<compile_context>
chip_gen: v7x
topology: tpu7x:2x2x1
jax: 0.10.0
libtpu: 0.0.40
codegen_flags: <defaults>
</compile_context>

<pallas_src>
import jax
import jax.numpy as jnp
from jax.experimental import pallas as pl
from jax.experimental.pallas import tpu as pltpu

Z_DIM = 64            # final linear produces 2*Z_DIM = 128 features (lane aligned)
IN_DIM = 512
HID = 1024
OUT_DIM = 2 * Z_DIM   # 128


def _round_up(n, m):
    return ((n + m - 1) // m) * m


def encoder_kernel(x_ref, w1_ref, b1_ref, w2_ref, b2_ref, w3_ref, b3_ref, out_ref):
    # x arrives as f32 straight from the caller; cast to bf16 in-kernel so the MXU
    # runs bf16 x bf16 -> f32 without a wrapper-side cast pass.
    x = x_ref[...].astype(jnp.bfloat16)                    # (tb, 512)

    # Hoist bias loads/broadcasts once (JAX does not CSE broadcast_in_dim).
    b1 = b1_ref[...]                                       # (1, 1024) f32
    b2 = b2_ref[...]                                       # (1, 1024) f32
    b3 = b3_ref[...]                                       # (1, 128)  f32

    # Dropout(0.5) layers are identity in eval mode.
    # Layer 1: Linear(512, 1024) + ReLU
    h1 = jnp.dot(x, w1_ref[...], preferred_element_type=jnp.float32)
    h1 = jnp.maximum(h1 + b1, 0.0).astype(jnp.bfloat16)

    # Layer 2: Linear(1024, 1024) + ReLU
    h2 = jnp.dot(h1, w2_ref[...], preferred_element_type=jnp.float32)
    h2 = jnp.maximum(h2 + b2, 0.0).astype(jnp.bfloat16)

    # Layer 3: Linear(1024, 2*z_dim)
    p = jnp.dot(h2, w3_ref[...], preferred_element_type=jnp.float32) + b3   # (tb, 128)

    # Lane-dense (tb, 128) output: mu in lanes [0, Z_DIM), softplus(sigma)+eps above.
    lane = jax.lax.broadcasted_iota(jnp.int32, p.shape, dimension=1)
    softplus_p = jnp.maximum(p, 0.0) + jnp.log1p(jnp.exp(-jnp.abs(p)))  # stable softplus
    out = jnp.where(lane < Z_DIM, p, softplus_p + jnp.float32(1e-7))
    out_ref[...] = out.astype(out_ref.dtype)


def prepare_params(params):
    """One-time parameter prep (do NOT call per forward): bf16 weights, f32 (1,N) biases."""
    w1, b1, w2, b2, w3, b3 = params
    return (
        w1.astype(jnp.bfloat16),
        b1.astype(jnp.float32).reshape(1, HID),
        w2.astype(jnp.bfloat16),
        b2.astype(jnp.float32).reshape(1, HID),
        w3.astype(jnp.bfloat16),
        b3.astype(jnp.float32).reshape(1, OUT_DIM),
    )


def _choose_tb(B):
    """Batch tile: multiple of 16 (bf16 packs 2 rows/sublane), >=2 tiles when the
    batch allows (keeps both v7x TensorCores busy under the 'parallel' axis), and
    limited pad-row waste for large batches."""
    B16 = _round_up(B, 16)
    if B16 < 128:
        return B16                                 # tiny batch: one full-batch tile
    if B16 <= 1024:
        return _round_up((B16 + 1) // 2, 16)       # exactly two tiles
    for tb in (512, 256, 128):                     # large batch: keep pad waste small
        if _round_up(B, tb) - B <= max(B // 8, tb // 4):
            return tb
    return 128


def _build_encoder_call(tb, b_pad, single_buffer_weights):
    # Grid-invariant operands (constant index_map) can be single-buffered to halve
    # their VMEM footprint; fall back to default double-buffering if unsupported.
    res_kw = (
        {"pipeline_mode": pl.Buffered(buffer_count=1)} if single_buffer_weights else {}
    )
    full = lambda i: (0, 0)
    grid_spec = pltpu.PrefetchScalarGridSpec(
        num_scalar_prefetch=0,
        grid=(b_pad // tb,),
        in_specs=[
            pl.BlockSpec((tb, IN_DIM), lambda i: (i, 0)),        # x tile (f32)
            pl.BlockSpec((IN_DIM, HID), full, **res_kw),         # W1 (bf16, resident)
            pl.BlockSpec((1, HID), full, **res_kw),              # b1 (f32)
            pl.BlockSpec((HID, HID), full, **res_kw),            # W2 (bf16)
            pl.BlockSpec((1, HID), full, **res_kw),              # b2 (f32)
            pl.BlockSpec((HID, OUT_DIM), full, **res_kw),        # W3 (bf16)
            pl.BlockSpec((1, OUT_DIM), full, **res_kw),          # b3 (f32)
        ],
        out_specs=pl.BlockSpec((tb, OUT_DIM), lambda i: (i, 0)),
    )
    return pl.pallas_call(
        encoder_kernel,
        out_shape=jax.ShapeDtypeStruct((b_pad, OUT_DIM), jnp.float32),
        grid_spec=grid_spec,
        compiler_params=pltpu.CompilerParams(
            dimension_semantics=("parallel",),        # shard batch tiles across TCs (v7x)
            vmem_limit_bytes=48 * 1024 * 1024,        # ample for tb<=512; safe on v7x (64 MiB)
        ),
    )


def encoder_forward(x, prepared_params, *, tb=None):
    """x: (B, ...) with prod(...) == 512.  prepared_params from prepare_params().
    Returns (mu, sigma) — the parameters of Independent(Normal(mu, sigma), 1)."""
    B = x.shape[0]
    x2 = x.reshape(B, -1).astype(jnp.float32)          # flatten, like x.view(B, -1)
    assert x2.shape[1] == IN_DIM

    if tb is None:
        tb = _choose_tb(B)
    tb = _round_up(min(tb, _round_up(B, 16)), 16)
    B_pad = _round_up(B, tb)
    if B_pad != B:
        x2 = jnp.pad(x2, ((0, B_pad - B), (0, 0)))

    args = (x2,) + tuple(prepared_params)
    try:
        out = _build_encoder_call(tb, B_pad, single_buffer_weights=True)(*args)
    except Exception:
        # pl.Buffered(1) not supported on this JAX version -> default double buffering.
        out = _build_encoder_call(tb, B_pad, single_buffer_weights=False)(*args)

    out = out[:B]                                      # drop batch padding
    mu = out[:, :Z_DIM]
    sigma = out[:, Z_DIM:]
    # NOTE: PyTorch returns Independent(Normal(mu, sigma), 1); JAX has no torch
    # distribution object, so we return the distribution parameters (mu, sigma).
    return mu, sigma


def init_params(key):
    k1, k2, k3, k4, k5, k6 = jax.random.split(key, 6)
    s1 = 1.0 / jnp.sqrt(IN_DIM)
    s2 = 1.0 / jnp.sqrt(HID)
    w1 = jax.random.uniform(k1, (IN_DIM, HID), jnp.float32, -s1, s1)
    b1 = jax.random.uniform(k2, (1, HID), jnp.float32, -s1, s1)
    w2 = jax.random.uniform(k3, (HID, HID), jnp.float32, -s2, s2)
    b2 = jax.random.uniform(k4, (1, HID), jnp.float32, -s2, s2)
    w3 = jax.random.uniform(k5, (HID, OUT_DIM), jnp.float32, -s2, s2)
    b3 = jax.random.uniform(k6, (1, OUT_DIM), jnp.float32, -s2, s2)
    return (w1, b1, w2, b2, w3, b3)


def reference_forward(x, params):
    """Pure-JAX reference with the same bf16 rounding as the kernel (f32 accumulation),
    so the comparison isolates kernel correctness."""
    w1, b1, w2, b2, w3, b3 = params
    x2 = x.reshape(x.shape[0], -1).astype(jnp.bfloat16).astype(jnp.float32)
    w1f = w1.astype(jnp.bfloat16).astype(jnp.float32)
    w2f = w2.astype(jnp.bfloat16).astype(jnp.float32)
    w3f = w3.astype(jnp.bfloat16).astype(jnp.float32)
    h1 = jnp.maximum(x2 @ w1f + b1, 0.0).astype(jnp.bfloat16).astype(jnp.float32)
    h2 = jnp.maximum(h1 @ w2f + b2, 0.0).astype(jnp.bfloat16).astype(jnp.float32)
    p = h2 @ w3f + b3
    return p[:, :Z_DIM], jax.nn.softplus(p[:, Z_DIM:]) + 1e-7


def reference_forward_f32(x, params):
    """Pure-f32 reference (detects bf16 precision drift vs the original model)."""
    w1, b1, w2, b2, w3, b3 = params
    x2 = x.reshape(x.shape[0], -1).astype(jnp.float32)
    h1 = jnp.maximum(x2 @ w1 + b1, 0.0)
    h2 = jnp.maximum(h1 @ w2 + b2, 0.0)
    p = h2 @ w3 + b3
    return p[:, :Z_DIM], jax.nn.softplus(p[:, Z_DIM:]) + 1e-7


if __name__ == "__main__":
    key = jax.random.PRNGKey(0)
    kx, kp, kx2 = jax.random.split(key, 3)

    params = init_params(kp)
    prepared = prepare_params(params)        # one-time bf16 weight cast (hoisted)
    jax.block_until_ready(prepared)

    # Small NCHW input whose flattened feature size is 512 (8, 2, 16, 16).
    x = jax.random.normal(kx, (8, 2, 16, 16), jnp.float32)
    mu, sigma = encoder_forward(x, prepared)
    jax.block_until_ready((mu, sigma))

    mu_ref, sigma_ref = reference_forward(x, params)
    assert mu.shape == (8, Z_DIM) and sigma.shape == (8, Z_DIM)
    assert jnp.allclose(mu, mu_ref, atol=1e-2, rtol=1e-2), \
        f"mu mismatch: max abs err {float(jnp.max(jnp.abs(mu - mu_ref)))}"
    assert jnp.allclose(sigma, sigma_ref, atol=1e-2, rtol=1e-2), \
        f"sigma mismatch: max abs err {float(jnp.max(jnp.abs(sigma - sigma_ref)))}"
    assert bool(jnp.all(sigma > 0))

    # Loose parity check against a pure-f32 forward (bf16 rounding drift budget).
    mu_f32, sigma_f32 = reference_forward_f32(x, params)
    assert jnp.allclose(mu, mu_f32, atol=1e-1, rtol=1e-1)
    assert jnp.allclose(sigma, sigma_f32, atol=1e-1, rtol=1e-1)

    # Larger batch exercising the 2-tile (both v7x TCs) path plus batch padding.
    xb = jax.random.normal(kx2, (200, 512), jnp.float32)
    mu_b, sigma_b = encoder_forward(xb, prepared)
    jax.block_until_ready((mu_b, sigma_b))
    mu_b_ref, sigma_b_ref = reference_forward(xb, params)
    assert mu_b.shape == (200, Z_DIM) and sigma_b.shape == (200, Z_DIM)
    assert jnp.allclose(mu_b, mu_b_ref, atol=1e-2, rtol=1e-2)
    assert jnp.allclose(sigma_b, sigma_b_ref, atol=1e-2, rtol=1e-2)

    print("KERNEL_OK")
</pallas_src>

<mosaic_0001>
module attributes {stable_mosaic.version = 11 : i64} {
  func.func @encoder_kernel(%arg0: i32, %arg1: memref<16x512xf32, #tpu.memory_space<vmem>>, %arg2: memref<512x1024xbf16, #tpu.memory_space<vmem>>, %arg3: memref<1x1024xf32, #tpu.memory_space<vmem>>, %arg4: memref<1024x1024xbf16, #tpu.memory_space<vmem>>, %arg5: memref<1x1024xf32, #tpu.memory_space<vmem>>, %arg6: memref<1024x128xbf16, #tpu.memory_space<vmem>>, %arg7: memref<1x128xf32, #tpu.memory_space<vmem>>, %arg8: memref<16x128xf32, #tpu.memory_space<vmem>>) attributes {dimension_semantics = [#tpu.dimension_semantics<parallel>], iteration_bounds = array<i64: 1>, scalar_prefetch = 0 : i64, scratch_operands = 0 : i64, tpu.core_type = #tpu.core_type<tc>, window_params = [{transform_indices = @transform_0, window_bounds = array<i64: 16, 512>}, {pipeline_mode = #tpu.pipeline_mode<synchronous>, transform_indices = @transform_1, window_bounds = array<i64: 512, 1024>}, {pipeline_mode = #tpu.pipeline_mode<synchronous>, transform_indices = @transform_2, window_bounds = array<i64: 1, 1024>}, {pipeline_mode = #tpu.pipeline_mode<synchronous>, transform_indices = @transform_3, window_bounds = array<i64: 1024, 1024>}, {pipeline_mode = #tpu.pipeline_mode<synchronous>, transform_indices = @transform_4, window_bounds = array<i64: 1, 1024>}, {pipeline_mode = #tpu.pipeline_mode<synchronous>, transform_indices = @transform_5, window_bounds = array<i64: 1024, 128>}, {pipeline_mode = #tpu.pipeline_mode<synchronous>, transform_indices = @transform_6, window_bounds = array<i64: 1, 128>}, {transform_indices = @transform_7, window_bounds = array<i64: 16, 128>}]} {
    %c0 = arith.constant 0 : index
    %c0_0 = arith.constant 0 : index
    %0 = vector.load %arg1[%c0, %c0_0] : memref<16x512xf32, #tpu.memory_space<vmem>>, vector<16x512xf32>
    %1 = arith.truncf %0 : vector<16x512xf32> to vector<16x512xbf16>
    %c0_1 = arith.constant 0 : index
    %c0_2 = arith.constant 0 : index
    %2 = vector.load %arg3[%c0_1, %c0_2] : memref<1x1024xf32, #tpu.memory_space<vmem>>, vector<1x1024xf32>
    %c0_3 = arith.constant 0 : index
    %c0_4 = arith.constant 0 : index
    %3 = vector.load %arg5[%c0_3, %c0_4] : memref<1x1024xf32, #tpu.memory_space<vmem>>, vector<1x1024xf32>
    %c0_5 = arith.constant 0 : index
    %c0_6 = arith.constant 0 : index
    %4 = vector.load %arg7[%c0_5, %c0_6] : memref<1x128xf32, #tpu.memory_space<vmem>>, vector<1x128xf32>
    %c0_7 = arith.constant 0 : index
    %c0_8 = arith.constant 0 : index
    %5 = vector.load %arg2[%c0_7, %c0_8] : memref<512x1024xbf16, #tpu.memory_space<vmem>>, vector<512x1024xbf16>
    %cst = arith.constant dense<0.000000e+00> : vector<16x1024xf32>
    %6 = tpu.matmul %1, %5, %cst {dimension_numbers = #tpu.dot_dimension_numbers<[1], [0], [0], [1], [0, 0, 1, 1], [], []>} : vector<16x512xbf16>, vector<512x1024xbf16>, vector<16x1024xf32> -> vector<16x1024xf32>
    %7 = vector.broadcast %2 : vector<1x1024xf32> to vector<16x1024xf32>
    %8 = arith.addf %6, %7 : vector<16x1024xf32>
    %cst_9 = arith.constant 0.000000e+00 : f32
    %9 = vector.broadcast %cst_9 : f32 to vector<16x1024xf32>
    %10 = arith.maximumf %8, %9 : vector<16x1024xf32>
    %11 = arith.truncf %10 : vector<16x1024xf32> to vector<16x1024xbf16>
    %c0_10 = arith.constant 0 : index
    %c0_11 = arith.constant 0 : index
    %12 = vector.load %arg4[%c0_10, %c0_11] : memref<1024x1024xbf16, #tpu.memory_space<vmem>>, vector<1024x1024xbf16>
    %cst_12 = arith.constant dense<0.000000e+00> : vector<16x1024xf32>
    %13 = tpu.matmul %11, %12, %cst_12 {dimension_numbers = #tpu.dot_dimension_numbers<[1], [0], [0], [1], [0, 0, 1, 1], [], []>} : vector<16x1024xbf16>, vector<1024x1024xbf16>, vector<16x1024xf32> -> vector<16x1024xf32>
    %14 = vector.broadcast %3 : vector<1x1024xf32> to vector<16x1024xf32>
    %15 = arith.addf %13, %14 : vector<16x1024xf32>
    %cst_13 = arith.constant 0.000000e+00 : f32
    %16 = vector.broadcast %cst_13 : f32 to vector<16x1024xf32>
    %17 = arith.maximumf %15, %16 : vector<16x1024xf32>
    %18 = arith.truncf %17 : vector<16x1024xf32> to vector<16x1024xbf16>
    %c0_14 = arith.constant 0 : index
    %c0_15 = arith.constant 0 : index
    %19 = vector.load %arg6[%c0_14, %c0_15] : memref<1024x128xbf16, #tpu.memory_space<vmem>>, vector<1024x128xbf16>
    %cst_16 = arith.constant dense<0.000000e+00> : vector<16x128xf32>
    %20 = tpu.matmul %18, %19, %cst_16 {dimension_numbers = #tpu.dot_dimension_numbers<[1], [0], [0], [1], [0, 0, 1, 1], [], []>} : vector<16x1024xbf16>, vector<1024x128xbf16>, vector<16x128xf32> -> vector<16x128xf32>
    %21 = vector.broadcast %4 : vector<1x128xf32> to vector<16x128xf32>
    %22 = arith.addf %20, %21 : vector<16x128xf32>
    %23 = tpu.iota {dimensions = array<i32: 1>} : vector<16x128xi32>
    %cst_17 = arith.constant 0.000000e+00 : f32
    %24 = vector.broadcast %cst_17 : f32 to vector<16x128xf32>
    %25 = arith.maximumf %22, %24 : vector<16x128xf32>
    %26 = math.absf %22 : vector<16x128xf32>
    %cst_18 = arith.constant 0.000000e+00 : f32
    %27 = vector.broadcast %cst_18 : f32 to vector<16x128xf32>
    %28 = arith.subf %27, %26 : vector<16x128xf32>
    %29 = math.exp %28 : vector<16x128xf32>
    %30 = math.log1p %29 : vector<16x128xf32>
    %31 = arith.addf %25, %30 : vector<16x128xf32>
    %c64_i32 = arith.constant 64 : i32
    %32 = vector.broadcast %c64_i32 : i32 to vector<16x128xi32>
    %33 = arith.cmpi slt, %23, %32 : vector<16x128xi32>
    %cst_19 = arith.constant 1.000000e-07 : f32
    %34 = vector.broadcast %cst_19 : f32 to vector<16x128xf32>
    %35 = arith.addf %31, %34 : vector<16x128xf32>
    %36 = arith.select %33, %22, %35 : vector<16x128xi1>, vector<16x128xf32>
    %c0_20 = arith.constant 0 : index
    %c0_21 = arith.constant 0 : index
    %37 = vector.load %arg8[%c0_20, %c0_21] : memref<16x128xf32, #tpu.memory_space<vmem>>, vector<16x128xf32>
    tpu.vector_store %arg8[%c0_20, %c0_21], %36 {strides = array<i32>} : memref<16x128xf32, #tpu.memory_space<vmem>>, vector<16x128xf32>,
    return
  }
  func.func @transform_0(%arg0: i32) -> (i32, i32) {
    %c0_i32 = arith.constant 0 : i32
    %c0_i32_0 = arith.constant 0 : i32
    return %arg0, %c0_i32 : i32, i32
  }
  func.func @transform_1(%arg0: i32) -> (i32, i32) {
    %c0_i32 = arith.constant 0 : i32
    %c0_i32_0 = arith.constant 0 : i32
    %c0_i32_1 = arith.constant 0 : i32
    return %c0_i32, %c0_i32_0 : i32, i32
  }
  func.func @transform_2(%arg0: i32) -> (i32, i32) {
    %c0_i32 = arith.constant 0 : i32
    %c0_i32_0 = arith.constant 0 : i32
    %c0_i32_1 = arith.constant 0 : i32
    return %c0_i32, %c0_i32_0 : i32, i32
  }
  func.func @transform_3(%arg0: i32) -> (i32, i32) {
    %c0_i32 = arith.constant 0 : i32
    %c0_i32_0 = arith.constant 0 : i32
    %c0_i32_1 = arith.constant 0 : i32
    return %c0_i32, %c0_i32_0 : i32, i32
  }
  func.func @transform_4(%arg0: i32) -> (i32, i32) {
    %c0_i32 = arith.constant 0 : i32
    %c0_i32_0 = arith.constant 0 : i32
    %c0_i32_1 = arith.constant 0 : i32
    return %c0_i32, %c0_i32_0 : i32, i32
  }
  func.func @transform_5(%arg0: i32) -> (i32, i32) {
    %c0_i32 = arith.constant 0 : i32
    %c0_i32_0 = arith.constant 0 : i32
    %c0_i32_1 = arith.constant 0 : i32
    return %c0_i32, %c0_i32_0 : i32, i32
  }
  func.func @transform_6(%arg0: i32) -> (i32, i32) {
    %c0_i32 = arith.constant 0 : i32
    %c0_i32_0 = arith.constant 0 : i32
    %c0_i32_1 = arith.constant 0 : i32
    return %c0_i32, %c0_i32_0 : i32, i32
  }
  func.func @transform_7(%arg0: i32) -> (i32, i32) {
    %c0_i32 = arith.constant 0 : i32
    %c0_i32_0 = arith.constant 0 : i32
    return %arg0, %c0_i32 : i32, i32
  }
}

module attributes {stable_mosaic.version = 11 : i64} {
  func.func @encoder_kernel(%arg0: i32, %arg1: memref<16x512xf32, #tpu.memory_space<vmem>>, %arg2: memref<512x1024xbf16, #tpu.memory_space<vmem>>, %arg3: memref<1x1024xf32, #tpu.memory_space<vmem>>, %arg4: memref<1024x1024xbf16, #tpu.memory_space<vmem>>, %arg5: memref<1x1024xf32, #tpu.memory_space<vmem>>, %arg6: memref<1024x128xbf16, #tpu.memory_space<vmem>>, %arg7: memref<1x128xf32, #tpu.memory_space<vmem>>, %arg8: memref<16x128xf32, #tpu.memory_space<vmem>>) attributes {dimension_semantics = [#tpu.dimension_semantics<parallel>], iteration_bounds = array<i64: 1>, scalar_prefetch = 0 : i64, scratch_operands = 0 : i64, tpu.core_type = #tpu.core_type<tc>, window_params = [{transform_indices = @transform_0, window_bounds = array<i64: 16, 512>}, {pipeline_mode = #tpu.pipeline_mode<synchronous>, transform_indices = @transform_1, window_bounds = array<i64: 512, 1024>}, {pipeline_mode = #tpu.pipeline_mode<synchronous>, transform_indices = @transform_2, window_bounds = array<i64: 1, 1024>}, {pipeline_mode = #tpu.pipeline_mode<synchronous>, transform_indices = @transform_3, window_bounds = array<i64: 1024, 1024>}, {pipeline_mode = #tpu.pipeline_mode<synchronous>, transform_indices = @transform_4, window_bounds = array<i64: 1, 1024>}, {pipeline_mode = #tpu.pipeline_mode<synchronous>, transform_indices = @transform_5, window_bounds = array<i64: 1024, 128>}, {pipeline_mode = #tpu.pipeline_mode<synchronous>, transform_indices = @transform_6, window_bounds = array<i64: 1, 128>}, {transform_indices = @transform_7, window_bounds = array<i64: 16, 128>}]} {
    %c0 = arith.constant 0 : index
    %c0_0 = arith.constant 0 : index
    %0 = vector.load %arg1[%c0, %c0_0] : memref<16x512xf32, #tpu.memory_space<vmem>>, vector<16x512xf32>
    %1 = arith.truncf %0 : vector<16x512xf32> to vector<16x512xbf16>
    %c0_1 = arith.constant 0 : index
    %c0_2 = arith.constant 0 : index
    %2 = vector.load %arg3[%c0_1, %c0_2] : memref<1x1024xf32, #tpu.memory_space<vmem>>, vector<1x1024xf32>
    %c0_3 = arith.constant 0 : index
    %c0_4 = arith.constant 0 : index
    %3 = vector.load %arg5[%c0_3, %c0_4] : memref<1x1024xf32, #tpu.memory_space<vmem>>, vector<1x1024xf32>
    %c0_5 = arith.constant 0 : index
    %c0_6 = arith.constant 0 : index
    %4 = vector.load %arg7[%c0_5, %c0_6] : memref<1x128xf32, #tpu.memory_space<vmem>>, vector<1x128xf32>
    %c0_7 = arith.constant 0 : index
    %c0_8 = arith.constant 0 : index
    %5 = vector.load %arg2[%c0_7, %c0_8] : memref<512x1024xbf16, #tpu.memory_space<vmem>>, vector<512x1024xbf16>
    %cst = arith.constant dense<0.000000e+00> : vector<16x1024xf32>
    %6 = tpu.matmul %1, %5, %cst {dimension_numbers = #tpu.dot_dimension_numbers<[1], [0], [0], [1], [0, 0, 1, 1], [], []>} : vector<16x512xbf16>, vector<512x1024xbf16>, vector<16x1024xf32> -> vector<16x1024xf32>
    %7 = vector.broadcast %2 : vector<1x1024xf32> to vector<16x1024xf32>
    %8 = arith.addf %6, %7 : vector<16x1024xf32>
    %cst_9 = arith.constant 0.000000e+00 : f32
    %9 = vector.broadcast %cst_9 : f32 to vector<16x1024xf32>
    %10 = arith.maximumf %8, %9 : vector<16x1024xf32>
    %11 = arith.truncf %10 : vector<16x1024xf32> to vector<16x1024xbf16>
    %c0_10 = arith.constant 0 : index
    %c0_11 = arith.constant 0 : index
    %12 = vector.load %arg4[%c0_10, %c0_11] : memref<1024x1024xbf16, #tpu.memory_space<vmem>>, vector<1024x1024xbf16>
    %cst_12 = arith.constant dense<0.000000e+00> : vector<16x1024xf32>
    %13 = tpu.matmul %11, %12, %cst_12 {dimension_numbers = #tpu.dot_dimension_numbers<[1], [0], [0], [1], [0, 0, 1, 1], [], []>} : vector<16x1024xbf16>, vector<1024x1024xbf16>, vector<16x1024xf32> -> vector<16x1024xf32>
    %14 = vector.broadcast %3 : vector<1x1024xf32> to vector<16x1024xf32>
    %15 = arith.addf %13, %14 : vector<16x1024xf32>
    %cst_13 = arith.constant 0.000000e+00 : f32
    %16 = vector.broadcast %cst_13 : f32 to vector<16x1024xf32>
    %17 = arith.maximumf %15, %16 : vector<16x1024xf32>
    %18 = arith.truncf %17 : vector<16x1024xf32> to vector<16x1024xbf16>
    %c0_14 = arith.constant 0 : index
    %c0_15 = arith.constant 0 : index
    %19 = vector.load %arg6[%c0_14, %c0_15] : memref<1024x128xbf16, #tpu.memory_space<vmem>>, vector<1024x128xbf16>
    %cst_16 = arith.constant dense<0.000000e+00> : vector<16x128xf32>
    %20 = tpu.matmul %18, %19, %cst_16 {dimension_numbers = #tpu.dot_dimension_numbers<[1], [0], [0], [1], [0, 0, 1, 1], [], []>} : vector<16x1024xbf16>, vector<1024x128xbf16>, vector<16x128xf32> -> vector<16x128xf32>
    %21 = vector.broadcast %4 : vector<1x128xf32> to vector<16x128xf32>
    %22 = arith.addf %20, %21 : vector<16x128xf32>
    %23 = tpu.iota {dimensions = array<i32: 1>} : vector<16x128xi32>
    %cst_17 = arith.constant 0.000000e+00 : f32
    %24 = vector.broadcast %cst_17 : f32 to vector<16x128xf32>
    %25 = arith.maximumf %22, %24 : vector<16x128xf32>
    %26 = math.absf %22 : vector<16x128xf32>
    %cst_18 = arith.constant 0.000000e+00 : f32
    %27 = vector.broadcast %cst_18 : f32 to vector<16x128xf32>
    %28 = arith.subf %27, %26 : vector<16x128xf32>
    %29 = math.exp %28 : vector<16x128xf32>
    %30 = math.log1p %29 : vector<16x128xf32>
    %31 = arith.addf %25, %30 : vector<16x128xf32>
    %c64_i32 = arith.constant 64 : i32
    %32 = vector.broadcast %c64_i32 : i32 to vector<16x128xi32>
    %33 = arith.cmpi slt, %23, %32 : vector<16x128xi32>
    %cst_19 = arith.constant 1.000000e-07 : f32
    %34 = vector.broadcast %cst_19 : f32 to vector<16x128xf32>
    %35 = arith.addf %31, %34 : vector<16x128xf32>
    %36 = arith.select %33, %22, %35 : vector<16x128xi1>, vector<16x128xf32>
    %c0_20 = arith.constant 0 : index
    %c0_21 = arith.constant 0 : index
    %37 = vector.load %arg8[%c0_20, %c0_21] : memref<16x128xf32, #tpu.memory_space<vmem>>, vector<16x128xf32>
    tpu.vector_store %arg8[%c0_20, %c0_21], %36 {strides = array<i32>} : memref<16x128xf32, #tpu.memory_space<vmem>>, vector<16x128xf32>,
    return
  }
  func.func @transform_0(%arg0: i32) -> (i32, i32) {
    %c0_i32 = arith.constant 0 : i32
    %c0_i32_0 = arith.constant 0 : i32
    return %arg0, %c0_i32 : i32, i32
  }
  func.func @transform_1(%arg0: i32) -> (i32, i32) {
    %c0_i32 = arith.constant 0 : i32
    %c0_i32_0 = arith.constant 0 : i32
    %c0_i32_1 = arith.constant 0 : i32
    return %c0_i32, %c0_i32_0 : i32, i32
  }
  func.func @transform_2(%arg0: i32) -> (i32, i32) {
    %c0_i32 = arith.constant 0 : i32
    %c0_i32_0 = arith.constant 0 : i32
    %c0_i32_1 = arith.constant 0 : i32
    return %c0_i32, %c0_i32_0 : i32, i32
  }
  func.func @transform_3(%arg0: i32) -> (i32, i32) {
    %c0_i32 = arith.constant 0 : i32
    %c0_i32_0 = arith.constant 0 : i32
    %c0_i32_1 = arith.constant 0 : i32
    return %c0_i32, %c0_i32_0 : i32, i32
  }
  func.func @transform_4(%arg0: i32) -> (i32, i32) {
    %c0_i32 = arith.constant 0 : i32
    %c0_i32_0 = arith.constant 0 : i32
    %c0_i32_1 = arith.constant 0 : i32
    return %c0_i32, %c0_i32_0 : i32, i32
  }
  func.func @transform_5(%arg0: i32) -> (i32, i32) {
    %c0_i32 = arith.constant 0 : i32
    %c0_i32_0 = arith.constant 0 : i32
    %c0_i32_1 = arith.constant 0 : i32
    return %c0_i32, %c0_i32_0 : i32, i32
  }
  func.func @transform_6(%arg0: i32) -> (i32, i32) {
    %c0_i32 = arith.constant 0 : i32
    %c0_i32_0 = arith.constant 0 : i32
    %c0_i32_1 = arith.constant 0 : i32
    return %c0_i32, %c0_i32_0 : i32, i32
  }
  func.func @transform_7(%arg0: i32) -> (i32, i32) {
    %c0_i32 = arith.constant 0 : i32
    %c0_i32_0 = arith.constant 0 : i32
    return %arg0, %c0_i32 : i32, i32
  }
}

</mosaic_0001>

<llo_original>
// kernel: tpu_custom_call.1
$region0: #{tpu_custom_call.1}
  #allocation0 [shape = 'u32[]', space=smem, size = 0x4, offset = 0x4, fixed_abs, tag = 'smem constant byte address 0x4 - core index']
  #allocation1 [shape = 'u32[144,128]{1,0:T(1,128)}', space=vmem, size = 0x12000, scoped, tag = 'internal scratch']
  %s0 = inlined_call_operand.hbm [shape: f32[16,512], index: 0, kind: input, shape index: {}]
  %s1 = inlined_call_operand.hbm [shape: bf16[512,1024], index: 1, kind: input, shape index: {}]
  %s2 = inlined_call_operand.hbm [shape: f32[1,1024], index: 2, kind: input, shape index: {}]
  %s3 = inlined_call_operand.hbm [shape: bf16[1024,1024], index: 3, kind: input, shape index: {}]
  %s4 = inlined_call_operand.hbm [shape: f32[1,1024], index: 4, kind: input, shape index: {}]
  %s5 = inlined_call_operand.hbm [shape: bf16[1024,128], index: 5, kind: input, shape index: {}]
  %s6 = inlined_call_operand.hbm [shape: f32[1,128], index: 6, kind: input, shape index: {}]
  %s7 = inlined_call_operand.hbm [shape: f32[16,128], index: 7, kind: output, shape index: {}]
  %s8 = sld [smem:[#allocation0]]
  $region66: #{tpu_custom_call.1} parent=0
    _
  %s10 = ssub.s32 1, %s8
  %s11 = scalar_select 0, %s10, %s8
  $region1: #{tpu_custom_call.1} parent=0
    #allocation2 [shape = 'u8[32768]{0}', space=vmem, size = 0x8000, scoped, tag = 'input window, operand 0, single buffered']
    #allocation3 [shape = 's32[1]{0}', space=sflag, size = 0x4, scoped, tag = 'scoped memory for tpu_custom_call.1']
    #allocation4 [shape = 's32[1]{0}', space=sflag, size = 0x4, scoped, tag = 'scoped memory for tpu_custom_call.1']
    #allocation5 [shape = 'u8[1048576]{0}', space=vmem, size = 0x100000, scoped, tag = 'input window, operand 1, single buffered']
    #allocation6 [shape = 's32[1]{0}', space=sflag, size = 0x4, scoped, tag = 'scoped memory for tpu_custom_call.1']
    #allocation7 [shape = 'u8[4096]{0}', space=vmem, size = 0x1000, scoped, tag = 'input window, operand 2, single buffered']
    #allocation8 [shape = 'u8[2097152]{0}', space=vmem, size = 0x200000, scoped, tag = 'input window, operand 3, single buffered']
    #allocation9 [shape = 's32[1]{0}', space=sflag, size = 0x4, scoped, tag = 'scoped memory for tpu_custom_call.1']
    #allocation10 [shape = 'u8[4096]{0}', space=vmem, size = 0x1000, scoped, tag = 'input window, operand 4, single buffered']
    #allocation11 [shape = 'u8[262144]{0}', space=vmem, size = 0x40000, scoped, tag = 'input window, operand 5, single buffered']
    #allocation12 [shape = 's32[1]{0}', space=sflag, size = 0x4, scoped, tag = 'scoped memory for tpu_custom_call.1']
    #allocation13 [shape = 'u8[512]{0}', space=vmem, size = 0x400, scoped, tag = 'input window, operand 6, single buffered']
    #allocation14 [shape = 'u8[8192]{0}', space=vmem, size = 0x2000, scoped, tag = 'output window, operand 0, single buffered']
    %12 = vsyncpa [#allocation3], 0
    %13 = vsyncpa [#allocation6], 0
    %14 = vsyncpa [#allocation9], 0
    %15 = vsyncpa [#allocation12], 0
    %16 = vsyncpa [#allocation4], 0
    // Predicated region
    $region2: #{tpu_custom_call.1} parent=1 // pred_check
      _
    $region3: #{tpu_custom_call.1} parent=1 // pred_check_branch
      %18 = sbr.rel (0) target = $region5
    $region4: #{tpu_custom_call.1} parent=1 // pred_region
      %s20 = ssub.s32 1024, 1024
      %21 = vsyncadd [#allocation3], %s20
      %s22 = sshll.u32 [#allocation2], 4
      %s23 = int_to_ptr.vmem [resolvable:$true] %s22
      %28 = dma.hbm_to_vmem [thread:$0]  %s0, 1024, %s23, [#allocation3], 512, 512, 32
    $region5: #{tpu_custom_call.1} parent=1 // pred_fallthru
      _
    // Predicated region
    $region6: #{tpu_custom_call.1} parent=1 // pred_check
      _
    $region7: #{tpu_custom_call.1} parent=1 // pred_check_branch
      %30 = sbr.rel (0) target = $region9
    $region8: #{tpu_custom_call.1} parent=1 // pred_region
      %s32 = ssub.s32 32768, 32768
      %33 = vsyncadd [#allocation6], %s32
      %s34 = sshll.u32 [#allocation5], 4
      %s35 = int_to_ptr.vmem [resolvable:$true] %s34
      %40 = dma.hbm_to_vmem [thread:$0]  %s1, 32768, %s35, [#allocation6], 512, 512, 32
    $region9: #{tpu_custom_call.1} parent=1 // pred_fallthru
      _
    // Predicated region
    $region10: #{tpu_custom_call.1} parent=1 // pred_check
      _
    $region11: #{tpu_custom_call.1} parent=1 // pred_check_branch
      %42 = sbr.rel (0) target = $region13
    $region12: #{tpu_custom_call.1} parent=1 // pred_region
      %s44 = ssub.s32 128, 128
      %45 = vsyncadd [#allocation6], %s44
      %s47 = sshll.u32 [#allocation7], 4
      %s48 = int_to_ptr.vmem [resolvable:$true] %s47
      %50 = dma.hbm_to_vmem [thread:$0]  %s2, 128, %s48, [#allocation6]
    $region13: #{tpu_custom_call.1} parent=1 // pred_fallthru
      _
    // Predicated region
    $region14: #{tpu_custom_call.1} parent=1 // pred_check
      _
    $region15: #{tpu_custom_call.1} parent=1 // pred_check_branch
      %52 = sbr.rel (0) target = $region17
    $region16: #{tpu_custom_call.1} parent=1 // pred_region
      %s54 = ssub.s32 65536, 65536
      %55 = vsyncadd [#allocation9], %s54
      %s56 = sshll.u32 [#allocation8], 4
      %s57 = int_to_ptr.vmem [resolvable:$true] %s56
      %62 = dma.hbm_to_vmem [thread:$0]  %s3, 65536, %s57, [#allocation9], 512, 512, 32
    $region17: #{tpu_custom_call.1} parent=1 // pred_fallthru
      _
    // Predicated region
    $region18: #{tpu_custom_call.1} parent=1 // pred_check
      _
    $region19: #{tpu_custom_call.1} parent=1 // pred_check_branch
      %64 = sbr.rel (0) target = $region21
    $region20: #{tpu_custom_call.1} parent=1 // pred_region
      %s66 = ssub.s32 128, 128
      %67 = vsyncadd [#allocation9], %s66
      %s69 = sshll.u32 [#allocation10], 4
      %s70 = int_to_ptr.vmem [resolvable:$true] %s69
      %72 = dma.hbm_to_vmem [thread:$0]  %s4, 128, %s70, [#allocation9]
    $region21: #{tpu_custom_call.1} parent=1 // pred_fallthru
      _
    // Predicated region
    $region22: #{tpu_custom_call.1} parent=1 // pred_check
      _
    $region23: #{tpu_custom_call.1} parent=1 // pred_check_branch
      %74 = sbr.rel (0) target = $region25
    $region24: #{tpu_custom_call.1} parent=1 // pred_region
      %s76 = ssub.s32 8192, 8192
      %77 = vsyncadd [#allocation12], %s76
      %s78 = sshll.u32 [#allocation11], 4
      %s79 = int_to_ptr.vmem [resolvable:$true] %s78
      %84 = dma.hbm_to_vmem [thread:$0]  %s5, 8192, %s79, [#allocation12], 64, 64, 4
    $region25: #{tpu_custom_call.1} parent=1 // pred_fallthru
      _
    // Predicated region
    $region26: #{tpu_custom_call.1} parent=1 // pred_check
      _
    $region27: #{tpu_custom_call.1} parent=1 // pred_check_branch
      %86 = sbr.rel (0) target = $region29
    $region28: #{tpu_custom_call.1} parent=1 // pred_region
      %s88 = ssub.s32 16, 16
      %89 = vsyncadd [#allocation12], %s88
      %s91 = sshll.u32 [#allocation13], 4
      %s92 = int_to_ptr.vmem [resolvable:$true] %s91
      %94 = dma.hbm_to_vmem [thread:$0]  %s6, 16, %s92, [#allocation12]
    $region29: #{tpu_custom_call.1} parent=1 // pred_fallthru
      _
    // Predicated region
    $region30: #{tpu_custom_call.1} parent=1 // pred_check
      _
    $region31: #{tpu_custom_call.1} parent=1 // pred_check_branch
      %96 = sbr.rel (0) target = $region33
    $region32: #{tpu_custom_call.1} parent=1 // pred_region
      %97 = dma.done [#allocation3], 1024
    $region33: #{tpu_custom_call.1} parent=1 // pred_fallthru
      _
    // Predicated region
    $region34: #{tpu_custom_call.1} parent=1 // pred_check
      _
    $region35: #{tpu_custom_call.1} parent=1 // pred_check_branch
      %99 = sbr.rel (0) target = $region37
    $region36: #{tpu_custom_call.1} parent=1 // pred_region
      %100 = dma.done [#allocation6], 32768
    $region37: #{tpu_custom_call.1} parent=1 // pred_fallthru
      _
    // Predicated region
    $region38: #{tpu_custom_call.1} parent=1 // pred_check
      _
    $region39: #{tpu_custom_call.1} parent=1 // pred_check_branch
      %102 = sbr.rel (0) target = $region41
    $region40: #{tpu_custom_call.1} parent=1 // pred_region
      %103 = dma.done [#allocation6], 128
    $region41: #{tpu_custom_call.1} parent=1 // pred_fallthru
      _
    // Predicated region
    $region42: #{tpu_custom_call.1} parent=1 // pred_check
      _
    $region43: #{tpu_custom_call.1} parent=1 // pred_check_branch
      %105 = sbr.rel (0) target = $region45
    $region44: #{tpu_custom_call.1} parent=1 // pred_region
      %106 = dma.done [#allocation9], 65536
    $region45: #{tpu_custom_call.1} parent=1 // pred_fallthru
      _
    // Predicated region
    $region46: #{tpu_custom_call.1} parent=1 // pred_check
      _
    $region47: #{tpu_custom_call.1} parent=1 // pred_check_branch
      %108 = sbr.rel (0) target = $region49
    $region48: #{tpu_custom_call.1} parent=1 // pred_region
      %109 = dma.done [#allocation9], 128
    $region49: #{tpu_custom_call.1} parent=1 // pred_fallthru
      _
    // Predicated region
    $region50: #{tpu_custom_call.1} parent=1 // pred_check
      _
    $region51: #{tpu_custom_call.1} parent=1 // pred_check_branch
      %111 = sbr.rel (0) target = $region53
    $region52: #{tpu_custom_call.1} parent=1 // pred_region
      %112 = dma.done [#allocation12], 8192
    $region53: #{tpu_custom_call.1} parent=1 // pred_fallthru
      _
    // Predicated region
    $region54: #{tpu_custom_call.1} parent=1 // pred_check
      _
    $region55: #{tpu_custom_call.1} parent=1 // pred_check_branch
      %114 = sbr.rel (0) target = $region57
    $region56: #{tpu_custom_call.1} parent=1 // pred_region
      %115 = dma.done [#allocation12], 16
    $region57: #{tpu_custom_call.1} parent=1 // pred_fallthru
      _
    %v117 = vld [vmem:[#allocation2] sm:$0xff]
    %v118 = vld [vmem:[#allocation2 + $0x8] sm:$0xff]
    %v119 = vld [vmem:[#allocation2 + $0x10] sm:$0xff]
    %v120 = vld [vmem:[#allocation2 + $0x18] sm:$0xff]
    %v121 = vld [vmem:[#allocation2 + $0x20] sm:$0xff]
    %v122 = vld [vmem:[#allocation2 + $0x28] sm:$0xff]
    %v123 = vld [vmem:[#allocation2 + $0x30] sm:$0xff]
    %v124 = vld [vmem:[#allocation2 + $0x38] sm:$0xff]
    %v125 = vpack.c.bf16 %v121, %v117
    %v126 = vpack.c.bf16 %v122, %v118
    %v127 = vpack.c.bf16 %v123, %v119
    %v128 = vpack.c.bf16 %v124, %v120
    %v129 = vld [vmem:[#allocation7] sm:$0xff]
    %v130 = vld [vmem:[#allocation10] sm:$0xff]
    %v131 = vld [vmem:[#allocation13] sm:$0x1]
    %v132 = vld [vmem:[#allocation5] sm:$0xff]
    %v133 = vld [vmem:[#allocation5 + $0x8] sm:$0xff]
    %v134 = vld [vmem:[#allocation5 + $0x10] sm:$0xff]
    %v135 = vld [vmem:[#allocation5 + $0x18] sm:$0xff]
    %v136 = vld [vmem:[#allocation5 + $0x20] sm:$0xff]
    %v137 = vld [vmem:[#allocation5 + $0x28] sm:$0xff]
    %v138 = vld [vmem:[#allocation5 + $0x30] sm:$0xff]
    %v139 = vld [vmem:[#allocation5 + $0x38] sm:$0xff]
    %v140 = vld [vmem:[#allocation5 + $0x40] sm:$0xff]
    %v141 = vld [vmem:[#allocation5 + $0x48] sm:$0xff]
    %v142 = vld [vmem:[#allocation5 + $0x50] sm:$0xff]
    %v143 = vld [vmem:[#allocation5 + $0x58] sm:$0xff]
    %v144 = vld [vmem:[#allocation5 + $0x60] sm:$0xff]
    %v145 = vld [vmem:[#allocation5 + $0x68] sm:$0xff]
    %v146 = vld [vmem:[#allocation5 + $0x70] sm:$0xff]
    %v147 = vld [vmem:[#allocation5 + $0x78] sm:$0xff]
    %v148 = vld [vmem:[#allocation5 + $0x80] sm:$0xff]
    %v149 = vld [vmem:[#allocation5 + $0x88] sm:$0xff]
    %v150 = vld [vmem:[#allocation5 + $0x90] sm:$0xff]
    %v151 = vld [vmem:[#allocation5 + $0x98] sm:$0xff]
    %v152 = vld [vmem:[#allocation5 + $0xa0] sm:$0xff]
    %v153 = vld [vmem:[#allocation5 + $0xa8] sm:$0xff]
    %v154 = vld [vmem:[#allocation5 + $0xb0] sm:$0xff]
    %v155 = vld [vmem:[#allocation5 + $0xb8] sm:$0xff]
    %v156 = vld [vmem:[#allocation5 + $0xc0] sm:$0xff]
    %v157 = vld [vmem:[#allocation5 + $0xc8] sm:$0xff]
    %v158 = vld [vmem:[#allocation5 + $0xd0] sm:$0xff]
    %v159 = vld [vmem:[#allocation5 + $0xd8] sm:$0xff]
    %v160 = vld [vmem:[#allocation5 + $0xe0] sm:$0xff]
    %v161 = vld [vmem:[#allocation5 + $0xe8] sm:$0xff]
    %v162 = vld [vmem:[#allocation5 + $0xf0] sm:$0xff]
    %v163 = vld [vmem:[#allocation5 + $0xf8] sm:$0xff]
    %v164 = vld [vmem:[#allocation5 + $0x100] sm:$0xff]
    %v165 = vld [vmem:[#allocation5 + $0x108] sm:$0xff]
    %v166 = vld [vmem:[#allocation5 + $0x110] sm:$0xff]
    %v167 = vld [vmem:[#allocation5 + $0x118] sm:$0xff]
    %v168 = vld [vmem:[#allocation5 + $0x120] sm:$0xff]
    %v169 = vld [vmem:[#allocation5 + $0x128] sm:$0xff]
    %v170 = vld [vmem:[#allocation5 + $0x130] sm:$0xff]
    %v171 = vld [vmem:[#allocation5 + $0x138] sm:$0xff]
    %v172 = vld [vmem:[#allocation5 + $0x140] sm:$0xff]
    %v173 = vld [vmem:[#allocation5 + $0x148] sm:$0xff]
    %v174 = vld [vmem:[#allocation5 + $0x150] sm:$0xff]
    %v175 = vld [vmem:[#allocation5 + $0x158] sm:$0xff]
    %v176 = vld [vmem:[#allocation5 + $0x160] sm:$0xff]
    %v177 = vld [vmem:[#allocation5 + $0x168] sm:$0xff]
    %v178 = vld [vmem:[#allocation5 + $0x170] sm:$0xff]
    %v179 = vld [vmem:[#allocation5 + $0x178] sm:$0xff]
    %v180 = vld [vmem:[#allocation5 + $0x180] sm:$0xff]
    %v181 = vld [vmem:[#allocation5 + $0x188] sm:$0xff]
    %v182 = vld [vmem:[#allocation5 + $0x190] sm:$0xff]
    %v183 = vld [vmem:[#allocation5 + $0x198] sm:$0xff]
    %v184 = vld [vmem:[#allocation5 + $0x1a0] sm:$0xff]
    %v185 = vld [vmem:[#allocation5 + $0x1a8] sm:$0xff]
    %v186 = vld [vmem:[#allocation5 + $0x1b0] sm:$0xff]
    %v187 = vld [vmem:[#allocation5 + $0x1b8] sm:$0xff]
    %v188 = vld [vmem:[#allocation5 + $0x1c0] sm:$0xff]
    %v189 = vld [vmem:[#allocation5 + $0x1c8] sm:$0xff]
    %v190 = vld [vmem:[#allocation5 + $0x1d0] sm:$0xff]
    %v191 = vld [vmem:[#allocation5 + $0x1d8] sm:$0xff]
    %v192 = vld [vmem:[#allocation5 + $0x1e0] sm:$0xff]
    %v193 = vld [vmem:[#allocation5 + $0x1e8] sm:$0xff]
    %v194 = vld [vmem:[#allocation5 + $0x1f0] sm:$0xff]
    %v195 = vld [vmem:[#allocation5 + $0x1f8] sm:$0xff]
    %v196 = vld [vmem:[#allocation5 + $0x200] sm:$0xff]
    %v197 = vld [vmem:[#allocation5 + $0x208] sm:$0xff]
    %v198 = vld [vmem:[#allocation5 + $0x210] sm:$0xff]
    %v199 = vld [vmem:[#allocation5 + $0x218] sm:$0xff]
    %v200 = vld [vmem:[#allocation5 + $0x220] sm:$0xff]
    %v201 = vld [vmem:[#allocation5 + $0x228] sm:$0xff]
    %v202 = vld [vmem:[#allocation5 + $0x230] sm:$0xff]
    %v203 = vld [vmem:[#allocation5 + $0x238] sm:$0xff]
    %v204 = vld [vmem:[#allocation5 + $0x240] sm:$0xff]
    %v205 = vld [vmem:[#allocation5 + $0x248] sm:$0xff]
    %v206 = vld [vmem:[#allocation5 + $0x250] sm:$0xff]
    %v207 = vld [vmem:[#allocation5 + $0x258] sm:$0xff]
    %v208 = vld [vmem:[#allocation5 + $0x260] sm:$0xff]
    %v209 = vld [vmem:[#allocation5 + $0x268] sm:$0xff]
    %v210 = vld [vmem:[#allocation5 + $0x270] sm:$0xff]
    %v211 = vld [vmem:[#allocation5 + $0x278] sm:$0xff]
    %v212 = vld [vmem:[#allocation5 + $0x280] sm:$0xff]
    %v213 = vld [vmem:[#allocation5 + $0x288] sm:$0xff]
    %v214 = vld [vmem:[#allocation5 + $0x290] sm:$0xff]
    %v215 = vld [vmem:[#allocation5 + $0x298] sm:$0xff]
    %v216 = vld [vmem:[#allocation5 + $0x2a0] sm:$0xff]
    %v217 = vld [vmem:[#allocation5 + $0x2a8] sm:$0xff]
    %v218 = vld [vmem:[#allocation5 + $0x2b0] sm:$0xff]
    %v219 = vld [vmem:[#allocation5 + $0x2b8] sm:$0xff]
    %v220 = vld [vmem:[#allocation5 + $0x2c0] sm:$0xff]
    %v221 = vld [vmem:[#allocation5 + $0x2c8] sm:$0xff]
    %v222 = vld [vmem:[#allocation5 + $0x2d0] sm:$0xff]
    %v223 = vld [vmem:[#allocation5 + $0x2d8] sm:$0xff]
    %v224 = vld [vmem:[#allocation5 + $0x2e0] sm:$0xff]
    %v225 = vld [vmem:[#allocation5 + $0x2e8] sm:$0xff]
    %v226 = vld [vmem:[#allocation5 + $0x2f0] sm:$0xff]
    %v227 = vld [vmem:[#allocation5 + $0x2f8] sm:$0xff]
    %v228 = vld [vmem:[#allocation5 + $0x300] sm:$0xff]
    %v229 = vld [vmem:[#allocation5 + $0x308] sm:$0xff]
    %v230 = vld [vmem:[#allocation5 + $0x310] sm:$0xff]
    %v231 = vld [vmem:[#allocation5 + $0x318] sm:$0xff]
    %v232 = vld [vmem:[#allocation5 + $0x320] sm:$0xff]
    %v233 = vld [vmem:[#allocation5 + $0x328] sm:$0xff]
    %v234 = vld [vmem:[#allocation5 + $0x330] sm:$0xff]
    %v235 = vld [vmem:[#allocation5 + $0x338] sm:$0xff]
    %v236 = vld [vmem:[#allocation5 + $0x340] sm:$0xff]
    %v237 = vld [vmem:[#allocation5 + $0x348] sm:$0xff]
    %v238 = vld [vmem:[#allocation5 + $0x350] sm:$0xff]
    %v239 = vld [vmem:[#allocation5 + $0x358] sm:$0xff]
    %v240 = vld [vmem:[#allocation5 + $0x360] sm:$0xff]
    %v241 = vld [vmem:[#allocation5 + $0x368] sm:$0xff]
    %v242 = vld [vmem:[#allocation5 + $0x370] sm:$0xff]
    %v243 = vld [vmem:[#allocation5 + $0x378] sm:$0xff]
    %v244 = vld [vmem:[#allocation5 + $0x380] sm:$0xff]
    %v245 = vld [vmem:[#allocation5 + $0x388] sm:$0xff]
    %v246 = vld [vmem:[#allocation5 + $0x390] sm:$0xff]
    %v247 = vld [vmem:[#allocation5 + $0x398] sm:$0xff]
    %v248 = vld [vmem:[#allocation5 + $0x3a0] sm:$0xff]
    %v249 = vld [vmem:[#allocation5 + $0x3a8] sm:$0xff]
    %v250 = vld [vmem:[#allocation5 + $0x3b0] sm:$0xff]
    %v251 = vld [vmem:[#allocation5 + $0x3b8] sm:$0xff]
    %v252 = vld [vmem:[#allocation5 + $0x3c0] sm:$0xff]
    %v253 = vld [vmem:[#allocation5 + $0x3c8] sm:$0xff]
    %v254 = vld [vmem:[#allocation5 + $0x3d0] sm:$0xff]
    %v255 = vld [vmem:[#allocation5 + $0x3d8] sm:$0xff]
    %v256 = vld [vmem:[#allocation5 + $0x3e0] sm:$0xff]
    %v257 = vld [vmem:[#allocation5 + $0x3e8] sm:$0xff]
    %v258 = vld [vmem:[#allocation5 + $0x3f0] sm:$0xff]
    %v259 = vld [vmem:[#allocation5 + $0x3f8] sm:$0xff]
    %v260 = vld [vmem:[#allocation5 + $0x400] sm:$0xff]
    %v261 = vld [vmem:[#allocation5 + $0x408] sm:$0xff]
    %v262 = vld [vmem:[#allocation5 + $0x410] sm:$0xff]
    %v263 = vld [vmem:[#allocation5 + $0x418] sm:$0xff]
    %v264 = vld [vmem:[#allocation5 + $0x420] sm:$0xff]
    %v265 = vld [vmem:[#allocation5 + $0x428] sm:$0xff]
    %v266 = vld [vmem:[#allocation5 + $0x430] sm:$0xff]
    %v267 = vld [vmem:[#allocation5 + $0x438] sm:$0xff]
    %v268 = vld [vmem:[#allocation5 + $0x440] sm:$0xff]
    %v269 = vld [vmem:[#allocation5 + $0x448] sm:$0xff]
    %v270 = vld [vmem:[#allocation5 + $0x450] sm:$0xff]
    %v271 = vld [vmem:[#allocation5 + $0x458] sm:$0xff]
    %v272 = vld [vmem:[#allocation5 + $0x460] sm:$0xff]
    %v273 = vld [vmem:[#allocation5 + $0x468] sm:$0xff]
    %v274 = vld [vmem:[#allocation5 + $0x470] sm:$0xff]
    %v275 = vld [vmem:[#allocation5 + $0x478] sm:$0xff]
    %v276 = vld [vmem:[#allocation5 + $0x480] sm:$0xff]
    %v277 = vld [vmem:[#allocation5 + $0x488] sm:$0xff]
    %v278 = vld [vmem:[#allocation5 + $0x490] sm:$0xff]
    %v279 = vld [vmem:[#allocation5 + $0x498] sm:$0xff]
    %v280 = vld [vmem:[#allocation5 + $0x4a0] sm:$0xff]
    %v281 = vld [vmem:[#allocation5 + $0x4a8] sm:$0xff]
    %v282 = vld [vmem:[#allocation5 + $0x4b0] sm:$0xff]
    %v283 = vld [vmem:[#allocation5 + $0x4b8] sm:$0xff]
    %v284 = vld [vmem:[#allocation5 + $0x4c0] sm:$0xff]
    %v285 = vld [vmem:[#allocation5 + $0x4c8] sm:$0xff]
    %v286 = vld [vmem:[#allocation5 + $0x4d0] sm:$0xff]
    %v287 = vld [vmem:[#allocation5 + $0x4d8] sm:$0xff]
    %v288 = vld [vmem:[#allocation5 + $0x4e0] sm:$0xff]
    %v289 = vld [vmem:[#allocation5 + $0x4e8] sm:$0xff]
    %v290 = vld [vmem:[#allocation5 + $0x4f0] sm:$0xff]
    %v291 = vld [vmem:[#allocation5 + $0x4f8] sm:$0xff]
    %v292 = vld [vmem:[#allocation5 + $0x500] sm:$0xff]
    %v293 = vld [vmem:[#allocation5 + $0x508] sm:$0xff]
    %v294 = vld [vmem:[#allocation5 + $0x510] sm:$0xff]
    %v295 = vld [vmem:[#allocation5 + $0x518] sm:$0xff]
    %v296 = vld [vmem:[#allocation5 + $0x520] sm:$0xff]
    %v297 = vld [vmem:[#allocation5 + $0x528] sm:$0xff]
    %v298 = vld [vmem:[#allocation5 + $0x530] sm:$0xff]
    %v299 = vld [vmem:[#allocation5 + $0x538] sm:$0xff]
    %v300 = vld [vmem:[#allocation5 + $0x540] sm:$0xff]
    %v301 = vld [vmem:[#allocation5 + $0x548] sm:$0xff]
    %v302 = vld [vmem:[#allocation5 + $0x550] sm:$0xff]
    %v303 = vld [vmem:[#allocation5 + $0x558] sm:$0xff]
    %v304 = vld [vmem:[#allocation5 + $0x560] sm:$0xff]
    %v305 = vld [vmem:[#allocation5 + $0x568] sm:$0xff]
    %v306 = vld [vmem:[#allocation5 + $0x570] sm:$0xff]
    %v307 = vld [vmem:[#allocation5 + $0x578] sm:$0xff]
    %v308 = vld [vmem:[#allocation5 + $0x580] sm:$0xff]
    %v309 = vld [vmem:[#allocation5 + $0x588] sm:$0xff]
    %v310 = vld [vmem:[#allocation5 + $0x590] sm:$0xff]
    %v311 = vld [vmem:[#allocation5 + $0x598] sm:$0xff]
    %v312 = vld [vmem:[#allocation5 + $0x5a0] sm:$0xff]
    %v313 = vld [vmem:[#allocation5 + $0x5a8] sm:$0xff]
    %v314 = vld [vmem:[#allocation5 + $0x5b0] sm:$0xff]
    %v315 = vld [vmem:[#allocation5 + $0x5b8] sm:$0xff]
    %v316 = vld [vmem:[#allocation5 + $0x5c0] sm:$0xff]
    %v317 = vld [vmem:[#allocation5 + $0x5c8] sm:$0xff]
    %v318 = vld [vmem:[#allocation5 + $0x5d0] sm:$0xff]
    %v319 = vld [vmem:[#allocation5 + $0x5d8] sm:$0xff]
    %v320 = vld [vmem:[#allocation5 + $0x5e0] sm:$0xff]
    %v321 = vld [vmem:[#allocation5 + $0x5e8] sm:$0xff]
    %v322 = vld [vmem:[#allocation5 + $0x5f0] sm:$0xff]
    %v323 = vld [vmem:[#allocation5 + $0x5f8] sm:$0xff]
    %v324 = vld [vmem:[#allocation5 + $0x600] sm:$0xff]
    %v325 = vld [vmem:[#allocation5 + $0x608] sm:$0xff]
    %v326 = vld [vmem:[#allocation5 + $0x610] sm:$0xff]
    %v327 = vld [vmem:[#allocation5 + $0x618] sm:$0xff]
    %v328 = vld [vmem:[#allocation5 + $0x620] sm:$0xff]
    %v329 = vld [vmem:[#allocation5 + $0x628] sm:$0xff]
    %v330 = vld [vmem:[#allocation5 + $0x630] sm:$0xff]
    %v331 = vld [vmem:[#allocation5 + $0x638] sm:$0xff]
    %v332 = vld [vmem:[#allocation5 + $0x640] sm:$0xff]
    %v333 = vld [vmem:[#allocation5 + $0x648] sm:$0xff]
    %v334 = vld [vmem:[#allocation5 + $0x650] sm:$0xff]
    %v335 = vld [vmem:[#allocation5 + $0x658] sm:$0xff]
    %v336 = vld [vmem:[#allocation5 + $0x660] sm:$0xff]
    %v337 = vld [vmem:[#allocation5 + $0x668] sm:$0xff]
    %v338 = vld [vmem:[#allocation5 + $0x670] sm:$0xff]
    %v339 = vld [vmem:[#allocation5 + $0x678] sm:$0xff]
    %v340 = vld [vmem:[#allocation5 + $0x680] sm:$0xff]
    %v341 = vld [vmem:[#allocation5 + $0x688] sm:$0xff]
    %v342 = vld [vmem:[#allocation5 + $0x690] sm:$0xff]
    %v343 = vld [vmem:[#allocation5 + $0x698] sm:$0xff]
    %v344 = vld [vmem:[#allocation5 + $0x6a0] sm:$0xff]
    %v345 = vld [vmem:[#allocation5 + $0x6a8] sm:$0xff]
    %v346 = vld [vmem:[#allocation5 + $0x6b0] sm:$0xff]
    %v347 = vld [vmem:[#allocation5 + $0x6b8] sm:$0xff]
    %v348 = vld [vmem:[#allocation5 + $0x6c0] sm:$0xff]
    %v349 = vld [vmem:[#allocation5 + $0x6c8] sm:$0xff]
    %v350 = vld [vmem:[#allocation5 + $0x6d0] sm:$0xff]
    %v351 = vld [vmem:[#allocation5 + $0x6d8] sm:$0xff]
    %v352 = vld [vmem:[#allocation5 + $0x6e0] sm:$0xff]
    %v353 = vld [vmem:[#allocation5 + $0x6e8] sm:$0xff]
    %v354 = vld [vmem:[#allocation5 + $0x6f0] sm:$0xff]
    %v355 = vld [vmem:[#allocation5 + $0x6f8] sm:$0xff]
    %v356 = vld [vmem:[#allocation5 + $0x700] sm:$0xff]
    %v357 = vld [vmem:[#allocation5 + $0x708] sm:$0xff]
    %v358 = vld [vmem:[#allocation5 + $0x710] sm:$0xff]
    %v359 = vld [vmem:[#allocation5 + $0x718] sm:$0xff]
    %v360 = vld [vmem:[#allocation5 + $0x720] sm:$0xff]
    %v361 = vld [vmem:[#allocation5 + $0x728] sm:$0xff]
    %v362 = vld [vmem:[#allocation5 + $0x730] sm:$0xff]
    %v363 = vld [vmem:[#allocation5 + $0x738] sm:$0xff]
    %v364 = vld [vmem:[#allocation5 + $0x740] sm:$0xff]
    %v365 = vld [vmem:[#allocation5 + $0x748] sm:$0xff]
    %v366 = vld [vmem:[#allocation5 + $0x750] sm:$0xff]
    %v367 = vld [vmem:[#allocation5 + $0x758] sm:$0xff]
    %v368 = vld [vmem:[#allocation5 + $0x760] sm:$0xff]
    %v369 = vld [vmem:[#allocation5 + $0x768] sm:$0xff]
    %v370 = vld [vmem:[#allocation5 + $0x770] sm:$0xff]
    %v371 = vld [vmem:[#allocation5 + $0x778] sm:$0xff]
    %v372 = vld [vmem:[#allocation5 + $0x780] sm:$0xff]
    %v373 = vld [vmem:[#allocation5 + $0x788] sm:$0xff]
    %v374 = vld [vmem:[#allocation5 + $0x790] sm:$0xff]
    %v375 = vld [vmem:[#allocation5 + $0x798] sm:$0xff]
    %v376 = vld [vmem:[#allocation5 + $0x7a0] sm:$0xff]
    %v377 = vld [vmem:[#allocation5 + $0x7a8] sm:$0xff]
    %v378 = vld [vmem:[#allocation5 + $0x7b0] sm:$0xff]
    %v379 = vld [vmem:[#allocation5 + $0x7b8] sm:$0xff]
    %v380 = vld [vmem:[#allocation5 + $0x7c0] sm:$0xff]
    %v381 = vld [vmem:[#allocation5 + $0x7c8] sm:$0xff]
    %v382 = vld [vmem:[#allocation5 + $0x7d0] sm:$0xff]
    %v383 = vld [vmem:[#allocation5 + $0x7d8] sm:$0xff]
    %v384 = vld [vmem:[#allocation5 + $0x7e0] sm:$0xff]
    %v385 = vld [vmem:[#allocation5 + $0x7e8] sm:$0xff]
    %v386 = vld [vmem:[#allocation5 + $0x7f0] sm:$0xff]
    %v387 = vld [vmem:[#allocation5 + $0x7f8] sm:$0xff]
    %v389 = vlaneseq
    %v390 = vshrl.u32 %v389, 7
    %v391 = vsub.s32 0, %v390
    %v392 = vrot.slane %v129, %v391
    %v393 = vlaneseq
    %v394 = vshrl.u32 %v393, 7
    %v395 = vsub.s32 1, %v394
    %v396 = vrot.slane %v129, %v395
    %v397 = vlaneseq
    %v398 = vshrl.u32 %v397, 7
    %v399 = vsub.s32 2, %v398
    %v400 = vrot.slane %v129, %v399
    %v401 = vlaneseq
    %v402 = vshrl.u32 %v401, 7
    %v403 = vsub.s32 3, %v402
    %v404 = vrot.slane %v129, %v403
    %v405 = vlaneseq
    %v406 = vshrl.u32 %v405, 7
    %v407 = vsub.s32 4, %v406
    %v408 = vrot.slane %v129, %v407
    %v409 = vlaneseq
    %v410 = vshrl.u32 %v409, 7
    %v411 = vsub.s32 5, %v410
    %v412 = vrot.slane %v129, %v411
    %v413 = vlaneseq
    %v414 = vshrl.u32 %v413, 7
    %v415 = vsub.s32 6, %v414
    %v416 = vrot.slane %v129, %v415
    %v417 = vlaneseq
    %v418 = vshrl.u32 %v417, 7
    %v419 = vsub.s32 7, %v418
    %v420 = vrot.slane %v129, %v419
    %v685 = vunpack.c.l.b16 %v132
    %v686 = vunpack.c.h.b16 %v132
    %v687 = vunpack.c.l.b16 %v133
    %v688 = vunpack.c.h.b16 %v133
    %v689 = vunpack.c.l.b16 %v134
    %v690 = vunpack.c.h.b16 %v134
    %v691 = vunpack.c.l.b16 %v135
    %v692 = vunpack.c.h.b16 %v135
    %v693 = vunpack.c.l.b16 %v136
    %v694 = vunpack.c.h.b16 %v136
    %v695 = vunpack.c.l.b16 %v137
    %v696 = vunpack.c.h.b16 %v137
    %v697 = vunpack.c.l.b16 %v138
    %v698 = vunpack.c.h.b16 %v138
    %v699 = vunpack.c.l.b16 %v139
    %v700 = vunpack.c.h.b16 %v139
    %v701 = vunpack.c.l.b16 %v140
    %v702 = vunpack.c.h.b16 %v140
    %v703 = vunpack.c.l.b16 %v141
    %v704 = vunpack.c.h.b16 %v141
    %v705 = vunpack.c.l.b16 %v142
    %v706 = vunpack.c.h.b16 %v142
    %v707 = vunpack.c.l.b16 %v143
    %v708 = vunpack.c.h.b16 %v143
    %v709 = vunpack.c.l.b16 %v144
    %v710 = vunpack.c.h.b16 %v144
    %v711 = vunpack.c.l.b16 %v145
    %v712 = vunpack.c.h.b16 %v145
    %v713 = vunpack.c.l.b16 %v146
    %v714 = vunpack.c.h.b16 %v146
    %v715 = vunpack.c.l.b16 %v147
    %v716 = vunpack.c.h.b16 %v147
    %v717 = vunpack.c.l.b16 %v148
    %v718 = vunpack.c.h.b16 %v148
    %v719 = vunpack.c.l.b16 %v149
    %v720 = vunpack.c.h.b16 %v149
    %v721 = vunpack.c.l.b16 %v150
    %v722 = vunpack.c.h.b16 %v150
    %v723 = vunpack.c.l.b16 %v151
    %v724 = vunpack.c.h.b16 %v151
    %v725 = vunpack.c.l.b16 %v152
    %v726 = vunpack.c.h.b16 %v152
    %v727 = vunpack.c.l.b16 %v153
    %v728 = vunpack.c.h.b16 %v153
    %v729 = vunpack.c.l.b16 %v154
    %v730 = vunpack.c.h.b16 %v154
    %v731 = vunpack.c.l.b16 %v155
    %v732 = vunpack.c.h.b16 %v155
    %v733 = vunpack.c.l.b16 %v156
    %v734 = vunpack.c.h.b16 %v156
    %v735 = vunpack.c.l.b16 %v157
    %v736 = vunpack.c.h.b16 %v157
    %v737 = vunpack.c.l.b16 %v158
    %v738 = vunpack.c.h.b16 %v158
    %v739 = vunpack.c.l.b16 %v159
    %v740 = vunpack.c.h.b16 %v159
    %v741 = vunpack.c.l.b16 %v160
    %v742 = vunpack.c.h.b16 %v160
    %v743 = vunpack.c.l.b16 %v161
    %v744 = vunpack.c.h.b16 %v161
    %v745 = vunpack.c.l.b16 %v162
    %v746 = vunpack.c.h.b16 %v162
    %v747 = vunpack.c.l.b16 %v163
    %v748 = vunpack.c.h.b16 %v163
    %v749 = vunpack.c.l.b16 %v164
    %v750 = vunpack.c.h.b16 %v164
    %v751 = vunpack.c.l.b16 %v165
    %v752 = vunpack.c.h.b16 %v165
    %v753 = vunpack.c.l.b16 %v166
    %v754 = vunpack.c.h.b16 %v166
    %v755 = vunpack.c.l.b16 %v167
    %v756 = vunpack.c.h.b16 %v167
    %v757 = vunpack.c.l.b16 %v168
    %v758 = vunpack.c.h.b16 %v168
    %v759 = vunpack.c.l.b16 %v169
    %v760 = vunpack.c.h.b16 %v169
    %v761 = vunpack.c.l.b16 %v170
    %v762 = vunpack.c.h.b16 %v170
    %v763 = vunpack.c.l.b16 %v171
    %v764 = vunpack.c.h.b16 %v171
    %v765 = vunpack.c.l.b16 %v172
    %v766 = vunpack.c.h.b16 %v172
    %v767 = vunpack.c.l.b16 %v173
    %v768 = vunpack.c.h.b16 %v173
    %v769 = vunpack.c.l.b16 %v174
    %v770 = vunpack.c.h.b16 %v174
    %v771 = vunpack.c.l.b16 %v175
    %v772 = vunpack.c.h.b16 %v175
    %v773 = vunpack.c.l.b16 %v176
    %v774 = vunpack.c.h.b16 %v176
    %v775 = vunpack.c.l.b16 %v177
    %v776 = vunpack.c.h.b16 %v177
    %v777 = vunpack.c.l.b16 %v178
    %v778 = vunpack.c.h.b16 %v178
    %v779 = vunpack.c.l.b16 %v179
    %v780 = vunpack.c.h.b16 %v179
    %v781 = vunpack.c.l.b16 %v180
    %v782 = vunpack.c.h.b16 %v180
    %v783 = vunpack.c.l.b16 %v181
    %v784 = vunpack.c.h.b16 %v181
    %v785 = vunpack.c.l.b16 %v182
    %v786 = vunpack.c.h.b16 %v182
    %v787 = vunpack.c.l.b16 %v183
    %v788 = vunpack.c.h.b16 %v183
    %v789 = vunpack.c.l.b16 %v184
    %v790 = vunpack.c.h.b16 %v184
    %v791 = vunpack.c.l.b16 %v185
    %v792 = vunpack.c.h.b16 %v185
    %v793 = vunpack.c.l.b16 %v186
    %v794 = vunpack.c.h.b16 %v186
    %v795 = vunpack.c.l.b16 %v187
    %v796 = vunpack.c.h.b16 %v187
    %v797 = vunpack.c.l.b16 %v188
    %v798 = vunpack.c.h.b16 %v188
    %v799 = vunpack.c.l.b16 %v189
    %v800 = vunpack.c.h.b16 %v189
    %v801 = vunpack.c.l.b16 %v190
    %v802 = vunpack.c.h.b16 %v190
    %v803 = vunpack.c.l.b16 %v191
    %v804 = vunpack.c.h.b16 %v191
    %v805 = vunpack.c.l.b16 %v192
    %v806 = vunpack.c.h.b16 %v192
    %v807 = vunpack.c.l.b16 %v193
    %v808 = vunpack.c.h.b16 %v193
    %v809 = vunpack.c.l.b16 %v194
    %v810 = vunpack.c.h.b16 %v194
    %v811 = vunpack.c.l.b16 %v195
    %v812 = vunpack.c.h.b16 %v195
    %v813 = vunpack.c.l.b16 %v196
    %v814 = vunpack.c.h.b16 %v196
    %v815 = vunpack.c.l.b16 %v197
    %v816 = vunpack.c.h.b16 %v197
    %v817 = vunpack.c.l.b16 %v198
    %v818 = vunpack.c.h.b16 %v198
    %v819 = vunpack.c.l.b16 %v199
    %v820 = vunpack.c.h.b16 %v199
    %v821 = vunpack.c.l.b16 %v200
    %v822 = vunpack.c.h.b16 %v200
    %v823 = vunpack.c.l.b16 %v201
    %v824 = vunpack.c.h.b16 %v201
    %v825 = vunpack.c.l.b16 %v202
    %v826 = vunpack.c.h.b16 %v202
    %v827 = vunpack.c.l.b16 %v203
    %v828 = vunpack.c.h.b16 %v203
    %v829 = vunpack.c.l.b16 %v204
    %v830 = vunpack.c.h.b16 %v204
    %v831 = vunpack.c.l.b16 %v205
    %v832 = vunpack.c.h.b16 %v205
    %v833 = vunpack.c.l.b16 %v206
    %v834 = vunpack.c.h.b16 %v206
    %v835 = vunpack.c.l.b16 %v207
    %v836 = vunpack.c.h.b16 %v207
    %v837 = vunpack.c.l.b16 %v208
    %v838 = vunpack.c.h.b16 %v208
    %v839 = vunpack.c.l.b16 %v209
    %v840 = vunpack.c.h.b16 %v209
    %v841 = vunpack.c.l.b16 %v210
    %v842 = vunpack.c.h.b16 %v210
    %v843 = vunpack.c.l.b16 %v211
    %v844 = vunpack.c.h.b16 %v211
    %v845 = vunpack.c.l.b16 %v212
    %v846 = vunpack.c.h.b16 %v212
    %v847 = vunpack.c.l.b16 %v213
    %v848 = vunpack.c.h.b16 %v213
    %v849 = vunpack.c.l.b16 %v214
    %v850 = vunpack.c.h.b16 %v214
    %v851 = vunpack.c.l.b16 %v215
    %v852 = vunpack.c.h.b16 %v215
    %v853 = vunpack.c.l.b16 %v216
    %v854 = vunpack.c.h.b16 %v216
    %v855 = vunpack.c.l.b16 %v217
    %v856 = vunpack.c.h.b16 %v217
    %v857 = vunpack.c.l.b16 %v218
    %v858 = vunpack.c.h.b16 %v218
    %v859 = vunpack.c.l.b16 %v219
    %v860 = vunpack.c.h.b16 %v219
    %v861 = vunpack.c.l.b16 %v220
    %v862 = vunpack.c.h.b16 %v220
    %v863 = vunpack.c.l.b16 %v221
    %v864 = vunpack.c.h.b16 %v221
    %v865 = vunpack.c.l.b16 %v222
    %v866 = vunpack.c.h.b16 %v222
    %v867 = vunpack.c.l.b16 %v223
    %v868 = vunpack.c.h.b16 %v223
    %v869 = vunpack.c.l.b16 %v224
    %v870 = vunpack.c.h.b16 %v224
    %v871 = vunpack.c.l.b16 %v225
    %v872 = vunpack.c.h.b16 %v225
    %v873 = vunpack.c.l.b16 %v226
    %v874 = vunpack.c.h.b16 %v226
    %v875 = vunpack.c.l.b16 %v227
    %v876 = vunpack.c.h.b16 %v227
    %v877 = vunpack.c.l.b16 %v228
    %v878 = vunpack.c.h.b16 %v228
    %v879 = vunpack.c.l.b16 %v229
    %v880 = vunpack.c.h.b16 %v229
    %v881 = vunpack.c.l.b16 %v230
    %v882 = vunpack.c.h.b16 %v230
    %v883 = vunpack.c.l.b16 %v231
    %v884 = vunpack.c.h.b16 %v231
    %v885 = vunpack.c.l.b16 %v232
    %v886 = vunpack.c.h.b16 %v232
    %v887 = vunpack.c.l.b16 %v233
    %v888 = vunpack.c.h.b16 %v233
    %v889 = vunpack.c.l.b16 %v234
    %v890 = vunpack.c.h.b16 %v234
    %v891 = vunpack.c.l.b16 %v235
    %v892 = vunpack.c.h.b16 %v235
    %v893 = vunpack.c.l.b16 %v236
    %v894 = vunpack.c.h.b16 %v236
    %v895 = vunpack.c.l.b16 %v237
    %v896 = vunpack.c.h.b16 %v237
    %v897 = vunpack.c.l.b16 %v238
    %v898 = vunpack.c.h.b16 %v238
    %v899 = vunpack.c.l.b16 %v239
    %v900 = vunpack.c.h.b16 %v239
    %v901 = vunpack.c.l.b16 %v240
    %v902 = vunpack.c.h.b16 %v240
    %v903 = vunpack.c.l.b16 %v241
    %v904 = vunpack.c.h.b16 %v241
    %v905 = vunpack.c.l.b16 %v242
    %v906 = vunpack.c.h.b16 %v242
    %v907 = vunpack.c.l.b16 %v243
    %v908 = vunpack.c.h.b16 %v243
    %v909 = vunpack.c.l.b16 %v244
    %v910 = vunpack.c.h.b16 %v244
    %v911 = vunpack.c.l.b16 %v245
    %v912 = vunpack.c.h.b16 %v245
    %v913 = vunpack.c.l.b16 %v246
    %v914 = vunpack.c.h.b16 %v246
    %v915 = vunpack.c.l.b16 %v247
    %v916 = vunpack.c.h.b16 %v247
    %v917 = vunpack.c.l.b16 %v248
    %v918 = vunpack.c.h.b16 %v248
    %v919 = vunpack.c.l.b16 %v249
    %v920 = vunpack.c.h.b16 %v249
    %v921 = vunpack.c.l.b16 %v250
    %v922 = vunpack.c.h.b16 %v250
    %v923 = vunpack.c.l.b16 %v251
    %v924 = vunpack.c.h.b16 %v251
    %v925 = vunpack.c.l.b16 %v252
    %v926 = vunpack.c.h.b16 %v252
    %v927 = vunpack.c.l.b16 %v253
    %v928 = vunpack.c.h.b16 %v253
    %v929 = vunpack.c.l.b16 %v254
    %v930 = vunpack.c.h.b16 %v254
    %v931 = vunpack.c.l.b16 %v255
    %v932 = vunpack.c.h.b16 %v255
    %v933 = vunpack.c.l.b16 %v256
    %v934 = vunpack.c.h.b16 %v256
    %v935 = vunpack.c.l.b16 %v257
    %v936 = vunpack.c.h.b16 %v257
    %v937 = vunpack.c.l.b16 %v258
    %v938 = vunpack.c.h.b16 %v258
    %v939 = vunpack.c.l.b16 %v259
    %v940 = vunpack.c.h.b16 %v259
    %v941 = vunpack.c.l.b16 %v260
    %v942 = vunpack.c.h.b16 %v260
    %v943 = vunpack.c.l.b16 %v261
    %v944 = vunpack.c.h.b16 %v261
    %v945 = vunpack.c.l.b16 %v262
    %v946 = vunpack.c.h.b16 %v262
    %v947 = vunpack.c.l.b16 %v263
    %v948 = vunpack.c.h.b16 %v263
    %v949 = vunpack.c.l.b16 %v264
    %v950 = vunpack.c.h.b16 %v264
    %v951 = vunpack.c.l.b16 %v265
    %v952 = vunpack.c.h.b16 %v265
    %v953 = vunpack.c.l.b16 %v266
    %v954 = vunpack.c.h.b16 %v266
    %v955 = vunpack.c.l.b16 %v267
    %v956 = vunpack.c.h.b16 %v267
    %v957 = vunpack.c.l.b16 %v268
    %v958 = vunpack.c.h.b16 %v268
    %v959 = vunpack.c.l.b16 %v269
    %v960 = vunpack.c.h.b16 %v269
    %v961 = vunpack.c.l.b16 %v270
    %v962 = vunpack.c.h.b16 %v270
    %v963 = vunpack.c.l.b16 %v271
    %v964 = vunpack.c.h.b16 %v271
    %v965 = vunpack.c.l.b16 %v272
    %v966 = vunpack.c.h.b16 %v272
    %v967 = vunpack.c.l.b16 %v273
    %v968 = vunpack.c.h.b16 %v273
    %v969 = vunpack.c.l.b16 %v274
    %v970 = vunpack.c.h.b16 %v274
    %v971 = vunpack.c.l.b16 %v275
    %v972 = vunpack.c.h.b16 %v275
    %v973 = vunpack.c.l.b16 %v276
    %v974 = vunpack.c.h.b16 %v276
    %v975 = vunpack.c.l.b16 %v277
    %v976 = vunpack.c.h.b16 %v277
    %v977 = vunpack.c.l.b16 %v278
    %v978 = vunpack.c.h.b16 %v278
    %v979 = vunpack.c.l.b16 %v279
    %v980 = vunpack.c.h.b16 %v279
    %v981 = vunpack.c.l.b16 %v280
    %v982 = vunpack.c.h.b16 %v280
    %v983 = vunpack.c.l.b16 %v281
    %v984 = vunpack.c.h.b16 %v281
    %v985 = vunpack.c.l.b16 %v282
    %v986 = vunpack.c.h.b16 %v282
    %v987 = vunpack.c.l.b16 %v283
    %v988 = vunpack.c.h.b16 %v283
    %v989 = vunpack.c.l.b16 %v284
    %v990 = vunpack.c.h.b16 %v284
    %v991 = vunpack.c.l.b16 %v285
    %v992 = vunpack.c.h.b16 %v285
    %v993 = vunpack.c.l.b16 %v286
    %v994 = vunpack.c.h.b16 %v286
    %v995 = vunpack.c.l.b16 %v287
    %v996 = vunpack.c.h.b16 %v287
    %v997 = vunpack.c.l.b16 %v288
    %v998 = vunpack.c.h.b16 %v288
    %v999 = vunpack.c.l.b16 %v289
    %v1000 = vunpack.c.h.b16 %v289
    %v1001 = vunpack.c.l.b16 %v290
    %v1002 = vunpack.c.h.b16 %v290
    %v1003 = vunpack.c.l.b16 %v291
    %v1004 = vunpack.c.h.b16 %v291
    %v1005 = vunpack.c.l.b16 %v292
    %v1006 = vunpack.c.h.b16 %v292
    %v1007 = vunpack.c.l.b16 %v293
    %v1008 = vunpack.c.h.b16 %v293
    %v1009 = vunpack.c.l.b16 %v294
    %v1010 = vunpack.c.h.b16 %v294
    %v1011 = vunpack.c.l.b16 %v295
    %v1012 = vunpack.c.h.b16 %v295
    %v1013 = vunpack.c.l.b16 %v296
    %v1014 = vunpack.c.h.b16 %v296
    %v1015 = vunpack.c.l.b16 %v297
    %v1016 = vunpack.c.h.b16 %v297
    %v1017 = vunpack.c.l.b16 %v298
    %v1018 = vunpack.c.h.b16 %v298
    %v1019 = vunpack.c.l.b16 %v299
    %v1020 = vunpack.c.h.b16 %v299
    %v1021 = vunpack.c.l.b16 %v300
    %v1022 = vunpack.c.h.b16 %v300
    %v1023 = vunpack.c.l.b16 %v301
    %v1024 = vunpack.c.h.b16 %v301
    %v1025 = vunpack.c.l.b16 %v302
    %v1026 = vunpack.c.h.b16 %v302
    %v1027 = vunpack.c.l.b16 %v303
    %v1028 = vunpack.c.h.b16 %v303
    %v1029 = vunpack.c.l.b16 %v304
    %v1030 = vunpack.c.h.b16 %v304
    %v1031 = vunpack.c.l.b16 %v305
    %v1032 = vunpack.c.h.b16 %v305
    %v1033 = vunpack.c.l.b16 %v306
    %v1034 = vunpack.c.h.b16 %v306
    %v1035 = vunpack.c.l.b16 %v307
    %v1036 = vunpack.c.h.b16 %v307
    %v1037 = vunpack.c.l.b16 %v308
    %v1038 = vunpack.c.h.b16 %v308
    %v1039 = vunpack.c.l.b16 %v309
    %v1040 = vunpack.c.h.b16 %v309
    %v1041 = vunpack.c.l.b16 %v310
    %v1042 = vunpack.c.h.b16 %v310
    %v1043 = vunpack.c.l.b16 %v311
    %v1044 = vunpack.c.h.b16 %v311
    %v1045 = vunpack.c.l.b16 %v312
    %v1046 = vunpack.c.h.b16 %v312
    %v1047 = vunpack.c.l.b16 %v313
    %v1048 = vunpack.c.h.b16 %v313
    %v1049 = vunpack.c.l.b16 %v314
    %v1050 = vunpack.c.h.b16 %v314
    %v1051 = vunpack.c.l.b16 %v315
    %v1052 = vunpack.c.h.b16 %v315
    %v1053 = vunpack.c.l.b16 %v316
    %v1054 = vunpack.c.h.b16 %v316
    %v1055 = vunpack.c.l.b16 %v317
    %v1056 = vunpack.c.h.b16 %v317
    %v1057 = vunpack.c.l.b16 %v318
    %v1058 = vunpack.c.h.b16 %v318
    %v1059 = vunpack.c.l.b16 %v319
    %v1060 = vunpack.c.h.b16 %v319
    %v1061 = vunpack.c.l.b16 %v320
    %v1062 = vunpack.c.h.b16 %v320
    %v1063 = vunpack.c.l.b16 %v321
    %v1064 = vunpack.c.h.b16 %v321
    %v1065 = vunpack.c.l.b16 %v322
    %v1066 = vunpack.c.h.b16 %v322
    %v1067 = vunpack.c.l.b16 %v323
    %v1068 = vunpack.c.h.b16 %v323
    %v1069 = vunpack.c.l.b16 %v324
    %v1070 = vunpack.c.h.b16 %v324
    %v1071 = vunpack.c.l.b16 %v325
    %v1072 = vunpack.c.h.b16 %v325
    %v1073 = vunpack.c.l.b16 %v326
    %v1074 = vunpack.c.h.b16 %v326
    %v1075 = vunpack.c.l.b16 %v327
    %v1076 = vunpack.c.h.b16 %v327
    %v1077 = vunpack.c.l.b16 %v328
    %v1078 = vunpack.c.h.b16 %v328
    %v1079 = vunpack.c.l.b16 %v329
    %v1080 = vunpack.c.h.b16 %v329
    %v1081 = vunpack.c.l.b16 %v330
    %v1082 = vunpack.c.h.b16 %v330
    %v1083 = vunpack.c.l.b16 %v331
    %v1084 = vunpack.c.h.b16 %v331
    %v1085 = vunpack.c.l.b16 %v332
    %v1086 = vunpack.c.h.b16 %v332
    %v1087 = vunpack.c.l.b16 %v333
    %v1088 = vunpack.c.h.b16 %v333
    %v1089 = vunpack.c.l.b16 %v334
    %v1090 = vunpack.c.h.b16 %v334
    %v1091 = vunpack.c.l.b16 %v335
    %v1092 = vunpack.c.h.b16 %v335
    %v1093 = vunpack.c.l.b16 %v336
    %v1094 = vunpack.c.h.b16 %v336
    %v1095 = vunpack.c.l.b16 %v337
    %v1096 = vunpack.c.h.b16 %v337
    %v1097 = vunpack.c.l.b16 %v338
    %v1098 = vunpack.c.h.b16 %v338
    %v1099 = vunpack.c.l.b16 %v339
    %v1100 = vunpack.c.h.b16 %v339
    %v1101 = vunpack.c.l.b16 %v340
    %v1102 = vunpack.c.h.b16 %v340
    %v1103 = vunpack.c.l.b16 %v341
    %v1104 = vunpack.c.h.b16 %v341
    %v1105 = vunpack.c.l.b16 %v342
    %v1106 = vunpack.c.h.b16 %v342
    %v1107 = vunpack.c.l.b16 %v343
    %v1108 = vunpack.c.h.b16 %v343
    %v1109 = vunpack.c.l.b16 %v344
    %v1110 = vunpack.c.h.b16 %v344
    %v1111 = vunpack.c.l.b16 %v345
    %v1112 = vunpack.c.h.b16 %v345
    %v1113 = vunpack.c.l.b16 %v346
    %v1114 = vunpack.c.h.b16 %v346
    %v1115 = vunpack.c.l.b16 %v347
    %v1116 = vunpack.c.h.b16 %v347
    %v1117 = vunpack.c.l.b16 %v348
    %v1118 = vunpack.c.h.b16 %v348
    %v1119 = vunpack.c.l.b16 %v349
    %v1120 = vunpack.c.h.b16 %v349
    %v1121 = vunpack.c.l.b16 %v350
    %v1122 = vunpack.c.h.b16 %v350
    %v1123 = vunpack.c.l.b16 %v351
    %v1124 = vunpack.c.h.b16 %v351
    %v1125 = vunpack.c.l.b16 %v352
    %v1126 = vunpack.c.h.b16 %v352
    %v1127 = vunpack.c.l.b16 %v353
    %v1128 = vunpack.c.h.b16 %v353
    %v1129 = vunpack.c.l.b16 %v354
    %v1130 = vunpack.c.h.b16 %v354
    %v1131 = vunpack.c.l.b16 %v355
    %v1132 = vunpack.c.h.b16 %v355
    %v1133 = vunpack.c.l.b16 %v356
    %v1134 = vunpack.c.h.b16 %v356
    %v1135 = vunpack.c.l.b16 %v357
    %v1136 = vunpack.c.h.b16 %v357
    %v1137 = vunpack.c.l.b16 %v358
    %v1138 = vunpack.c.h.b16 %v358
    %v1139 = vunpack.c.l.b16 %v359
    %v1140 = vunpack.c.h.b16 %v359
    %v1141 = vunpack.c.l.b16 %v360
    %v1142 = vunpack.c.h.b16 %v360
    %v1143 = vunpack.c.l.b16 %v361
    %v1144 = vunpack.c.h.b16 %v361
    %v1145 = vunpack.c.l.b16 %v362
    %v1146 = vunpack.c.h.b16 %v362
    %v1147 = vunpack.c.l.b16 %v363
    %v1148 = vunpack.c.h.b16 %v363
    %v1149 = vunpack.c.l.b16 %v364
    %v1150 = vunpack.c.h.b16 %v364
    %v1151 = vunpack.c.l.b16 %v365
    %v1152 = vunpack.c.h.b16 %v365
    %v1153 = vunpack.c.l.b16 %v366
    %v1154 = vunpack.c.h.b16 %v366
    %v1155 = vunpack.c.l.b16 %v367
    %v1156 = vunpack.c.h.b16 %v367
    %v1157 = vunpack.c.l.b16 %v368
    %v1158 = vunpack.c.h.b16 %v368
    %v1159 = vunpack.c.l.b16 %v369
    %v1160 = vunpack.c.h.b16 %v369
    %v1161 = vunpack.c.l.b16 %v370
    %v1162 = vunpack.c.h.b16 %v370
    %v1163 = vunpack.c.l.b16 %v371
    %v1164 = vunpack.c.h.b16 %v371
    %v1165 = vunpack.c.l.b16 %v372
    %v1166 = vunpack.c.h.b16 %v372
    %v1167 = vunpack.c.l.b16 %v373
    %v1168 = vunpack.c.h.b16 %v373
    %v1169 = vunpack.c.l.b16 %v374
    %v1170 = vunpack.c.h.b16 %v374
    %v1171 = vunpack.c.l.b16 %v375
    %v1172 = vunpack.c.h.b16 %v375
    %v1173 = vunpack.c.l.b16 %v376
    %v1174 = vunpack.c.h.b16 %v376
    %v1175 = vunpack.c.l.b16 %v377
    %v1176 = vunpack.c.h.b16 %v377
    %v1177 = vunpack.c.l.b16 %v378
    %v1178 = vunpack.c.h.b16 %v378
    %v1179 = vunpack.c.l.b16 %v379
    %v1180 = vunpack.c.h.b16 %v379
    %v1181 = vunpack.c.l.b16 %v380
    %v1182 = vunpack.c.h.b16 %v380
    %v1183 = vunpack.c.l.b16 %v381
    %v1184 = vunpack.c.h.b16 %v381
    %v1185 = vunpack.c.l.b16 %v382
    %v1186 = vunpack.c.h.b16 %v382
    %v1187 = vunpack.c.l.b16 %v383
    %v1188 = vunpack.c.h.b16 %v383
    %v1189 = vunpack.c.l.b16 %v384
    %v1190 = vunpack.c.h.b16 %v384
    %v1191 = vunpack.c.l.b16 %v385
    %v1192 = vunpack.c.h.b16 %v385
    %v1193 = vunpack.c.l.b16 %v386
    %v1194 = vunpack.c.h.b16 %v386
    %v1195 = vunpack.c.l.b16 %v387
    %v1196 = vunpack.c.h.b16 %v387
    %v1197 = vpack.c.b16 %v693, %v685
    %v1198 = vpack.c.b16 %v694, %v686
    %v1199 = vpack.c.b16 %v695, %v687
    %v1200 = vpack.c.b16 %v696, %v688
    %v1201 = vpack.c.b16 %v697, %v689
    %v1202 = vpack.c.b16 %v698, %v690
    %v1203 = vpack.c.b16 %v699, %v691
    %v1204 = vpack.c.b16 %v700, %v692
    %v1205 = vpack.c.b16 %v709, %v701
    %v1206 = vpack.c.b16 %v710, %v702
    %v1207 = vpack.c.b16 %v711, %v703
    %v1208 = vpack.c.b16 %v712, %v704
    %v1209 = vpack.c.b16 %v713, %v705
    %v1210 = vpack.c.b16 %v714, %v706
    %v1211 = vpack.c.b16 %v715, %v707
    %v1212 = vpack.c.b16 %v716, %v708
    %v1213 = vpack.c.b16 %v725, %v717
    %v1214 = vpack.c.b16 %v726, %v718
    %v1215 = vpack.c.b16 %v727, %v719
    %v1216 = vpack.c.b16 %v728, %v720
    %v1217 = vpack.c.b16 %v729, %v721
    %v1218 = vpack.c.b16 %v730, %v722
    %v1219 = vpack.c.b16 %v731, %v723
    %v1220 = vpack.c.b16 %v732, %v724
    %v1221 = vpack.c.b16 %v741, %v733
    %v1222 = vpack.c.b16 %v742, %v734
    %v1223 = vpack.c.b16 %v743, %v735
    %v1224 = vpack.c.b16 %v744, %v736
    %v1225 = vpack.c.b16 %v745, %v737
    %v1226 = vpack.c.b16 %v746, %v738
    %v1227 = vpack.c.b16 %v747, %v739
    %v1228 = vpack.c.b16 %v748, %v740
    %v1229 = vpack.c.b16 %v757, %v749
    %v1230 = vpack.c.b16 %v758, %v750
    %v1231 = vpack.c.b16 %v759, %v751
    %v1232 = vpack.c.b16 %v760, %v752
    %v1233 = vpack.c.b16 %v761, %v753
    %v1234 = vpack.c.b16 %v762, %v754
    %v1235 = vpack.c.b16 %v763, %v755
    %v1236 = vpack.c.b16 %v764, %v756
    %v1237 = vpack.c.b16 %v773, %v765
    %v1238 = vpack.c.b16 %v774, %v766
    %v1239 = vpack.c.b16 %v775, %v767
    %v1240 = vpack.c.b16 %v776, %v768
    %v1241 = vpack.c.b16 %v777, %v769
    %v1242 = vpack.c.b16 %v778, %v770
    %v1243 = vpack.c.b16 %v779, %v771
    %v1244 = vpack.c.b16 %v780, %v772
    %v1245 = vpack.c.b16 %v789, %v781
    %v1246 = vpack.c.b16 %v790, %v782
    %v1247 = vpack.c.b16 %v791, %v783
    %v1248 = vpack.c.b16 %v792, %v784
    %v1249 = vpack.c.b16 %v793, %v785
    %v1250 = vpack.c.b16 %v794, %v786
    %v1251 = vpack.c.b16 %v795, %v787
    %v1252 = vpack.c.b16 %v796, %v788
    %v1253 = vpack.c.b16 %v805, %v797
    %v1254 = vpack.c.b16 %v806, %v798
    %v1255 = vpack.c.b16 %v807, %v799
    %v1256 = vpack.c.b16 %v808, %v800
    %v1257 = vpack.c.b16 %v809, %v801
    %v1258 = vpack.c.b16 %v810, %v802
    %v1259 = vpack.c.b16 %v811, %v803
    %v1260 = vpack.c.b16 %v812, %v804
    %v1261 = vpack.c.b16 %v821, %v813
    %v1262 = vpack.c.b16 %v822, %v814
    %v1263 = vpack.c.b16 %v823, %v815
    %v1264 = vpack.c.b16 %v824, %v816
    %v1265 = vpack.c.b16 %v825, %v817
    %v1266 = vpack.c.b16 %v826, %v818
    %v1267 = vpack.c.b16 %v827, %v819
    %v1268 = vpack.c.b16 %v828, %v820
    %v1269 = vpack.c.b16 %v837, %v829
    %v1270 = vpack.c.b16 %v838, %v830
    %v1271 = vpack.c.b16 %v839, %v831
    %v1272 = vpack.c.b16 %v840, %v832
    %v1273 = vpack.c.b16 %v841, %v833
    %v1274 = vpack.c.b16 %v842, %v834
    %v1275 = vpack.c.b16 %v843, %v835
    %v1276 = vpack.c.b16 %v844, %v836
    %v1277 = vpack.c.b16 %v853, %v845
    %v1278 = vpack.c.b16 %v854, %v846
    %v1279 = vpack.c.b16 %v855, %v847
    %v1280 = vpack.c.b16 %v856, %v848
    %v1281 = vpack.c.b16 %v857, %v849
    %v1282 = vpack.c.b16 %v858, %v850
    %v1283 = vpack.c.b16 %v859, %v851
    %v1284 = vpack.c.b16 %v860, %v852
    %v1285 = vpack.c.b16 %v869, %v861
    %v1286 = vpack.c.b16 %v870, %v862
    %v1287 = vpack.c.b16 %v871, %v863
    %v1288 = vpack.c.b16 %v872, %v864
    %v1289 = vpack.c.b16 %v873, %v865
    %v1290 = vpack.c.b16 %v874, %v866
    %v1291 = vpack.c.b16 %v875, %v867
    %v1292 = vpack.c.b16 %v876, %v868
    %v1293 = vpack.c.b16 %v885, %v877
    %v1294 = vpack.c.b16 %v886, %v878
    %v1295 = vpack.c.b16 %v887, %v879
    %v1296 = vpack.c.b16 %v888, %v880
    %v1297 = vpack.c.b16 %v889, %v881
    %v1298 = vpack.c.b16 %v890, %v882
    %v1299 = vpack.c.b16 %v891, %v883
    %v1300 = vpack.c.b16 %v892, %v884
    %v1301 = vpack.c.b16 %v901, %v893
    %v1302 = vpack.c.b16 %v902, %v894
    %v1303 = vpack.c.b16 %v903, %v895
    %v1304 = vpack.c.b16 %v904, %v896
    %v1305 = vpack.c.b16 %v905, %v897
    %v1306 = vpack.c.b16 %v906, %v898
    %v1307 = vpack.c.b16 %v907, %v899
    %v1308 = vpack.c.b16 %v908, %v900
    %v1309 = vpack.c.b16 %v917, %v909
    %v1310 = vpack.c.b16 %v918, %v910
    %v1311 = vpack.c.b16 %v919, %v911
    %v1312 = vpack.c.b16 %v920, %v912
    %v1313 = vpack.c.b16 %v921, %v913
    %v1314 = vpack.c.b16 %v922, %v914
    %v1315 = vpack.c.b16 %v923, %v915
    %v1316 = vpack.c.b16 %v924, %v916
    %v1317 = vpack.c.b16 %v933, %v925
    %v1318 = vpack.c.b16 %v934, %v926
    %v1319 = vpack.c.b16 %v935, %v927
    %v1320 = vpack.c.b16 %v936, %v928
    %v1321 = vpack.c.b16 %v937, %v929
    %v1322 = vpack.c.b16 %v938, %v930
    %v1323 = vpack.c.b16 %v939, %v931
    %v1324 = vpack.c.b16 %v940, %v932
    %v1325 = vpack.c.b16 %v949, %v941
    %v1326 = vpack.c.b16 %v950, %v942
    %v1327 = vpack.c.b16 %v951, %v943
    %v1328 = vpack.c.b16 %v952, %v944
    %v1329 = vpack.c.b16 %v953, %v945
    %v1330 = vpack.c.b16 %v954, %v946
    %v1331 = vpack.c.b16 %v955, %v947
    %v1332 = vpack.c.b16 %v956, %v948
    %v1333 = vpack.c.b16 %v965, %v957
    %v1334 = vpack.c.b16 %v966, %v958
    %v1335 = vpack.c.b16 %v967, %v959
    %v1336 = vpack.c.b16 %v968, %v960
    %v1337 = vpack.c.b16 %v969, %v961
    %v1338 = vpack.c.b16 %v970, %v962
    %v1339 = vpack.c.b16 %v971, %v963
    %v1340 = vpack.c.b16 %v972, %v964
    %v1341 = vpack.c.b16 %v981, %v973
    %v1342 = vpack.c.b16 %v982, %v974
    %v1343 = vpack.c.b16 %v983, %v975
    %v1344 = vpack.c.b16 %v984, %v976
    %v1345 = vpack.c.b16 %v985, %v977
    %v1346 = vpack.c.b16 %v986, %v978
    %v1347 = vpack.c.b16 %v987, %v979
    %v1348 = vpack.c.b16 %v988, %v980
    %v1349 = vpack.c.b16 %v997, %v989
    %v1350 = vpack.c.b16 %v998, %v990
    %v1351 = vpack.c.b16 %v999, %v991
    %v1352 = vpack.c.b16 %v1000, %v992
    %v1353 = vpack.c.b16 %v1001, %v993
    %v1354 = vpack.c.b16 %v1002, %v994
    %v1355 = vpack.c.b16 %v1003, %v995
    %v1356 = vpack.c.b16 %v1004, %v996
    %v1357 = vpack.c.b16 %v1013, %v1005
    %v1358 = vpack.c.b16 %v1014, %v1006
    %v1359 = vpack.c.b16 %v1015, %v1007
    %v1360 = vpack.c.b16 %v1016, %v1008
    %v1361 = vpack.c.b16 %v1017, %v1009
    %v1362 = vpack.c.b16 %v1018, %v1010
    %v1363 = vpack.c.b16 %v1019, %v1011
    %v1364 = vpack.c.b16 %v1020, %v1012
    %v1365 = vpack.c.b16 %v1029, %v1021
    %v1366 = vpack.c.b16 %v1030, %v1022
    %v1367 = vpack.c.b16 %v1031, %v1023
    %v1368 = vpack.c.b16 %v1032, %v1024
    %v1369 = vpack.c.b16 %v1033, %v1025
    %v1370 = vpack.c.b16 %v1034, %v1026
    %v1371 = vpack.c.b16 %v1035, %v1027
    %v1372 = vpack.c.b16 %v1036, %v1028
    %v1373 = vpack.c.b16 %v1045, %v1037
    %v1374 = vpack.c.b16 %v1046, %v1038
    %v1375 = vpack.c.b16 %v1047, %v1039
    %v1376 = vpack.c.b16 %v1048, %v1040
    %v1377 = vpack.c.b16 %v1049, %v1041
    %v1378 = vpack.c.b16 %v1050, %v1042
    %v1379 = vpack.c.b16 %v1051, %v1043
    %v1380 = vpack.c.b16 %v1052, %v1044
    %v1381 = vpack.c.b16 %v1061, %v1053
    %v1382 = vpack.c.b16 %v1062, %v1054
    %v1383 = vpack.c.b16 %v1063, %v1055
    %v1384 = vpack.c.b16 %v1064, %v1056
    %v1385 = vpack.c.b16 %v1065, %v1057
    %v1386 = vpack.c.b16 %v1066, %v1058
    %v1387 = vpack.c.b16 %v1067, %v1059
    %v1388 = vpack.c.b16 %v1068, %v1060
    %v1389 = vpack.c.b16 %v1077, %v1069
    %v1390 = vpack.c.b16 %v1078, %v1070
    %v1391 = vpack.c.b16 %v1079, %v1071
    %v1392 = vpack.c.b16 %v1080, %v1072
    %v1393 = vpack.c.b16 %v1081, %v1073
    %v1394 = vpack.c.b16 %v1082, %v1074
    %v1395 = vpack.c.b16 %v1083, %v1075
    %v1396 = vpack.c.b16 %v1084, %v1076
    %v1397 = vpack.c.b16 %v1093, %v1085
    %v1398 = vpack.c.b16 %v1094, %v1086
    %v1399 = vpack.c.b16 %v1095, %v1087
    %v1400 = vpack.c.b16 %v1096, %v1088
    %v1401 = vpack.c.b16 %v1097, %v1089
    %v1402 = vpack.c.b16 %v1098, %v1090
    %v1403 = vpack.c.b16 %v1099, %v1091
    %v1404 = vpack.c.b16 %v1100, %v1092
    %v1405 = vpack.c.b16 %v1109, %v1101
    %v1406 = vpack.c.b16 %v1110, %v1102
    %v1407 = vpack.c.b16 %v1111, %v1103
    %v1408 = vpack.c.b16 %v1112, %v1104
    %v1409 = vpack.c.b16 %v1113, %v1105
    %v1410 = vpack.c.b16 %v1114, %v1106
    %v1411 = vpack.c.b16 %v1115, %v1107
    %v1412 = vpack.c.b16 %v1116, %v1108
    %v1413 = vpack.c.b16 %v1125, %v1117
    %v1414 = vpack.c.b16 %v1126, %v1118
    %v1415 = vpack.c.b16 %v1127, %v1119
    %v1416 = vpack.c.b16 %v1128, %v1120
    %v1417 = vpack.c.b16 %v1129, %v1121
    %v1418 = vpack.c.b16 %v1130, %v1122
    %v1419 = vpack.c.b16 %v1131, %v1123
    %v1420 = vpack.c.b16 %v1132, %v1124
    %v1421 = vpack.c.b16 %v1141, %v1133
    %v1422 = vpack.c.b16 %v1142, %v1134
    %v1423 = vpack.c.b16 %v1143, %v1135
    %v1424 = vpack.c.b16 %v1144, %v1136
    %v1425 = vpack.c.b16 %v1145, %v1137
    %v1426 = vpack.c.b16 %v1146, %v1138
    %v1427 = vpack.c.b16 %v1147, %v1139
    %v1428 = vpack.c.b16 %v1148, %v1140
    %v1429 = vpack.c.b16 %v1157, %v1149
    %v1430 = vpack.c.b16 %v1158, %v1150
    %v1431 = vpack.c.b16 %v1159, %v1151
    %v1432 = vpack.c.b16 %v1160, %v1152
    %v1433 = vpack.c.b16 %v1161, %v1153
    %v1434 = vpack.c.b16 %v1162, %v1154
    %v1435 = vpack.c.b16 %v1163, %v1155
    %v1436 = vpack.c.b16 %v1164, %v1156
    %v1437 = vpack.c.b16 %v1173, %v1165
    %v1438 = vpack.c.b16 %v1174, %v1166
    %v1439 = vpack.c.b16 %v1175, %v1167
    %v1440 = vpack.c.b16 %v1176, %v1168
    %v1441 = vpack.c.b16 %v1177, %v1169
    %v1442 = vpack.c.b16 %v1178, %v1170
    %v1443 = vpack.c.b16 %v1179, %v1171
    %v1444 = vpack.c.b16 %v1180, %v1172
    %v1445 = vpack.c.b16 %v1189, %v1181
    %v1446 = vpack.c.b16 %v1190, %v1182
    %v1447 = vpack.c.b16 %v1191, %v1183
    %v1448 = vpack.c.b16 %v1192, %v1184
    %v1449 = vpack.c.b16 %v1193, %v1185
    %v1450 = vpack.c.b16 %v1194, %v1186
    %v1451 = vpack.c.b16 %v1195, %v1187
    %v1452 = vpack.c.b16 %v1196, %v1188
    %1709 = vmatprep.subr.bf16.mxu0 %v1198
    %1710 = vmatpush1.bf16.msra.mxu0 %v1197
    %1711 = vmatprep.subr.bf16.mxu0 %v1206
    %1712 = vmatpush1.bf16.msra.mxu0 %v1205
    %1713 = vmatprep.subr.bf16.mxu0 %v1214
    %1714 = vmatpush1.bf16.msra.mxu0 %v1213
    %1715 = vmatprep.subr.bf16.mxu0 %v1222
    %1716 = vmatpush1.bf16.msra.mxu0 %v1221
    %1717 = vmatprep.subr.bf16.mxu0 %v1230
    %1718 = vmatpush1.bf16.msra.mxu0 %v1229
    %1719 = vmatprep.subr.bf16.mxu0 %v1238
    %1720 = vmatpush1.bf16.msra.mxu0 %v1237
    %1721 = vmatprep.subr.bf16.mxu0 %v1246
    %1722 = vmatpush1.bf16.msra.mxu0 %v1245
    %1723 = vmatprep.subr.bf16.mxu0 %v1254
    %1724 = vmatpush1.bf16.msra.mxu0 %v1253
    %1725 = vmatprep.subr.bf16.mxu0 %v1262
    %1726 = vmatpush1.bf16.msra.mxu0 %v1261
    %1727 = vmatprep.subr.bf16.mxu0 %v1270
    %1728 = vmatpush1.bf16.msra.mxu0 %v1269
    %1729 = vmatprep.subr.bf16.mxu0 %v1278
    %1730 = vmatpush1.bf16.msra.mxu0 %v1277
    %1731 = vmatprep.subr.bf16.mxu0 %v1286
    %1732 = vmatpush1.bf16.msra.mxu0 %v1285
    %1733 = vmatprep.subr.bf16.mxu0 %v1294
    %1734 = vmatpush1.bf16.msra.mxu0 %v1293
    %1735 = vmatprep.subr.bf16.mxu0 %v1302
    %1736 = vmatpush1.bf16.msra.mxu0 %v1301
    %1737 = vmatprep.subr.bf16.mxu0 %v1310
    %1738 = vmatpush1.bf16.msra.mxu0 %v1309
    %1739 = vmatprep.subr.bf16.mxu0 %v1318
    %1740 = vmatpush1.bf16.msra.mxu0 %v1317
    %1741 = vmatprep.mubr.bf16.mxu0 %v126
    %1742 = vmatmul.mubr.bf16.gmra.mrb[0].mxu0 %v125
    %v1743 = vpop.f32.mrb[0].mxu0
    %v1744 = vadd.f32 %v392, %v1743
    %v1745 = vpop.f32.mrb[0].mxu0
    %v1746 = vadd.f32 %v396, %v1745
    %v1747 = vpop.f32.mrb[0].mxu0
    %v1748 = vadd.f32 %v392, %v1747
    %v1749 = vpop.f32.mrb[0].mxu0
    %v1750 = vadd.f32 %v396, %v1749
    %1751 = vdwg.mxu0
    %1752 = vmatprep.subr.bf16.mxu0 %v1326
    %1753 = vmatpush1.bf16.msra.mxu0 %v1325
    %1754 = vmatprep.subr.bf16.mxu0 %v1334
    %1755 = vmatpush1.bf16.msra.mxu0 %v1333
    %1756 = vmatprep.subr.bf16.mxu0 %v1342
    %1757 = vmatpush1.bf16.msra.mxu0 %v1341
    %1758 = vmatprep.subr.bf16.mxu0 %v1350
    %1759 = vmatpush1.bf16.msra.mxu0 %v1349
    %1760 = vmatprep.subr.bf16.mxu0 %v1358
    %1761 = vmatpush1.bf16.msra.mxu0 %v1357
    %1762 = vmatprep.subr.bf16.mxu0 %v1366
    %1763 = vmatpush1.bf16.msra.mxu0 %v1365
    %1764 = vmatprep.subr.bf16.mxu0 %v1374
    %1765 = vmatpush1.bf16.msra.mxu0 %v1373
    %1766 = vmatprep.subr.bf16.mxu0 %v1382
    %1767 = vmatpush1.bf16.msra.mxu0 %v1381
    %1768 = vmatprep.subr.bf16.mxu0 %v1390
    %1769 = vmatpush1.bf16.msra.mxu0 %v1389
    %1770 = vmatprep.subr.bf16.mxu0 %v1398
    %1771 = vmatpush1.bf16.msra.mxu0 %v1397
    %1772 = vmatprep.subr.bf16.mxu0 %v1406
    %1773 = vmatpush1.bf16.msra.mxu0 %v1405
    %1774 = vmatprep.subr.bf16.mxu0 %v1414
    %1775 = vmatpush1.bf16.msra.mxu0 %v1413
    %1776 = vmatprep.subr.bf16.mxu0 %v1422
    %1777 = vmatpush1.bf16.msra.mxu0 %v1421
    %1778 = vmatprep.subr.bf16.mxu0 %v1430
    %1779 = vmatpush1.bf16.msra.mxu0 %v1429
    %1780 = vmatprep.subr.bf16.mxu0 %v1438
    %1781 = vmatpush1.bf16.msra.mxu0 %v1437
    %1782 = vmatprep.subr.bf16.mxu0 %v1446
    %1783 = vmatpush1.bf16.msra.mxu0 %v1445
    %1784 = vmatprep.mubr.bf16.mxu0 %v128
    %1785 = vmatmul.mubr.bf16.gmra.mrb[0].mxu0 %v127
    %v1786 = vpop.f32.mrb[0].mxu0
    %v1787 = vadd.f32 %v1744, %v1786
    %v1788 = vpop.f32.mrb[0].mxu0
    %v1789 = vadd.f32 %v1746, %v1788
    %v1790 = vpop.f32.mrb[0].mxu0
    %v1791 = vadd.f32 %v1748, %v1790
    %v1792 = vpop.f32.mrb[0].mxu0
    %v1793 = vadd.f32 %v1750, %v1792
    %1794 = vdwg.mxu0
    %1795 = vmatprep.subr.bf16.mxu0 %v1200
    %1796 = vmatpush1.bf16.msra.mxu0 %v1199
    %1797 = vmatprep.subr.bf16.mxu0 %v1208
    %1798 = vmatpush1.bf16.msra.mxu0 %v1207
    %1799 = vmatprep.subr.bf16.mxu0 %v1216
    %1800 = vmatpush1.bf16.msra.mxu0 %v1215
    %1801 = vmatprep.subr.bf16.mxu0 %v1224
    %1802 = vmatpush1.bf16.msra.mxu0 %v1223
    %1803 = vmatprep.subr.bf16.mxu0 %v1232
    %1804 = vmatpush1.bf16.msra.mxu0 %v1231
    %1805 = vmatprep.subr.bf16.mxu0 %v1240
    %1806 = vmatpush1.bf16.msra.mxu0 %v1239
    %1807 = vmatprep.subr.bf16.mxu0 %v1248
    %1808 = vmatpush1.bf16.msra.mxu0 %v1247
    %1809 = vmatprep.subr.bf16.mxu0 %v1256
    %1810 = vmatpush1.bf16.msra.mxu0 %v1255
    %1811 = vmatprep.subr.bf16.mxu0 %v1264
    %1812 = vmatpush1.bf16.msra.mxu0 %v1263
    %1813 = vmatprep.subr.bf16.mxu0 %v1272
    %1814 = vmatpush1.bf16.msra.mxu0 %v1271
    %1815 = vmatprep.subr.bf16.mxu0 %v1280
    %1816 = vmatpush1.bf16.msra.mxu0 %v1279
    %1817 = vmatprep.subr.bf16.mxu0 %v1288
    %1818 = vmatpush1.bf16.msra.mxu0 %v1287
    %1819 = vmatprep.subr.bf16.mxu0 %v1296
    %1820 = vmatpush1.bf16.msra.mxu0 %v1295
    %1821 = vmatprep.subr.bf16.mxu0 %v1304
    %1822 = vmatpush1.bf16.msra.mxu0 %v1303
    %1823 = vmatprep.subr.bf16.mxu0 %v1312
    %1824 = vmatpush1.bf16.msra.mxu0 %v1311
    %1825 = vmatprep.subr.bf16.mxu0 %v1320
    %1826 = vmatpush1.bf16.msra.mxu0 %v1319
    %1827 = vmatprep.mubr.bf16.mxu0 %v126
    %1828 = vmatmul.mubr.bf16.gmra.mrb[0].mxu0 %v125
    %v1829 = vpop.f32.mrb[0].mxu0
    %v1830 = vadd.f32 %v400, %v1829
    %v1831 = vpop.f32.mrb[0].mxu0
    %v1832 = vadd.f32 %v404, %v1831
    %v1833 = vpop.f32.mrb[0].mxu0
    %v1834 = vadd.f32 %v400, %v1833
    %v1835 = vpop.f32.mrb[0].mxu0
    %v1836 = vadd.f32 %v404, %v1835
    %1837 = vdwg.mxu0
    %1838 = vmatprep.subr.bf16.mxu0 %v1328
    %1839 = vmatpush1.bf16.msra.mxu0 %v1327
    %1840 = vmatprep.subr.bf16.mxu0 %v1336
    %1841 = vmatpush1.bf16.msra.mxu0 %v1335
    %1842 = vmatprep.subr.bf16.mxu0 %v1344
    %1843 = vmatpush1.bf16.msra.mxu0 %v1343
    %1844 = vmatprep.subr.bf16.mxu0 %v1352
    %1845 = vmatpush1.bf16.msra.mxu0 %v1351
    %1846 = vmatprep.subr.bf16.mxu0 %v1360
    %1847 = vmatpush1.bf16.msra.mxu0 %v1359
    %1848 = vmatprep.subr.bf16.mxu0 %v1368
    %1849 = vmatpush1.bf16.msra.mxu0 %v1367
    %1850 = vmatprep.subr.bf16.mxu0 %v1376
    %1851 = vmatpush1.bf16.msra.mxu0 %v1375
    %1852 = vmatprep.subr.bf16.mxu0 %v1384
    %1853 = vmatpush1.bf16.msra.mxu0 %v1383
    %1854 = vmatprep.subr.bf16.mxu0 %v1392
    %1855 = vmatpush1.bf16.msra.mxu0 %v1391
    %1856 = vmatprep.subr.bf16.mxu0 %v1400
    %1857 = vmatpush1.bf16.msra.mxu0 %v1399
    %1858 = vmatprep.subr.bf16.mxu0 %v1408
    %1859 = vmatpush1.bf16.msra.mxu0 %v1407
    %1860 = vmatprep.subr.bf16.mxu0 %v1416
    %1861 = vmatpush1.bf16.msra.mxu0 %v1415
    %1862 = vmatprep.subr.bf16.mxu0 %v1424
    %1863 = vmatpush1.bf16.msra.mxu0 %v1423
    %1864 = vmatprep.subr.bf16.mxu0 %v1432
    %1865 = vmatpush1.bf16.msra.mxu0 %v1431
    %1866 = vmatprep.subr.bf16.mxu0 %v1440
    %1867 = vmatpush1.bf16.msra.mxu0 %v1439
    %1868 = vmatprep.subr.bf16.mxu0 %v1448
    %1869 = vmatpush1.bf16.msra.mxu0 %v1447
    %1870 = vmatprep.mubr.bf16.mxu0 %v128
    %1871 = vmatmul.mubr.bf16.gmra.mrb[0].mxu0 %v127
    %v1872 = vpop.f32.mrb[0].mxu0
    %v1873 = vadd.f32 %v1830, %v1872
    %v1874 = vpop.f32.mrb[0].mxu0
    %v1875 = vadd.f32 %v1832, %v1874
    %v1876 = vpop.f32.mrb[0].mxu0
    %v1877 = vadd.f32 %v1834, %v1876
    %v1878 = vpop.f32.mrb[0].mxu0
    %v1879 = vadd.f32 %v1836, %v1878
    %1880 = vdwg.mxu0
    %1881 = vmatprep.subr.bf16.mxu0 %v1202
    %1882 = vmatpush1.bf16.msra.mxu0 %v1201
    %1883 = vmatprep.subr.bf16.mxu0 %v1210
    %1884 = vmatpush1.bf16.msra.mxu0 %v1209
    %1885 = vmatprep.subr.bf16.mxu0 %v1218
    %1886 = vmatpush1.bf16.msra.mxu0 %v1217
    %1887 = vmatprep.subr.bf16.mxu0 %v1226
    %1888 = vmatpush1.bf16.msra.mxu0 %v1225
    %1889 = vmatprep.subr.bf16.mxu0 %v1234
    %1890 = vmatpush1.bf16.msra.mxu0 %v1233
    %1891 = vmatprep.subr.bf16.mxu0 %v1242
    %1892 = vmatpush1.bf16.msra.mxu0 %v1241
    %1893 = vmatprep.subr.bf16.mxu0 %v1250
    %1894 = vmatpush1.bf16.msra.mxu0 %v1249
    %1895 = vmatprep.subr.bf16.mxu0 %v1258
    %1896 = vmatpush1.bf16.msra.mxu0 %v1257
    %1897 = vmatprep.subr.bf16.mxu0 %v1266
    %1898 = vmatpush1.bf16.msra.mxu0 %v1265
    %1899 = vmatprep.subr.bf16.mxu0 %v1274
    %1900 = vmatpush1.bf16.msra.mxu0 %v1273
    %1901 = vmatprep.subr.bf16.mxu0 %v1282
    %1902 = vmatpush1.bf16.msra.mxu0 %v1281
    %1903 = vmatprep.subr.bf16.mxu0 %v1290
    %1904 = vmatpush1.bf16.msra.mxu0 %v1289
    %1905 = vmatprep.subr.bf16.mxu0 %v1298
    %1906 = vmatpush1.bf16.msra.mxu0 %v1297
    %1907 = vmatprep.subr.bf16.mxu0 %v1306
    %1908 = vmatpush1.bf16.msra.mxu0 %v1305
    %1909 = vmatprep.subr.bf16.mxu0 %v1314
    %1910 = vmatpush1.bf16.msra.mxu0 %v1313
    %1911 = vmatprep.subr.bf16.mxu0 %v1322
    %1912 = vmatpush1.bf16.msra.mxu0 %v1321
    %1913 = vmatprep.mubr.bf16.mxu0 %v126
    %1914 = vmatmul.mubr.bf16.gmra.mrb[0].mxu0 %v125
    %v1915 = vpop.f32.mrb[0].mxu0
    %v1916 = vadd.f32 %v408, %v1915
    %v1917 = vpop.f32.mrb[0].mxu0
    %v1918 = vadd.f32 %v412, %v1917
    %v1919 = vpop.f32.mrb[0].mxu0
    %v1920 = vadd.f32 %v408, %v1919
    %v1921 = vpop.f32.mrb[0].mxu0
    %v1922 = vadd.f32 %v412, %v1921
    %1923 = vdwg.mxu0
    %1924 = vmatprep.subr.bf16.mxu0 %v1330
    %1925 = vmatpush1.bf16.msra.mxu0 %v1329
    %1926 = vmatprep.subr.bf16.mxu0 %v1338
    %1927 = vmatpush1.bf16.msra.mxu0 %v1337
    %1928 = vmatprep.subr.bf16.mxu0 %v1346
    %1929 = vmatpush1.bf16.msra.mxu0 %v1345
    %1930 = vmatprep.subr.bf16.mxu0 %v1354
    %1931 = vmatpush1.bf16.msra.mxu0 %v1353
    %1932 = vmatprep.subr.bf16.mxu0 %v1362
    %1933 = vmatpush1.bf16.msra.mxu0 %v1361
    %1934 = vmatprep.subr.bf16.mxu0 %v1370
    %1935 = vmatpush1.bf16.msra.mxu0 %v1369
    %1936 = vmatprep.subr.bf16.mxu0 %v1378
    %1937 = vmatpush1.bf16.msra.mxu0 %v1377
    %1938 = vmatprep.subr.bf16.mxu0 %v1386
    %1939 = vmatpush1.bf16.msra.mxu0 %v1385
    %1940 = vmatprep.subr.bf16.mxu0 %v1394
    %1941 = vmatpush1.bf16.msra.mxu0 %v1393
    %1942 = vmatprep.subr.bf16.mxu0 %v1402
    %1943 = vmatpush1.bf16.msra.mxu0 %v1401
    %1944 = vmatprep.subr.bf16.mxu0 %v1410
    %1945 = vmatpush1.bf16.msra.mxu0 %v1409
    %1946 = vmatprep.subr.bf16.mxu0 %v1418
    %1947 = vmatpush1.bf16.msra.mxu0 %v1417
    %1948 = vmatprep.subr.bf16.mxu0 %v1426
    %1949 = vmatpush1.bf16.msra.mxu0 %v1425
    %1950 = vmatprep.subr.bf16.mxu0 %v1434
    %1951 = vmatpush1.bf16.msra.mxu0 %v1433
    %1952 = vmatprep.subr.bf16.mxu0 %v1442
    %1953 = vmatpush1.bf16.msra.mxu0 %v1441
    %1954 = vmatprep.subr.bf16.mxu0 %v1450
    %1955 = vmatpush1.bf16.msra.mxu0 %v1449
    %1956 = vmatprep.mubr.bf16.mxu0 %v128
    %1957 = vmatmul.mubr.bf16.gmra.mrb[0].mxu0 %v127
    %v1958 = vpop.f32.mrb[0].mxu0
    %v1959 = vadd.f32 %v1916, %v1958
    %v1960 = vpop.f32.mrb[0].mxu0
    %v1961 = vadd.f32 %v1918, %v1960
    %v1962 = vpop.f32.mrb[0].mxu0
    %v1963 = vadd.f32 %v1920, %v1962
    %v1964 = vpop.f32.mrb[0].mxu0
    %v1965 = vadd.f32 %v1922, %v1964
    %1966 = vdwg.mxu0
    %1967 = vmatprep.subr.bf16.mxu0 %v1204
    %1968 = vmatpush1.bf16.msra.mxu0 %v1203
    %1969 = vmatprep.subr.bf16.mxu0 %v1212
    %1970 = vmatpush1.bf16.msra.mxu0 %v1211
    %1971 = vmatprep.subr.bf16.mxu0 %v1220
    %1972 = vmatpush1.bf16.msra.mxu0 %v1219
    %1973 = vmatprep.subr.bf16.mxu0 %v1228
    %1974 = vmatpush1.bf16.msra.mxu0 %v1227
    %1975 = vmatprep.subr.bf16.mxu0 %v1236
    %1976 = vmatpush1.bf16.msra.mxu0 %v1235
    %1977 = vmatprep.subr.bf16.mxu0 %v1244
    %1978 = vmatpush1.bf16.msra.mxu0 %v1243
    %1979 = vmatprep.subr.bf16.mxu0 %v1252
    %1980 = vmatpush1.bf16.msra.mxu0 %v1251
    %1981 = vmatprep.subr.bf16.mxu0 %v1260
    %1982 = vmatpush1.bf16.msra.mxu0 %v1259
    %1983 = vmatprep.subr.bf16.mxu0 %v1268
    %1984 = vmatpush1.bf16.msra.mxu0 %v1267
    %1985 = vmatprep.subr.bf16.mxu0 %v1276
    %1986 = vmatpush1.bf16.msra.mxu0 %v1275
    %1987 = vmatprep.subr.bf16.mxu0 %v1284
    %1988 = vmatpush1.bf16.msra.mxu0 %v1283
    %1989 = vmatprep.subr.bf16.mxu0 %v1292
    %1990 = vmatpush1.bf16.msra.mxu0 %v1291
    %1991 = vmatprep.subr.bf16.mxu0 %v1300
    %1992 = vmatpush1.bf16.msra.mxu0 %v1299
    %1993 = vmatprep.subr.bf16.mxu0 %v1308
    %1994 = vmatpush1.bf16.msra.mxu0 %v1307
    %1995 = vmatprep.subr.bf16.mxu0 %v1316
    %1996 = vmatpush1.bf16.msra.mxu0 %v1315
    %1997 = vmatprep.subr.bf16.mxu0 %v1324
    %1998 = vmatpush1.bf16.msra.mxu0 %v1323
    %1999 = vmatprep.mubr.bf16.mxu0 %v126
    %2000 = vmatmul.mubr.bf16.gmra.mrb[0].mxu0 %v125
    %v2001 = vpop.f32.mrb[0].mxu0
    %v2002 = vadd.f32 %v416, %v2001
    %v2003 = vpop.f32.mrb[0].mxu0
    %v2004 = vadd.f32 %v420, %v2003
    %v2005 = vpop.f32.mrb[0].mxu0
    %v2006 = vadd.f32 %v416, %v2005
    %v2007 = vpop.f32.mrb[0].mxu0
    %v2008 = vadd.f32 %v420, %v2007
    %2009 = vdwg.mxu0
    %2010 = vmatprep.subr.bf16.mxu0 %v1332
    %2011 = vmatpush1.bf16.msra.mxu0 %v1331
    %2012 = vmatprep.subr.bf16.mxu0 %v1340
    %2013 = vmatpush1.bf16.msra.mxu0 %v1339
    %2014 = vmatprep.subr.bf16.mxu0 %v1348
    %2015 = vmatpush1.bf16.msra.mxu0 %v1347
    %2016 = vmatprep.subr.bf16.mxu0 %v1356
    %2017 = vmatpush1.bf16.msra.mxu0 %v1355
    %2018 = vmatprep.subr.bf16.mxu0 %v1364
    %2019 = vmatpush1.bf16.msra.mxu0 %v1363
    %2020 = vmatprep.subr.bf16.mxu0 %v1372
    %2021 = vmatpush1.bf16.msra.mxu0 %v1371
    %2022 = vmatprep.subr.bf16.mxu0 %v1380
    %2023 = vmatpush1.bf16.msra.mxu0 %v1379
    %2024 = vmatprep.subr.bf16.mxu0 %v1388
    %2025 = vmatpush1.bf16.msra.mxu0 %v1387
    %2026 = vmatprep.subr.bf16.mxu0 %v1396
    %2027 = vmatpush1.bf16.msra.mxu0 %v1395
    %2028 = vmatprep.subr.bf16.mxu0 %v1404
    %2029 = vmatpush1.bf16.msra.mxu0 %v1403
    %2030 = vmatprep.subr.bf16.mxu0 %v1412
    %2031 = vmatpush1.bf16.msra.mxu0 %v1411
    %2032 = vmatprep.subr.bf16.mxu0 %v1420
    %2033 = vmatpush1.bf16.msra.mxu0 %v1419
    %2034 = vmatprep.subr.bf16.mxu0 %v1428
    %2035 = vmatpush1.bf16.msra.mxu0 %v1427
    %2036 = vmatprep.subr.bf16.mxu0 %v1436
    %2037 = vmatpush1.bf16.msra.mxu0 %v1435
    %2038 = vmatprep.subr.bf16.mxu0 %v1444
    %2039 = vmatpush1.bf16.msra.mxu0 %v1443
    %2040 = vmatprep.subr.bf16.mxu0 %v1452
    %2041 = vmatpush1.bf16.msra.mxu0 %v1451
    %2042 = vmatprep.mubr.bf16.mxu0 %v128
    %2043 = vmatmul.mubr.bf16.gmra.mrb[0].mxu0 %v127
    %v2044 = vpop.f32.mrb[0].mxu0
    %v2045 = vadd.f32 %v2002, %v2044
    %v2046 = vpop.f32.mrb[0].mxu0
    %v2047 = vadd.f32 %v2004, %v2046
    %v2048 = vpop.f32.mrb[0].mxu0
    %v2049 = vadd.f32 %v2006, %v2048
    %v2050 = vpop.f32.mrb[0].mxu0
    %v2051 = vadd.f32 %v2008, %v2050
    %2052 = vdwg.mxu0
    %v2053 = vmax.f32 %v1787, 0.0
    %v2054 = vmax.f32 %v1789, 0.0
    %v2055 = vmax.f32 %v1873, 0.0
    %v2056 = vmax.f32 %v1875, 0.0
    %v2057 = vmax.f32 %v1959, 0.0
    %v2058 = vmax.f32 %v1961, 0.0
    %v2059 = vmax.f32 %v2045, 0.0
    %v2060 = vmax.f32 %v2047, 0.0
    %v2061 = vmax.f32 %v1791, 0.0
    %v2062 = vmax.f32 %v1793, 0.0
    %v2063 = vmax.f32 %v1877, 0.0
    %v2064 = vmax.f32 %v1879, 0.0
    %v2065 = vmax.f32 %v1963, 0.0
    %v2066 = vmax.f32 %v1965, 0.0
    %v2067 = vmax.f32 %v2049, 0.0
    %v2068 = vmax.f32 %v2051, 0.0
    %v2069 = vpack.c.bf16 %v2061, %v2053
    %v2070 = vpack.c.bf16 %v2062, %v2054
    %v2071 = vpack.c.bf16 %v2063, %v2055
    %v2072 = vpack.c.bf16 %v2064, %v2056
    %v2073 = vpack.c.bf16 %v2065, %v2057
    %v2074 = vpack.c.bf16 %v2066, %v2058
    %v2075 = vpack.c.bf16 %v2067, %v2059
    %v2076 = vpack.c.bf16 %v2068, %v2060
    %v2077 = vld [vmem:[#allocation8] sm:$0xff]
    %v2078 = vld [vmem:[#allocation8 + $0x8] sm:$0xff]
    %v2079 = vld [vmem:[#allocation8 + $0x10] sm:$0xff]
    %v2080 = vld [vmem:[#allocation8 + $0x18] sm:$0xff]
    %v2081 = vld [vmem:[#allocation8 + $0x20] sm:$0xff]
    %v2082 = vld [vmem:[#allocation8 + $0x28] sm:$0xff]
    %v2083 = vld [vmem:[#allocation8 + $0x30] sm:$0xff]
    %v2084 = vld [vmem:[#allocation8 + $0x38] sm:$0xff]
    %v2085 = vld [vmem:[#allocation8 + $0x40] sm:$0xff]
    %v2086 = vld [vmem:[#allocation8 + $0x48] sm:$0xff]
    %v2087 = vld [vmem:[#allocation8 + $0x50] sm:$0xff]
    %v2088 = vld [vmem:[#allocation8 + $0x58] sm:$0xff]
    %v2089 = vld [vmem:[#allocation8 + $0x60] sm:$0xff]
    %v2090 = vld [vmem:[#allocation8 + $0x68] sm:$0xff]
    %v2091 = vld [vmem:[#allocation8 + $0x70] sm:$0xff]
    %v2092 = vld [vmem:[#allocation8 + $0x78] sm:$0xff]
    %v2093 = vld [vmem:[#allocation8 + $0x80] sm:$0xff]
    %v2094 = vld [vmem:[#allocation8 + $0x88] sm:$0xff]
    %v2095 = vld [vmem:[#allocation8 + $0x90] sm:$0xff]
    %v2096 = vld [vmem:[#allocation8 + $0x98] sm:$0xff]
    %v2097 = vld [vmem:[#allocation8 + $0xa0] sm:$0xff]
    %v2098 = vld [vmem:[#allocation8 + $0xa8] sm:$0xff]
    %v2099 = vld [vmem:[#allocation8 + $0xb0] sm:$0xff]
    %v2100 = vld [vmem:[#allocation8 + $0xb8] sm:$0xff]
    %v2101 = vld [vmem:[#allocation8 + $0xc0] sm:$0xff]
    %v2102 = vld [vmem:[#allocation8 + $0xc8] sm:$0xff]
    %v2103 = vld [vmem:[#allocation8 + $0xd0] sm:$0xff]
    %v2104 = vld [vmem:[#allocation8 + $0xd8] sm:$0xff]
    %v2105 = vld [vmem:[#allocation8 + $0xe0] sm:$0xff]
    %v2106 = vld [vmem:[#allocation8 + $0xe8] sm:$0xff]
    %v2107 = vld [vmem:[#allocation8 + $0xf0] sm:$0xff]
    %v2108 = vld [vmem:[#allocation8 + $0xf8] sm:$0xff]
    %v2109 = vld [vmem:[#allocation8 + $0x100] sm:$0xff]
    %v2110 = vld [vmem:[#allocation8 + $0x108] sm:$0xff]
    %v2111 = vld [vmem:[#allocation8 + $0x110] sm:$0xff]
    %v2112 = vld [vmem:[#allocation8 + $0x118] sm:$0xff]
    %v2113 = vld [vmem:[#allocation8 + $0x120] sm:$0xff]
    %v2114 = vld [vmem:[#allocation8 + $0x128] sm:$0xff]
    %v2115 = vld [vmem:[#allocation8 + $0x130] sm:$0xff]
    %v2116 = vld [vmem:[#allocation8 + $0x138] sm:$0xff]
    %v2117 = vld [vmem:[#allocation8 + $0x140] sm:$0xff]
    %v2118 = vld [vmem:[#allocation8 + $0x148] sm:$0xff]
    %v2119 = vld [vmem:[#allocation8 + $0x150] sm:$0xff]
    %v2120 = vld [vmem:[#allocation8 + $0x158] sm:$0xff]
    %v2121 = vld [vmem:[#allocation8 + $0x160] sm:$0xff]
    %v2122 = vld [vmem:[#allocation8 + $0x168] sm:$0xff]
    %v2123 = vld [vmem:[#allocation8 + $0x170] sm:$0xff]
    %v2124 = vld [vmem:[#allocation8 + $0x178] sm:$0xff]
    %v2125 = vld [vmem:[#allocation8 + $0x180] sm:$0xff]
    %v2126 = vld [vmem:[#allocation8 + $0x188] sm:$0xff]
    %v2127 = vld [vmem:[#allocation8 + $0x190] sm:$0xff]
    %v2128 = vld [vmem:[#allocation8 + $0x198] sm:$0xff]
    %v2129 = vld [vmem:[#allocation8 + $0x1a0] sm:$0xff]
    %v2130 = vld [vmem:[#allocation8 + $0x1a8] sm:$0xff]
    %v2131 = vld [vmem:[#allocation8 + $0x1b0] sm:$0xff]
    %v2132 = vld [vmem:[#allocation8 + $0x1b8] sm:$0xff]
    %v2133 = vld [vmem:[#allocation8 + $0x1c0] sm:$0xff]
    %v2134 = vld [vmem:[#allocation8 + $0x1c8] sm:$0xff]
    %v2135 = vld [vmem:[#allocation8 + $0x1d0] sm:$0xff]
    %v2136 = vld [vmem:[#allocation8 + $0x1d8] sm:$0xff]
    %v2137 = vld [vmem:[#allocation8 + $0x1e0] sm:$0xff]
    %v2138 = vld [vmem:[#allocation8 + $0x1e8] sm:$0xff]
    %v2139 = vld [vmem:[#allocation8 + $0x1f0] sm:$0xff]
    %v2140 = vld [vmem:[#allocation8 + $0x1f8] sm:$0xff]
    %v2141 = vld [vmem:[#allocation8 + $0x200] sm:$0xff]
    %v2142 = vld [vmem:[#allocation8 + $0x208] sm:$0xff]
    %v2143 = vld [vmem:[#allocation8 + $0x210] sm:$0xff]
    %v2144 = vld [vmem:[#allocation8 + $0x218] sm:$0xff]
    %v2145 = vld [vmem:[#allocation8 + $0x220] sm:$0xff]
    %v2146 = vld [vmem:[#allocation8 + $0x228] sm:$0xff]
    %v2147 = vld [vmem:[#allocation8 + $0x230] sm:$0xff]
    %v2148 = vld [vmem:[#allocation8 + $0x238] sm:$0xff]
    %v2149 = vld [vmem:[#allocation8 + $0x240] sm:$0xff]
    %v2150 = vld [vmem:[#allocation8 + $0x248] sm:$0xff]
    %v2151 = vld [vmem:[#allocation8 + $0x250] sm:$0xff]
    %v2152 = vld [vmem:[#allocation8 + $0x258] sm:$0xff]
    %v2153 = vld [vmem:[#allocation8 + $0x260] sm:$0xff]
    %v2154 = vld [vmem:[#allocation8 + $0x268] sm:$0xff]
    %v2155 = vld [vmem:[#allocation8 + $0x270] sm:$0xff]
    %v2156 = vld [vmem:[#allocation8 + $0x278] sm:$0xff]
    %v2157 = vld [vmem:[#allocation8 + $0x280] sm:$0xff]
    %v2158 = vld [vmem:[#allocation8 + $0x288] sm:$0xff]
    %v2159 = vld [vmem:[#allocation8 + $0x290] sm:$0xff]
    %v2160 = vld [vmem:[#allocation8 + $0x298] sm:$0xff]
    %v2161 = vld [vmem:[#allocation8 + $0x2a0] sm:$0xff]
    %v2162 = vld [vmem:[#allocation8 + $0x2a8] sm:$0xff]
    %v2163 = vld [vmem:[#allocation8 + $0x2b0] sm:$0xff]
    %v2164 = vld [vmem:[#allocation8 + $0x2b8] sm:$0xff]
    %v2165 = vld [vmem:[#allocation8 + $0x2c0] sm:$0xff]
    %v2166 = vld [vmem:[#allocation8 + $0x2c8] sm:$0xff]
    %v2167 = vld [vmem:[#allocation8 + $0x2d0] sm:$0xff]
    %v2168 = vld [vmem:[#allocation8 + $0x2d8] sm:$0xff]
    %v2169 = vld [vmem:[#allocation8 + $0x2e0] sm:$0xff]
    %v2170 = vld [vmem:[#allocation8 + $0x2e8] sm:$0xff]
    %v2171 = vld [vmem:[#allocation8 + $0x2f0] sm:$0xff]
    %v2172 = vld [vmem:[#allocation8 + $0x2f8] sm:$0xff]
    %v2173 = vld [vmem:[#allocation8 + $0x300] sm:$0xff]
    %v2174 = vld [vmem:[#allocation8 + $0x308] sm:$0xff]
    %v2175 = vld [vmem:[#allocation8 + $0x310] sm:$0xff]
    %v2176 = vld [vmem:[#allocation8 + $0x318] sm:$0xff]
    %v2177 = vld [vmem:[#allocation8 + $0x320] sm:$0xff]
    %v2178 = vld [vmem:[#allocation8 + $0x328] sm:$0xff]
    %v2179 = vld [vmem:[#allocation8 + $0x330] sm:$0xff]
    %v2180 = vld [vmem:[#allocation8 + $0x338] sm:$0xff]
    %v2181 = vld [vmem:[#allocation8 + $0x340] sm:$0xff]
    %v2182 = vld [vmem:[#allocation8 + $0x348] sm:$0xff]
    %v2183 = vld [vmem:[#allocation8 + $0x350] sm:$0xff]
    %v2184 = vld [vmem:[#allocation8 + $0x358] sm:$0xff]
    %v2185 = vld [vmem:[#allocation8 + $0x360] sm:$0xff]
    %v2186 = vld [vmem:[#allocation8 + $0x368] sm:$0xff]
    %v2187 = vld [vmem:[#allocation8 + $0x370] sm:$0xff]
    %v2188 = vld [vmem:[#allocation8 + $0x378] sm:$0xff]
    %v2189 = vld [vmem:[#allocation8 + $0x380] sm:$0xff]
    %v2190 = vld [vmem:[#allocation8 + $0x388] sm:$0xff]
    %v2191 = vld [vmem:[#allocation8 + $0x390] sm:$0xff]
    %v2192 = vld [vmem:[#allocation8 + $0x398] sm:$0xff]
    %v2193 = vld [vmem:[#allocation8 + $0x3a0] sm:$0xff]
    %v2194 = vld [vmem:[#allocation8 + $0x3a8] sm:$0xff]
    %v2195 = vld [vmem:[#allocation8 + $0x3b0] sm:$0xff]
    %v2196 = vld [vmem:[#allocation8 + $0x3b8] sm:$0xff]
    %v2197 = vld [vmem:[#allocation8 + $0x3c0] sm:$0xff]
    %v2198 = vld [vmem:[#allocation8 + $0x3c8] sm:$0xff]
    %v2199 = vld [vmem:[#allocation8 + $0x3d0] sm:$0xff]
    %v2200 = vld [vmem:[#allocation8 + $0x3d8] sm:$0xff]
    %v2201 = vld [vmem:[#allocation8 + $0x3e0] sm:$0xff]
    %v2202 = vld [vmem:[#allocation8 + $0x3e8] sm:$0xff]
    %v2203 = vld [vmem:[#allocation8 + $0x3f0] sm:$0xff]
    %v2204 = vld [vmem:[#allocation8 + $0x3f8] sm:$0xff]
    %v2205 = vld [vmem:[#allocation8 + $0x400] sm:$0xff]
    %v2206 = vld [vmem:[#allocation8 + $0x408] sm:$0xff]
    %v2207 = vld [vmem:[#allocation8 + $0x410] sm:$0xff]
    %v2208 = vld [vmem:[#allocation8 + $0x418] sm:$0xff]
    %v2209 = vld [vmem:[#allocation8 + $0x420] sm:$0xff]
    %v2210 = vld [vmem:[#allocation8 + $0x428] sm:$0xff]
    %v2211 = vld [vmem:[#allocation8 + $0x430] sm:$0xff]
    %v2212 = vld [vmem:[#allocation8 + $0x438] sm:$0xff]
    %v2213 = vld [vmem:[#allocation8 + $0x440] sm:$0xff]
    %v2214 = vld [vmem:[#allocation8 + $0x448] sm:$0xff]
    %v2215 = vld [vmem:[#allocation8 + $0x450] sm:$0xff]
    %v2216 = vld [vmem:[#allocation8 + $0x458] sm:$0xff]
    %v2217 = vld [vmem:[#allocation8 + $0x460] sm:$0xff]
    %v2218 = vld [vmem:[#allocation8 + $0x468] sm:$0xff]
    %v2219 = vld [vmem:[#allocation8 + $0x470] sm:$0xff]
    %v2220 = vld [vmem:[#allocation8 + $0x478] sm:$0xff]
    %v2221 = vld [vmem:[#allocation8 + $0x480] sm:$0xff]
    %v2222 = vld [vmem:[#allocation8 + $0x488] sm:$0xff]
    %v2223 = vld [vmem:[#allocation8 + $0x490] sm:$0xff]
    %v2224 = vld [vmem:[#allocation8 + $0x498] sm:$0xff]
    %v2225 = vld [vmem:[#allocation8 + $0x4a0] sm:$0xff]
    %v2226 = vld [vmem:[#allocation8 + $0x4a8] sm:$0xff]
    %v2227 = vld [vmem:[#allocation8 + $0x4b0] sm:$0xff]
    %v2228 = vld [vmem:[#allocation8 + $0x4b8] sm:$0xff]
    %v2229 = vld [vmem:[#allocation8 + $0x4c0] sm:$0xff]
    %v2230 = vld [vmem:[#allocation8 + $0x4c8] sm:$0xff]
    %v2231 = vld [vmem:[#allocation8 + $0x4d0] sm:$0xff]
    %v2232 = vld [vmem:[#allocation8 + $0x4d8] sm:$0xff]
    %v2233 = vld [vmem:[#allocation8 + $0x4e0] sm:$0xff]
    %v2234 = vld [vmem:[#allocation8 + $0x4e8] sm:$0xff]
    %v2235 = vld [vmem:[#allocation8 + $0x4f0] sm:$0xff]
    %v2236 = vld [vmem:[#allocation8 + $0x4f8] sm:$0xff]
    %v2237 = vld [vmem:[#allocation8 + $0x500] sm:$0xff]
    %v2238 = vld [vmem:[#allocation8 + $0x508] sm:$0xff]
    %v2239 = vld [vmem:[#allocation8 + $0x510] sm:$0xff]
    %v2240 = vld [vmem:[#allocation8 + $0x518] sm:$0xff]
    %v2241 = vld [vmem:[#allocation8 + $0x520] sm:$0xff]
    %v2242 = vld [vmem:[#allocation8 + $0x528] sm:$0xff]
    %v2243 = vld [vmem:[#allocation8 + $0x530] sm:$0xff]
    %v2244 = vld [vmem:[#allocation8 + $0x538] sm:$0xff]
    %v2245 = vld [vmem:[#allocation8 + $0x540] sm:$0xff]
    %v2246 = vld [vmem:[#allocation8 + $0x548] sm:$0xff]
    %v2247 = vld [vmem:[#allocation8 + $0x550] sm:$0xff]
    %v2248 = vld [vmem:[#allocation8 + $0x558] sm:$0xff]
    %v2249 = vld [vmem:[#allocation8 + $0x560] sm:$0xff]
    %v2250 = vld [vmem:[#allocation8 + $0x568] sm:$0xff]
    %v2251 = vld [vmem:[#allocation8 + $0x570] sm:$0xff]
    %v2252 = vld [vmem:[#allocation8 + $0x578] sm:$0xff]
    %v2253 = vld [vmem:[#allocation8 + $0x580] sm:$0xff]
    %v2254 = vld [vmem:[#allocation8 + $0x588] sm:$0xff]
    %v2255 = vld [vmem:[#allocation8 + $0x590] sm:$0xff]
    %v2256 = vld [vmem:[#allocation8 + $0x598] sm:$0xff]
    %v2257 = vld [vmem:[#allocation8 + $0x5a0] sm:$0xff]
    %v2258 = vld [vmem:[#allocation8 + $0x5a8] sm:$0xff]
    %v2259 = vld [vmem:[#allocation8 + $0x5b0] sm:$0xff]
    %v2260 = vld [vmem:[#allocation8 + $0x5b8] sm:$0xff]
    %v2261 = vld [vmem:[#allocation8 + $0x5c0] sm:$0xff]
    %v2262 = vld [vmem:[#allocation8 + $0x5c8] sm:$0xff]
    %v2263 = vld [vmem:[#allocation8 + $0x5d0] sm:$0xff]
    %v2264 = vld [vmem:[#allocation8 + $0x5d8] sm:$0xff]
    %v2265 = vld [vmem:[#allocation8 + $0x5e0] sm:$0xff]
    %v2266 = vld [vmem:[#allocation8 + $0x5e8] sm:$0xff]
    %v2267 = vld [vmem:[#allocation8 + $0x5f0] sm:$0xff]
    %v2268 = vld [vmem:[#allocation8 + $0x5f8] sm:$0xff]
    %v2269 = vld [vmem:[#allocation8 + $0x600] sm:$0xff]
    %v2270 = vld [vmem:[#allocation8 + $0x608] sm:$0xff]
    %v2271 = vld [vmem:[#allocation8 + $0x610] sm:$0xff]
    %v2272 = vld [vmem:[#allocation8 + $0x618] sm:$0xff]
    %v2273 = vld [vmem:[#allocation8 + $0x620] sm:$0xff]
    %v2274 = vld [vmem:[#allocation8 + $0x628] sm:$0xff]
    %v2275 = vld [vmem:[#allocation8 + $0x630] sm:$0xff]
    %v2276 = vld [vmem:[#allocation8 + $0x638] sm:$0xff]
    %v2277 = vld [vmem:[#allocation8 + $0x640] sm:$0xff]
    %v2278 = vld [vmem:[#allocation8 + $0x648] sm:$0xff]
    %v2279 = vld [vmem:[#allocation8 + $0x650] sm:$0xff]
    %v2280 = vld [vmem:[#allocation8 + $0x658] sm:$0xff]
    %v2281 = vld [vmem:[#allocation8 + $0x660] sm:$0xff]
    %v2282 = vld [vmem:[#allocation8 + $0x668] sm:$0xff]
    %v2283 = vld [vmem:[#allocation8 + $0x670] sm:$0xff]
    %v2284 = vld [vmem:[#allocation8 + $0x678] sm:$0xff]
    %v2285 = vld [vmem:[#allocation8 + $0x680] sm:$0xff]
    %v2286 = vld [vmem:[#allocation8 + $0x688] sm:$0xff]
    %v2287 = vld [vmem:[#allocation8 + $0x690] sm:$0xff]
    %v2288 = vld [vmem:[#allocation8 + $0x698] sm:$0xff]
    %v2289 = vld [vmem:[#allocation8 + $0x6a0] sm:$0xff]
    %v2290 = vld [vmem:[#allocation8 + $0x6a8] sm:$0xff]
    %v2291 = vld [vmem:[#allocation8 + $0x6b0] sm:$0xff]
    %v2292 = vld [vmem:[#allocation8 + $0x6b8] sm:$0xff]
    %v2293 = vld [vmem:[#allocation8 + $0x6c0] sm:$0xff]
    %v2294 = vld [vmem:[#allocation8 + $0x6c8] sm:$0xff]
    %v2295 = vld [vmem:[#allocation8 + $0x6d0] sm:$0xff]
    %v2296 = vld [vmem:[#allocation8 + $0x6d8] sm:$0xff]
    %v2297 = vld [vmem:[#allocation8 + $0x6e0] sm:$0xff]
    %v2298 = vld [vmem:[#allocation8 + $0x6e8] sm:$0xff]
    %v2299 = vld [vmem:[#allocation8 + $0x6f0] sm:$0xff]
    %v2300 = vld [vmem:[#allocation8 + $0x6f8] sm:$0xff]
    %v2301 = vld [vmem:[#allocation8 + $0x700] sm:$0xff]
    %v2302 = vld [vmem:[#allocation8 + $0x708] sm:$0xff]
    %v2303 = vld [vmem:[#allocation8 + $0x710] sm:$0xff]
    %v2304 = vld [vmem:[#allocation8 + $0x718] sm:$0xff]
    %v2305 = vld [vmem:[#allocation8 + $0x720] sm:$0xff]
    %v2306 = vld [vmem:[#allocation8 + $0x728] sm:$0xff]
    %v2307 = vld [vmem:[#allocation8 + $0x730] sm:$0xff]
    %v2308 = vld [vmem:[#allocation8 + $0x738] sm:$0xff]
    %v2309 = vld [vmem:[#allocation8 + $0x740] sm:$0xff]
    %v2310 = vld [vmem:[#allocation8 + $0x748] sm:$0xff]
    %v2311 = vld [vmem:[#allocation8 + $0x750] sm:$0xff]
    %v2312 = vld [vmem:[#allocation8 + $0x758] sm:$0xff]
    %v2313 = vld [vmem:[#allocation8 + $0x760] sm:$0xff]
    %v2314 = vld [vmem:[#allocation8 + $0x768] sm:$0xff]
    %v2315 = vld [vmem:[#allocation8 + $0x770] sm:$0xff]
    %v2316 = vld [vmem:[#allocation8 + $0x778] sm:$0xff]
    %v2317 = vld [vmem:[#allocation8 + $0x780] sm:$0xff]
    %v2318 = vld [vmem:[#allocation8 + $0x788] sm:$0xff]
    %v2319 = vld [vmem:[#allocation8 + $0x790] sm:$0xff]
    %v2320 = vld [vmem:[#allocation8 + $0x798] sm:$0xff]
    %v2321 = vld [vmem:[#allocation8 + $0x7a0] sm:$0xff]
    %v2322 = vld [vmem:[#allocation8 + $0x7a8] sm:$0xff]
    %v2323 = vld [vmem:[#allocation8 + $0x7b0] sm:$0xff]
    %v2324 = vld [vmem:[#allocation8 + $0x7b8] sm:$0xff]
    %v2325 = vld [vmem:[#allocation8 + $0x7c0] sm:$0xff]
    %v2326 = vld [vmem:[#allocation8 + $0x7c8] sm:$0xff]
    %v2327 = vld [vmem:[#allocation8 + $0x7d0] sm:$0xff]
    %v2328 = vld [vmem:[#allocation8 + $0x7d8] sm:$0xff]
    %v2329 = vld [vmem:[#allocation8 + $0x7e0] sm:$0xff]
    %v2330 = vld [vmem:[#allocation8 + $0x7e8] sm:$0xff]
    %v2331 = vld [vmem:[#allocation8 + $0x7f0] sm:$0xff]
    %v2332 = vld [vmem:[#allocation8 + $0x7f8] sm:$0xff]
    %v2333 = vld [vmem:[#allocation8 + $0x800] sm:$0xff]
    %v2334 = vld [vmem:[#allocation8 + $0x808] sm:$0xff]
    %v2335 = vld [vmem:[#allocation8 + $0x810] sm:$0xff]
    %v2336 = vld [vmem:[#allocation8 + $0x818] sm:$0xff]
    %v2337 = vld [vmem:[#allocation8 + $0x820] sm:$0xff]
    %v2338 = vld [vmem:[#allocation8 + $0x828] sm:$0xff]
    %v2339 = vld [vmem:[#allocation8 + $0x830] sm:$0xff]
    %v2340 = vld [vmem:[#allocation8 + $0x838] sm:$0xff]
    %v2341 = vld [vmem:[#allocation8 + $0x840] sm:$0xff]
    %v2342 = vld [vmem:[#allocation8 + $0x848] sm:$0xff]
    %v2343 = vld [vmem:[#allocation8 + $0x850] sm:$0xff]
    %v2344 = vld [vmem:[#allocation8 + $0x858] sm:$0xff]
    %v2345 = vld [vmem:[#allocation8 + $0x860] sm:$0xff]
    %v2346 = vld [vmem:[#allocation8 + $0x868] sm:$0xff]
    %v2347 = vld [vmem:[#allocation8 + $0x870] sm:$0xff]
    %v2348 = vld [vmem:[#allocation8 + $0x878] sm:$0xff]
    %v2349 = vld [vmem:[#allocation8 + $0x880] sm:$0xff]
    %v2350 = vld [vmem:[#allocation8 + $0x888] sm:$0xff]
    %v2351 = vld [vmem:[#allocation8 + $0x890] sm:$0xff]
    %v2352 = vld [vmem:[#allocation8 + $0x898] sm:$0xff]
    %v2353 = vld [vmem:[#allocation8 + $0x8a0] sm:$0xff]
    %v2354 = vld [vmem:[#allocation8 + $0x8a8] sm:$0xff]
    %v2355 = vld [vmem:[#allocation8 + $0x8b0] sm:$0xff]
    %v2356 = vld [vmem:[#allocation8 + $0x8b8] sm:$0xff]
    %v2357 = vld [vmem:[#allocation8 + $0x8c0] sm:$0xff]
    %v2358 = vld [vmem:[#allocation8 + $0x8c8] sm:$0xff]
    %v2359 = vld [vmem:[#allocation8 + $0x8d0] sm:$0xff]
    %v2360 = vld [vmem:[#allocation8 + $0x8d8] sm:$0xff]
    %v2361 = vld [vmem:[#allocation8 + $0x8e0] sm:$0xff]
    %v2362 = vld [vmem:[#allocation8 + $0x8e8] sm:$0xff]
    %v2363 = vld [vmem:[#allocation8 + $0x8f0] sm:$0xff]
    %v2364 = vld [vmem:[#allocation8 + $0x8f8] sm:$0xff]
    %v2365 = vld [vmem:[#allocation8 + $0x900] sm:$0xff]
    %v2366 = vld [vmem:[#allocation8 + $0x908] sm:$0xff]
    %v2367 = vld [vmem:[#allocation8 + $0x910] sm:$0xff]
    %v2368 = vld [vmem:[#allocation8 + $0x918] sm:$0xff]
    %v2369 = vld [vmem:[#allocation8 + $0x920] sm:$0xff]
    %v2370 = vld [vmem:[#allocation8 + $0x928] sm:$0xff]
    %v2371 = vld [vmem:[#allocation8 + $0x930] sm:$0xff]
    %v2372 = vld [vmem:[#allocation8 + $0x938] sm:$0xff]
    %v2373 = vld [vmem:[#allocation8 + $0x940] sm:$0xff]
    %v2374 = vld [vmem:[#allocation8 + $0x948] sm:$0xff]
    %v2375 = vld [vmem:[#allocation8 + $0x950] sm:$0xff]
    %v2376 = vld [vmem:[#allocation8 + $0x958] sm:$0xff]
    %v2377 = vld [vmem:[#allocation8 + $0x960] sm:$0xff]
    %v2378 = vld [vmem:[#allocation8 + $0x968] sm:$0xff]
    %v2379 = vld [vmem:[#allocation8 + $0x970] sm:$0xff]
    %v2380 = vld [vmem:[#allocation8 + $0x978] sm:$0xff]
    %v2381 = vld [vmem:[#allocation8 + $0x980] sm:$0xff]
    %v2382 = vld [vmem:[#allocation8 + $0x988] sm:$0xff]
    %v2383 = vld [vmem:[#allocation8 + $0x990] sm:$0xff]
    %v2384 = vld [vmem:[#allocation8 + $0x998] sm:$0xff]
    %v2385 = vld [vmem:[#allocation8 + $0x9a0] sm:$0xff]
    %v2386 = vld [vmem:[#allocation8 + $0x9a8] sm:$0xff]
    %v2387 = vld [vmem:[#allocation8 + $0x9b0] sm:$0xff]
    %v2388 = vld [vmem:[#allocation8 + $0x9b8] sm:$0xff]
    %v2389 = vld [vmem:[#allocation8 + $0x9c0] sm:$0xff]
    %v2390 = vld [vmem:[#allocation8 + $0x9c8] sm:$0xff]
    %v2391 = vld [vmem:[#allocation8 + $0x9d0] sm:$0xff]
    %v2392 = vld [vmem:[#allocation8 + $0x9d8] sm:$0xff]
    %v2393 = vld [vmem:[#allocation8 + $0x9e0] sm:$0xff]
    %v2394 = vld [vmem:[#allocation8 + $0x9e8] sm:$0xff]
    %v2395 = vld [vmem:[#allocation8 + $0x9f0] sm:$0xff]
    %v2396 = vld [vmem:[#allocation8 + $0x9f8] sm:$0xff]
    %v2397 = vld [vmem:[#allocation8 + $0xa00] sm:$0xff]
    %v2398 = vld [vmem:[#allocation8 + $0xa08] sm:$0xff]
    %v2399 = vld [vmem:[#allocation8 + $0xa10] sm:$0xff]
    %v2400 = vld [vmem:[#allocation8 + $0xa18] sm:$0xff]
    %v2401 = vld [vmem:[#allocation8 + $0xa20] sm:$0xff]
    %v2402 = vld [vmem:[#allocation8 + $0xa28] sm:$0xff]
    %v2403 = vld [vmem:[#allocation8 + $0xa30] sm:$0xff]
    %v2404 = vld [vmem:[#allocation8 + $0xa38] sm:$0xff]
    %v2405 = vld [vmem:[#allocation8 + $0xa40] sm:$0xff]
    %v2406 = vld [vmem:[#allocation8 + $0xa48] sm:$0xff]
    %v2407 = vld [vmem:[#allocation8 + $0xa50] sm:$0xff]
    %v2408 = vld [vmem:[#allocation8 + $0xa58] sm:$0xff]
    %v2409 = vld [vmem:[#allocation8 + $0xa60] sm:$0xff]
    %v2410 = vld [vmem:[#allocation8 + $0xa68] sm:$0xff]
    %v2411 = vld [vmem:[#allocation8 + $0xa70] sm:$0xff]
    %v2412 = vld [vmem:[#allocation8 + $0xa78] sm:$0xff]
    %v2413 = vld [vmem:[#allocation8 + $0xa80] sm:$0xff]
    %v2414 = vld [vmem:[#allocation8 + $0xa88] sm:$0xff]
    %v2415 = vld [vmem:[#allocation8 + $0xa90] sm:$0xff]
    %v2416 = vld [vmem:[#allocation8 + $0xa98] sm:$0xff]
    %v2417 = vld [vmem:[#allocation8 + $0xaa0] sm:$0xff]
    %v2418 = vld [vmem:[#allocation8 + $0xaa8] sm:$0xff]
    %v2419 = vld [vmem:[#allocation8 + $0xab0] sm:$0xff]
    %v2420 = vld [vmem:[#allocation8 + $0xab8] sm:$0xff]
    %v2421 = vld [vmem:[#allocation8 + $0xac0] sm:$0xff]
    %v2422 = vld [vmem:[#allocation8 + $0xac8] sm:$0xff]
    %v2423 = vld [vmem:[#allocation8 + $0xad0] sm:$0xff]
    %v2424 = vld [vmem:[#allocation8 + $0xad8] sm:$0xff]
    %v2425 = vld [vmem:[#allocation8 + $0xae0] sm:$0xff]
    %v2426 = vld [vmem:[#allocation8 + $0xae8] sm:$0xff]
    %v2427 = vld [vmem:[#allocation8 + $0xaf0] sm:$0xff]
    %v2428 = vld [vmem:[#allocation8 + $0xaf8] sm:$0xff]
    %v2429 = vld [vmem:[#allocation8 + $0xb00] sm:$0xff]
    %v2430 = vld [vmem:[#allocation8 + $0xb08] sm:$0xff]
    %v2431 = vld [vmem:[#allocation8 + $0xb10] sm:$0xff]
    %v2432 = vld [vmem:[#allocation8 + $0xb18] sm:$0xff]
    %v2433 = vld [vmem:[#allocation8 + $0xb20] sm:$0xff]
    %v2434 = vld [vmem:[#allocation8 + $0xb28] sm:$0xff]
    %v2435 = vld [vmem:[#allocation8 + $0xb30] sm:$0xff]
    %v2436 = vld [vmem:[#allocation8 + $0xb38] sm:$0xff]
    %v2437 = vld [vmem:[#allocation8 + $0xb40] sm:$0xff]
    %v2438 = vld [vmem:[#allocation8 + $0xb48] sm:$0xff]
    %v2439 = vld [vmem:[#allocation8 + $0xb50] sm:$0xff]
    %v2440 = vld [vmem:[#allocation8 + $0xb58] sm:$0xff]
    %v2441 = vld [vmem:[#allocation8 + $0xb60] sm:$0xff]
    %v2442 = vld [vmem:[#allocation8 + $0xb68] sm:$0xff]
    %v2443 = vld [vmem:[#allocation8 + $0xb70] sm:$0xff]
    %v2444 = vld [vmem:[#allocation8 + $0xb78] sm:$0xff]
    %v2445 = vld [vmem:[#allocation8 + $0xb80] sm:$0xff]
    %v2446 = vld [vmem:[#allocation8 + $0xb88] sm:$0xff]
    %v2447 = vld [vmem:[#allocation8 + $0xb90] sm:$0xff]
    %v2448 = vld [vmem:[#allocation8 + $0xb98] sm:$0xff]
    %v2449 = vld [vmem:[#allocation8 + $0xba0] sm:$0xff]
    %v2450 = vld [vmem:[#allocation8 + $0xba8] sm:$0xff]
    %v2451 = vld [vmem:[#allocation8 + $0xbb0] sm:$0xff]
    %v2452 = vld [vmem:[#allocation8 + $0xbb8] sm:$0xff]
    %v2453 = vld [vmem:[#allocation8 + $0xbc0] sm:$0xff]
    %v2454 = vld [vmem:[#allocation8 + $0xbc8] sm:$0xff]
    %v2455 = vld [vmem:[#allocation8 + $0xbd0] sm:$0xff]
    %v2456 = vld [vmem:[#allocation8 + $0xbd8] sm:$0xff]
    %v2457 = vld [vmem:[#allocation8 + $0xbe0] sm:$0xff]
    %v2458 = vld [vmem:[#allocation8 + $0xbe8] sm:$0xff]
    %v2459 = vld [vmem:[#allocation8 + $0xbf0] sm:$0xff]
    %v2460 = vld [vmem:[#allocation8 + $0xbf8] sm:$0xff]
    %v2461 = vld [vmem:[#allocation8 + $0xc00] sm:$0xff]
    %v2462 = vld [vmem:[#allocation8 + $0xc08] sm:$0xff]
    %v2463 = vld [vmem:[#allocation8 + $0xc10] sm:$0xff]
    %v2464 = vld [vmem:[#allocation8 + $0xc18] sm:$0xff]
    %v2465 = vld [vmem:[#allocation8 + $0xc20] sm:$0xff]
    %v2466 = vld [vmem:[#allocation8 + $0xc28] sm:$0xff]
    %v2467 = vld [vmem:[#allocation8 + $0xc30] sm:$0xff]
    %v2468 = vld [vmem:[#allocation8 + $0xc38] sm:$0xff]
    %v2469 = vld [vmem:[#allocation8 + $0xc40] sm:$0xff]
    %v2470 = vld [vmem:[#allocation8 + $0xc48] sm:$0xff]
    %v2471 = vld [vmem:[#allocation8 + $0xc50] sm:$0xff]
    %v2472 = vld [vmem:[#allocation8 + $0xc58] sm:$0xff]
    %v2473 = vld [vmem:[#allocation8 + $0xc60] sm:$0xff]
    %v2474 = vld [vmem:[#allocation8 + $0xc68] sm:$0xff]
    %v2475 = vld [vmem:[#allocation8 + $0xc70] sm:$0xff]
    %v2476 = vld [vmem:[#allocation8 + $0xc78] sm:$0xff]
    %v2477 = vld [vmem:[#allocation8 + $0xc80] sm:$0xff]
    %v2478 = vld [vmem:[#allocation8 + $0xc88] sm:$0xff]
    %v2479 = vld [vmem:[#allocation8 + $0xc90] sm:$0xff]
    %v2480 = vld [vmem:[#allocation8 + $0xc98] sm:$0xff]
    %v2481 = vld [vmem:[#allocation8 + $0xca0] sm:$0xff]
    %v2482 = vld [vmem:[#allocation8 + $0xca8] sm:$0xff]
    %v2483 = vld [vmem:[#allocation8 + $0xcb0] sm:$0xff]
    %v2484 = vld [vmem:[#allocation8 + $0xcb8] sm:$0xff]
    %v2485 = vld [vmem:[#allocation8 + $0xcc0] sm:$0xff]
    %v2486 = vld [vmem:[#allocation8 + $0xcc8] sm:$0xff]
    %v2487 = vld [vmem:[#allocation8 + $0xcd0] sm:$0xff]
    %v2488 = vld [vmem:[#allocation8 + $0xcd8] sm:$0xff]
    %v2489 = vld [vmem:[#allocation8 + $0xce0] sm:$0xff]
    %v2490 = vld [vmem:[#allocation8 + $0xce8] sm:$0xff]
    %v2491 = vld [vmem:[#allocation8 + $0xcf0] sm:$0xff]
    %v2492 = vld [vmem:[#allocation8 + $0xcf8] sm:$0xff]
    %v2493 = vld [vmem:[#allocation8 + $0xd00] sm:$0xff]
    %v2494 = vld [vmem:[#allocation8 + $0xd08] sm:$0xff]
    %v2495 = vld [vmem:[#allocation8 + $0xd10] sm:$0xff]
    %v2496 = vld [vmem:[#allocation8 + $0xd18] sm:$0xff]
    %v2497 = vld [vmem:[#allocation8 + $0xd20] sm:$0xff]
    %v2498 = vld [vmem:[#allocation8 + $0xd28] sm:$0xff]
    %v2499 = vld [vmem:[#allocation8 + $0xd30] sm:$0xff]
    %v2500 = vld [vmem:[#allocation8 + $0xd38] sm:$0xff]
    %v2501 = vld [vmem:[#allocation8 + $0xd40] sm:$0xff]
    %v2502 = vld [vmem:[#allocation8 + $0xd48] sm:$0xff]
    %v2503 = vld [vmem:[#allocation8 + $0xd50] sm:$0xff]
    %v2504 = vld [vmem:[#allocation8 + $0xd58] sm:$0xff]
    %v2505 = vld [vmem:[#allocation8 + $0xd60] sm:$0xff]
    %v2506 = vld [vmem:[#allocation8 + $0xd68] sm:$0xff]
    %v2507 = vld [vmem:[#allocation8 + $0xd70] sm:$0xff]
    %v2508 = vld [vmem:[#allocation8 + $0xd78] sm:$0xff]
    %v2509 = vld [vmem:[#allocation8 + $0xd80] sm:$0xff]
    %v2510 = vld [vmem:[#allocation8 + $0xd88] sm:$0xff]
    %v2511 = vld [vmem:[#allocation8 + $0xd90] sm:$0xff]
    %v2512 = vld [vmem:[#allocation8 + $0xd98] sm:$0xff]
    %v2513 = vld [vmem:[#allocation8 + $0xda0] sm:$0xff]
    %v2514 = vld [vmem:[#allocation8 + $0xda8] sm:$0xff]
    %v2515 = vld [vmem:[#allocation8 + $0xdb0] sm:$0xff]
    %v2516 = vld [vmem:[#allocation8 + $0xdb8] sm:$0xff]
    %v2517 = vld [vmem:[#allocation8 + $0xdc0] sm:$0xff]
    %v2518 = vld [vmem:[#allocation8 + $0xdc8] sm:$0xff]
    %v2519 = vld [vmem:[#allocation8 + $0xdd0] sm:$0xff]
    %v2520 = vld [vmem:[#allocation8 + $0xdd8] sm:$0xff]
    %v2521 = vld [vmem:[#allocation8 + $0xde0] sm:$0xff]
    %v2522 = vld [vmem:[#allocation8 + $0xde8] sm:$0xff]
    %v2523 = vld [vmem:[#allocation8 + $0xdf0] sm:$0xff]
    %v2524 = vld [vmem:[#allocation8 + $0xdf8] sm:$0xff]
    %v2525 = vld [vmem:[#allocation8 + $0xe00] sm:$0xff]
    %v2526 = vld [vmem:[#allocation8 + $0xe08] sm:$0xff]
    %v2527 = vld [vmem:[#allocation8 + $0xe10] sm:$0xff]
    %v2528 = vld [vmem:[#allocation8 + $0xe18] sm:$0xff]
    %v2529 = vld [vmem:[#allocation8 + $0xe20] sm:$0xff]
    %v2530 = vld [vmem:[#allocation8 + $0xe28] sm:$0xff]
    %v2531 = vld [vmem:[#allocation8 + $0xe30] sm:$0xff]
    %v2532 = vld [vmem:[#allocation8 + $0xe38] sm:$0xff]
    %v2533 = vld [vmem:[#allocation8 + $0xe40] sm:$0xff]
    %v2534 = vld [vmem:[#allocation8 + $0xe48] sm:$0xff]
    %v2535 = vld [vmem:[#allocation8 + $0xe50] sm:$0xff]
    %v2536 = vld [vmem:[#allocation8 + $0xe58] sm:$0xff]
    %v2537 = vld [vmem:[#allocation8 + $0xe60] sm:$0xff]
    %v2538 = vld [vmem:[#allocation8 + $0xe68] sm:$0xff]
    %v2539 = vld [vmem:[#allocation8 + $0xe70] sm:$0xff]
    %v2540 = vld [vmem:[#allocation8 + $0xe78] sm:$0xff]
    %v2541 = vld [vmem:[#allocation8 + $0xe80] sm:$0xff]
    %v2542 = vld [vmem:[#allocation8 + $0xe88] sm:$0xff]
    %v2543 = vld [vmem:[#allocation8 + $0xe90] sm:$0xff]
    %v2544 = vld [vmem:[#allocation8 + $0xe98] sm:$0xff]
    %v2545 = vld [vmem:[#allocation8 + $0xea0] sm:$0xff]
    %v2546 = vld [vmem:[#allocation8 + $0xea8] sm:$0xff]
    %v2547 = vld [vmem:[#allocation8 + $0xeb0] sm:$0xff]
    %v2548 = vld [vmem:[#allocation8 + $0xeb8] sm:$0xff]
    %v2549 = vld [vmem:[#allocation8 + $0xec0] sm:$0xff]
    %v2550 = vld [vmem:[#allocation8 + $0xec8] sm:$0xff]
    %v2551 = vld [vmem:[#allocation8 + $0xed0] sm:$0xff]
    %v2552 = vld [vmem:[#allocation8 + $0xed8] sm:$0xff]
    %v2553 = vld [vmem:[#allocation8 + $0xee0] sm:$0xff]
    %v2554 = vld [vmem:[#allocation8 + $0xee8] sm:$0xff]
    %v2555 = vld [vmem:[#allocation8 + $0xef0] sm:$0xff]
    %v2556 = vld [vmem:[#allocation8 + $0xef8] sm:$0xff]
    %v2557 = vld [vmem:[#allocation8 + $0xf00] sm:$0xff]
    %v2558 = vld [vmem:[#allocation8 + $0xf08] sm:$0xff]
    %v2559 = vld [vmem:[#allocation8 + $0xf10] sm:$0xff]
    %v2560 = vld [vmem:[#allocation8 + $0xf18] sm:$0xff]
    %v2561 = vld [vmem:[#allocation8 + $0xf20] sm:$0xff]
    %v2562 = vld [vmem:[#allocation8 + $0xf28] sm:$0xff]
    %v2563 = vld [vmem:[#allocation8 + $0xf30] sm:$0xff]
    %v2564 = vld [vmem:[#allocation8 + $0xf38] sm:$0xff]
    %v2565 = vld [vmem:[#allocation8 + $0xf40] sm:$0xff]
    %v2566 = vld [vmem:[#allocation8 + $0xf48] sm:$0xff]
    %v2567 = vld [vmem:[#allocation8 + $0xf50] sm:$0xff]
    %v2568 = vld [vmem:[#allocation8 + $0xf58] sm:$0xff]
    %v2569 = vld [vmem:[#allocation8 + $0xf60] sm:$0xff]
    %v2570 = vld [vmem:[#allocation8 + $0xf68] sm:$0xff]
    %v2571 = vld [vmem:[#allocation8 + $0xf70] sm:$0xff]
    %v2572 = vld [vmem:[#allocation8 + $0xf78] sm:$0xff]
    %v2573 = vld [vmem:[#allocation8 + $0xf80] sm:$0xff]
    %v2574 = vld [vmem:[#allocation8 + $0xf88] sm:$0xff]
    %v2575 = vld [vmem:[#allocation8 + $0xf90] sm:$0xff]
    %v2576 = vld [vmem:[#allocation8 + $0xf98] sm:$0xff]
    %v2577 = vld [vmem:[#allocation8 + $0xfa0] sm:$0xff]
    %v2578 = vld [vmem:[#allocation8 + $0xfa8] sm:$0xff]
    %v2579 = vld [vmem:[#allocation8 + $0xfb0] sm:$0xff]
    %v2580 = vld [vmem:[#allocation8 + $0xfb8] sm:$0xff]
    %v2581 = vld [vmem:[#allocation8 + $0xfc0] sm:$0xff]
    %v2582 = vld [vmem:[#allocation8 + $0xfc8] sm:$0xff]
    %v2583 = vld [vmem:[#allocation8 + $0xfd0] sm:$0xff]
    %v2584 = vld [vmem:[#allocation8 + $0xfd8] sm:$0xff]
    %v2585 = vld [vmem:[#allocation8 + $0xfe0] sm:$0xff]
    %v2586 = vld [vmem:[#allocation8 + $0xfe8] sm:$0xff]
    %v2587 = vld [vmem:[#allocation8 + $0xff0] sm:$0xff]
    %v2588 = vld [vmem:[#allocation8 + $0xff8] sm:$0xff]
    %v2590 = vlaneseq
    %v2591 = vshrl.u32 %v2590, 7
    %v2592 = vsub.s32 0, %v2591
    %v2593 = vrot.slane %v130, %v2592
    %v2594 = vlaneseq
    %v2595 = vshrl.u32 %v2594, 7
    %v2596 = vsub.s32 1, %v2595
    %v2597 = vrot.slane %v130, %v2596
    %v2598 = vlaneseq
    %v2599 = vshrl.u32 %v2598, 7
    %v2600 = vsub.s32 2, %v2599
    %v2601 = vrot.slane %v130, %v2600
    %v2602 = vlaneseq
    %v2603 = vshrl.u32 %v2602, 7
    %v2604 = vsub.s32 3, %v2603
    %v2605 = vrot.slane %v130, %v2604
    %v2606 = vlaneseq
    %v2607 = vshrl.u32 %v2606, 7
    %v2608 = vsub.s32 4, %v2607
    %v2609 = vrot.slane %v130, %v2608
    %v2610 = vlaneseq
    %v2611 = vshrl.u32 %v2610, 7
    %v2612 = vsub.s32 5, %v2611
    %v2613 = vrot.slane %v130, %v2612
    %v2614 = vlaneseq
    %v2615 = vshrl.u32 %v2614, 7
    %v2616 = vsub.s32 6, %v2615
    %v2617 = vrot.slane %v130, %v2616
    %v2618 = vlaneseq
    %v2619 = vshrl.u32 %v2618, 7
    %v2620 = vsub.s32 7, %v2619
    %v2621 = vrot.slane %v130, %v2620
    %v3142 = vunpack.c.l.b16 %v2077
    %v3143 = vunpack.c.h.b16 %v2077
    %v3144 = vunpack.c.l.b16 %v2078
    %v3145 = vunpack.c.h.b16 %v2078
    %v3146 = vunpack.c.l.b16 %v2079
    %v3147 = vunpack.c.h.b16 %v2079
    %v3148 = vunpack.c.l.b16 %v2080
    %v3149 = vunpack.c.h.b16 %v2080
    %v3150 = vunpack.c.l.b16 %v2081
    %v3151 = vunpack.c.h.b16 %v2081
    %v3152 = vunpack.c.l.b16 %v2082
    %v3153 = vunpack.c.h.b16 %v2082
    %v3154 = vunpack.c.l.b16 %v2083
    %v3155 = vunpack.c.h.b16 %v2083
    %v3156 = vunpack.c.l.b16 %v2084
    %v3157 = vunpack.c.h.b16 %v2084
    %v3158 = vunpack.c.l.b16 %v2085
    %v3159 = vunpack.c.h.b16 %v2085
    %v3160 = vunpack.c.l.b16 %v2086
    %v3161 = vunpack.c.h.b16 %v2086
    %v3162 = vunpack.c.l.b16 %v2087
    %v3163 = vunpack.c.h.b16 %v2087
    %v3164 = vunpack.c.l.b16 %v2088
    %v3165 = vunpack.c.h.b16 %v2088
    %v3166 = vunpack.c.l.b16 %v2089
    %v3167 = vunpack.c.h.b16 %v2089
    %v3168 = vunpack.c.l.b16 %v2090
    %v3169 = vunpack.c.h.b16 %v2090
    %v3170 = vunpack.c.l.b16 %v2091
    %v3171 = vunpack.c.h.b16 %v2091
    %v3172 = vunpack.c.l.b16 %v2092
    %v3173 = vunpack.c.h.b16 %v2092
    %v3174 = vunpack.c.l.b16 %v2093
    %v3175 = vunpack.c.h.b16 %v2093
    %v3176 = vunpack.c.l.b16 %v2094
    %v3177 = vunpack.c.h.b16 %v2094
    %v3178 = vunpack.c.l.b16 %v2095
    %v3179 = vunpack.c.h.b16 %v2095
    %v3180 = vunpack.c.l.b16 %v2096
    %v3181 = vunpack.c.h.b16 %v2096
    %v3182 = vunpack.c.l.b16 %v2097
    %v3183 = vunpack.c.h.b16 %v2097
    %v3184 = vunpack.c.l.b16 %v2098
    %v3185 = vunpack.c.h.b16 %v2098
    %v3186 = vunpack.c.l.b16 %v2099
    %v3187 = vunpack.c.h.b16 %v2099
    %v3188 = vunpack.c.l.b16 %v2100
    %v3189 = vunpack.c.h.b16 %v2100
    %v3190 = vunpack.c.l.b16 %v2101
    %v3191 = vunpack.c.h.b16 %v2101
    %v3192 = vunpack.c.l.b16 %v2102
    %v3193 = vunpack.c.h.b16 %v2102
    %v3194 = vunpack.c.l.b16 %v2103
    %v3195 = vunpack.c.h.b16 %v2103
    %v3196 = vunpack.c.l.b16 %v2104
    %v3197 = vunpack.c.h.b16 %v2104
    %v3198 = vunpack.c.l.b16 %v2105
    %v3199 = vunpack.c.h.b16 %v2105
    %v3200 = vunpack.c.l.b16 %v2106
    %v3201 = vunpack.c.h.b16 %v2106
    %v3202 = vunpack.c.l.b16 %v2107
    %v3203 = vunpack.c.h.b16 %v2107
    %v3204 = vunpack.c.l.b16 %v2108
    %v3205 = vunpack.c.h.b16 %v2108
    %v3206 = vunpack.c.l.b16 %v2109
    %v3207 = vunpack.c.h.b16 %v2109
    %v3208 = vunpack.c.l.b16 %v2110
    %v3209 = vunpack.c.h.b16 %v2110
    %v3210 = vunpack.c.l.b16 %v2111
    %v3211 = vunpack.c.h.b16 %v2111
    %v3212 = vunpack.c.l.b16 %v2112
    %v3213 = vunpack.c.h.b16 %v2112
    %v3214 = vunpack.c.l.b16 %v2113
    %v3215 = vunpack.c.h.b16 %v2113
    %v3216 = vunpack.c.l.b16 %v2114
    %v3217 = vunpack.c.h.b16 %v2114
    %v3218 = vunpack.c.l.b16 %v2115
    %v3219 = vunpack.c.h.b16 %v2115
    %v3220 = vunpack.c.l.b16 %v2116
    %v3221 = vunpack.c.h.b16 %v2116
    %v3222 = vunpack.c.l.b16 %v2117
    %v3223 = vunpack.c.h.b16 %v2117
    %v3224 = vunpack.c.l.b16 %v2118
    %v3225 = vunpack.c.h.b16 %v2118
    %v3226 = vunpack.c.l.b16 %v2119
    %v3227 = vunpack.c.h.b16 %v2119
    %v3228 = vunpack.c.l.b16 %v2120
    %v3229 = vunpack.c.h.b16 %v2120
    %v3230 = vunpack.c.l.b16 %v2121
    %v3231 = vunpack.c.h.b16 %v2121
    %v3232 = vunpack.c.l.b16 %v2122
    %v3233 = vunpack.c.h.b16 %v2122
    %v3234 = vunpack.c.l.b16 %v2123
    %v3235 = vunpack.c.h.b16 %v2123
    %v3236 = vunpack.c.l.b16 %v2124
    %v3237 = vunpack.c.h.b16 %v2124
    %v3238 = vunpack.c.l.b16 %v2125
    %v3239 = vunpack.c.h.b16 %v2125
    %v3240 = vunpack.c.l.b16 %v2126
    %v3241 = vunpack.c.h.b16 %v2126
    %v3242 = vunpack.c.l.b16 %v2127
    %v3243 = vunpack.c.h.b16 %v2127
    %v3244 = vunpack.c.l.b16 %v2128
    %v3245 = vunpack.c.h.b16 %v2128
    %v3246 = vunpack.c.l.b16 %v2129
    %v3247 = vunpack.c.h.b16 %v2129
    %v3248 = vunpack.c.l.b16 %v2130
    %v3249 = vunpack.c.h.b16 %v2130
    %v3250 = vunpack.c.l.b16 %v2131
    %v3251 = vunpack.c.h.b16 %v2131
    %v3252 = vunpack.c.l.b16 %v2132
    %v3253 = vunpack.c.h.b16 %v2132
    %v3254 = vunpack.c.l.b16 %v2133
    %v3255 = vunpack.c.h.b16 %v2133
    %v3256 = vunpack.c.l.b16 %v2134
    %v3257 = vunpack.c.h.b16 %v2134
    %v3258 = vunpack.c.l.b16 %v2135
    %v3259 = vunpack.c.h.b16 %v2135
    %v3260 = vunpack.c.l.b16 %v2136
    %v3261 = vunpack.c.h.b16 %v2136
    %v3262 = vunpack.c.l.b16 %v2137
    %v3263 = vunpack.c.h.b16 %v2137
    %v3264 = vunpack.c.l.b16 %v2138
    %v3265 = vunpack.c.h.b16 %v2138
    %v3266 = vunpack.c.l.b16 %v2139
    %v3267 = vunpack.c.h.b16 %v2139
    %v3268 = vunpack.c.l.b16 %v2140
    %v3269 = vunpack.c.h.b16 %v2140
    %v3270 = vunpack.c.l.b16 %v2141
    %v3271 = vunpack.c.h.b16 %v2141
    %v3272 = vunpack.c.l.b16 %v2142
    %v3273 = vunpack.c.h.b16 %v2142
    %v3274 = vunpack.c.l.b16 %v2143
    %v3275 = vunpack.c.h.b16 %v2143
    %v3276 = vunpack.c.l.b16 %v2144
    %v3277 = vunpack.c.h.b16 %v2144
    %v3278 = vunpack.c.l.b16 %v2145
    %v3279 = vunpack.c.h.b16 %v2145
    %v3280 = vunpack.c.l.b16 %v2146
    %v3281 = vunpack.c.h.b16 %v2146
    %v3282 = vunpack.c.l.b16 %v2147
    %v3283 = vunpack.c.h.b16 %v2147
    %v3284 = vunpack.c.l.b16 %v2148
    %v3285 = vunpack.c.h.b16 %v2148
    %v3286 = vunpack.c.l.b16 %v2149
    %v3287 = vunpack.c.h.b16 %v2149
    %v3288 = vunpack.c.l.b16 %v2150
    %v3289 = vunpack.c.h.b16 %v2150
    %v3290 = vunpack.c.l.b16 %v2151
    %v3291 = vunpack.c.h.b16 %v2151
    %v3292 = vunpack.c.l.b16 %v2152
    %v3293 = vunpack.c.h.b16 %v2152
    %v3294 = vunpack.c.l.b16 %v2153
    %v3295 = vunpack.c.h.b16 %v2153
    %v3296 = vunpack.c.l.b16 %v2154
    %v3297 = vunpack.c.h.b16 %v2154
    %v3298 = vunpack.c.l.b16 %v2155
    %v3299 = vunpack.c.h.b16 %v2155
    %v3300 = vunpack.c.l.b16 %v2156
    %v3301 = vunpack.c.h.b16 %v2156
    %v3302 = vunpack.c.l.b16 %v2157
    %v3303 = vunpack.c.h.b16 %v2157
    %v3304 = vunpack.c.l.b16 %v2158
    %v3305 = vunpack.c.h.b16 %v2158
    %v3306 = vunpack.c.l.b16 %v2159
    %v3307 = vunpack.c.h.b16 %v2159
    %v3308 = vunpack.c.l.b16 %v2160
    %v3309 = vunpack.c.h.b16 %v2160
    %v3310 = vunpack.c.l.b16 %v2161
    %v3311 = vunpack.c.h.b16 %v2161
    %v3312 = vunpack.c.l.b16 %v2162
    %v3313 = vunpack.c.h.b16 %v2162
    %v3314 = vunpack.c.l.b16 %v2163
    %v3315 = vunpack.c.h.b16 %v2163
    %v3316 = vunpack.c.l.b16 %v2164
    %v3317 = vunpack.c.h.b16 %v2164
    %v3318 = vunpack.c.l.b16 %v2165
    %v3319 = vunpack.c.h.b16 %v2165
    %v3320 = vunpack.c.l.b16 %v2166
    %v3321 = vunpack.c.h.b16 %v2166
    %v3322 = vunpack.c.l.b16 %v2167
    %v3323 = vunpack.c.h.b16 %v2167
    %v3324 = vunpack.c.l.b16 %v2168
    %v3325 = vunpack.c.h.b16 %v2168
    %v3326 = vunpack.c.l.b16 %v2169
    %v3327 = vunpack.c.h.b16 %v2169
    %v3328 = vunpack.c.l.b16 %v2170
    %v3329 = vunpack.c.h.b16 %v2170
    %v3330 = vunpack.c.l.b16 %v2171
    %v3331 = vunpack.c.h.b16 %v2171
    %v3332 = vunpack.c.l.b16 %v2172
    %v3333 = vunpack.c.h.b16 %v2172
    %v3334 = vunpack.c.l.b16 %v2173
    %v3335 = vunpack.c.h.b16 %v2173
    %v3336 = vunpack.c.l.b16 %v2174
    %v3337 = vunpack.c.h.b16 %v2174
    %v3338 = vunpack.c.l.b16 %v2175
    %v3339 = vunpack.c.h.b16 %v2175
    %v3340 = vunpack.c.l.b16 %v2176
    %v3341 = vunpack.c.h.b16 %v2176
    %v3342 = vunpack.c.l.b16 %v2177
    %v3343 = vunpack.c.h.b16 %v2177
    %v3344 = vunpack.c.l.b16 %v2178
    %v3345 = vunpack.c.h.b16 %v2178
    %v3346 = vunpack.c.l.b16 %v2179
    %v3347 = vunpack.c.h.b16 %v2179
    %v3348 = vunpack.c.l.b16 %v2180
    %v3349 = vunpack.c.h.b16 %v2180
    %v3350 = vunpack.c.l.b16 %v2181
    %v3351 = vunpack.c.h.b16 %v2181
    %v3352 = vunpack.c.l.b16 %v2182
    %v3353 = vunpack.c.h.b16 %v2182
    %v3354 = vunpack.c.l.b16 %v2183
    %v3355 = vunpack.c.h.b16 %v2183
    %v3356 = vunpack.c.l.b16 %v2184
    %v3357 = vunpack.c.h.b16 %v2184
    %v3358 = vunpack.c.l.b16 %v2185
    %v3359 = vunpack.c.h.b16 %v2185
    %v3360 = vunpack.c.l.b16 %v2186
    %v3361 = vunpack.c.h.b16 %v2186
    %v3362 = vunpack.c.l.b16 %v2187
    %v3363 = vunpack.c.h.b16 %v2187
    %v3364 = vunpack.c.l.b16 %v2188
    %v3365 = vunpack.c.h.b16 %v2188
    %v3366 = vunpack.c.l.b16 %v2189
    %v3367 = vunpack.c.h.b16 %v2189
    %v3368 = vunpack.c.l.b16 %v2190
    %v3369 = vunpack.c.h.b16 %v2190
    %v3370 = vunpack.c.l.b16 %v2191
    %v3371 = vunpack.c.h.b16 %v2191
    %v3372 = vunpack.c.l.b16 %v2192
    %v3373 = vunpack.c.h.b16 %v2192
    %v3374 = vunpack.c.l.b16 %v2193
    %v3375 = vunpack.c.h.b16 %v2193
    %v3376 = vunpack.c.l.b16 %v2194
    %v3377 = vunpack.c.h.b16 %v2194
    %v3378 = vunpack.c.l.b16 %v2195
    %v3379 = vunpack.c.h.b16 %v2195
    %v3380 = vunpack.c.l.b16 %v2196
    %v3381 = vunpack.c.h.b16 %v2196
    %v3382 = vunpack.c.l.b16 %v2197
    %v3383 = vunpack.c.h.b16 %v2197
    %v3384 = vunpack.c.l.b16 %v2198
    %v3385 = vunpack.c.h.b16 %v2198
    %v3386 = vunpack.c.l.b16 %v2199
    %v3387 = vunpack.c.h.b16 %v2199
    %v3388 = vunpack.c.l.b16 %v2200
    %v3389 = vunpack.c.h.b16 %v2200
    %v3390 = vunpack.c.l.b16 %v2201
    %v3391 = vunpack.c.h.b16 %v2201
    %v3392 = vunpack.c.l.b16 %v2202
    %v3393 = vunpack.c.h.b16 %v2202
    %v3394 = vunpack.c.l.b16 %v2203
    %v3395 = vunpack.c.h.b16 %v2203
    %v3396 = vunpack.c.l.b16 %v2204
    %v3397 = vunpack.c.h.b16 %v2204
    %v3398 = vunpack.c.l.b16 %v2205
    %v3399 = vunpack.c.h.b16 %v2205
    %v3400 = vunpack.c.l.b16 %v2206
    %v3401 = vunpack.c.h.b16 %v2206
    %v3402 = vunpack.c.l.b16 %v2207
    %v3403 = vunpack.c.h.b16 %v2207
    %v3404 = vunpack.c.l.b16 %v2208
    %v3405 = vunpack.c.h.b16 %v2208
    %v3406 = vunpack.c.l.b16 %v2209
    %v3407 = vunpack.c.h.b16 %v2209
    %v3408 = vunpack.c.l.b16 %v2210
    %v3409 = vunpack.c.h.b16 %v2210
    %v3410 = vunpack.c.l.b16 %v2211
    %v3411 = vunpack.c.h.b16 %v2211
    %v3412 = vunpack.c.l.b16 %v2212
    %v3413 = vunpack.c.h.b16 %v2212
    %v3414 = vunpack.c.l.b16 %v2213
    %v3415 = vunpack.c.h.b16 %v2213
    %v3416 = vunpack.c.l.b16 %v2214
    %v3417 = vunpack.c.h.b16 %v2214
    %v3418 = vunpack.c.l.b16 %v2215
    %v3419 = vunpack.c.h.b16 %v2215
    %v3420 = vunpack.c.l.b16 %v2216
    %v3421 = vunpack.c.h.b16 %v2216
    %v3422 = vunpack.c.l.b16 %v2217
    %v3423 = vunpack.c.h.b16 %v2217
    %v3424 = vunpack.c.l.b16 %v2218
    %v3425 = vunpack.c.h.b16 %v2218
    %v3426 = vunpack.c.l.b16 %v2219
    %v3427 = vunpack.c.h.b16 %v2219
    %v3428 = vunpack.c.l.b16 %v2220
    %v3429 = vunpack.c.h.b16 %v2220
    %v3430 = vunpack.c.l.b16 %v2221
    %v3431 = vunpack.c.h.b16 %v2221
    %v3432 = vunpack.c.l.b16 %v2222
    %v3433 = vunpack.c.h.b16 %v2222
    %v3434 = vunpack.c.l.b16 %v2223
    %v3435 = vunpack.c.h.b16 %v2223
    %v3436 = vunpack.c.l.b16 %v2224
    %v3437 = vunpack.c.h.b16 %v2224
    %v3438 = vunpack.c.l.b16 %v2225
    %v3439 = vunpack.c.h.b16 %v2225
    %v3440 = vunpack.c.l.b16 %v2226
    %v3441 = vunpack.c.h.b16 %v2226
    %v3442 = vunpack.c.l.b16 %v2227
    %v3443 = vunpack.c.h.b16 %v2227
    %v3444 = vunpack.c.l.b16 %v2228
    %v3445 = vunpack.c.h.b16 %v2228
    %v3446 = vunpack.c.l.b16 %v2229
    %v3447 = vunpack.c.h.b16 %v2229
    %v3448 = vunpack.c.l.b16 %v2230
    %v3449 = vunpack.c.h.b16 %v2230
    %v3450 = vunpack.c.l.b16 %v2231
    %v3451 = vunpack.c.h.b16 %v2231
    %v3452 = vunpack.c.l.b16 %v2232
    %v3453 = vunpack.c.h.b16 %v2232
    %v3454 = vunpack.c.l.b16 %v2233
    %v3455 = vunpack.c.h.b16 %v2233
    %v3456 = vunpack.c.l.b16 %v2234
    %v3457 = vunpack.c.h.b16 %v2234
    %v3458 = vunpack.c.l.b16 %v2235
    %v3459 = vunpack.c.h.b16 %v2235
    %v3460 = vunpack.c.l.b16 %v2236
    %v3461 = vunpack.c.h.b16 %v2236
    %v3462 = vunpack.c.l.b16 %v2237
    %v3463 = vunpack.c.h.b16 %v2237
    %v3464 = vunpack.c.l.b16 %v2238
    %v3465 = vunpack.c.h.b16 %v2238
    %v3466 = vunpack.c.l.b16 %v2239
    %v3467 = vunpack.c.h.b16 %v2239
    %v3468 = vunpack.c.l.b16 %v2240
    %v3469 = vunpack.c.h.b16 %v2240
    %v3470 = vunpack.c.l.b16 %v2241
    %v3471 = vunpack.c.h.b16 %v2241
    %v3472 = vunpack.c.l.b16 %v2242
    %v3473 = vunpack.c.h.b16 %v2242
    %v3474 = vunpack.c.l.b16 %v2243
    %v3475 = vunpack.c.h.b16 %v2243
    %v3476 = vunpack.c.l.b16 %v2244
    %v3477 = vunpack.c.h.b16 %v2244
    %v3478 = vunpack.c.l.b16 %v2245
    %v3479 = vunpack.c.h.b16 %v2245
    %v3480 = vunpack.c.l.b16 %v2246
    %v3481 = vunpack.c.h.b16 %v2246
    %v3482 = vunpack.c.l.b16 %v2247
    %v3483 = vunpack.c.h.b16 %v2247
    %v3484 = vunpack.c.l.b16 %v2248
    %v3485 = vunpack.c.h.b16 %v2248
    %v3486 = vunpack.c.l.b16 %v2249
    %v3487 = vunpack.c.h.b16 %v2249
    %v3488 = vunpack.c.l.b16 %v2250
    %v3489 = vunpack.c.h.b16 %v2250
    %v3490 = vunpack.c.l.b16 %v2251
    %v3491 = vunpack.c.h.b16 %v2251
    %v3492 = vunpack.c.l.b16 %v2252
    %v3493 = vunpack.c.h.b16 %v2252
    %v3494 = vunpack.c.l.b16 %v2253
    %v3495 = vunpack.c.h.b16 %v2253
    %v3496 = vunpack.c.l.b16 %v2254
    %v3497 = vunpack.c.h.b16 %v2254
    %v3498 = vunpack.c.l.b16 %v2255
    %v3499 = vunpack.c.h.b16 %v2255
    %v3500 = vunpack.c.l.b16 %v2256
    %v3501 = vunpack.c.h.b16 %v2256
    %v3502 = vunpack.c.l.b16 %v2257
    %v3503 = vunpack.c.h.b16 %v2257
    %v3504 = vunpack.c.l.b16 %v2258
    %v3505 = vunpack.c.h.b16 %v2258
    %v3506 = vunpack.c.l.b16 %v2259
    %v3507 = vunpack.c.h.b16 %v2259
    %v3508 = vunpack.c.l.b16 %v2260
    %v3509 = vunpack.c.h.b16 %v2260
    %v3510 = vunpack.c.l.b16 %v2261
    %v3511 = vunpack.c.h.b16 %v2261
    %v3512 = vunpack.c.l.b16 %v2262
    %v3513 = vunpack.c.h.b16 %v2262
    %v3514 = vunpack.c.l.b16 %v2263
    %v3515 = vunpack.c.h.b16 %v2263
    %v3516 = vunpack.c.l.b16 %v2264
    %v3517 = vunpack.c.h.b16 %v2264
    %v3518 = vunpack.c.l.b16 %v2265
    %v3519 = vunpack.c.h.b16 %v2265
    %v3520 = vunpack.c.l.b16 %v2266
    %v3521 = vunpack.c.h.b16 %v2266
    %v3522 = vunpack.c.l.b16 %v2267
    %v3523 = vunpack.c.h.b16 %v2267
    %v3524 = vunpack.c.l.b16 %v2268
    %v3525 = vunpack.c.h.b16 %v2268
    %v3526 = vunpack.c.l.b16 %v2269
    %v3527 = vunpack.c.h.b16 %v2269
    %v3528 = vunpack.c.l.b16 %v2270
    %v3529 = vunpack.c.h.b16 %v2270
    %v3530 = vunpack.c.l.b16 %v2271
    %v3531 = vunpack.c.h.b16 %v2271
    %v3532 = vunpack.c.l.b16 %v2272
    %v3533 = vunpack.c.h.b16 %v2272
    %v3534 = vunpack.c.l.b16 %v2273
    %v3535 = vunpack.c.h.b16 %v2273
    %v3536 = vunpack.c.l.b16 %v2274
    %v3537 = vunpack.c.h.b16 %v2274
    %v3538 = vunpack.c.l.b16 %v2275
    %v3539 = vunpack.c.h.b16 %v2275
    %v3540 = vunpack.c.l.b16 %v2276
    %v3541 = vunpack.c.h.b16 %v2276
    %v3542 = vunpack.c.l.b16 %v2277
    %v3543 = vunpack.c.h.b16 %v2277
    %v3544 = vunpack.c.l.b16 %v2278
    %v3545 = vunpack.c.h.b16 %v2278
    %v3546 = vunpack.c.l.b16 %v2279
    %v3547 = vunpack.c.h.b16 %v2279
    %v3548 = vunpack.c.l.b16 %v2280
    %v3549 = vunpack.c.h.b16 %v2280
    %v3550 = vunpack.c.l.b16 %v2281
    %v3551 = vunpack.c.h.b16 %v2281
    %v3552 = vunpack.c.l.b16 %v2282
    %v3553 = vunpack.c.h.b16 %v2282
    %v3554 = vunpack.c.l.b16 %v2283
    %v3555 = vunpack.c.h.b16 %v2283
    %v3556 = vunpack.c.l.b16 %v2284
    %v3557 = vunpack.c.h.b16 %v2284
    %v3558 = vunpack.c.l.b16 %v2285
    %v3559 = vunpack.c.h.b16 %v2285
    %v3560 = vunpack.c.l.b16 %v2286
    %v3561 = vunpack.c.h.b16 %v2286
    %v3562 = vunpack.c.l.b16 %v2287
    %v3563 = vunpack.c.h.b16 %v2287
    %v3564 = vunpack.c.l.b16 %v2288
    %v3565 = vunpack.c.h.b16 %v2288
    %v3566 = vunpack.c.l.b16 %v2289
    %v3567 = vunpack.c.h.b16 %v2289
    %v3568 = vunpack.c.l.b16 %v2290
    %v3569 = vunpack.c.h.b16 %v2290
    %v3570 = vunpack.c.l.b16 %v2291
    %v3571 = vunpack.c.h.b16 %v2291
    %v3572 = vunpack.c.l.b16 %v2292
    %v3573 = vunpack.c.h.b16 %v2292
    %v3574 = vunpack.c.l.b16 %v2293
    %v3575 = vunpack.c.h.b16 %v2293
    %v3576 = vunpack.c.l.b16 %v2294
    %v3577 = vunpack.c.h.b16 %v2294
    %v3578 = vunpack.c.l.b16 %v2295
    %v3579 = vunpack.c.h.b16 %v2295
    %v3580 = vunpack.c.l.b16 %v2296
    %v3581 = vunpack.c.h.b16 %v2296
    %v3582 = vunpack.c.l.b16 %v2297
    %v3583 = vunpack.c.h.b16 %v2297
    %v3584 = vunpack.c.l.b16 %v2298
    %v3585 = vunpack.c.h.b16 %v2298
    %v3586 = vunpack.c.l.b16 %v2299
    %v3587 = vunpack.c.h.b16 %v2299
    %v3588 = vunpack.c.l.b16 %v2300
    %v3589 = vunpack.c.h.b16 %v2300
    %v3590 = vunpack.c.l.b16 %v2301
    %v3591 = vunpack.c.h.b16 %v2301
    %v3592 = vunpack.c.l.b16 %v2302
    %v3593 = vunpack.c.h.b16 %v2302
    %v3594 = vunpack.c.l.b16 %v2303
    %v3595 = vunpack.c.h.b16 %v2303
    %v3596 = vunpack.c.l.b16 %v2304
    %v3597 = vunpack.c.h.b16 %v2304
    %v3598 = vunpack.c.l.b16 %v2305
    %v3599 = vunpack.c.h.b16 %v2305
    %v3600 = vunpack.c.l.b16 %v2306
    %v3601 = vunpack.c.h.b16 %v2306
    %v3602 = vunpack.c.l.b16 %v2307
    %v3603 = vunpack.c.h.b16 %v2307
    %v3604 = vunpack.c.l.b16 %v2308
    %v3605 = vunpack.c.h.b16 %v2308
    %v3606 = vunpack.c.l.b16 %v2309
    %v3607 = vunpack.c.h.b16 %v2309
    %v3608 = vunpack.c.l.b16 %v2310
    %v3609 = vunpack.c.h.b16 %v2310
    %v3610 = vunpack.c.l.b16 %v2311
    %v3611 = vunpack.c.h.b16 %v2311
    %v3612 = vunpack.c.l.b16 %v2312
    %v3613 = vunpack.c.h.b16 %v2312
    %v3614 = vunpack.c.l.b16 %v2313
    %v3615 = vunpack.c.h.b16 %v2313
    %v3616 = vunpack.c.l.b16 %v2314
    %v3617 = vunpack.c.h.b16 %v2314
    %v3618 = vunpack.c.l.b16 %v2315
    %v3619 = vunpack.c.h.b16 %v2315
    %v3620 = vunpack.c.l.b16 %v2316
    %v3621 = vunpack.c.h.b16 %v2316
    %v3622 = vunpack.c.l.b16 %v2317
    %v3623 = vunpack.c.h.b16 %v2317
    %v3624 = vunpack.c.l.b16 %v2318
    %v3625 = vunpack.c.h.b16 %v2318
    %v3626 = vunpack.c.l.b16 %v2319
    %v3627 = vunpack.c.h.b16 %v2319
    %v3628 = vunpack.c.l.b16 %v2320
    %v3629 = vunpack.c.h.b16 %v2320
    %v3630 = vunpack.c.l.b16 %v2321
    %v3631 = vunpack.c.h.b16 %v2321
    %v3632 = vunpack.c.l.b16 %v2322
    %v3633 = vunpack.c.h.b16 %v2322
    %v3634 = vunpack.c.l.b16 %v2323
    %v3635 = vunpack.c.h.b16 %v2323
    %v3636 = vunpack.c.l.b16 %v2324
    %v3637 = vunpack.c.h.b16 %v2324
    %v3638 = vunpack.c.l.b16 %v2325
    %v3639 = vunpack.c.h.b16 %v2325
    %v3640 = vunpack.c.l.b16 %v2326
    %v3641 = vunpack.c.h.b16 %v2326
    %v3642 = vunpack.c.l.b16 %v2327
    %v3643 = vunpack.c.h.b16 %v2327
    %v3644 = vunpack.c.l.b16 %v2328
    %v3645 = vunpack.c.h.b16 %v2328
    %v3646 = vunpack.c.l.b16 %v2329
    %v3647 = vunpack.c.h.b16 %v2329
    %v3648 = vunpack.c.l.b16 %v2330
    %v3649 = vunpack.c.h.b16 %v2330
    %v3650 = vunpack.c.l.b16 %v2331
    %v3651 = vunpack.c.h.b16 %v2331
    %v3652 = vunpack.c.l.b16 %v2332
    %v3653 = vunpack.c.h.b16 %v2332
    %v3654 = vunpack.c.l.b16 %v2333
    %v3655 = vunpack.c.h.b16 %v2333
    %v3656 = vunpack.c.l.b16 %v2334
    %v3657 = vunpack.c.h.b16 %v2334
    %v3658 = vunpack.c.l.b16 %v2335
    %v3659 = vunpack.c.h.b16 %v2335
    %v3660 = vunpack.c.l.b16 %v2336
    %v3661 = vunpack.c.h.b16 %v2336
    %v3662 = vunpack.c.l.b16 %v2337
    %v3663 = vunpack.c.h.b16 %v2337
    %v3664 = vunpack.c.l.b16 %v2338
    %v3665 = vunpack.c.h.b16 %v2338
    %v3666 = vunpack.c.l.b16 %v2339
    %v3667 = vunpack.c.h.b16 %v2339
    %v3668 = vunpack.c.l.b16 %v2340
    %v3669 = vunpack.c.h.b16 %v2340
    %v3670 = vunpack.c.l.b16 %v2341
    %v3671 = vunpack.c.h.b16 %v2341
    %v3672 = vunpack.c.l.b16 %v2342
    %v3673 = vunpack.c.h.b16 %v2342
    %v3674 = vunpack.c.l.b16 %v2343
    %v3675 = vunpack.c.h.b16 %v2343
    %v3676 = vunpack.c.l.b16 %v2344
    %v3677 = vunpack.c.h.b16 %v2344
    %v3678 = vunpack.c.l.b16 %v2345
    %v3679 = vunpack.c.h.b16 %v2345
    %v3680 = vunpack.c.l.b16 %v2346
    %v3681 = vunpack.c.h.b16 %v2346
    %v3682 = vunpack.c.l.b16 %v2347
    %v3683 = vunpack.c.h.b16 %v2347
    %v3684 = vunpack.c.l.b16 %v2348
    %v3685 = vunpack.c.h.b16 %v2348
    %v3686 = vunpack.c.l.b16 %v2349
    %v3687 = vunpack.c.h.b16 %v2349
    %v3688 = vunpack.c.l.b16 %v2350
    %v3689 = vunpack.c.h.b16 %v2350
    %v3690 = vunpack.c.l.b16 %v2351
    %v3691 = vunpack.c.h.b16 %v2351
    %v3692 = vunpack.c.l.b16 %v2352
    %v3693 = vunpack.c.h.b16 %v2352
    %v3694 = vunpack.c.l.b16 %v2353
    %v3695 = vunpack.c.h.b16 %v2353
    %v3696 = vunpack.c.l.b16 %v2354
    %v3697 = vunpack.c.h.b16 %v2354
    %v3698 = vunpack.c.l.b16 %v2355
    %v3699 = vunpack.c.h.b16 %v2355
    %v3700 = vunpack.c.l.b16 %v2356
    %v3701 = vunpack.c.h.b16 %v2356
    %v3702 = vunpack.c.l.b16 %v2357
    %v3703 = vunpack.c.h.b16 %v2357
    %v3704 = vunpack.c.l.b16 %v2358
    %v3705 = vunpack.c.h.b16 %v2358
    %v3706 = vunpack.c.l.b16 %v2359
    %v3707 = vunpack.c.h.b16 %v2359
    %v3708 = vunpack.c.l.b16 %v2360
    %v3709 = vunpack.c.h.b16 %v2360
    %v3710 = vunpack.c.l.b16 %v2361
    %v3711 = vunpack.c.h.b16 %v2361
    %v3712 = vunpack.c.l.b16 %v2362
    %v3713 = vunpack.c.h.b16 %v2362
    %v3714 = vunpack.c.l.b16 %v2363
    %v3715 = vunpack.c.h.b16 %v2363
    %v3716 = vunpack.c.l.b16 %v2364
    %v3717 = vunpack.c.h.b16 %v2364
    %v3718 = vunpack.c.l.b16 %v2365
    %v3719 = vunpack.c.h.b16 %v2365
    %v3720 = vunpack.c.l.b16 %v2366
    %v3721 = vunpack.c.h.b16 %v2366
    %v3722 = vunpack.c.l.b16 %v2367
    %v3723 = vunpack.c.h.b16 %v2367
    %v3724 = vunpack.c.l.b16 %v2368
    %v3725 = vunpack.c.h.b16 %v2368
    %v3726 = vunpack.c.l.b16 %v2369
    %v3727 = vunpack.c.h.b16 %v2369
    %v3728 = vunpack.c.l.b16 %v2370
    %v3729 = vunpack.c.h.b16 %v2370
    %v3730 = vunpack.c.l.b16 %v2371
    %v3731 = vunpack.c.h.b16 %v2371
    %v3732 = vunpack.c.l.b16 %v2372
    %v3733 = vunpack.c.h.b16 %v2372
    %v3734 = vunpack.c.l.b16 %v2373
    %v3735 = vunpack.c.h.b16 %v2373
    %v3736 = vunpack.c.l.b16 %v2374
    %v3737 = vunpack.c.h.b16 %v2374
    %v3738 = vunpack.c.l.b16 %v2375
    %v3739 = vunpack.c.h.b16 %v2375
    %v3740 = vunpack.c.l.b16 %v2376
    %v3741 = vunpack.c.h.b16 %v2376
    %v3742 = vunpack.c.l.b16 %v2377
    %v3743 = vunpack.c.h.b16 %v2377
    %v3744 = vunpack.c.l.b16 %v2378
    %v3745 = vunpack.c.h.b16 %v2378
    %v3746 = vunpack.c.l.b16 %v2379
    %v3747 = vunpack.c.h.b16 %v2379
    %v3748 = vunpack.c.l.b16 %v2380
    %v3749 = vunpack.c.h.b16 %v2380
    %v3750 = vunpack.c.l.b16 %v2381
    %v3751 = vunpack.c.h.b16 %v2381
    %v3752 = vunpack.c.l.b16 %v2382
    %v3753 = vunpack.c.h.b16 %v2382
    %v3754 = vunpack.c.l.b16 %v2383
    %v3755 = vunpack.c.h.b16 %v2383
    %v3756 = vunpack.c.l.b16 %v2384
    %v3757 = vunpack.c.h.b16 %v2384
    %v3758 = vunpack.c.l.b16 %v2385
    %v3759 = vunpack.c.h.b16 %v2385
    %v3760 = vunpack.c.l.b16 %v2386
    %v3761 = vunpack.c.h.b16 %v2386
    %v3762 = vunpack.c.l.b16 %v2387
    %v3763 = vunpack.c.h.b16 %v2387
    %v3764 = vunpack.c.l.b16 %v2388
    %v3765 = vunpack.c.h.b16 %v2388
    %v3766 = vunpack.c.l.b16 %v2389
    %v3767 = vunpack.c.h.b16 %v2389
    %v3768 = vunpack.c.l.b16 %v2390
    %v3769 = vunpack.c.h.b16 %v2390
    %v3770 = vunpack.c.l.b16 %v2391
    %v3771 = vunpack.c.h.b16 %v2391
    %v3772 = vunpack.c.l.b16 %v2392
    %v3773 = vunpack.c.h.b16 %v2392
    %v3774 = vunpack.c.l.b16 %v2393
    %v3775 = vunpack.c.h.b16 %v2393
    %v3776 = vunpack.c.l.b16 %v2394
    %v3777 = vunpack.c.h.b16 %v2394
    %v3778 = vunpack.c.l.b16 %v2395
    %v3779 = vunpack.c.h.b16 %v2395
    %v3780 = vunpack.c.l.b16 %v2396
    %v3781 = vunpack.c.h.b16 %v2396
    %v3782 = vunpack.c.l.b16 %v2397
    %v3783 = vunpack.c.h.b16 %v2397
    %v3784 = vunpack.c.l.b16 %v2398
    %v3785 = vunpack.c.h.b16 %v2398
    %v3786 = vunpack.c.l.b16 %v2399
    %v3787 = vunpack.c.h.b16 %v2399
    %v3788 = vunpack.c.l.b16 %v2400
    %v3789 = vunpack.c.h.b16 %v2400
    %v3790 = vunpack.c.l.b16 %v2401
    %v3791 = vunpack.c.h.b16 %v2401
    %v3792 = vunpack.c.l.b16 %v2402
    %v3793 = vunpack.c.h.b16 %v2402
    %v3794 = vunpack.c.l.b16 %v2403
    %v3795 = vunpack.c.h.b16 %v2403
    %v3796 = vunpack.c.l.b16 %v2404
    %v3797 = vunpack.c.h.b16 %v2404
    %v3798 = vunpack.c.l.b16 %v2405
    %v3799 = vunpack.c.h.b16 %v2405
    %v3800 = vunpack.c.l.b16 %v2406
    %v3801 = vunpack.c.h.b16 %v2406
    %v3802 = vunpack.c.l.b16 %v2407
    %v3803 = vunpack.c.h.b16 %v2407
    %v3804 = vunpack.c.l.b16 %v2408
    %v3805 = vunpack.c.h.b16 %v2408
    %v3806 = vunpack.c.l.b16 %v2409
    %v3807 = vunpack.c.h.b16 %v2409
    %v3808 = vunpack.c.l.b16 %v2410
    %v3809 = vunpack.c.h.b16 %v2410
    %v3810 = vunpack.c.l.b16 %v2411
    %v3811 = vunpack.c.h.b16 %v2411
    %v3812 = vunpack.c.l.b16 %v2412
    %v3813 = vunpack.c.h.b16 %v2412
    %v3814 = vunpack.c.l.b16 %v2413
    %v3815 = vunpack.c.h.b16 %v2413
    %v3816 = vunpack.c.l.b16 %v2414
    %v3817 = vunpack.c.h.b16 %v2414
    %v3818 = vunpack.c.l.b16 %v2415
    %v3819 = vunpack.c.h.b16 %v2415
    %v3820 = vunpack.c.l.b16 %v2416
    %v3821 = vunpack.c.h.b16 %v2416
    %v3822 = vunpack.c.l.b16 %v2417
    %v3823 = vunpack.c.h.b16 %v2417
    %v3824 = vunpack.c.l.b16 %v2418
    %v3825 = vunpack.c.h.b16 %v2418
    %v3826 = vunpack.c.l.b16 %v2419
    %v3827 = vunpack.c.h.b16 %v2419
    %v3828 = vunpack.c.l.b16 %v2420
    %v3829 = vunpack.c.h.b16 %v2420
    %v3830 = vunpack.c.l.b16 %v2421
    %v3831 = vunpack.c.h.b16 %v2421
    %v3832 = vunpack.c.l.b16 %v2422
    %v3833 = vunpack.c.h.b16 %v2422
    %v3834 = vunpack.c.l.b16 %v2423
    %v3835 = vunpack.c.h.b16 %v2423
    %v3836 = vunpack.c.l.b16 %v2424
    %v3837 = vunpack.c.h.b16 %v2424
    %v3838 = vunpack.c.l.b16 %v2425
    %v3839 = vunpack.c.h.b16 %v2425
    %v3840 = vunpack.c.l.b16 %v2426
    %v3841 = vunpack.c.h.b16 %v2426
    %v3842 = vunpack.c.l.b16 %v2427
    %v3843 = vunpack.c.h.b16 %v2427
    %v3844 = vunpack.c.l.b16 %v2428
    %v3845 = vunpack.c.h.b16 %v2428
    %v3846 = vunpack.c.l.b16 %v2429
    %v3847 = vunpack.c.h.b16 %v2429
    %v3848 = vunpack.c.l.b16 %v2430
    %v3849 = vunpack.c.h.b16 %v2430
    %v3850 = vunpack.c.l.b16 %v2431
    %v3851 = vunpack.c.h.b16 %v2431
    %v3852 = vunpack.c.l.b16 %v2432
    %v3853 = vunpack.c.h.b16 %v2432
    %v3854 = vunpack.c.l.b16 %v2433
    %v3855 = vunpack.c.h.b16 %v2433
    %v3856 = vunpack.c.l.b16 %v2434
    %v3857 = vunpack.c.h.b16 %v2434
    %v3858 = vunpack.c.l.b16 %v2435
    %v3859 = vunpack.c.h.b16 %v2435
    %v3860 = vunpack.c.l.b16 %v2436
    %v3861 = vunpack.c.h.b16 %v2436
    %v3862 = vunpack.c.l.b16 %v2437
    %v3863 = vunpack.c.h.b16 %v2437
    %v3864 = vunpack.c.l.b16 %v2438
    %v3865 = vunpack.c.h.b16 %v2438
    %v3866 = vunpack.c.l.b16 %v2439
    %v3867 = vunpack.c.h.b16 %v2439
    %v3868 = vunpack.c.l.b16 %v2440
    %v3869 = vunpack.c.h.b16 %v2440
    %v3870 = vunpack.c.l.b16 %v2441
    %v3871 = vunpack.c.h.b16 %v2441
    %v3872 = vunpack.c.l.b16 %v2442
    %v3873 = vunpack.c.h.b16 %v2442
    %v3874 = vunpack.c.l.b16 %v2443
    %v3875 = vunpack.c.h.b16 %v2443
    %v3876 = vunpack.c.l.b16 %v2444
    %v3877 = vunpack.c.h.b16 %v2444
    %v3878 = vunpack.c.l.b16 %v2445
    %v3879 = vunpack.c.h.b16 %v2445
    %v3880 = vunpack.c.l.b16 %v2446
    %v3881 = vunpack.c.h.b16 %v2446
    %v3882 = vunpack.c.l.b16 %v2447
    %v3883 = vunpack.c.h.b16 %v2447
    %v3884 = vunpack.c.l.b16 %v2448
    %v3885 = vunpack.c.h.b16 %v2448
    %v3886 = vunpack.c.l.b16 %v2449
    %v3887 = vunpack.c.h.b16 %v2449
    %v3888 = vunpack.c.l.b16 %v2450
    %v3889 = vunpack.c.h.b16 %v2450
    %v3890 = vunpack.c.l.b16 %v2451
    %v3891 = vunpack.c.h.b16 %v2451
    %v3892 = vunpack.c.l.b16 %v2452
    %v3893 = vunpack.c.h.b16 %v2452
    %v3894 = vunpack.c.l.b16 %v2453
    %v3895 = vunpack.c.h.b16 %v2453
    %v3896 = vunpack.c.l.b16 %v2454
    %v3897 = vunpack.c.h.b16 %v2454
    %v3898 = vunpack.c.l.b16 %v2455
    %v3899 = vunpack.c.h.b16 %v2455
    %v3900 = vunpack.c.l.b16 %v2456
    %v3901 = vunpack.c.h.b16 %v2456
    %v3902 = vunpack.c.l.b16 %v2457
    %v3903 = vunpack.c.h.b16 %v2457
    %v3904 = vunpack.c.l.b16 %v2458
    %v3905 = vunpack.c.h.b16 %v2458
    %v3906 = vunpack.c.l.b16 %v2459
    %v3907 = vunpack.c.h.b16 %v2459
    %v3908 = vunpack.c.l.b16 %v2460
    %v3909 = vunpack.c.h.b16 %v2460
    %v3910 = vunpack.c.l.b16 %v2461
    %v3911 = vunpack.c.h.b16 %v2461
    %v3912 = vunpack.c.l.b16 %v2462
    %v3913 = vunpack.c.h.b16 %v2462
    %v3914 = vunpack.c.l.b16 %v2463
    %v3915 = vunpack.c.h.b16 %v2463
    %v3916 = vunpack.c.l.b16 %v2464
    %v3917 = vunpack.c.h.b16 %v2464
    %v3918 = vunpack.c.l.b16 %v2465
    %v3919 = vunpack.c.h.b16 %v2465
    %v3920 = vunpack.c.l.b16 %v2466
    %v3921 = vunpack.c.h.b16 %v2466
    %v3922 = vunpack.c.l.b16 %v2467
    %v3923 = vunpack.c.h.b16 %v2467
    %v3924 = vunpack.c.l.b16 %v2468
    %v3925 = vunpack.c.h.b16 %v2468
    %v3926 = vunpack.c.l.b16 %v2469
    %v3927 = vunpack.c.h.b16 %v2469
    %v3928 = vunpack.c.l.b16 %v2470
    %v3929 = vunpack.c.h.b16 %v2470
    %v3930 = vunpack.c.l.b16 %v2471
    %v3931 = vunpack.c.h.b16 %v2471
    %v3932 = vunpack.c.l.b16 %v2472
    %v3933 = vunpack.c.h.b16 %v2472
    %v3934 = vunpack.c.l.b16 %v2473
    %v3935 = vunpack.c.h.b16 %v2473
    %v3936 = vunpack.c.l.b16 %v2474
    %v3937 = vunpack.c.h.b16 %v2474
    %v3938 = vunpack.c.l.b16 %v2475
    %v3939 = vunpack.c.h.b16 %v2475
    %v3940 = vunpack.c.l.b16 %v2476
    %v3941 = vunpack.c.h.b16 %v2476
    %v3942 = vunpack.c.l.b16 %v2477
    %v3943 = vunpack.c.h.b16 %v2477
    %v3944 = vunpack.c.l.b16 %v2478
    %v3945 = vunpack.c.h.b16 %v2478
    %v3946 = vunpack.c.l.b16 %v2479
    %v3947 = vunpack.c.h.b16 %v2479
    %v3948 = vunpack.c.l.b16 %v2480
    %v3949 = vunpack.c.h.b16 %v2480
    %v3950 = vunpack.c.l.b16 %v2481
    %v3951 = vunpack.c.h.b16 %v2481
    %v3952 = vunpack.c.l.b16 %v2482
    %v3953 = vunpack.c.h.b16 %v2482
    %v3954 = vunpack.c.l.b16 %v2483
    %v3955 = vunpack.c.h.b16 %v2483
    %v3956 = vunpack.c.l.b16 %v2484
    %v3957 = vunpack.c.h.b16 %v2484
    %v3958 = vunpack.c.l.b16 %v2485
    %v3959 = vunpack.c.h.b16 %v2485
    %v3960 = vunpack.c.l.b16 %v2486
    %v3961 = vunpack.c.h.b16 %v2486
    %v3962 = vunpack.c.l.b16 %v2487
    %v3963 = vunpack.c.h.b16 %v2487
    %v3964 = vunpack.c.l.b16 %v2488
    %v3965 = vunpack.c.h.b16 %v2488
    %v3966 = vunpack.c.l.b16 %v2489
    %v3967 = vunpack.c.h.b16 %v2489
    %v3968 = vunpack.c.l.b16 %v2490
    %v3969 = vunpack.c.h.b16 %v2490
    %v3970 = vunpack.c.l.b16 %v2491
    %v3971 = vunpack.c.h.b16 %v2491
    %v3972 = vunpack.c.l.b16 %v2492
    %v3973 = vunpack.c.h.b16 %v2492
    %v3974 = vunpack.c.l.b16 %v2493
    %v3975 = vunpack.c.h.b16 %v2493
    %v3976 = vunpack.c.l.b16 %v2494
    %v3977 = vunpack.c.h.b16 %v2494
    %v3978 = vunpack.c.l.b16 %v2495
    %v3979 = vunpack.c.h.b16 %v2495
    %v3980 = vunpack.c.l.b16 %v2496
    %v3981 = vunpack.c.h.b16 %v2496
    %v3982 = vunpack.c.l.b16 %v2497
    %v3983 = vunpack.c.h.b16 %v2497
    %v3984 = vunpack.c.l.b16 %v2498
    %v3985 = vunpack.c.h.b16 %v2498
    %v3986 = vunpack.c.l.b16 %v2499
    %v3987 = vunpack.c.h.b16 %v2499
    %v3988 = vunpack.c.l.b16 %v2500
    %v3989 = vunpack.c.h.b16 %v2500
    %v3990 = vunpack.c.l.b16 %v2501
    %v3991 = vunpack.c.h.b16 %v2501
    %v3992 = vunpack.c.l.b16 %v2502
    %v3993 = vunpack.c.h.b16 %v2502
    %v3994 = vunpack.c.l.b16 %v2503
    %v3995 = vunpack.c.h.b16 %v2503
    %v3996 = vunpack.c.l.b16 %v2504
    %v3997 = vunpack.c.h.b16 %v2504
    %v3998 = vunpack.c.l.b16 %v2505
    %v3999 = vunpack.c.h.b16 %v2505
    %v4000 = vunpack.c.l.b16 %v2506
    %v4001 = vunpack.c.h.b16 %v2506
    %v4002 = vunpack.c.l.b16 %v2507
    %v4003 = vunpack.c.h.b16 %v2507
    %v4004 = vunpack.c.l.b16 %v2508
    %v4005 = vunpack.c.h.b16 %v2508
    %v4006 = vunpack.c.l.b16 %v2509
    %v4007 = vunpack.c.h.b16 %v2509
    %v4008 = vunpack.c.l.b16 %v2510
    %v4009 = vunpack.c.h.b16 %v2510
    %v4010 = vunpack.c.l.b16 %v2511
    %v4011 = vunpack.c.h.b16 %v2511
    %v4012 = vunpack.c.l.b16 %v2512
    %v4013 = vunpack.c.h.b16 %v2512
    %v4014 = vunpack.c.l.b16 %v2513
    %v4015 = vunpack.c.h.b16 %v2513
    %v4016 = vunpack.c.l.b16 %v2514
    %v4017 = vunpack.c.h.b16 %v2514
    %v4018 = vunpack.c.l.b16 %v2515
    %v4019 = vunpack.c.h.b16 %v2515
    %v4020 = vunpack.c.l.b16 %v2516
    %v4021 = vunpack.c.h.b16 %v2516
    %v4022 = vunpack.c.l.b16 %v2517
    %v4023 = vunpack.c.h.b16 %v2517
    %v4024 = vunpack.c.l.b16 %v2518
    %v4025 = vunpack.c.h.b16 %v2518
    %v4026 = vunpack.c.l.b16 %v2519
    %v4027 = vunpack.c.h.b16 %v2519
    %v4028 = vunpack.c.l.b16 %v2520
    %v4029 = vunpack.c.h.b16 %v2520
    %v4030 = vunpack.c.l.b16 %v2521
    %v4031 = vunpack.c.h.b16 %v2521
    %v4032 = vunpack.c.l.b16 %v2522
    %v4033 = vunpack.c.h.b16 %v2522
    %v4034 = vunpack.c.l.b16 %v2523
    %v4035 = vunpack.c.h.b16 %v2523
    %v4036 = vunpack.c.l.b16 %v2524
    %v4037 = vunpack.c.h.b16 %v2524
    %v4038 = vunpack.c.l.b16 %v2525
    %v4039 = vunpack.c.h.b16 %v2525
    %v4040 = vunpack.c.l.b16 %v2526
    %v4041 = vunpack.c.h.b16 %v2526
    %v4042 = vunpack.c.l.b16 %v2527
    %v4043 = vunpack.c.h.b16 %v2527
    %v4044 = vunpack.c.l.b16 %v2528
    %v4045 = vunpack.c.h.b16 %v2528
    %v4046 = vunpack.c.l.b16 %v2529
    %v4047 = vunpack.c.h.b16 %v2529
    %v4048 = vunpack.c.l.b16 %v2530
    %v4049 = vunpack.c.h.b16 %v2530
    %v4050 = vunpack.c.l.b16 %v2531
    %v4051 = vunpack.c.h.b16 %v2531
    %v4052 = vunpack.c.l.b16 %v2532
    %v4053 = vunpack.c.h.b16 %v2532
    %v4054 = vunpack.c.l.b16 %v2533
    %v4055 = vunpack.c.h.b16 %v2533
    %v4056 = vunpack.c.l.b16 %v2534
    %v4057 = vunpack.c.h.b16 %v2534
    %v4058 = vunpack.c.l.b16 %v2535
    %v4059 = vunpack.c.h.b16 %v2535
    %v4060 = vunpack.c.l.b16 %v2536
    %v4061 = vunpack.c.h.b16 %v2536
    %v4062 = vunpack.c.l.b16 %v2537
    %v4063 = vunpack.c.h.b16 %v2537
    %v4064 = vunpack.c.l.b16 %v2538
    %v4065 = vunpack.c.h.b16 %v2538
    %v4066 = vunpack.c.l.b16 %v2539
    %v4067 = vunpack.c.h.b16 %v2539
    %v4068 = vunpack.c.l.b16 %v2540
    %v4069 = vunpack.c.h.b16 %v2540
    %v4070 = vunpack.c.l.b16 %v2541
    %v4071 = vunpack.c.h.b16 %v2541
    %v4072 = vunpack.c.l.b16 %v2542
    %v4073 = vunpack.c.h.b16 %v2542
    %v4074 = vunpack.c.l.b16 %v2543
    %v4075 = vunpack.c.h.b16 %v2543
    %v4076 = vunpack.c.l.b16 %v2544
    %v4077 = vunpack.c.h.b16 %v2544
    %v4078 = vunpack.c.l.b16 %v2545
    %v4079 = vunpack.c.h.b16 %v2545
    %v4080 = vunpack.c.l.b16 %v2546
    %v4081 = vunpack.c.h.b16 %v2546
    %v4082 = vunpack.c.l.b16 %v2547
    %v4083 = vunpack.c.h.b16 %v2547
    %v4084 = vunpack.c.l.b16 %v2548
    %v4085 = vunpack.c.h.b16 %v2548
    %v4086 = vunpack.c.l.b16 %v2549
    %v4087 = vunpack.c.h.b16 %v2549
    %v4088 = vunpack.c.l.b16 %v2550
    %v4089 = vunpack.c.h.b16 %v2550
    %v4090 = vunpack.c.l.b16 %v2551
    %v4091 = vunpack.c.h.b16 %v2551
    %v4092 = vunpack.c.l.b16 %v2552
    %v4093 = vunpack.c.h.b16 %v2552
    %v4094 = vunpack.c.l.b16 %v2553
    %v4095 = vunpack.c.h.b16 %v2553
    %v4096 = vunpack.c.l.b16 %v2554
    %v4097 = vunpack.c.h.b16 %v2554
    %v4098 = vunpack.c.l.b16 %v2555
    %v4099 = vunpack.c.h.b16 %v2555
    %v4100 = vunpack.c.l.b16 %v2556
    %v4101 = vunpack.c.h.b16 %v2556
    %v4102 = vunpack.c.l.b16 %v2557
    %v4103 = vunpack.c.h.b16 %v2557
    %v4104 = vunpack.c.l.b16 %v2558
    %v4105 = vunpack.c.h.b16 %v2558
    %v4106 = vunpack.c.l.b16 %v2559
    %v4107 = vunpack.c.h.b16 %v2559
    %v4108 = vunpack.c.l.b16 %v2560
    %v4109 = vunpack.c.h.b16 %v2560
    %v4110 = vunpack.c.l.b16 %v2561
    %v4111 = vunpack.c.h.b16 %v2561
    %v4112 = vunpack.c.l.b16 %v2562
    %v4113 = vunpack.c.h.b16 %v2562
    %v4114 = vunpack.c.l.b16 %v2563
    %v4115 = vunpack.c.h.b16 %v2563
    %v4116 = vunpack.c.l.b16 %v2564
    %v4117 = vunpack.c.h.b16 %v2564
    %v4118 = vunpack.c.l.b16 %v2565
    %v4119 = vunpack.c.h.b16 %v2565
    %v4120 = vunpack.c.l.b16 %v2566
    %v4121 = vunpack.c.h.b16 %v2566
    %v4122 = vunpack.c.l.b16 %v2567
    %v4123 = vunpack.c.h.b16 %v2567
    %v4124 = vunpack.c.l.b16 %v2568
    %v4125 = vunpack.c.h.b16 %v2568
    %v4126 = vunpack.c.l.b16 %v2569
    %v4127 = vunpack.c.h.b16 %v2569
    %v4128 = vunpack.c.l.b16 %v2570
    %v4129 = vunpack.c.h.b16 %v2570
    %v4130 = vunpack.c.l.b16 %v2571
    %v4131 = vunpack.c.h.b16 %v2571
    %v4132 = vunpack.c.l.b16 %v2572
    %v4133 = vunpack.c.h.b16 %v2572
    %v4134 = vunpack.c.l.b16 %v2573
    %v4135 = vunpack.c.h.b16 %v2573
    %v4136 = vunpack.c.l.b16 %v2574
    %v4137 = vunpack.c.h.b16 %v2574
    %v4138 = vunpack.c.l.b16 %v2575
    %v4139 = vunpack.c.h.b16 %v2575
    %v4140 = vunpack.c.l.b16 %v2576
    %v4141 = vunpack.c.h.b16 %v2576
    %v4142 = vunpack.c.l.b16 %v2577
    %v4143 = vunpack.c.h.b16 %v2577
    %v4144 = vunpack.c.l.b16 %v2578
    %v4145 = vunpack.c.h.b16 %v2578
    %v4146 = vunpack.c.l.b16 %v2579
    %v4147 = vunpack.c.h.b16 %v2579
    %v4148 = vunpack.c.l.b16 %v2580
    %v4149 = vunpack.c.h.b16 %v2580
    %v4150 = vunpack.c.l.b16 %v2581
    %v4151 = vunpack.c.h.b16 %v2581
    %v4152 = vunpack.c.l.b16 %v2582
    %v4153 = vunpack.c.h.b16 %v2582
    %v4154 = vunpack.c.l.b16 %v2583
    %v4155 = vunpack.c.h.b16 %v2583
    %v4156 = vunpack.c.l.b16 %v2584
    %v4157 = vunpack.c.h.b16 %v2584
    %v4158 = vunpack.c.l.b16 %v2585
    %v4159 = vunpack.c.h.b16 %v2585
    %v4160 = vunpack.c.l.b16 %v2586
    %v4161 = vunpack.c.h.b16 %v2586
    %v4162 = vunpack.c.l.b16 %v2587
    %v4163 = vunpack.c.h.b16 %v2587
    %v4164 = vunpack.c.l.b16 %v2588
    %v4165 = vunpack.c.h.b16 %v2588
    %v4166 = vpack.c.b16 %v3150, %v3142
    %v4167 = vpack.c.b16 %v3151, %v3143
    %v4168 = vpack.c.b16 %v3152, %v3144
    %v4169 = vpack.c.b16 %v3153, %v3145
    %v4170 = vpack.c.b16 %v3154, %v3146
    %v4171 = vpack.c.b16 %v3155, %v3147
    %v4172 = vpack.c.b16 %v3156, %v3148
    %v4173 = vpack.c.b16 %v3157, %v3149
    %v4174 = vpack.c.b16 %v3166, %v3158
    %v4175 = vpack.c.b16 %v3167, %v3159
    %v4176 = vpack.c.b16 %v3168, %v3160
    %v4177 = vpack.c.b16 %v3169, %v3161
    %v4178 = vpack.c.b16 %v3170, %v3162
    %v4179 = vpack.c.b16 %v3171, %v3163
    %v4180 = vpack.c.b16 %v3172, %v3164
    %v4181 = vpack.c.b16 %v3173, %v3165
    %v4182 = vpack.c.b16 %v3182, %v3174
    %v4183 = vpack.c.b16 %v3183, %v3175
    %v4184 = vpack.c.b16 %v3184, %v3176
    %v4185 = vpack.c.b16 %v3185, %v3177
    %v4186 = vpack.c.b16 %v3186, %v3178
    %v4187 = vpack.c.b16 %v3187, %v3179
    %v4188 = vpack.c.b16 %v3188, %v3180
    %v4189 = vpack.c.b16 %v3189, %v3181
    %v4190 = vpack.c.b16 %v3198, %v3190
    %v4191 = vpack.c.b16 %v3199, %v3191
    %v4192 = vpack.c.b16 %v3200, %v3192
    %v4193 = vpack.c.b16 %v3201, %v3193
    %v4194 = vpack.c.b16 %v3202, %v3194
    %v4195 = vpack.c.b16 %v3203, %v3195
    %v4196 = vpack.c.b16 %v3204, %v3196
    %v4197 = vpack.c.b16 %v3205, %v3197
    %v4198 = vpack.c.b16 %v3214, %v3206
    %v4199 = vpack.c.b16 %v3215, %v3207
    %v4200 = vpack.c.b16 %v3216, %v3208
    %v4201 = vpack.c.b16 %v3217, %v3209
    %v4202 = vpack.c.b16 %v3218, %v3210
    %v4203 = vpack.c.b16 %v3219, %v3211
    %v4204 = vpack.c.b16 %v3220, %v3212
    %v4205 = vpack.c.b16 %v3221, %v3213
    %v4206 = vpack.c.b16 %v3230, %v3222
    %v4207 = vpack.c.b16 %v3231, %v3223
    %v4208 = vpack.c.b16 %v3232, %v3224
    %v4209 = vpack.c.b16 %v3233, %v3225
    %v4210 = vpack.c.b16 %v3234, %v3226
    %v4211 = vpack.c.b16 %v3235, %v3227
    %v4212 = vpack.c.b16 %v3236, %v3228
    %v4213 = vpack.c.b16 %v3237, %v3229
    %v4214 = vpack.c.b16 %v3246, %v3238
    %v4215 = vpack.c.b16 %v3247, %v3239
    %v4216 = vpack.c.b16 %v3248, %v3240
    %v4217 = vpack.c.b16 %v3249, %v3241
    %v4218 = vpack.c.b16 %v3250, %v3242
    %v4219 = vpack.c.b16 %v3251, %v3243
    %v4220 = vpack.c.b16 %v3252, %v3244
    %v4221 = vpack.c.b16 %v3253, %v3245
    %v4222 = vpack.c.b16 %v3262, %v3254
    %v4223 = vpack.c.b16 %v3263, %v3255
    %v4224 = vpack.c.b16 %v3264, %v3256
    %v4225 = vpack.c.b16 %v3265, %v3257
    %v4226 = vpack.c.b16 %v3266, %v3258
    %v4227 = vpack.c.b16 %v3267, %v3259
    %v4228 = vpack.c.b16 %v3268, %v3260
    %v4229 = vpack.c.b16 %v3269, %v3261
    %v4230 = vpack.c.b16 %v3278, %v3270
    %v4231 = vpack.c.b16 %v3279, %v3271
    %v4232 = vpack.c.b16 %v3280, %v3272
    %v4233 = vpack.c.b16 %v3281, %v3273
    %v4234 = vpack.c.b16 %v3282, %v3274
    %v4235 = vpack.c.b16 %v3283, %v3275
    %v4236 = vpack.c.b16 %v3284, %v3276
    %v4237 = vpack.c.b16 %v3285, %v3277
    %v4238 = vpack.c.b16 %v3294, %v3286
    %v4239 = vpack.c.b16 %v3295, %v3287
    %v4240 = vpack.c.b16 %v3296, %v3288
    %v4241 = vpack.c.b16 %v3297, %v3289
    %v4242 = vpack.c.b16 %v3298, %v3290
    %v4243 = vpack.c.b16 %v3299, %v3291
    %v4244 = vpack.c.b16 %v3300, %v3292
    %v4245 = vpack.c.b16 %v3301, %v3293
    %v4246 = vpack.c.b16 %v3310, %v3302
    %v4247 = vpack.c.b16 %v3311, %v3303
    %v4248 = vpack.c.b16 %v3312, %v3304
    %v4249 = vpack.c.b16 %v3313, %v3305
    %v4250 = vpack.c.b16 %v3314, %v3306
    %v4251 = vpack.c.b16 %v3315, %v3307
    %v4252 = vpack.c.b16 %v3316, %v3308
    %v4253 = vpack.c.b16 %v3317, %v3309
    %v4254 = vpack.c.b16 %v3326, %v3318
    %v4255 = vpack.c.b16 %v3327, %v3319
    %v4256 = vpack.c.b16 %v3328, %v3320
    %v4257 = vpack.c.b16 %v3329, %v3321
    %v4258 = vpack.c.b16 %v3330, %v3322
    %v4259 = vpack.c.b16 %v3331, %v3323
    %v4260 = vpack.c.b16 %v3332, %v3324
    %v4261 = vpack.c.b16 %v3333, %v3325
    %v4262 = vpack.c.b16 %v3342, %v3334
    %v4263 = vpack.c.b16 %v3343, %v3335
    %v4264 = vpack.c.b16 %v3344, %v3336
    %v4265 = vpack.c.b16 %v3345, %v3337
    %v4266 = vpack.c.b16 %v3346, %v3338
    %v4267 = vpack.c.b16 %v3347, %v3339
    %v4268 = vpack.c.b16 %v3348, %v3340
    %v4269 = vpack.c.b16 %v3349, %v3341
    %v4270 = vpack.c.b16 %v3358, %v3350
    %v4271 = vpack.c.b16 %v3359, %v3351
    %v4272 = vpack.c.b16 %v3360, %v3352
    %v4273 = vpack.c.b16 %v3361, %v3353
    %v4274 = vpack.c.b16 %v3362, %v3354
    %v4275 = vpack.c.b16 %v3363, %v3355
    %v4276 = vpack.c.b16 %v3364, %v3356
    %v4277 = vpack.c.b16 %v3365, %v3357
    %v4278 = vpack.c.b16 %v3374, %v3366
    %v4279 = vpack.c.b16 %v3375, %v3367
    %v4280 = vpack.c.b16 %v3376, %v3368
    %v4281 = vpack.c.b16 %v3377, %v3369
    %v4282 = vpack.c.b16 %v3378, %v3370
    %v4283 = vpack.c.b16 %v3379, %v3371
    %v4284 = vpack.c.b16 %v3380, %v3372
    %v4285 = vpack.c.b16 %v3381, %v3373
    %v4286 = vpack.c.b16 %v3390, %v3382
    %v4287 = vpack.c.b16 %v3391, %v3383
    %v4288 = vpack.c.b16 %v3392, %v3384
    %v4289 = vpack.c.b16 %v3393, %v3385
    %v4290 = vpack.c.b16 %v3394, %v3386
    %v4291 = vpack.c.b16 %v3395, %v3387
    %v4292 = vpack.c.b16 %v3396, %v3388
    %v4293 = vpack.c.b16 %v3397, %v3389
    %v4294 = vpack.c.b16 %v3406, %v3398
    %v4295 = vpack.c.b16 %v3407, %v3399
    %v4296 = vpack.c.b16 %v3408, %v3400
    %v4297 = vpack.c.b16 %v3409, %v3401
    %v4298 = vpack.c.b16 %v3410, %v3402
    %v4299 = vpack.c.b16 %v3411, %v3403
    %v4300 = vpack.c.b16 %v3412, %v3404
    %v4301 = vpack.c.b16 %v3413, %v3405
    %v4302 = vpack.c.b16 %v3422, %v3414
    %v4303 = vpack.c.b16 %v3423, %v3415
    %v4304 = vpack.c.b16 %v3424, %v3416
    %v4305 = vpack.c.b16 %v3425, %v3417
    %v4306 = vpack.c.b16 %v3426, %v3418
    %v4307 = vpack.c.b16 %v3427, %v3419
    %v4308 = vpack.c.b16 %v3428, %v3420
    %v4309 = vpack.c.b16 %v3429, %v3421
    %v4310 = vpack.c.b16 %v3438, %v3430
    %v4311 = vpack.c.b16 %v3439, %v3431
    %v4312 = vpack.c.b16 %v3440, %v3432
    %v4313 = vpack.c.b16 %v3441, %v3433
    %v4314 = vpack.c.b16 %v3442, %v3434
    %v4315 = vpack.c.b16 %v3443, %v3435
    %v4316 = vpack.c.b16 %v3444, %v3436
    %v4317 = vpack.c.b16 %v3445, %v3437
    %v4318 = vpack.c.b16 %v3454, %v3446
    %v4319 = vpack.c.b16 %v3455, %v3447
    %v4320 = vpack.c.b16 %v3456, %v3448
    %v4321 = vpack.c.b16 %v3457, %v3449
    %v4322 = vpack.c.b16 %v3458, %v3450
    %v4323 = vpack.c.b16 %v3459, %v3451
    %v4324 = vpack.c.b16 %v3460, %v3452
    %v4325 = vpack.c.b16 %v3461, %v3453
    %v4326 = vpack.c.b16 %v3470, %v3462
    %v4327 = vpack.c.b16 %v3471, %v3463
    %v4328 = vpack.c.b16 %v3472, %v3464
    %v4329 = vpack.c.b16 %v3473, %v3465
    %v4330 = vpack.c.b16 %v3474, %v3466
    %v4331 = vpack.c.b16 %v3475, %v3467
    %v4332 = vpack.c.b16 %v3476, %v3468
    %v4333 = vpack.c.b16 %v3477, %v3469
    %v4334 = vpack.c.b16 %v3486, %v3478
    %v4335 = vpack.c.b16 %v3487, %v3479
    %v4336 = vpack.c.b16 %v3488, %v3480
    %v4337 = vpack.c.b16 %v3489, %v3481
    %v4338 = vpack.c.b16 %v3490, %v3482
    %v4339 = vpack.c.b16 %v3491, %v3483
    %v4340 = vpack.c.b16 %v3492, %v3484
    %v4341 = vpack.c.b16 %v3493, %v3485
    %v4342 = vpack.c.b16 %v3502, %v3494
    %v4343 = vpack.c.b16 %v3503, %v3495
    %v4344 = vpack.c.b16 %v3504, %v3496
    %v4345 = vpack.c.b16 %v3505, %v3497
    %v4346 = vpack.c.b16 %v3506, %v3498
    %v4347 = vpack.c.b16 %v3507, %v3499
    %v4348 = vpack.c.b16 %v3508, %v3500
    %v4349 = vpack.c.b16 %v3509, %v3501
    %v4350 = vpack.c.b16 %v3518, %v3510
    %v4351 = vpack.c.b16 %v3519, %v3511
    %v4352 = vpack.c.b16 %v3520, %v3512
    %v4353 = vpack.c.b16 %v3521, %v3513
    %v4354 = vpack.c.b16 %v3522, %v3514
    %v4355 = vpack.c.b16 %v3523, %v3515
    %v4356 = vpack.c.b16 %v3524, %v3516
    %v4357 = vpack.c.b16 %v3525, %v3517
    %v4358 = vpack.c.b16 %v3534, %v3526
    %v4359 = vpack.c.b16 %v3535, %v3527
    %v4360 = vpack.c.b16 %v3536, %v3528
    %v4361 = vpack.c.b16 %v3537, %v3529
    %v4362 = vpack.c.b16 %v3538, %v3530
    %v4363 = vpack.c.b16 %v3539, %v3531
    %v4364 = vpack.c.b16 %v3540, %v3532
    %v4365 = vpack.c.b16 %v3541, %v3533
    %v4366 = vpack.c.b16 %v3550, %v3542
    %v4367 = vpack.c.b16 %v3551, %v3543
    %v4368 = vpack.c.b16 %v3552, %v3544
    %v4369 = vpack.c.b16 %v3553, %v3545
    %v4370 = vpack.c.b16 %v3554, %v3546
    %v4371 = vpack.c.b16 %v3555, %v3547
    %v4372 = vpack.c.b16 %v3556, %v3548
    %v4373 = vpack.c.b16 %v3557, %v3549
    %v4374 = vpack.c.b16 %v3566, %v3558
    %v4375 = vpack.c.b16 %v3567, %v3559
    %v4376 = vpack.c.b16 %v3568, %v3560
    %v4377 = vpack.c.b16 %v3569, %v3561
    %v4378 = vpack.c.b16 %v3570, %v3562
    %v4379 = vpack.c.b16 %v3571, %v3563
    %v4380 = vpack.c.b16 %v3572, %v3564
    %v4381 = vpack.c.b16 %v3573, %v3565
    %v4382 = vpack.c.b16 %v3582, %v3574
    %v4383 = vpack.c.b16 %v3583, %v3575
    %v4384 = vpack.c.b16 %v3584, %v3576
    %v4385 = vpack.c.b16 %v3585, %v3577
    %v4386 = vpack.c.b16 %v3586, %v3578
    %v4387 = vpack.c.b16 %v3587, %v3579
    %v4388 = vpack.c.b16 %v3588, %v3580
    %v4389 = vpack.c.b16 %v3589, %v3581
    %v4390 = vpack.c.b16 %v3598, %v3590
    %v4391 = vpack.c.b16 %v3599, %v3591
    %v4392 = vpack.c.b16 %v3600, %v3592
    %v4393 = vpack.c.b16 %v3601, %v3593
    %v4394 = vpack.c.b16 %v3602, %v3594
    %v4395 = vpack.c.b16 %v3603, %v3595
    %v4396 = vpack.c.b16 %v3604, %v3596
    %v4397 = vpack.c.b16 %v3605, %v3597
    %v4398 = vpack.c.b16 %v3614, %v3606
    %v4399 = vpack.c.b16 %v3615, %v3607
    %v4400 = vpack.c.b16 %v3616, %v3608
    %v4401 = vpack.c.b16 %v3617, %v3609
    %v4402 = vpack.c.b16 %v3618, %v3610
    %v4403 = vpack.c.b16 %v3619, %v3611
    %v4404 = vpack.c.b16 %v3620, %v3612
    %v4405 = vpack.c.b16 %v3621, %v3613
    %v4406 = vpack.c.b16 %v3630, %v3622
    %v4407 = vpack.c.b16 %v3631, %v3623
    %v4408 = vpack.c.b16 %v3632, %v3624
    %v4409 = vpack.c.b16 %v3633, %v3625
    %v4410 = vpack.c.b16 %v3634, %v3626
    %v4411 = vpack.c.b16 %v3635, %v3627
    %v4412 = vpack.c.b16 %v3636, %v3628
    %v4413 = vpack.c.b16 %v3637, %v3629
    %v4414 = vpack.c.b16 %v3646, %v3638
    %v4415 = vpack.c.b16 %v3647, %v3639
    %v4416 = vpack.c.b16 %v3648, %v3640
    %v4417 = vpack.c.b16 %v3649, %v3641
    %v4418 = vpack.c.b16 %v3650, %v3642
    %v4419 = vpack.c.b16 %v3651, %v3643
    %v4420 = vpack.c.b16 %v3652, %v3644
    %v4421 = vpack.c.b16 %v3653, %v3645
    %v4422 = vpack.c.b16 %v3662, %v3654
    %v4423 = vpack.c.b16 %v3663, %v3655
    %v4424 = vpack.c.b16 %v3664, %v3656
    %v4425 = vpack.c.b16 %v3665, %v3657
    %v4426 = vpack.c.b16 %v3666, %v3658
    %v4427 = vpack.c.b16 %v3667, %v3659
    %v4428 = vpack.c.b16 %v3668, %v3660
    %v4429 = vpack.c.b16 %v3669, %v3661
    %v4430 = vpack.c.b16 %v3678, %v3670
    %v4431 = vpack.c.b16 %v3679, %v3671
    %v4432 = vpack.c.b16 %v3680, %v3672
    %v4433 = vpack.c.b16 %v3681, %v3673
    %v4434 = vpack.c.b16 %v3682, %v3674
    %v4435 = vpack.c.b16 %v3683, %v3675
    %v4436 = vpack.c.b16 %v3684, %v3676
    %v4437 = vpack.c.b16 %v3685, %v3677
    %v4438 = vpack.c.b16 %v3694, %v3686
    %v4439 = vpack.c.b16 %v3695, %v3687
    %v4440 = vpack.c.b16 %v3696, %v3688
    %v4441 = vpack.c.b16 %v3697, %v3689
    %v4442 = vpack.c.b16 %v3698, %v3690
    %v4443 = vpack.c.b16 %v3699, %v3691
    %v4444 = vpack.c.b16 %v3700, %v3692
    %v4445 = vpack.c.b16 %v3701, %v3693
    %v4446 = vpack.c.b16 %v3710, %v3702
    %v4447 = vpack.c.b16 %v3711, %v3703
    %v4448 = vpack.c.b16 %v3712, %v3704
    %v4449 = vpack.c.b16 %v3713, %v3705
    %v4450 = vpack.c.b16 %v3714, %v3706
    %v4451 = vpack.c.b16 %v3715, %v3707
    %v4452 = vpack.c.b16 %v3716, %v3708
    %v4453 = vpack.c.b16 %v3717, %v3709
    %v4454 = vpack.c.b16 %v3726, %v3718
    %v4455 = vpack.c.b16 %v3727, %v3719
    %v4456 = vpack.c.b16 %v3728, %v3720
    %v4457 = vpack.c.b16 %v3729, %v3721
    %v4458 = vpack.c.b16 %v3730, %v3722
    %v4459 = vpack.c.b16 %v3731, %v3723
    %v4460 = vpack.c.b16 %v3732, %v3724
    %v4461 = vpack.c.b16 %v3733, %v3725
    %v4462 = vpack.c.b16 %v3742, %v3734
    %v4463 = vpack.c.b16 %v3743, %v3735
    %v4464 = vpack.c.b16 %v3744, %v3736
    %v4465 = vpack.c.b16 %v3745, %v3737
    %v4466 = vpack.c.b16 %v3746, %v3738
    %v4467 = vpack.c.b16 %v3747, %v3739
    %v4468 = vpack.c.b16 %v3748, %v3740
    %v4469 = vpack.c.b16 %v3749, %v3741
    %v4470 = vpack.c.b16 %v3758, %v3750
    %v4471 = vpack.c.b16 %v3759, %v3751
    %v4472 = vpack.c.b16 %v3760, %v3752
    %v4473 = vpack.c.b16 %v3761, %v3753
    %v4474 = vpack.c.b16 %v3762, %v3754
    %v4475 = vpack.c.b16 %v3763, %v3755
    %v4476 = vpack.c.b16 %v3764, %v3756
    %v4477 = vpack.c.b16 %v3765, %v3757
    %v4478 = vpack.c.b16 %v3774, %v3766
    %v4479 = vpack.c.b16 %v3775, %v3767
    %v4480 = vpack.c.b16 %v3776, %v3768
    %v4481 = vpack.c.b16 %v3777, %v3769
    %v4482 = vpack.c.b16 %v3778, %v3770
    %v4483 = vpack.c.b16 %v3779, %v3771
    %v4484 = vpack.c.b16 %v3780, %v3772
    %v4485 = vpack.c.b16 %v3781, %v3773
    %v4486 = vpack.c.b16 %v3790, %v3782
    %v4487 = vpack.c.b16 %v3791, %v3783
    %v4488 = vpack.c.b16 %v3792, %v3784
    %v4489 = vpack.c.b16 %v3793, %v3785
    %v4490 = vpack.c.b16 %v3794, %v3786
    %v4491 = vpack.c.b16 %v3795, %v3787
    %v4492 = vpack.c.b16 %v3796, %v3788
    %v4493 = vpack.c.b16 %v3797, %v3789
    %v4494 = vpack.c.b16 %v3806, %v3798
    %v4495 = vpack.c.b16 %v3807, %v3799
    %v4496 = vpack.c.b16 %v3808, %v3800
    %v4497 = vpack.c.b16 %v3809, %v3801
    %v4498 = vpack.c.b16 %v3810, %v3802
    %v4499 = vpack.c.b16 %v3811, %v3803
    %v4500 = vpack.c.b16 %v3812, %v3804
    %v4501 = vpack.c.b16 %v3813, %v3805
    %v4502 = vpack.c.b16 %v3822, %v3814
    %v4503 = vpack.c.b16 %v3823, %v3815
    %v4504 = vpack.c.b16 %v3824, %v3816
    %v4505 = vpack.c.b16 %v3825, %v3817
    %v4506 = vpack.c.b16 %v3826, %v3818
    %v4507 = vpack.c.b16 %v3827, %v3819
    %v4508 = vpack.c.b16 %v3828, %v3820
    %v4509 = vpack.c.b16 %v3829, %v3821
    %v4510 = vpack.c.b16 %v3838, %v3830
    %v4511 = vpack.c.b16 %v3839, %v3831
    %v4512 = vpack.c.b16 %v3840, %v3832
    %v4513 = vpack.c.b16 %v3841, %v3833
    %v4514 = vpack.c.b16 %v3842, %v3834
    %v4515 = vpack.c.b16 %v3843, %v3835
    %v4516 = vpack.c.b16 %v3844, %v3836
    %v4517 = vpack.c.b16 %v3845, %v3837
    %v4518 = vpack.c.b16 %v3854, %v3846
    %v4519 = vpack.c.b16 %v3855, %v3847
    %v4520 = vpack.c.b16 %v3856, %v3848
    %v4521 = vpack.c.b16 %v3857, %v3849
    %v4522 = vpack.c.b16 %v3858, %v3850
    %v4523 = vpack.c.b16 %v3859, %v3851
    %v4524 = vpack.c.b16 %v3860, %v3852
    %v4525 = vpack.c.b16 %v3861, %v3853
    %v4526 = vpack.c.b16 %v3870, %v3862
    %v4527 = vpack.c.b16 %v3871, %v3863
    %v4528 = vpack.c.b16 %v3872, %v3864
    %v4529 = vpack.c.b16 %v3873, %v3865
    %v4530 = vpack.c.b16 %v3874, %v3866
    %v4531 = vpack.c.b16 %v3875, %v3867
    %v4532 = vpack.c.b16 %v3876, %v3868
    %v4533 = vpack.c.b16 %v3877, %v3869
    %v4534 = vpack.c.b16 %v3886, %v3878
    %v4535 = vpack.c.b16 %v3887, %v3879
    %v4536 = vpack.c.b16 %v3888, %v3880
    %v4537 = vpack.c.b16 %v3889, %v3881
    %v4538 = vpack.c.b16 %v3890, %v3882
    %v4539 = vpack.c.b16 %v3891, %v3883
    %v4540 = vpack.c.b16 %v3892, %v3884
    %v4541 = vpack.c.b16 %v3893, %v3885
    %v4542 = vpack.c.b16 %v3902, %v3894
    %v4543 = vpack.c.b16 %v3903, %v3895
    %v4544 = vpack.c.b16 %v3904, %v3896
    %v4545 = vpack.c.b16 %v3905, %v3897
    %v4546 = vpack.c.b16 %v3906, %v3898
    %v4547 = vpack.c.b16 %v3907, %v3899
    %v4548 = vpack.c.b16 %v3908, %v3900
    %v4549 = vpack.c.b16 %v3909, %v3901
    %v4550 = vpack.c.b16 %v3918, %v3910
    %v4551 = vpack.c.b16 %v3919, %v3911
    %v4552 = vpack.c.b16 %v3920, %v3912
    %v4553 = vpack.c.b16 %v3921, %v3913
    %v4554 = vpack.c.b16 %v3922, %v3914
    %v4555 = vpack.c.b16 %v3923, %v3915
    %v4556 = vpack.c.b16 %v3924, %v3916
    %v4557 = vpack.c.b16 %v3925, %v3917
    %v4558 = vpack.c.b16 %v3934, %v3926
    %v4559 = vpack.c.b16 %v3935, %v3927
    %v4560 = vpack.c.b16 %v3936, %v3928
    %v4561 = vpack.c.b16 %v3937, %v3929
    %v4562 = vpack.c.b16 %v3938, %v3930
    %v4563 = vpack.c.b16 %v3939, %v3931
    %v4564 = vpack.c.b16 %v3940, %v3932
    %v4565 = vpack.c.b16 %v3941, %v3933
    %v4566 = vpack.c.b16 %v3950, %v3942
    %v4567 = vpack.c.b16 %v3951, %v3943
    %v4568 = vpack.c.b16 %v3952, %v3944
    %v4569 = vpack.c.b16 %v3953, %v3945
    %v4570 = vpack.c.b16 %v3954, %v3946
    %v4571 = vpack.c.b16 %v3955, %v3947
    %v4572 = vpack.c.b16 %v3956, %v3948
    %v4573 = vpack.c.b16 %v3957, %v3949
    %v4574 = vpack.c.b16 %v3966, %v3958
    %v4575 = vpack.c.b16 %v3967, %v3959
    %v4576 = vpack.c.b16 %v3968, %v3960
    %v4577 = vpack.c.b16 %v3969, %v3961
    %v4578 = vpack.c.b16 %v3970, %v3962
    %v4579 = vpack.c.b16 %v3971, %v3963
    %v4580 = vpack.c.b16 %v3972, %v3964
    %v4581 = vpack.c.b16 %v3973, %v3965
    %v4582 = vpack.c.b16 %v3982, %v3974
    %v4583 = vpack.c.b16 %v3983, %v3975
    %v4584 = vpack.c.b16 %v3984, %v3976
    %v4585 = vpack.c.b16 %v3985, %v3977
    %v4586 = vpack.c.b16 %v3986, %v3978
    %v4587 = vpack.c.b16 %v3987, %v3979
    %v4588 = vpack.c.b16 %v3988, %v3980
    %v4589 = vpack.c.b16 %v3989, %v3981
    %v4590 = vpack.c.b16 %v3998, %v3990
    %v4591 = vpack.c.b16 %v3999, %v3991
    %v4592 = vpack.c.b16 %v4000, %v3992
    %v4593 = vpack.c.b16 %v4001, %v3993
    %v4594 = vpack.c.b16 %v4002, %v3994
    %v4595 = vpack.c.b16 %v4003, %v3995
    %v4596 = vpack.c.b16 %v4004, %v3996
    %v4597 = vpack.c.b16 %v4005, %v3997
    %v4598 = vpack.c.b16 %v4014, %v4006
    %v4599 = vpack.c.b16 %v4015, %v4007
    %v4600 = vpack.c.b16 %v4016, %v4008
    %v4601 = vpack.c.b16 %v4017, %v4009
    %v4602 = vpack.c.b16 %v4018, %v4010
    %v4603 = vpack.c.b16 %v4019, %v4011
    %v4604 = vpack.c.b16 %v4020, %v4012
    %v4605 = vpack.c.b16 %v4021, %v4013
    %v4606 = vpack.c.b16 %v4030, %v4022
    %v4607 = vpack.c.b16 %v4031, %v4023
    %v4608 = vpack.c.b16 %v4032, %v4024
    %v4609 = vpack.c.b16 %v4033, %v4025
    %v4610 = vpack.c.b16 %v4034, %v4026
    %v4611 = vpack.c.b16 %v4035, %v4027
    %v4612 = vpack.c.b16 %v4036, %v4028
    %v4613 = vpack.c.b16 %v4037, %v4029
    %v4614 = vpack.c.b16 %v4046, %v4038
    %v4615 = vpack.c.b16 %v4047, %v4039
    %v4616 = vpack.c.b16 %v4048, %v4040
    %v4617 = vpack.c.b16 %v4049, %v4041
    %v4618 = vpack.c.b16 %v4050, %v4042
    %v4619 = vpack.c.b16 %v4051, %v4043
    %v4620 = vpack.c.b16 %v4052, %v4044
    %v4621 = vpack.c.b16 %v4053, %v4045
    %v4622 = vpack.c.b16 %v4062, %v4054
    %v4623 = vpack.c.b16 %v4063, %v4055
    %v4624 = vpack.c.b16 %v4064, %v4056
    %v4625 = vpack.c.b16 %v4065, %v4057
    %v4626 = vpack.c.b16 %v4066, %v4058
    %v4627 = vpack.c.b16 %v4067, %v4059
    %v4628 = vpack.c.b16 %v4068, %v4060
    %v4629 = vpack.c.b16 %v4069, %v4061
    %v4630 = vpack.c.b16 %v4078, %v4070
    %v4631 = vpack.c.b16 %v4079, %v4071
    %v4632 = vpack.c.b16 %v4080, %v4072
    %v4633 = vpack.c.b16 %v4081, %v4073
    %v4634 = vpack.c.b16 %v4082, %v4074
    %v4635 = vpack.c.b16 %v4083, %v4075
    %v4636 = vpack.c.b16 %v4084, %v4076
    %v4637 = vpack.c.b16 %v4085, %v4077
    %v4638 = vpack.c.b16 %v4094, %v4086
    %v4639 = vpack.c.b16 %v4095, %v4087
    %v4640 = vpack.c.b16 %v4096, %v4088
    %v4641 = vpack.c.b16 %v4097, %v4089
    %v4642 = vpack.c.b16 %v4098, %v4090
    %v4643 = vpack.c.b16 %v4099, %v4091
    %v4644 = vpack.c.b16 %v4100, %v4092
    %v4645 = vpack.c.b16 %v4101, %v4093
    %v4646 = vpack.c.b16 %v4110, %v4102
    %v4647 = vpack.c.b16 %v4111, %v4103
    %v4648 = vpack.c.b16 %v4112, %v4104
    %v4649 = vpack.c.b16 %v4113, %v4105
    %v4650 = vpack.c.b16 %v4114, %v4106
    %v4651 = vpack.c.b16 %v4115, %v4107
    %v4652 = vpack.c.b16 %v4116, %v4108
    %v4653 = vpack.c.b16 %v4117, %v4109
    %v4654 = vpack.c.b16 %v4126, %v4118
    %v4655 = vpack.c.b16 %v4127, %v4119
    %v4656 = vpack.c.b16 %v4128, %v4120
    %v4657 = vpack.c.b16 %v4129, %v4121
    %v4658 = vpack.c.b16 %v4130, %v4122
    %v4659 = vpack.c.b16 %v4131, %v4123
    %v4660 = vpack.c.b16 %v4132, %v4124
    %v4661 = vpack.c.b16 %v4133, %v4125
    %v4662 = vpack.c.b16 %v4142, %v4134
    %v4663 = vpack.c.b16 %v4143, %v4135
    %v4664 = vpack.c.b16 %v4144, %v4136
    %v4665 = vpack.c.b16 %v4145, %v4137
    %v4666 = vpack.c.b16 %v4146, %v4138
    %v4667 = vpack.c.b16 %v4147, %v4139
    %v4668 = vpack.c.b16 %v4148, %v4140
    %v4669 = vpack.c.b16 %v4149, %v4141
    %v4670 = vpack.c.b16 %v4158, %v4150
    %v4671 = vpack.c.b16 %v4159, %v4151
    %v4672 = vpack.c.b16 %v4160, %v4152
    %v4673 = vpack.c.b16 %v4161, %v4153
    %v4674 = vpack.c.b16 %v4162, %v4154
    %v4675 = vpack.c.b16 %v4163, %v4155
    %v4676 = vpack.c.b16 %v4164, %v4156
    %v4677 = vpack.c.b16 %v4165, %v4157
    %5190 = vmatprep.subr.bf16.mxu0 %v4167
    %5191 = vmatpush1.bf16.msra.mxu0 %v4166
    %5192 = vmatprep.subr.bf16.mxu0 %v4175
    %5193 = vmatpush1.bf16.msra.mxu0 %v4174
    %5194 = vmatprep.subr.bf16.mxu0 %v4183
    %5195 = vmatpush1.bf16.msra.mxu0 %v4182
    %5196 = vmatprep.subr.bf16.mxu0 %v4191
    %5197 = vmatpush1.bf16.msra.mxu0 %v4190
    %5198 = vmatprep.subr.bf16.mxu0 %v4199
    %5199 = vmatpush1.bf16.msra.mxu0 %v4198
    %5200 = vmatprep.subr.bf16.mxu0 %v4207
    %5201 = vmatpush1.bf16.msra.mxu0 %v4206
    %5202 = vmatprep.subr.bf16.mxu0 %v4215
    %5203 = vmatpush1.bf16.msra.mxu0 %v4214
    %5204 = vmatprep.subr.bf16.mxu0 %v4223
    %5205 = vmatpush1.bf16.msra.mxu0 %v4222
    %5206 = vmatprep.subr.bf16.mxu0 %v4231
    %5207 = vmatpush1.bf16.msra.mxu0 %v4230
    %5208 = vmatprep.subr.bf16.mxu0 %v4239
    %5209 = vmatpush1.bf16.msra.mxu0 %v4238
    %5210 = vmatprep.subr.bf16.mxu0 %v4247
    %5211 = vmatpush1.bf16.msra.mxu0 %v4246
    %5212 = vmatprep.subr.bf16.mxu0 %v4255
    %5213 = vmatpush1.bf16.msra.mxu0 %v4254
    %5214 = vmatprep.subr.bf16.mxu0 %v4263
    %5215 = vmatpush1.bf16.msra.mxu0 %v4262
    %5216 = vmatprep.subr.bf16.mxu0 %v4271
    %5217 = vmatpush1.bf16.msra.mxu0 %v4270
    %5218 = vmatprep.subr.bf16.mxu0 %v4279
    %5219 = vmatpush1.bf16.msra.mxu0 %v4278
    %5220 = vmatprep.subr.bf16.mxu0 %v4287
    %5221 = vmatpush1.bf16.msra.mxu0 %v4286
    %5222 = vmatprep.mubr.bf16.mxu0 %v2070
    %5223 = vmatmul.mubr.bf16.gmra.mrb[0].mxu0 %v2069
    %v5224 = vpop.f32.mrb[0].mxu0
    %v5225 = vadd.f32 %v2593, %v5224
    %v5226 = vpop.f32.mrb[0].mxu0
    %v5227 = vadd.f32 %v2597, %v5226
    %v5228 = vpop.f32.mrb[0].mxu0
    %v5229 = vadd.f32 %v2593, %v5228
    %v5230 = vpop.f32.mrb[0].mxu0
    %v5231 = vadd.f32 %v2597, %v5230
    %5232 = vdwg.mxu0
    %5233 = vmatprep.subr.bf16.mxu0 %v4295
    %5234 = vmatpush1.bf16.msra.mxu0 %v4294
    %5235 = vmatprep.subr.bf16.mxu0 %v4303
    %5236 = vmatpush1.bf16.msra.mxu0 %v4302
    %5237 = vmatprep.subr.bf16.mxu0 %v4311
    %5238 = vmatpush1.bf16.msra.mxu0 %v4310
    %5239 = vmatprep.subr.bf16.mxu0 %v4319
    %5240 = vmatpush1.bf16.msra.mxu0 %v4318
    %5241 = vmatprep.subr.bf16.mxu0 %v4327
    %5242 = vmatpush1.bf16.msra.mxu0 %v4326
    %5243 = vmatprep.subr.bf16.mxu0 %v4335
    %5244 = vmatpush1.bf16.msra.mxu0 %v4334
    %5245 = vmatprep.subr.bf16.mxu0 %v4343
    %5246 = vmatpush1.bf16.msra.mxu0 %v4342
    %5247 = vmatprep.subr.bf16.mxu0 %v4351
    %5248 = vmatpush1.bf16.msra.mxu0 %v4350
    %5249 = vmatprep.subr.bf16.mxu0 %v4359
    %5250 = vmatpush1.bf16.msra.mxu0 %v4358
    %5251 = vmatprep.subr.bf16.mxu0 %v4367
    %5252 = vmatpush1.bf16.msra.mxu0 %v4366
    %5253 = vmatprep.subr.bf16.mxu0 %v4375
    %5254 = vmatpush1.bf16.msra.mxu0 %v4374
    %5255 = vmatprep.subr.bf16.mxu0 %v4383
    %5256 = vmatpush1.bf16.msra.mxu0 %v4382
    %5257 = vmatprep.subr.bf16.mxu0 %v4391
    %5258 = vmatpush1.bf16.msra.mxu0 %v4390
    %5259 = vmatprep.subr.bf16.mxu0 %v4399
    %5260 = vmatpush1.bf16.msra.mxu0 %v4398
    %5261 = vmatprep.subr.bf16.mxu0 %v4407
    %5262 = vmatpush1.bf16.msra.mxu0 %v4406
    %5263 = vmatprep.subr.bf16.mxu0 %v4415
    %5264 = vmatpush1.bf16.msra.mxu0 %v4414
    %5265 = vmatprep.mubr.bf16.mxu0 %v2072
    %5266 = vmatmul.mubr.bf16.gmra.mrb[0].mxu0 %v2071
    %v5267 = vpop.f32.mrb[0].mxu0
    %v5268 = vadd.f32 %v5225, %v5267
    %v5269 = vpop.f32.mrb[0].mxu0
    %v5270 = vadd.f32 %v5227, %v5269
    %v5271 = vpop.f32.mrb[0].mxu0
    %v5272 = vadd.f32 %v5229, %v5271
    %v5273 = vpop.f32.mrb[0].mxu0
    %v5274 = vadd.f32 %v5231, %v5273
    %5275 = vdwg.mxu0
    %5276 = vmatprep.subr.bf16.mxu0 %v4423
    %5277 = vmatpush1.bf16.msra.mxu0 %v4422
    %5278 = vmatprep.subr.bf16.mxu0 %v4431
    %5279 = vmatpush1.bf16.msra.mxu0 %v4430
    %5280 = vmatprep.subr.bf16.mxu0 %v4439
    %5281 = vmatpush1.bf16.msra.mxu0 %v4438
    %5282 = vmatprep.subr.bf16.mxu0 %v4447
    %5283 = vmatpush1.bf16.msra.mxu0 %v4446
    %5284 = vmatprep.subr.bf16.mxu0 %v4455
    %5285 = vmatpush1.bf16.msra.mxu0 %v4454
    %5286 = vmatprep.subr.bf16.mxu0 %v4463
    %5287 = vmatpush1.bf16.msra.mxu0 %v4462
    %5288 = vmatprep.subr.bf16.mxu0 %v4471
    %5289 = vmatpush1.bf16.msra.mxu0 %v4470
    %5290 = vmatprep.subr.bf16.mxu0 %v4479
    %5291 = vmatpush1.bf16.msra.mxu0 %v4478
    %5292 = vmatprep.subr.bf16.mxu0 %v4487
    %5293 = vmatpush1.bf16.msra.mxu0 %v4486
    %5294 = vmatprep.subr.bf16.mxu0 %v4495
    %5295 = vmatpush1.bf16.msra.mxu0 %v4494
    %5296 = vmatprep.subr.bf16.mxu0 %v4503
    %5297 = vmatpush1.bf16.msra.mxu0 %v4502
    %5298 = vmatprep.subr.bf16.mxu0 %v4511
    %5299 = vmatpush1.bf16.msra.mxu0 %v4510
    %5300 = vmatprep.subr.bf16.mxu0 %v4519
    %5301 = vmatpush1.bf16.msra.mxu0 %v4518
    %5302 = vmatprep.subr.bf16.mxu0 %v4527
    %5303 = vmatpush1.bf16.msra.mxu0 %v4526
    %5304 = vmatprep.subr.bf16.mxu0 %v4535
    %5305 = vmatpush1.bf16.msra.mxu0 %v4534
    %5306 = vmatprep.subr.bf16.mxu0 %v4543
    %5307 = vmatpush1.bf16.msra.mxu0 %v4542
    %5308 = vmatprep.mubr.bf16.mxu0 %v2074
    %5309 = vmatmul.mubr.bf16.gmra.mrb[0].mxu0 %v2073
    %v5310 = vpop.f32.mrb[0].mxu0
    %v5311 = vadd.f32 %v5268, %v5310
    %v5312 = vpop.f32.mrb[0].mxu0
    %v5313 = vadd.f32 %v5270, %v5312
    %v5314 = vpop.f32.mrb[0].mxu0
    %v5315 = vadd.f32 %v5272, %v5314
    %v5316 = vpop.f32.mrb[0].mxu0
    %v5317 = vadd.f32 %v5274, %v5316
    %5318 = vdwg.mxu0
    %5319 = vmatprep.subr.bf16.mxu0 %v4551
    %5320 = vmatpush1.bf16.msra.mxu0 %v4550
    %5321 = vmatprep.subr.bf16.mxu0 %v4559
    %5322 = vmatpush1.bf16.msra.mxu0 %v4558
    %5323 = vmatprep.subr.bf16.mxu0 %v4567
    %5324 = vmatpush1.bf16.msra.mxu0 %v4566
    %5325 = vmatprep.subr.bf16.mxu0 %v4575
    %5326 = vmatpush1.bf16.msra.mxu0 %v4574
    %5327 = vmatprep.subr.bf16.mxu0 %v4583
    %5328 = vmatpush1.bf16.msra.mxu0 %v4582
    %5329 = vmatprep.subr.bf16.mxu0 %v4591
    %5330 = vmatpush1.bf16.msra.mxu0 %v4590
    %5331 = vmatprep.subr.bf16.mxu0 %v4599
    %5332 = vmatpush1.bf16.msra.mxu0 %v4598
    %5333 = vmatprep.subr.bf16.mxu0 %v4607
    %5334 = vmatpush1.bf16.msra.mxu0 %v4606
    %5335 = vmatprep.subr.bf16.mxu0 %v4615
    %5336 = vmatpush1.bf16.msra.mxu0 %v4614
    %5337 = vmatprep.subr.bf16.mxu0 %v4623
    %5338 = vmatpush1.bf16.msra.mxu0 %v4622
    %5339 = vmatprep.subr.bf16.mxu0 %v4631
    %5340 = vmatpush1.bf16.msra.mxu0 %v4630
    %5341 = vmatprep.subr.bf16.mxu0 %v4639
    %5342 = vmatpush1.bf16.msra.mxu0 %v4638
    %5343 = vmatprep.subr.bf16.mxu0 %v4647
    %5344 = vmatpush1.bf16.msra.mxu0 %v4646
    %5345 = vmatprep.subr.bf16.mxu0 %v4655
    %5346 = vmatpush1.bf16.msra.mxu0 %v4654
    %5347 = vmatprep.subr.bf16.mxu0 %v4663
    %5348 = vmatpush1.bf16.msra.mxu0 %v4662
    %5349 = vmatprep.subr.bf16.mxu0 %v4671
    %5350 = vmatpush1.bf16.msra.mxu0 %v4670
    %5351 = vmatprep.mubr.bf16.mxu0 %v2076
    %5352 = vmatmul.mubr.bf16.gmra.mrb[0].mxu0 %v2075
    %v5353 = vpop.f32.mrb[0].mxu0
    %v5354 = vadd.f32 %v5311, %v5353
    %v5355 = vpop.f32.mrb[0].mxu0
    %v5356 = vadd.f32 %v5313, %v5355
    %v5357 = vpop.f32.mrb[0].mxu0
    %v5358 = vadd.f32 %v5315, %v5357
    %v5359 = vpop.f32.mrb[0].mxu0
    %v5360 = vadd.f32 %v5317, %v5359
    %5361 = vdwg.mxu0
    %5362 = vmatprep.subr.bf16.mxu0 %v4169
    %5363 = vmatpush1.bf16.msra.mxu0 %v4168
    %5364 = vmatprep.subr.bf16.mxu0 %v4177
    %5365 = vmatpush1.bf16.msra.mxu0 %v4176
    %5366 = vmatprep.subr.bf16.mxu0 %v4185
    %5367 = vmatpush1.bf16.msra.mxu0 %v4184
    %5368 = vmatprep.subr.bf16.mxu0 %v4193
    %5369 = vmatpush1.bf16.msra.mxu0 %v4192
    %5370 = vmatprep.subr.bf16.mxu0 %v4201
    %5371 = vmatpush1.bf16.msra.mxu0 %v4200
    %5372 = vmatprep.subr.bf16.mxu0 %v4209
    %5373 = vmatpush1.bf16.msra.mxu0 %v4208
    %5374 = vmatprep.subr.bf16.mxu0 %v4217
    %5375 = vmatpush1.bf16.msra.mxu0 %v4216
    %5376 = vmatprep.subr.bf16.mxu0 %v4225
    %5377 = vmatpush1.bf16.msra.mxu0 %v4224
    %5378 = vmatprep.subr.bf16.mxu0 %v4233
    %5379 = vmatpush1.bf16.msra.mxu0 %v4232
    %5380 = vmatprep.subr.bf16.mxu0 %v4241
    %5381 = vmatpush1.bf16.msra.mxu0 %v4240
    %5382 = vmatprep.subr.bf16.mxu0 %v4249
    %5383 = vmatpush1.bf16.msra.mxu0 %v4248
    %5384 = vmatprep.subr.bf16.mxu0 %v4257
    %5385 = vmatpush1.bf16.msra.mxu0 %v4256
    %5386 = vmatprep.subr.bf16.mxu0 %v4265
    %5387 = vmatpush1.bf16.msra.mxu0 %v4264
    %5388 = vmatprep.subr.bf16.mxu0 %v4273
    %5389 = vmatpush1.bf16.msra.mxu0 %v4272
    %5390 = vmatprep.subr.bf16.mxu0 %v4281
    %5391 = vmatpush1.bf16.msra.mxu0 %v4280
    %5392 = vmatprep.subr.bf16.mxu0 %v4289
    %5393 = vmatpush1.bf16.msra.mxu0 %v4288
    %5394 = vmatprep.mubr.bf16.mxu0 %v2070
    %5395 = vmatmul.mubr.bf16.gmra.mrb[0].mxu0 %v2069
    %v5396 = vpop.f32.mrb[0].mxu0
    %v5397 = vadd.f32 %v2601, %v5396
    %v5398 = vpop.f32.mrb[0].mxu0
    %v5399 = vadd.f32 %v2605, %v5398
    %v5400 = vpop.f32.mrb[0].mxu0
    %v5401 = vadd.f32 %v2601, %v5400
    %v5402 = vpop.f32.mrb[0].mxu0
    %v5403 = vadd.f32 %v2605, %v5402
    %5404 = vdwg.mxu0
    %5405 = vmatprep.subr.bf16.mxu0 %v4297
    %5406 = vmatpush1.bf16.msra.mxu0 %v4296
    %5407 = vmatprep.subr.bf16.mxu0 %v4305
    %5408 = vmatpush1.bf16.msra.mxu0 %v4304
    %5409 = vmatprep.subr.bf16.mxu0 %v4313
    %5410 = vmatpush1.bf16.msra.mxu0 %v4312
    %5411 = vmatprep.subr.bf16.mxu0 %v4321
    %5412 = vmatpush1.bf16.msra.mxu0 %v4320
    %5413 = vmatprep.subr.bf16.mxu0 %v4329
    %5414 = vmatpush1.bf16.msra.mxu0 %v4328
    %5415 = vmatprep.subr.bf16.mxu0 %v4337
    %5416 = vmatpush1.bf16.msra.mxu0 %v4336
    %5417 = vmatprep.subr.bf16.mxu0 %v4345
    %5418 = vmatpush1.bf16.msra.mxu0 %v4344
    %5419 = vmatprep.subr.bf16.mxu0 %v4353
    %5420 = vmatpush1.bf16.msra.mxu0 %v4352
    %5421 = vmatprep.subr.bf16.mxu0 %v4361
    %5422 = vmatpush1.bf16.msra.mxu0 %v4360
    %5423 = vmatprep.subr.bf16.mxu0 %v4369
    %5424 = vmatpush1.bf16.msra.mxu0 %v4368
    %5425 = vmatprep.subr.bf16.mxu0 %v4377
    %5426 = vmatpush1.bf16.msra.mxu0 %v4376
    %5427 = vmatprep.subr.bf16.mxu0 %v4385
    %5428 = vmatpush1.bf16.msra.mxu0 %v4384
    %5429 = vmatprep.subr.bf16.mxu0 %v4393
    %5430 = vmatpush1.bf16.msra.mxu0 %v4392
    %5431 = vmatprep.subr.bf16.mxu0 %v4401
    %5432 = vmatpush1.bf16.msra.mxu0 %v4400
    %5433 = vmatprep.subr.bf16.mxu0 %v4409
    %5434 = vmatpush1.bf16.msra.mxu0 %v4408
    %5435 = vmatprep.subr.bf16.mxu0 %v4417
    %5436 = vmatpush1.bf16.msra.mxu0 %v4416
    %5437 = vmatprep.mubr.bf16.mxu0 %v2072
    %5438 = vmatmul.mubr.bf16.gmra.mrb[0].mxu0 %v2071
    %v5439 = vpop.f32.mrb[0].mxu0
    %v5440 = vadd.f32 %v5397, %v5439
    %v5441 = vpop.f32.mrb[0].mxu0
    %v5442 = vadd.f32 %v5399, %v5441
    %v5443 = vpop.f32.mrb[0].mxu0
    %v5444 = vadd.f32 %v5401, %v5443
    %v5445 = vpop.f32.mrb[0].mxu0
    %v5446 = vadd.f32 %v5403, %v5445
    %5447 = vdwg.mxu0
    %5448 = vmatprep.subr.bf16.mxu0 %v4425
    %5449 = vmatpush1.bf16.msra.mxu0 %v4424
    %5450 = vmatprep.subr.bf16.mxu0 %v4433
    %5451 = vmatpush1.bf16.msra.mxu0 %v4432
    %5452 = vmatprep.subr.bf16.mxu0 %v4441
    %5453 = vmatpush1.bf16.msra.mxu0 %v4440
    %5454 = vmatprep.subr.bf16.mxu0 %v4449
    %5455 = vmatpush1.bf16.msra.mxu0 %v4448
    %5456 = vmatprep.subr.bf16.mxu0 %v4457
    %5457 = vmatpush1.bf16.msra.mxu0 %v4456
    %5458 = vmatprep.subr.bf16.mxu0 %v4465
    %5459 = vmatpush1.bf16.msra.mxu0 %v4464
    %5460 = vmatprep.subr.bf16.mxu0 %v4473
    %5461 = vmatpush1.bf16.msra.mxu0 %v4472
    %5462 = vmatprep.subr.bf16.mxu0 %v4481
    %5463 = vmatpush1.bf16.msra.mxu0 %v4480
    %5464 = vmatprep.subr.bf16.mxu0 %v4489
    %5465 = vmatpush1.bf16.msra.mxu0 %v4488
    %5466 = vmatprep.subr.bf16.mxu0 %v4497
    %5467 = vmatpush1.bf16.msra.mxu0 %v4496
    %5468 = vmatprep.subr.bf16.mxu0 %v4505
    %5469 = vmatpush1.bf16.msra.mxu0 %v4504
    %5470 = vmatprep.subr.bf16.mxu0 %v4513
    %5471 = vmatpush1.bf16.msra.mxu0 %v4512
    %5472 = vmatprep.subr.bf16.mxu0 %v4521
    %5473 = vmatpush1.bf16.msra.mxu0 %v4520
    %5474 = vmatprep.subr.bf16.mxu0 %v4529
    %5475 = vmatpush1.bf16.msra.mxu0 %v4528
    %5476 = vmatprep.subr.bf16.mxu0 %v4537
    %5477 = vmatpush1.bf16.msra.mxu0 %v4536
    %5478 = vmatprep.subr.bf16.mxu0 %v4545
    %5479 = vmatpush1.bf16.msra.mxu0 %v4544
    %5480 = vmatprep.mubr.bf16.mxu0 %v2074
    %5481 = vmatmul.mubr.bf16.gmra.mrb[0].mxu0 %v2073
    %v5482 = vpop.f32.mrb[0].mxu0
    %v5483 = vadd.f32 %v5440, %v5482
    %v5484 = vpop.f32.mrb[0].mxu0
    %v5485 = vadd.f32 %v5442, %v5484
    %v5486 = vpop.f32.mrb[0].mxu0
    %v5487 = vadd.f32 %v5444, %v5486
    %v5488 = vpop.f32.mrb[0].mxu0
    %v5489 = vadd.f32 %v5446, %v5488
    %5490 = vdwg.mxu0
    %5491 = vmatprep.subr.bf16.mxu0 %v4553
    %5492 = vmatpush1.bf16.msra.mxu0 %v4552
    %5493 = vmatprep.subr.bf16.mxu0 %v4561
    %5494 = vmatpush1.bf16.msra.mxu0 %v4560
    %5495 = vmatprep.subr.bf16.mxu0 %v4569
    %5496 = vmatpush1.bf16.msra.mxu0 %v4568
    %5497 = vmatprep.subr.bf16.mxu0 %v4577
    %5498 = vmatpush1.bf16.msra.mxu0 %v4576
    %5499 = vmatprep.subr.bf16.mxu0 %v4585
    %5500 = vmatpush1.bf16.msra.mxu0 %v4584
    %5501 = vmatprep.subr.bf16.mxu0 %v4593
    %5502 = vmatpush1.bf16.msra.mxu0 %v4592
    %5503 = vmatprep.subr.bf16.mxu0 %v4601
    %5504 = vmatpush1.bf16.msra.mxu0 %v4600
    %5505 = vmatprep.subr.bf16.mxu0 %v4609
    %5506 = vmatpush1.bf16.msra.mxu0 %v4608
    %5507 = vmatprep.subr.bf16.mxu0 %v4617
    %5508 = vmatpush1.bf16.msra.mxu0 %v4616
    %5509 = vmatprep.subr.bf16.mxu0 %v4625
    %5510 = vmatpush1.bf16.msra.mxu0 %v4624
    %5511 = vmatprep.subr.bf16.mxu0 %v4633
    %5512 = vmatpush1.bf16.msra.mxu0 %v4632
    %5513 = vmatprep.subr.bf16.mxu0 %v4641
    %5514 = vmatpush1.bf16.msra.mxu0 %v4640
    %5515 = vmatprep.subr.bf16.mxu0 %v4649
    %5516 = vmatpush1.bf16.msra.mxu0 %v4648
    %5517 = vmatprep.subr.bf16.mxu0 %v4657
    %5518 = vmatpush1.bf16.msra.mxu0 %v4656
    %5519 = vmatprep.subr.bf16.mxu0 %v4665
    %5520 = vmatpush1.bf16.msra.mxu0 %v4664
    %5521 = vmatprep.subr.bf16.mxu0 %v4673
    %5522 = vmatpush1.bf16.msra.mxu0 %v4672
    %5523 = vmatprep.mubr.bf16.mxu0 %v2076
    %5524 = vmatmul.mubr.bf16.gmra.mrb[0].mxu0 %v2075
    %v5525 = vpop.f32.mrb[0].mxu0
    %v5526 = vadd.f32 %v5483, %v5525
    %v5527 = vpop.f32.mrb[0].mxu0
    %v5528 = vadd.f32 %v5485, %v5527
    %v5529 = vpop.f32.mrb[0].mxu0
    %v5530 = vadd.f32 %v5487, %v5529
    %v5531 = vpop.f32.mrb[0].mxu0
    %v5532 = vadd.f32 %v5489, %v5531
    %5533 = vdwg.mxu0
    %5534 = vmatprep.subr.bf16.mxu0 %v4171
    %5535 = vmatpush1.bf16.msra.mxu0 %v4170
    %5536 = vmatprep.subr.bf16.mxu0 %v4179
    %5537 = vmatpush1.bf16.msra.mxu0 %v4178
    %5538 = vmatprep.subr.bf16.mxu0 %v4187
    %5539 = vmatpush1.bf16.msra.mxu0 %v4186
    %5540 = vmatprep.subr.bf16.mxu0 %v4195
    %5541 = vmatpush1.bf16.msra.mxu0 %v4194
    %5542 = vmatprep.subr.bf16.mxu0 %v4203
    %5543 = vmatpush1.bf16.msra.mxu0 %v4202
    %5544 = vmatprep.subr.bf16.mxu0 %v4211
    %5545 = vmatpush1.bf16.msra.mxu0 %v4210
    %5546 = vmatprep.subr.bf16.mxu0 %v4219
    %5547 = vmatpush1.bf16.msra.mxu0 %v4218
    %5548 = vmatprep.subr.bf16.mxu0 %v4227
    %5549 = vmatpush1.bf16.msra.mxu0 %v4226
    %5550 = vmatprep.subr.bf16.mxu0 %v4235
    %5551 = vmatpush1.bf16.msra.mxu0 %v4234
    %5552 = vmatprep.subr.bf16.mxu0 %v4243
    %5553 = vmatpush1.bf16.msra.mxu0 %v4242
    %5554 = vmatprep.subr.bf16.mxu0 %v4251
    %5555 = vmatpush1.bf16.msra.mxu0 %v4250
    %5556 = vmatprep.subr.bf16.mxu0 %v4259
    %5557 = vmatpush1.bf16.msra.mxu0 %v4258
    %5558 = vmatprep.subr.bf16.mxu0 %v4267
    %5559 = vmatpush1.bf16.msra.mxu0 %v4266
    %5560 = vmatprep.subr.bf16.mxu0 %v4275
    %5561 = vmatpush1.bf16.msra.mxu0 %v4274
    %5562 = vmatprep.subr.bf16.mxu0 %v4283
    %5563 = vmatpush1.bf16.msra.mxu0 %v4282
    %5564 = vmatprep.subr.bf16.mxu0 %v4291
    %5565 = vmatpush1.bf16.msra.mxu0 %v4290
    %5566 = vmatprep.mubr.bf16.mxu0 %v2070
    %5567 = vmatmul.mubr.bf16.gmra.mrb[0].mxu0 %v2069
    %v5568 = vpop.f32.mrb[0].mxu0
    %v5569 = vadd.f32 %v2609, %v5568
    %v5570 = vpop.f32.mrb[0].mxu0
    %v5571 = vadd.f32 %v2613, %v5570
    %v5572 = vpop.f32.mrb[0].mxu0
    %v5573 = vadd.f32 %v2609, %v5572
    %v5574 = vpop.f32.mrb[0].mxu0
    %v5575 = vadd.f32 %v2613, %v5574
    %5576 = vdwg.mxu0
    %5577 = vmatprep.subr.bf16.mxu0 %v4299
    %5578 = vmatpush1.bf16.msra.mxu0 %v4298
    %5579 = vmatprep.subr.bf16.mxu0 %v4307
    %5580 = vmatpush1.bf16.msra.mxu0 %v4306
    %5581 = vmatprep.subr.bf16.mxu0 %v4315
    %5582 = vmatpush1.bf16.msra.mxu0 %v4314
    %5583 = vmatprep.subr.bf16.mxu0 %v4323
    %5584 = vmatpush1.bf16.msra.mxu0 %v4322
    %5585 = vmatprep.subr.bf16.mxu0 %v4331
    %5586 = vmatpush1.bf16.msra.mxu0 %v4330
    %5587 = vmatprep.subr.bf16.mxu0 %v4339
    %5588 = vmatpush1.bf16.msra.mxu0 %v4338
    %5589 = vmatprep.subr.bf16.mxu0 %v4347
    %5590 = vmatpush1.bf16.msra.mxu0 %v4346
    %5591 = vmatprep.subr.bf16.mxu0 %v4355
    %5592 = vmatpush1.bf16.msra.mxu0 %v4354
    %5593 = vmatprep.subr.bf16.mxu0 %v4363
    %5594 = vmatpush1.bf16.msra.mxu0 %v4362
    %5595 = vmatprep.subr.bf16.mxu0 %v4371
    %5596 = vmatpush1.bf16.msra.mxu0 %v4370
    %5597 = vmatprep.subr.bf16.mxu0 %v4379
    %5598 = vmatpush1.bf16.msra.mxu0 %v4378
    %5599 = vmatprep.subr.bf16.mxu0 %v4387
    %5600 = vmatpush1.bf16.msra.mxu0 %v4386
    %5601 = vmatprep.subr.bf16.mxu0 %v4395
    %5602 = vmatpush1.bf16.msra.mxu0 %v4394
    %5603 = vmatprep.subr.bf16.mxu0 %v4403
    %5604 = vmatpush1.bf16.msra.mxu0 %v4402
    %5605 = vmatprep.subr.bf16.mxu0 %v4411
    %5606 = vmatpush1.bf16.msra.mxu0 %v4410
    %5607 = vmatprep.subr.bf16.mxu0 %v4419
    %5608 = vmatpush1.bf16.msra.mxu0 %v4418
    %5609 = vmatprep.mubr.bf16.mxu0 %v2072
    %5610 = vmatmul.mubr.bf16.gmra.mrb[0].mxu0 %v2071
    %v5611 = vpop.f32.mrb[0].mxu0
    %v5612 = vadd.f32 %v5569, %v5611
    %v5613 = vpop.f32.mrb[0].mxu0
    %v5614 = vadd.f32 %v5571, %v5613
    %v5615 = vpop.f32.mrb[0].mxu0
    %v5616 = vadd.f32 %v5573, %v5615
    %v5617 = vpop.f32.mrb[0].mxu0
    %v5618 = vadd.f32 %v5575, %v5617
    %5619 = vdwg.mxu0
    %5620 = vmatprep.subr.bf16.mxu0 %v4427
    %5621 = vmatpush1.bf16.msra.mxu0 %v4426
    %5622 = vmatprep.subr.bf16.mxu0 %v4435
    %5623 = vmatpush1.bf16.msra.mxu0 %v4434
    %5624 = vmatprep.subr.bf16.mxu0 %v4443
    %5625 = vmatpush1.bf16.msra.mxu0 %v4442
    %5626 = vmatprep.subr.bf16.mxu0 %v4451
    %5627 = vmatpush1.bf16.msra.mxu0 %v4450
    %5628 = vmatprep.subr.bf16.mxu0 %v4459
    %5629 = vmatpush1.bf16.msra.mxu0 %v4458
    %5630 = vmatprep.subr.bf16.mxu0 %v4467
    %5631 = vmatpush1.bf16.msra.mxu0 %v4466
    %5632 = vmatprep.subr.bf16.mxu0 %v4475
    %5633 = vmatpush1.bf16.msra.mxu0 %v4474
    %5634 = vmatprep.subr.bf16.mxu0 %v4483
    %5635 = vmatpush1.bf16.msra.mxu0 %v4482
    %5636 = vmatprep.subr.bf16.mxu0 %v4491
    %5637 = vmatpush1.bf16.msra.mxu0 %v4490
    %5638 = vmatprep.subr.bf16.mxu0 %v4499
    %5639 = vmatpush1.bf16.msra.mxu0 %v4498
    %5640 = vmatprep.subr.bf16.mxu0 %v4507
    %5641 = vmatpush1.bf16.msra.mxu0 %v4506
    %5642 = vmatprep.subr.bf16.mxu0 %v4515
    %5643 = vmatpush1.bf16.msra.mxu0 %v4514
    %5644 = vmatprep.subr.bf16.mxu0 %v4523
    %5645 = vmatpush1.bf16.msra.mxu0 %v4522
    %5646 = vmatprep.subr.bf16.mxu0 %v4531
    %5647 = vmatpush1.bf16.msra.mxu0 %v4530
    %5648 = vmatprep.subr.bf16.mxu0 %v4539
    %5649 = vmatpush1.bf16.msra.mxu0 %v4538
    %5650 = vmatprep.subr.bf16.mxu0 %v4547
    %5651 = vmatpush1.bf16.msra.mxu0 %v4546
    %5652 = vmatprep.mubr.bf16.mxu0 %v2074
    %5653 = vmatmul.mubr.bf16.gmra.mrb[0].mxu0 %v2073
    %v5654 = vpop.f32.mrb[0].mxu0
    %v5655 = vadd.f32 %v5612, %v5654
    %v5656 = vpop.f32.mrb[0].mxu0
    %v5657 = vadd.f32 %v5614, %v5656
    %v5658 = vpop.f32.mrb[0].mxu0
    %v5659 = vadd.f32 %v5616, %v5658
    %v5660 = vpop.f32.mrb[0].mxu0
    %v5661 = vadd.f32 %v5618, %v5660
    %5662 = vdwg.mxu0
    %5663 = vmatprep.subr.bf16.mxu0 %v4555
    %5664 = vmatpush1.bf16.msra.mxu0 %v4554
    %5665 = vmatprep.subr.bf16.mxu0 %v4563
    %5666 = vmatpush1.bf16.msra.mxu0 %v4562
    %5667 = vmatprep.subr.bf16.mxu0 %v4571
    %5668 = vmatpush1.bf16.msra.mxu0 %v4570
    %5669 = vmatprep.subr.bf16.mxu0 %v4579
    %5670 = vmatpush1.bf16.msra.mxu0 %v4578
    %5671 = vmatprep.subr.bf16.mxu0 %v4587
    %5672 = vmatpush1.bf16.msra.mxu0 %v4586
    %5673 = vmatprep.subr.bf16.mxu0 %v4595
    %5674 = vmatpush1.bf16.msra.mxu0 %v4594
    %5675 = vmatprep.subr.bf16.mxu0 %v4603
    %5676 = vmatpush1.bf16.msra.mxu0 %v4602
    %5677 = vmatprep.subr.bf16.mxu0 %v4611
    %5678 = vmatpush1.bf16.msra.mxu0 %v4610
    %5679 = vmatprep.subr.bf16.mxu0 %v4619
    %5680 = vmatpush1.bf16.msra.mxu0 %v4618
    %5681 = vmatprep.subr.bf16.mxu0 %v4627
    %5682 = vmatpush1.bf16.msra.mxu0 %v4626
    %5683 = vmatprep.subr.bf16.mxu0 %v4635
    %5684 = vmatpush1.bf16.msra.mxu0 %v4634
    %5685 = vmatprep.subr.bf16.mxu0 %v4643
    %5686 = vmatpush1.bf16.msra.mxu0 %v4642
    %5687 = vmatprep.subr.bf16.mxu0 %v4651
    %5688 = vmatpush1.bf16.msra.mxu0 %v4650
    %5689 = vmatprep.subr.bf16.mxu0 %v4659
    %5690 = vmatpush1.bf16.msra.mxu0 %v4658
    %5691 = vmatprep.subr.bf16.mxu0 %v4667
    %5692 = vmatpush1.bf16.msra.mxu0 %v4666
    %5693 = vmatprep.subr.bf16.mxu0 %v4675
    %5694 = vmatpush1.bf16.msra.mxu0 %v4674
    %5695 = vmatprep.mubr.bf16.mxu0 %v2076
    %5696 = vmatmul.mubr.bf16.gmra.mrb[0].mxu0 %v2075
    %v5697 = vpop.f32.mrb[0].mxu0
    %v5698 = vadd.f32 %v5655, %v5697
    %v5699 = vpop.f32.mrb[0].mxu0
    %v5700 = vadd.f32 %v5657, %v5699
    %v5701 = vpop.f32.mrb[0].mxu0
    %v5702 = vadd.f32 %v5659, %v5701
    %v5703 = vpop.f32.mrb[0].mxu0
    %v5704 = vadd.f32 %v5661, %v5703
    %5705 = vdwg.mxu0
    %5706 = vmatprep.subr.bf16.mxu0 %v4173
    %5707 = vmatpush1.bf16.msra.mxu0 %v4172
    %5708 = vmatprep.subr.bf16.mxu0 %v4181
    %5709 = vmatpush1.bf16.msra.mxu0 %v4180
    %5710 = vmatprep.subr.bf16.mxu0 %v4189
    %5711 = vmatpush1.bf16.msra.mxu0 %v4188
    %5712 = vmatprep.subr.bf16.mxu0 %v4197
    %5713 = vmatpush1.bf16.msra.mxu0 %v4196
    %5714 = vmatprep.subr.bf16.mxu0 %v4205
    %5715 = vmatpush1.bf16.msra.mxu0 %v4204
    %5716 = vmatprep.subr.bf16.mxu0 %v4213
    %5717 = vmatpush1.bf16.msra.mxu0 %v4212
    %5718 = vmatprep.subr.bf16.mxu0 %v4221
    %5719 = vmatpush1.bf16.msra.mxu0 %v4220
    %5720 = vmatprep.subr.bf16.mxu0 %v4229
    %5721 = vmatpush1.bf16.msra.mxu0 %v4228
    %5722 = vmatprep.subr.bf16.mxu0 %v4237
    %5723 = vmatpush1.bf16.msra.mxu0 %v4236
    %5724 = vmatprep.subr.bf16.mxu0 %v4245
    %5725 = vmatpush1.bf16.msra.mxu0 %v4244
    %5726 = vmatprep.subr.bf16.mxu0 %v4253
    %5727 = vmatpush1.bf16.msra.mxu0 %v4252
    %5728 = vmatprep.subr.bf16.mxu0 %v4261
    %5729 = vmatpush1.bf16.msra.mxu0 %v4260
    %5730 = vmatprep.subr.bf16.mxu0 %v4269
    %5731 = vmatpush1.bf16.msra.mxu0 %v4268
    %5732 = vmatprep.subr.bf16.mxu0 %v4277
    %5733 = vmatpush1.bf16.msra.mxu0 %v4276
    %5734 = vmatprep.subr.bf16.mxu0 %v4285
    %5735 = vmatpush1.bf16.msra.mxu0 %v4284
    %5736 = vmatprep.subr.bf16.mxu0 %v4293
    %5737 = vmatpush1.bf16.msra.mxu0 %v4292
    %5738 = vmatprep.mubr.bf16.mxu0 %v2070
    %5739 = vmatmul.mubr.bf16.gmra.mrb[0].mxu0 %v2069
    %v5740 = vpop.f32.mrb[0].mxu0
    %v5741 = vadd.f32 %v2617, %v5740
    %v5742 = vpop.f32.mrb[0].mxu0
    %v5743 = vadd.f32 %v2621, %v5742
    %v5744 = vpop.f32.mrb[0].mxu0
    %v5745 = vadd.f32 %v2617, %v5744
    %v5746 = vpop.f32.mrb[0].mxu0
    %v5747 = vadd.f32 %v2621, %v5746
    %5748 = vdwg.mxu0
    %5749 = vmatprep.subr.bf16.mxu0 %v4301
    %5750 = vmatpush1.bf16.msra.mxu0 %v4300
    %5751 = vmatprep.subr.bf16.mxu0 %v4309
    %5752 = vmatpush1.bf16.msra.mxu0 %v4308
    %5753 = vmatprep.subr.bf16.mxu0 %v4317
    %5754 = vmatpush1.bf16.msra.mxu0 %v4316
    %5755 = vmatprep.subr.bf16.mxu0 %v4325
    %5756 = vmatpush1.bf16.msra.mxu0 %v4324
    %5757 = vmatprep.subr.bf16.mxu0 %v4333
    %5758 = vmatpush1.bf16.msra.mxu0 %v4332
    %5759 = vmatprep.subr.bf16.mxu0 %v4341
    %5760 = vmatpush1.bf16.msra.mxu0 %v4340
    %5761 = vmatprep.subr.bf16.mxu0 %v4349
    %5762 = vmatpush1.bf16.msra.mxu0 %v4348
    %5763 = vmatprep.subr.bf16.mxu0 %v4357
    %5764 = vmatpush1.bf16.msra.mxu0 %v4356
    %5765 = vmatprep.subr.bf16.mxu0 %v4365
    %5766 = vmatpush1.bf16.msra.mxu0 %v4364
    %5767 = vmatprep.subr.bf16.mxu0 %v4373
    %5768 = vmatpush1.bf16.msra.mxu0 %v4372
    %5769 = vmatprep.subr.bf16.mxu0 %v4381
    %5770 = vmatpush1.bf16.msra.mxu0 %v4380
    %5771 = vmatprep.subr.bf16.mxu0 %v4389
    %5772 = vmatpush1.bf16.msra.mxu0 %v4388
    %5773 = vmatprep.subr.bf16.mxu0 %v4397
    %5774 = vmatpush1.bf16.msra.mxu0 %v4396
    %5775 = vmatprep.subr.bf16.mxu0 %v4405
    %5776 = vmatpush1.bf16.msra.mxu0 %v4404
    %5777 = vmatprep.subr.bf16.mxu0 %v4413
    %5778 = vmatpush1.bf16.msra.mxu0 %v4412
    %5779 = vmatprep.subr.bf16.mxu0 %v4421
    %5780 = vmatpush1.bf16.msra.mxu0 %v4420
    %5781 = vmatprep.mubr.bf16.mxu0 %v2072
    %5782 = vmatmul.mubr.bf16.gmra.mrb[0].mxu0 %v2071
    %v5783 = vpop.f32.mrb[0].mxu0
    %v5784 = vadd.f32 %v5741, %v5783
    %v5785 = vpop.f32.mrb[0].mxu0
    %v5786 = vadd.f32 %v5743, %v5785
    %v5787 = vpop.f32.mrb[0].mxu0
    %v5788 = vadd.f32 %v5745, %v5787
    %v5789 = vpop.f32.mrb[0].mxu0
    %v5790 = vadd.f32 %v5747, %v5789
    %5791 = vdwg.mxu0
    %5792 = vmatprep.subr.bf16.mxu0 %v4429
    %5793 = vmatpush1.bf16.msra.mxu0 %v4428
    %5794 = vmatprep.subr.bf16.mxu0 %v4437
    %5795 = vmatpush1.bf16.msra.mxu0 %v4436
    %5796 = vmatprep.subr.bf16.mxu0 %v4445
    %5797 = vmatpush1.bf16.msra.mxu0 %v4444
    %5798 = vmatprep.subr.bf16.mxu0 %v4453
    %5799 = vmatpush1.bf16.msra.mxu0 %v4452
    %5800 = vmatprep.subr.bf16.mxu0 %v4461
    %5801 = vmatpush1.bf16.msra.mxu0 %v4460
    %5802 = vmatprep.subr.bf16.mxu0 %v4469
    %5803 = vmatpush1.bf16.msra.mxu0 %v4468
    %5804 = vmatprep.subr.bf16.mxu0 %v4477
    %5805 = vmatpush1.bf16.msra.mxu0 %v4476
    %5806 = vmatprep.subr.bf16.mxu0 %v4485
    %5807 = vmatpush1.bf16.msra.mxu0 %v4484
    %5808 = vmatprep.subr.bf16.mxu0 %v4493
    %5809 = vmatpush1.bf16.msra.mxu0 %v4492
    %5810 = vmatprep.subr.bf16.mxu0 %v4501
    %5811 = vmatpush1.bf16.msra.mxu0 %v4500
    %5812 = vmatprep.subr.bf16.mxu0 %v4509
    %5813 = vmatpush1.bf16.msra.mxu0 %v4508
    %5814 = vmatprep.subr.bf16.mxu0 %v4517
    %5815 = vmatpush1.bf16.msra.mxu0 %v4516
    %5816 = vmatprep.subr.bf16.mxu0 %v4525
    %5817 = vmatpush1.bf16.msra.mxu0 %v4524
    %5818 = vmatprep.subr.bf16.mxu0 %v4533
    %5819 = vmatpush1.bf16.msra.mxu0 %v4532
    %5820 = vmatprep.subr.bf16.mxu0 %v4541
    %5821 = vmatpush1.bf16.msra.mxu0 %v4540
    %5822 = vmatprep.subr.bf16.mxu0 %v4549
    %5823 = vmatpush1.bf16.msra.mxu0 %v4548
    %5824 = vmatprep.mubr.bf16.mxu0 %v2074
    %5825 = vmatmul.mubr.bf16.gmra.mrb[0].mxu0 %v2073
    %v5826 = vpop.f32.mrb[0].mxu0
    %v5827 = vadd.f32 %v5784, %v5826
    %v5828 = vpop.f32.mrb[0].mxu0
    %v5829 = vadd.f32 %v5786, %v5828
    %v5830 = vpop.f32.mrb[0].mxu0
    %v5831 = vadd.f32 %v5788, %v5830
    %v5832 = vpop.f32.mrb[0].mxu0
    %v5833 = vadd.f32 %v5790, %v5832
    %5834 = vdwg.mxu0
    %5835 = vmatprep.subr.bf16.mxu0 %v4557
    %5836 = vmatpush1.bf16.msra.mxu0 %v4556
    %5837 = vmatprep.subr.bf16.mxu0 %v4565
    %5838 = vmatpush1.bf16.msra.mxu0 %v4564
    %5839 = vmatprep.subr.bf16.mxu0 %v4573
    %5840 = vmatpush1.bf16.msra.mxu0 %v4572
    %5841 = vmatprep.subr.bf16.mxu0 %v4581
    %5842 = vmatpush1.bf16.msra.mxu0 %v4580
    %5843 = vmatprep.subr.bf16.mxu0 %v4589
    %5844 = vmatpush1.bf16.msra.mxu0 %v4588
    %5845 = vmatprep.subr.bf16.mxu0 %v4597
    %5846 = vmatpush1.bf16.msra.mxu0 %v4596
    %5847 = vmatprep.subr.bf16.mxu0 %v4605
    %5848 = vmatpush1.bf16.msra.mxu0 %v4604
    %5849 = vmatprep.subr.bf16.mxu0 %v4613
    %5850 = vmatpush1.bf16.msra.mxu0 %v4612
    %5851 = vmatprep.subr.bf16.mxu0 %v4621
    %5852 = vmatpush1.bf16.msra.mxu0 %v4620
    %5853 = vmatprep.subr.bf16.mxu0 %v4629
    %5854 = vmatpush1.bf16.msra.mxu0 %v4628
    %5855 = vmatprep.subr.bf16.mxu0 %v4637
    %5856 = vmatpush1.bf16.msra.mxu0 %v4636
    %5857 = vmatprep.subr.bf16.mxu0 %v4645
    %5858 = vmatpush1.bf16.msra.mxu0 %v4644
    %5859 = vmatprep.subr.bf16.mxu0 %v4653
    %5860 = vmatpush1.bf16.msra.mxu0 %v4652
    %5861 = vmatprep.subr.bf16.mxu0 %v4661
    %5862 = vmatpush1.bf16.msra.mxu0 %v4660
    %5863 = vmatprep.subr.bf16.mxu0 %v4669
    %5864 = vmatpush1.bf16.msra.mxu0 %v4668
    %5865 = vmatprep.subr.bf16.mxu0 %v4677
    %5866 = vmatpush1.bf16.msra.mxu0 %v4676
    %5867 = vmatprep.mubr.bf16.mxu0 %v2076
    %5868 = vmatmul.mubr.bf16.gmra.mrb[0].mxu0 %v2075
    %v5869 = vpop.f32.mrb[0].mxu0
    %v5870 = vadd.f32 %v5827, %v5869
    %v5871 = vpop.f32.mrb[0].mxu0
    %v5872 = vadd.f32 %v5829, %v5871
    %v5873 = vpop.f32.mrb[0].mxu0
    %v5874 = vadd.f32 %v5831, %v5873
    %v5875 = vpop.f32.mrb[0].mxu0
    %v5876 = vadd.f32 %v5833, %v5875
    %5877 = vdwg.mxu0
    %v5878 = vmax.f32 %v5354, 0.0
    %v5879 = vmax.f32 %v5356, 0.0
    %v5880 = vmax.f32 %v5526, 0.0
    %v5881 = vmax.f32 %v5528, 0.0
    %v5882 = vmax.f32 %v5698, 0.0
    %v5883 = vmax.f32 %v5700, 0.0
    %v5884 = vmax.f32 %v5870, 0.0
    %v5885 = vmax.f32 %v5872, 0.0
    %v5886 = vmax.f32 %v5358, 0.0
    %v5887 = vmax.f32 %v5360, 0.0
    %v5888 = vmax.f32 %v5530, 0.0
    %v5889 = vmax.f32 %v5532, 0.0
    %v5890 = vmax.f32 %v5702, 0.0
    %v5891 = vmax.f32 %v5704, 0.0
    %v5892 = vmax.f32 %v5874, 0.0
    %v5893 = vmax.f32 %v5876, 0.0
    %v5894 = vpack.c.bf16 %v5886, %v5878
    %v5895 = vpack.c.bf16 %v5887, %v5879
    %v5896 = vpack.c.bf16 %v5888, %v5880
    %v5897 = vpack.c.bf16 %v5889, %v5881
    %v5898 = vpack.c.bf16 %v5890, %v5882
    %v5899 = vpack.c.bf16 %v5891, %v5883
    %v5900 = vpack.c.bf16 %v5892, %v5884
    %v5901 = vpack.c.bf16 %v5893, %v5885
    %v5902 = vld [vmem:[#allocation11] sm:$0xf]
    %v5903 = vld [vmem:[#allocation11 + $0x4] sm:$0xf]
    %v5904 = vld [vmem:[#allocation11 + $0x8] sm:$0xf]
    %v5905 = vld [vmem:[#allocation11 + $0xc] sm:$0xf]
    %v5906 = vld [vmem:[#allocation11 + $0x10] sm:$0xf]
    %v5907 = vld [vmem:[#allocation11 + $0x14] sm:$0xf]
    %v5908 = vld [vmem:[#allocation11 + $0x18] sm:$0xf]
    %v5909 = vld [vmem:[#allocation11 + $0x1c] sm:$0xf]
    %v5910 = vld [vmem:[#allocation11 + $0x20] sm:$0xf]
    %v5911 = vld [vmem:[#allocation11 + $0x24] sm:$0xf]
    %v5912 = vld [vmem:[#allocation11 + $0x28] sm:$0xf]
    %v5913 = vld [vmem:[#allocation11 + $0x2c] sm:$0xf]
    %v5914 = vld [vmem:[#allocation11 + $0x30] sm:$0xf]
    %v5915 = vld [vmem:[#allocation11 + $0x34] sm:$0xf]
    %v5916 = vld [vmem:[#allocation11 + $0x38] sm:$0xf]
    %v5917 = vld [vmem:[#allocation11 + $0x3c] sm:$0xf]
    %v5918 = vld [vmem:[#allocation11 + $0x40] sm:$0xf]
    %v5919 = vld [vmem:[#allocation11 + $0x44] sm:$0xf]
    %v5920 = vld [vmem:[#allocation11 + $0x48] sm:$0xf]
    %v5921 = vld [vmem:[#allocation11 + $0x4c] sm:$0xf]
    %v5922 = vld [vmem:[#allocation11 + $0x50] sm:$0xf]
    %v5923 = vld [vmem:[#allocation11 + $0x54] sm:$0xf]
    %v5924 = vld [vmem:[#allocation11 + $0x58] sm:$0xf]
    %v5925 = vld [vmem:[#allocation11 + $0x5c] sm:$0xf]
    %v5926 = vld [vmem:[#allocation11 + $0x60] sm:$0xf]
    %v5927 = vld [vmem:[#allocation11 + $0x64] sm:$0xf]
    %v5928 = vld [vmem:[#allocation11 + $0x68] sm:$0xf]
    %v5929 = vld [vmem:[#allocation11 + $0x6c] sm:$0xf]
    %v5930 = vld [vmem:[#allocation11 + $0x70] sm:$0xf]
    %v5931 = vld [vmem:[#allocation11 + $0x74] sm:$0xf]
    %v5932 = vld [vmem:[#allocation11 + $0x78] sm:$0xf]
    %v5933 = vld [vmem:[#allocation11 + $0x7c] sm:$0xf]
    %v5934 = vld [vmem:[#allocation11 + $0x80] sm:$0xf]
    %v5935 = vld [vmem:[#allocation11 + $0x84] sm:$0xf]
    %v5936 = vld [vmem:[#allocation11 + $0x88] sm:$0xf]
    %v5937 = vld [vmem:[#allocation11 + $0x8c] sm:$0xf]
    %v5938 = vld [vmem:[#allocation11 + $0x90] sm:$0xf]
    %v5939 = vld [vmem:[#allocation11 + $0x94] sm:$0xf]
    %v5940 = vld [vmem:[#allocation11 + $0x98] sm:$0xf]
    %v5941 = vld [vmem:[#allocation11 + $0x9c] sm:$0xf]
    %v5942 = vld [vmem:[#allocation11 + $0xa0] sm:$0xf]
    %v5943 = vld [vmem:[#allocation11 + $0xa4] sm:$0xf]
    %v5944 = vld [vmem:[#allocation11 + $0xa8] sm:$0xf]
    %v5945 = vld [vmem:[#allocation11 + $0xac] sm:$0xf]
    %v5946 = vld [vmem:[#allocation11 + $0xb0] sm:$0xf]
    %v5947 = vld [vmem:[#allocation11 + $0xb4] sm:$0xf]
    %v5948 = vld [vmem:[#allocation11 + $0xb8] sm:$0xf]
    %v5949 = vld [vmem:[#allocation11 + $0xbc] sm:$0xf]
    %v5950 = vld [vmem:[#allocation11 + $0xc0] sm:$0xf]
    %v5951 = vld [vmem:[#allocation11 + $0xc4] sm:$0xf]
    %v5952 = vld [vmem:[#allocation11 + $0xc8] sm:$0xf]
    %v5953 = vld [vmem:[#allocation11 + $0xcc] sm:$0xf]
    %v5954 = vld [vmem:[#allocation11 + $0xd0] sm:$0xf]
    %v5955 = vld [vmem:[#allocation11 + $0xd4] sm:$0xf]
    %v5956 = vld [vmem:[#allocation11 + $0xd8] sm:$0xf]
    %v5957 = vld [vmem:[#allocation11 + $0xdc] sm:$0xf]
    %v5958 = vld [vmem:[#allocation11 + $0xe0] sm:$0xf]
    %v5959 = vld [vmem:[#allocation11 + $0xe4] sm:$0xf]
    %v5960 = vld [vmem:[#allocation11 + $0xe8] sm:$0xf]
    %v5961 = vld [vmem:[#allocation11 + $0xec] sm:$0xf]
    %v5962 = vld [vmem:[#allocation11 + $0xf0] sm:$0xf]
    %v5963 = vld [vmem:[#allocation11 + $0xf4] sm:$0xf]
    %v5964 = vld [vmem:[#allocation11 + $0xf8] sm:$0xf]
    %v5965 = vld [vmem:[#allocation11 + $0xfc] sm:$0xf]
    %v5966 = vld [vmem:[#allocation11 + $0x100] sm:$0xf]
    %v5967 = vld [vmem:[#allocation11 + $0x104] sm:$0xf]
    %v5968 = vld [vmem:[#allocation11 + $0x108] sm:$0xf]
    %v5969 = vld [vmem:[#allocation11 + $0x10c] sm:$0xf]
    %v5970 = vld [vmem:[#allocation11 + $0x110] sm:$0xf]
    %v5971 = vld [vmem:[#allocation11 + $0x114] sm:$0xf]
    %v5972 = vld [vmem:[#allocation11 + $0x118] sm:$0xf]
    %v5973 = vld [vmem:[#allocation11 + $0x11c] sm:$0xf]
    %v5974 = vld [vmem:[#allocation11 + $0x120] sm:$0xf]
    %v5975 = vld [vmem:[#allocation11 + $0x124] sm:$0xf]
    %v5976 = vld [vmem:[#allocation11 + $0x128] sm:$0xf]
    %v5977 = vld [vmem:[#allocation11 + $0x12c] sm:$0xf]
    %v5978 = vld [vmem:[#allocation11 + $0x130] sm:$0xf]
    %v5979 = vld [vmem:[#allocation11 + $0x134] sm:$0xf]
    %v5980 = vld [vmem:[#allocation11 + $0x138] sm:$0xf]
    %v5981 = vld [vmem:[#allocation11 + $0x13c] sm:$0xf]
    %v5982 = vld [vmem:[#allocation11 + $0x140] sm:$0xf]
    %v5983 = vld [vmem:[#allocation11 + $0x144] sm:$0xf]
    %v5984 = vld [vmem:[#allocation11 + $0x148] sm:$0xf]
    %v5985 = vld [vmem:[#allocation11 + $0x14c] sm:$0xf]
    %v5986 = vld [vmem:[#allocation11 + $0x150] sm:$0xf]
    %v5987 = vld [vmem:[#allocation11 + $0x154] sm:$0xf]
    %v5988 = vld [vmem:[#allocation11 + $0x158] sm:$0xf]
    %v5989 = vld [vmem:[#allocation11 + $0x15c] sm:$0xf]
    %v5990 = vld [vmem:[#allocation11 + $0x160] sm:$0xf]
    %v5991 = vld [vmem:[#allocation11 + $0x164] sm:$0xf]
    %v5992 = vld [vmem:[#allocation11 + $0x168] sm:$0xf]
    %v5993 = vld [vmem:[#allocation11 + $0x16c] sm:$0xf]
    %v5994 = vld [vmem:[#allocation11 + $0x170] sm:$0xf]
    %v5995 = vld [vmem:[#allocation11 + $0x174] sm:$0xf]
    %v5996 = vld [vmem:[#allocation11 + $0x178] sm:$0xf]
    %v5997 = vld [vmem:[#allocation11 + $0x17c] sm:$0xf]
    %v5998 = vld [vmem:[#allocation11 + $0x180] sm:$0xf]
    %v5999 = vld [vmem:[#allocation11 + $0x184] sm:$0xf]
    %v6000 = vld [vmem:[#allocation11 + $0x188] sm:$0xf]
    %v6001 = vld [vmem:[#allocation11 + $0x18c] sm:$0xf]
    %v6002 = vld [vmem:[#allocation11 + $0x190] sm:$0xf]
    %v6003 = vld [vmem:[#allocation11 + $0x194] sm:$0xf]
    %v6004 = vld [vmem:[#allocation11 + $0x198] sm:$0xf]
    %v6005 = vld [vmem:[#allocation11 + $0x19c] sm:$0xf]
    %v6006 = vld [vmem:[#allocation11 + $0x1a0] sm:$0xf]
    %v6007 = vld [vmem:[#allocation11 + $0x1a4] sm:$0xf]
    %v6008 = vld [vmem:[#allocation11 + $0x1a8] sm:$0xf]
    %v6009 = vld [vmem:[#allocation11 + $0x1ac] sm:$0xf]
    %v6010 = vld [vmem:[#allocation11 + $0x1b0] sm:$0xf]
    %v6011 = vld [vmem:[#allocation11 + $0x1b4] sm:$0xf]
    %v6012 = vld [vmem:[#allocation11 + $0x1b8] sm:$0xf]
    %v6013 = vld [vmem:[#allocation11 + $0x1bc] sm:$0xf]
    %v6014 = vld [vmem:[#allocation11 + $0x1c0] sm:$0xf]
    %v6015 = vld [vmem:[#allocation11 + $0x1c4] sm:$0xf]
    %v6016 = vld [vmem:[#allocation11 + $0x1c8] sm:$0xf]
    %v6017 = vld [vmem:[#allocation11 + $0x1cc] sm:$0xf]
    %v6018 = vld [vmem:[#allocation11 + $0x1d0] sm:$0xf]
    %v6019 = vld [vmem:[#allocation11 + $0x1d4] sm:$0xf]
    %v6020 = vld [vmem:[#allocation11 + $0x1d8] sm:$0xf]
    %v6021 = vld [vmem:[#allocation11 + $0x1dc] sm:$0xf]
    %v6022 = vld [vmem:[#allocation11 + $0x1e0] sm:$0xf]
    %v6023 = vld [vmem:[#allocation11 + $0x1e4] sm:$0xf]
    %v6024 = vld [vmem:[#allocation11 + $0x1e8] sm:$0xf]
    %v6025 = vld [vmem:[#allocation11 + $0x1ec] sm:$0xf]
    %v6026 = vld [vmem:[#allocation11 + $0x1f0] sm:$0xf]
    %v6027 = vld [vmem:[#allocation11 + $0x1f4] sm:$0xf]
    %v6028 = vld [vmem:[#allocation11 + $0x1f8] sm:$0xf]
    %v6029 = vld [vmem:[#allocation11 + $0x1fc] sm:$0xf]
    %v6031 = vlaneseq
    %v6032 = vshrl.u32 %v6031, 7
    %v6033 = vsub.s32 0, %v6032
    %v6034 = vrot.slane %v131, %v6033
    %v6164 = vunpack.c.l.b16 %v5902
    %v6165 = vunpack.c.l.b16 %v5903
    %v6166 = vunpack.c.l.b16 %v5904
    %v6167 = vunpack.c.l.b16 %v5905
    %v6168 = vunpack.c.l.b16 %v5906
    %v6169 = vunpack.c.l.b16 %v5907
    %v6170 = vunpack.c.l.b16 %v5908
    %v6171 = vunpack.c.l.b16 %v5909
    %v6172 = vunpack.c.l.b16 %v5910
    %v6173 = vunpack.c.l.b16 %v5911
    %v6174 = vunpack.c.l.b16 %v5912
    %v6175 = vunpack.c.l.b16 %v5913
    %v6176 = vunpack.c.l.b16 %v5914
    %v6177 = vunpack.c.l.b16 %v5915
    %v6178 = vunpack.c.l.b16 %v5916
    %v6179 = vunpack.c.l.b16 %v5917
    %v6180 = vunpack.c.l.b16 %v5918
    %v6181 = vunpack.c.l.b16 %v5919
    %v6182 = vunpack.c.l.b16 %v5920
    %v6183 = vunpack.c.l.b16 %v5921
    %v6184 = vunpack.c.l.b16 %v5922
    %v6185 = vunpack.c.l.b16 %v5923
    %v6186 = vunpack.c.l.b16 %v5924
    %v6187 = vunpack.c.l.b16 %v5925
    %v6188 = vunpack.c.l.b16 %v5926
    %v6189 = vunpack.c.l.b16 %v5927
    %v6190 = vunpack.c.l.b16 %v5928
    %v6191 = vunpack.c.l.b16 %v5929
    %v6192 = vunpack.c.l.b16 %v5930
    %v6193 = vunpack.c.l.b16 %v5931
    %v6194 = vunpack.c.l.b16 %v5932
    %v6195 = vunpack.c.l.b16 %v5933
    %v6196 = vunpack.c.l.b16 %v5934
    %v6197 = vunpack.c.l.b16 %v5935
    %v6198 = vunpack.c.l.b16 %v5936
    %v6199 = vunpack.c.l.b16 %v5937
    %v6200 = vunpack.c.l.b16 %v5938
    %v6201 = vunpack.c.l.b16 %v5939
    %v6202 = vunpack.c.l.b16 %v5940
    %v6203 = vunpack.c.l.b16 %v5941
    %v6204 = vunpack.c.l.b16 %v5942
    %v6205 = vunpack.c.l.b16 %v5943
    %v6206 = vunpack.c.l.b16 %v5944
    %v6207 = vunpack.c.l.b16 %v5945
    %v6208 = vunpack.c.l.b16 %v5946
    %v6209 = vunpack.c.l.b16 %v5947
    %v6210 = vunpack.c.l.b16 %v5948
    %v6211 = vunpack.c.l.b16 %v5949
    %v6212 = vunpack.c.l.b16 %v5950
    %v6213 = vunpack.c.l.b16 %v5951
    %v6214 = vunpack.c.l.b16 %v5952
    %v6215 = vunpack.c.l.b16 %v5953
    %v6216 = vunpack.c.l.b16 %v5954
    %v6217 = vunpack.c.l.b16 %v5955
    %v6218 = vunpack.c.l.b16 %v5956
    %v6219 = vunpack.c.l.b16 %v5957
    %v6220 = vunpack.c.l.b16 %v5958
    %v6221 = vunpack.c.l.b16 %v5959
    %v6222 = vunpack.c.l.b16 %v5960
    %v6223 = vunpack.c.l.b16 %v5961
    %v6224 = vunpack.c.l.b16 %v5962
    %v6225 = vunpack.c.l.b16 %v5963
    %v6226 = vunpack.c.l.b16 %v5964
    %v6227 = vunpack.c.l.b16 %v5965
    %v6228 = vunpack.c.l.b16 %v5966
    %v6229 = vunpack.c.l.b16 %v5967
    %v6230 = vunpack.c.l.b16 %v5968
    %v6231 = vunpack.c.l.b16 %v5969
    %v6232 = vunpack.c.l.b16 %v5970
    %v6233 = vunpack.c.l.b16 %v5971
    %v6234 = vunpack.c.l.b16 %v5972
    %v6235 = vunpack.c.l.b16 %v5973
    %v6236 = vunpack.c.l.b16 %v5974
    %v6237 = vunpack.c.l.b16 %v5975
    %v6238 = vunpack.c.l.b16 %v5976
    %v6239 = vunpack.c.l.b16 %v5977
    %v6240 = vunpack.c.l.b16 %v5978
    %v6241 = vunpack.c.l.b16 %v5979
    %v6242 = vunpack.c.l.b16 %v5980
    %v6243 = vunpack.c.l.b16 %v5981
    %v6244 = vunpack.c.l.b16 %v5982
    %v6245 = vunpack.c.l.b16 %v5983
    %v6246 = vunpack.c.l.b16 %v5984
    %v6247 = vunpack.c.l.b16 %v5985
    %v6248 = vunpack.c.l.b16 %v5986
    %v6249 = vunpack.c.l.b16 %v5987
    %v6250 = vunpack.c.l.b16 %v5988
    %v6251 = vunpack.c.l.b16 %v5989
    %v6252 = vunpack.c.l.b16 %v5990
    %v6253 = vunpack.c.l.b16 %v5991
    %v6254 = vunpack.c.l.b16 %v5992
    %v6255 = vunpack.c.l.b16 %v5993
    %v6256 = vunpack.c.l.b16 %v5994
    %v6257 = vunpack.c.l.b16 %v5995
    %v6258 = vunpack.c.l.b16 %v5996
    %v6259 = vunpack.c.l.b16 %v5997
    %v6260 = vunpack.c.l.b16 %v5998
    %v6261 = vunpack.c.l.b16 %v5999
    %v6262 = vunpack.c.l.b16 %v6000
    %v6263 = vunpack.c.l.b16 %v6001
    %v6264 = vunpack.c.l.b16 %v6002
    %v6265 = vunpack.c.l.b16 %v6003
    %v6266 = vunpack.c.l.b16 %v6004
    %v6267 = vunpack.c.l.b16 %v6005
    %v6268 = vunpack.c.l.b16 %v6006
    %v6269 = vunpack.c.l.b16 %v6007
    %v6270 = vunpack.c.l.b16 %v6008
    %v6271 = vunpack.c.l.b16 %v6009
    %v6272 = vunpack.c.l.b16 %v6010
    %v6273 = vunpack.c.l.b16 %v6011
    %v6274 = vunpack.c.l.b16 %v6012
    %v6275 = vunpack.c.l.b16 %v6013
    %v6276 = vunpack.c.l.b16 %v6014
    %v6277 = vunpack.c.l.b16 %v6015
    %v6278 = vunpack.c.l.b16 %v6016
    %v6279 = vunpack.c.l.b16 %v6017
    %v6280 = vunpack.c.l.b16 %v6018
    %v6281 = vunpack.c.l.b16 %v6019
    %v6282 = vunpack.c.l.b16 %v6020
    %v6283 = vunpack.c.l.b16 %v6021
    %v6284 = vunpack.c.l.b16 %v6022
    %v6285 = vunpack.c.l.b16 %v6023
    %v6286 = vunpack.c.l.b16 %v6024
    %v6287 = vunpack.c.l.b16 %v6025
    %v6288 = vunpack.c.l.b16 %v6026
    %v6289 = vunpack.c.l.b16 %v6027
    %v6290 = vunpack.c.l.b16 %v6028
    %v6291 = vunpack.c.l.b16 %v6029
    %v6292 = vpack.c.b16 %v6165, %v6164
    %v6293 = vpack.c.b16 %v6167, %v6166
    %v6294 = vpack.c.b16 %v6169, %v6168
    %v6295 = vpack.c.b16 %v6171, %v6170
    %v6296 = vpack.c.b16 %v6173, %v6172
    %v6297 = vpack.c.b16 %v6175, %v6174
    %v6298 = vpack.c.b16 %v6177, %v6176
    %v6299 = vpack.c.b16 %v6179, %v6178
    %v6300 = vpack.c.b16 %v6181, %v6180
    %v6301 = vpack.c.b16 %v6183, %v6182
    %v6302 = vpack.c.b16 %v6185, %v6184
    %v6303 = vpack.c.b16 %v6187, %v6186
    %v6304 = vpack.c.b16 %v6189, %v6188
    %v6305 = vpack.c.b16 %v6191, %v6190
    %v6306 = vpack.c.b16 %v6193, %v6192
    %v6307 = vpack.c.b16 %v6195, %v6194
    %v6308 = vpack.c.b16 %v6197, %v6196
    %v6309 = vpack.c.b16 %v6199, %v6198
    %v6310 = vpack.c.b16 %v6201, %v6200
    %v6311 = vpack.c.b16 %v6203, %v6202
    %v6312 = vpack.c.b16 %v6205, %v6204
    %v6313 = vpack.c.b16 %v6207, %v6206
    %v6314 = vpack.c.b16 %v6209, %v6208
    %v6315 = vpack.c.b16 %v6211, %v6210
    %v6316 = vpack.c.b16 %v6213, %v6212
    %v6317 = vpack.c.b16 %v6215, %v6214
    %v6318 = vpack.c.b16 %v6217, %v6216
    %v6319 = vpack.c.b16 %v6219, %v6218
    %v6320 = vpack.c.b16 %v6221, %v6220
    %v6321 = vpack.c.b16 %v6223, %v6222
    %v6322 = vpack.c.b16 %v6225, %v6224
    %v6323 = vpack.c.b16 %v6227, %v6226
    %v6324 = vpack.c.b16 %v6229, %v6228
    %v6325 = vpack.c.b16 %v6231, %v6230
    %v6326 = vpack.c.b16 %v6233, %v6232
    %v6327 = vpack.c.b16 %v6235, %v6234
    %v6328 = vpack.c.b16 %v6237, %v6236
    %v6329 = vpack.c.b16 %v6239, %v6238
    %v6330 = vpack.c.b16 %v6241, %v6240
    %v6331 = vpack.c.b16 %v6243, %v6242
    %v6332 = vpack.c.b16 %v6245, %v6244
    %v6333 = vpack.c.b16 %v6247, %v6246
    %v6334 = vpack.c.b16 %v6249, %v6248
    %v6335 = vpack.c.b16 %v6251, %v6250
    %v6336 = vpack.c.b16 %v6253, %v6252
    %v6337 = vpack.c.b16 %v6255, %v6254
    %v6338 = vpack.c.b16 %v6257, %v6256
    %v6339 = vpack.c.b16 %v6259, %v6258
    %v6340 = vpack.c.b16 %v6261, %v6260
    %v6341 = vpack.c.b16 %v6263, %v6262
    %v6342 = vpack.c.b16 %v6265, %v6264
    %v6343 = vpack.c.b16 %v6267, %v6266
    %v6344 = vpack.c.b16 %v6269, %v6268
    %v6345 = vpack.c.b16 %v6271, %v6270
    %v6346 = vpack.c.b16 %v6273, %v6272
    %v6347 = vpack.c.b16 %v6275, %v6274
    %v6348 = vpack.c.b16 %v6277, %v6276
    %v6349 = vpack.c.b16 %v6279, %v6278
    %v6350 = vpack.c.b16 %v6281, %v6280
    %v6351 = vpack.c.b16 %v6283, %v6282
    %v6352 = vpack.c.b16 %v6285, %v6284
    %v6353 = vpack.c.b16 %v6287, %v6286
    %v6354 = vpack.c.b16 %v6289, %v6288
    %v6355 = vpack.c.b16 %v6291, %v6290
    %6420 = vmatprep.subr.bf16.mxu0 0
    %6421 = vmatpush1.bf16.msra.mxu0 %v6292
    %6422 = vmatprep.subr.bf16.mxu0 0
    %6423 = vmatpush1.bf16.msra.mxu0 %v6293
    %6424 = vmatprep.subr.bf16.mxu0 0
    %6425 = vmatpush1.bf16.msra.mxu0 %v6294
    %6426 = vmatprep.subr.bf16.mxu0 0
    %6427 = vmatpush1.bf16.msra.mxu0 %v6295
    %6428 = vmatprep.subr.bf16.mxu0 0
    %6429 = vmatpush1.bf16.msra.mxu0 %v6296
    %6430 = vmatprep.subr.bf16.mxu0 0
    %6431 = vmatpush1.bf16.msra.mxu0 %v6297
    %6432 = vmatprep.subr.bf16.mxu0 0
    %6433 = vmatpush1.bf16.msra.mxu0 %v6298
    %6434 = vmatprep.subr.bf16.mxu0 0
    %6435 = vmatpush1.bf16.msra.mxu0 %v6299
    %6436 = vmatprep.subr.bf16.mxu0 0
    %6437 = vmatpush1.bf16.msra.mxu0 %v6300
    %6438 = vmatprep.subr.bf16.mxu0 0
    %6439 = vmatpush1.bf16.msra.mxu0 %v6301
    %6440 = vmatprep.subr.bf16.mxu0 0
    %6441 = vmatpush1.bf16.msra.mxu0 %v6302
    %6442 = vmatprep.subr.bf16.mxu0 0
    %6443 = vmatpush1.bf16.msra.mxu0 %v6303
    %6444 = vmatprep.subr.bf16.mxu0 0
    %6445 = vmatpush1.bf16.msra.mxu0 %v6304
    %6446 = vmatprep.subr.bf16.mxu0 0
    %6447 = vmatpush1.bf16.msra.mxu0 %v6305
    %6448 = vmatprep.subr.bf16.mxu0 0
    %6449 = vmatpush1.bf16.msra.mxu0 %v6306
    %6450 = vmatprep.subr.bf16.mxu0 0
    %6451 = vmatpush1.bf16.msra.mxu0 %v6307
    %6452 = vmatprep.mubr.bf16.mxu0 %v5895
    %6453 = vmatmul.mubr.bf16.gmra.mrb[0].mxu0 %v5894
    %v6454 = vpop.f32.mrb[0].mxu0
    %v6455 = vadd.f32 %v6034, %v6454
    %v6456 = vpop.f32.mrb[0].mxu0
    %v6457 = vpop.f32.mrb[0].mxu0
    %v6458 = vadd.f32 %v6034, %v6457
    %v6459 = vpop.f32.mrb[0].mxu0
    %6460 = vdwg.mxu0
    %6461 = vmatprep.subr.bf16.mxu0 0
    %6462 = vmatpush1.bf16.msra.mxu0 %v6308
    %6463 = vmatprep.subr.bf16.mxu0 0
    %6464 = vmatpush1.bf16.msra.mxu0 %v6309
    %6465 = vmatprep.subr.bf16.mxu0 0
    %6466 = vmatpush1.bf16.msra.mxu0 %v6310
    %6467 = vmatprep.subr.bf16.mxu0 0
    %6468 = vmatpush1.bf16.msra.mxu0 %v6311
    %6469 = vmatprep.subr.bf16.mxu0 0
    %6470 = vmatpush1.bf16.msra.mxu0 %v6312
    %6471 = vmatprep.subr.bf16.mxu0 0
    %6472 = vmatpush1.bf16.msra.mxu0 %v6313
    %6473 = vmatprep.subr.bf16.mxu0 0
    %6474 = vmatpush1.bf16.msra.mxu0 %v6314
    %6475 = vmatprep.subr.bf16.mxu0 0
    %6476 = vmatpush1.bf16.msra.mxu0 %v6315
    %6477 = vmatprep.subr.bf16.mxu0 0
    %6478 = vmatpush1.bf16.msra.mxu0 %v6316
    %6479 = vmatprep.subr.bf16.mxu0 0
    %6480 = vmatpush1.bf16.msra.mxu0 %v6317
    %6481 = vmatprep.subr.bf16.mxu0 0
    %6482 = vmatpush1.bf16.msra.mxu0 %v6318
    %6483 = vmatprep.subr.bf16.mxu0 0
    %6484 = vmatpush1.bf16.msra.mxu0 %v6319
    %6485 = vmatprep.subr.bf16.mxu0 0
    %6486 = vmatpush1.bf16.msra.mxu0 %v6320
    %6487 = vmatprep.subr.bf16.mxu0 0
    %6488 = vmatpush1.bf16.msra.mxu0 %v6321
    %6489 = vmatprep.subr.bf16.mxu0 0
    %6490 = vmatpush1.bf16.msra.mxu0 %v6322
    %6491 = vmatprep.subr.bf16.mxu0 0
    %6492 = vmatpush1.bf16.msra.mxu0 %v6323
    %6493 = vmatprep.mubr.bf16.mxu0 %v5897
    %6494 = vmatmul.mubr.bf16.gmra.mrb[0].mxu0 %v5896
    %v6495 = vpop.f32.mrb[0].mxu0
    %v6496 = vadd.f32 %v6455, %v6495
    %v6497 = vpop.f32.mrb[0].mxu0
    %v6498 = vpop.f32.mrb[0].mxu0
    %v6499 = vadd.f32 %v6458, %v6498
    %v6500 = vpop.f32.mrb[0].mxu0
    %6501 = vdwg.mxu0
    %6502 = vmatprep.subr.bf16.mxu0 0
    %6503 = vmatpush1.bf16.msra.mxu0 %v6324
    %6504 = vmatprep.subr.bf16.mxu0 0
    %6505 = vmatpush1.bf16.msra.mxu0 %v6325
    %6506 = vmatprep.subr.bf16.mxu0 0
    %6507 = vmatpush1.bf16.msra.mxu0 %v6326
    %6508 = vmatprep.subr.bf16.mxu0 0
    %6509 = vmatpush1.bf16.msra.mxu0 %v6327
    %6510 = vmatprep.subr.bf16.mxu0 0
    %6511 = vmatpush1.bf16.msra.mxu0 %v6328
    %6512 = vmatprep.subr.bf16.mxu0 0
    %6513 = vmatpush1.bf16.msra.mxu0 %v6329
    %6514 = vmatprep.subr.bf16.mxu0 0
    %6515 = vmatpush1.bf16.msra.mxu0 %v6330
    %6516 = vmatprep.subr.bf16.mxu0 0
    %6517 = vmatpush1.bf16.msra.mxu0 %v6331
    %6518 = vmatprep.subr.bf16.mxu0 0
    %6519 = vmatpush1.bf16.msra.mxu0 %v6332
    %6520 = vmatprep.subr.bf16.mxu0 0
    %6521 = vmatpush1.bf16.msra.mxu0 %v6333
    %6522 = vmatprep.subr.bf16.mxu0 0
    %6523 = vmatpush1.bf16.msra.mxu0 %v6334
    %6524 = vmatprep.subr.bf16.mxu0 0
    %6525 = vmatpush1.bf16.msra.mxu0 %v6335
    %6526 = vmatprep.subr.bf16.mxu0 0
    %6527 = vmatpush1.bf16.msra.mxu0 %v6336
    %6528 = vmatprep.subr.bf16.mxu0 0
    %6529 = vmatpush1.bf16.msra.mxu0 %v6337
    %6530 = vmatprep.subr.bf16.mxu0 0
    %6531 = vmatpush1.bf16.msra.mxu0 %v6338
    %6532 = vmatprep.subr.bf16.mxu0 0
    %6533 = vmatpush1.bf16.msra.mxu0 %v6339
    %6534 = vmatprep.mubr.bf16.mxu0 %v5899
    %6535 = vmatmul.mubr.bf16.gmra.mrb[0].mxu0 %v5898
    %v6536 = vpop.f32.mrb[0].mxu0
    %v6537 = vadd.f32 %v6496, %v6536
    %v6538 = vpop.f32.mrb[0].mxu0
    %v6539 = vpop.f32.mrb[0].mxu0
    %v6540 = vadd.f32 %v6499, %v6539
    %v6541 = vpop.f32.mrb[0].mxu0
    %6542 = vdwg.mxu0
    %6543 = vmatprep.subr.bf16.mxu0 0
    %6544 = vmatpush1.bf16.msra.mxu0 %v6340
    %6545 = vmatprep.subr.bf16.mxu0 0
    %6546 = vmatpush1.bf16.msra.mxu0 %v6341
    %6547 = vmatprep.subr.bf16.mxu0 0
    %6548 = vmatpush1.bf16.msra.mxu0 %v6342
    %6549 = vmatprep.subr.bf16.mxu0 0
    %6550 = vmatpush1.bf16.msra.mxu0 %v6343
    %6551 = vmatprep.subr.bf16.mxu0 0
    %6552 = vmatpush1.bf16.msra.mxu0 %v6344
    %6553 = vmatprep.subr.bf16.mxu0 0
    %6554 = vmatpush1.bf16.msra.mxu0 %v6345
    %6555 = vmatprep.subr.bf16.mxu0 0
    %6556 = vmatpush1.bf16.msra.mxu0 %v6346
    %6557 = vmatprep.subr.bf16.mxu0 0
    %6558 = vmatpush1.bf16.msra.mxu0 %v6347
    %6559 = vmatprep.subr.bf16.mxu0 0
    %6560 = vmatpush1.bf16.msra.mxu0 %v6348
    %6561 = vmatprep.subr.bf16.mxu0 0
    %6562 = vmatpush1.bf16.msra.mxu0 %v6349
    %6563 = vmatprep.subr.bf16.mxu0 0
    %6564 = vmatpush1.bf16.msra.mxu0 %v6350
    %6565 = vmatprep.subr.bf16.mxu0 0
    %6566 = vmatpush1.bf16.msra.mxu0 %v6351
    %6567 = vmatprep.subr.bf16.mxu0 0
    %6568 = vmatpush1.bf16.msra.mxu0 %v6352
    %6569 = vmatprep.subr.bf16.mxu0 0
    %6570 = vmatpush1.bf16.msra.mxu0 %v6353
    %6571 = vmatprep.subr.bf16.mxu0 0
    %6572 = vmatpush1.bf16.msra.mxu0 %v6354
    %6573 = vmatprep.subr.bf16.mxu0 0
    %6574 = vmatpush1.bf16.msra.mxu0 %v6355
    %6575 = vmatprep.mubr.bf16.mxu0 %v5901
    %6576 = vmatmul.mubr.bf16.gmra.mrb[0].mxu0 %v5900
    %v6577 = vpop.f32.mrb[0].mxu0
    %v6578 = vadd.f32 %v6537, %v6577
    %v6579 = vpop.f32.mrb[0].mxu0
    %v6580 = vpop.f32.mrb[0].mxu0
    %v6581 = vadd.f32 %v6540, %v6580
    %v6582 = vpop.f32.mrb[0].mxu0
    %6583 = vdwg.mxu0
    %v6584 = vlaneseq
    %v6585 = vand.u32 %v6584, 127
    %v6586 = vmax.f32 %v6578, 0.0
    %v6587 = vmax.f32 %v6581, 0.0
    %v6588 = vand.u32 2147483647, %v6578
    %v6589 = vand.u32 2147483647, %v6581
    %v6590 = vsub.f32 0.0, %v6588
    %v6591 = vsub.f32 0.0, %v6589
    %v6592 = vmul.f32 %v6590, 1.442695
    %v6593 = vpow.pop %v6592
    %v6594 = vmul.f32 %v6591, 1.442695
    %v6595 = vpow.pop %v6594
    %v6596 = vadd.f32 %v6593, 1.0
    %v6597 = vlog2.pop %v6596
    %v6598 = vmul.f32 %v6597, 0.6931472
    %v6599 = vmul.f32 -0.5, %v6593
    %v6600 = vadd.f32 %v6599, 1.0
    %v6601 = vmul.f32 %v6600, %v6593
    %v6602 = vand.u32 2147483647, %v6593
    %vm6603 = vcmp.lt.f32.partialorder %v6602, 0.0004427343
    %v6604 = vsel %vm6603, %v6601, %v6598
    %v6605 = vadd.f32 %v6595, 1.0
    %v6606 = vlog2.pop %v6605
    %v6607 = vmul.f32 %v6606, 0.6931472
    %v6608 = vmul.f32 -0.5, %v6595
    %v6609 = vadd.f32 %v6608, 1.0
    %v6610 = vmul.f32 %v6609, %v6595
    %v6611 = vand.u32 2147483647, %v6595
    %vm6612 = vcmp.lt.f32.partialorder %v6611, 0.0004427343
    %v6613 = vsel %vm6612, %v6610, %v6607
    %v6614 = vadd.f32 %v6586, %v6604
    %v6615 = vadd.f32 %v6587, %v6613
    %vm6616 = vcmp.lt.s32.totalorder %v6585, 64
    %v6617 = vadd.f32 %v6614, 1e-07
    %v6618 = vadd.f32 %v6615, 1e-07
    %v6619 = vsel %vm6616, %v6578, %v6617
    %v6620 = vsel %vm6616, %v6581, %v6618
    %6621 = vst [vmem:[#allocation14] sm:$0xff] %v6619
    %6622 = vst [vmem:[#allocation14 + $0x8] sm:$0xff] %v6620
    // Predicated region
    $region58: #{tpu_custom_call.1} parent=1 // pred_check
      _
    $region59: #{tpu_custom_call.1} parent=1 // pred_check_branch
      %6624 = sbr.rel (0) target = $region61
    $region60: #{tpu_custom_call.1} parent=1 // pred_region
      %s6626 = ssub.s32 256, 256
      %6627 = vsyncadd [#allocation4], %s6626
      %s6628 = sshll.u32 [#allocation14], 4
      %s6629 = int_to_ptr.vmem [resolvable:$true] %s6628
      %6634 = dma.vmem_to_hbm [thread:$0]  %s6629, 256, %s7, [#allocation4], 128, 128, 8
    $region61: #{tpu_custom_call.1} parent=1 // pred_fallthru
      _
    // Predicated region
    $region62: #{tpu_custom_call.1} parent=1 // pred_check
      _
    $region63: #{tpu_custom_call.1} parent=1 // pred_check_branch
      %6636 = sbr.rel (0) target = $region65
    $region64: #{tpu_custom_call.1} parent=1 // pred_region
      %6637 = dma.done [#allocation4], 256
    $region65: #{tpu_custom_call.1} parent=1 // pred_fallthru
      _
    %6638 = vsyncpa [#allocation3], 1
    %6639 = vsyncpa [#allocation6], 1
    %6640 = vsyncpa [#allocation9], 1
    %6641 = vsyncpa [#allocation12], 1
    %6642 = vsyncpa [#allocation4], 1

// kernel: tpu_custom_call.1
$region0: #{tpu_custom_call.1}
  #allocation0 [shape = 'u32[]', space=smem, size = 0x4, offset = 0x4, fixed_abs, tag = 'smem constant byte address 0x4 - core index']
  #allocation1 [shape = 'u32[144,128]{1,0:T(1,128)}', space=vmem, size = 0x12000, scoped, tag = 'internal scratch']
  %s0 = inlined_call_operand.hbm [shape: f32[16,512], index: 0, kind: input, shape index: {}]
  %s1 = inlined_call_operand.hbm [shape: bf16[512,1024], index: 1, kind: input, shape index: {}]
  %s2 = inlined_call_operand.hbm [shape: f32[1,1024], index: 2, kind: input, shape index: {}]
  %s3 = inlined_call_operand.hbm [shape: bf16[1024,1024], index: 3, kind: input, shape index: {}]
  %s4 = inlined_call_operand.hbm [shape: f32[1,1024], index: 4, kind: input, shape index: {}]
  %s5 = inlined_call_operand.hbm [shape: bf16[1024,128], index: 5, kind: input, shape index: {}]
  %s6 = inlined_call_operand.hbm [shape: f32[1,128], index: 6, kind: input, shape index: {}]
  %s7 = inlined_call_operand.hbm [shape: f32[16,128], index: 7, kind: output, shape index: {}]
  %s8 = sld [smem:[#allocation0]]
  $region66: #{tpu_custom_call.1} parent=0
    _
  %s10 = ssub.s32 1, %s8
  %s11 = scalar_select 0, %s10, %s8
  $region1: #{tpu_custom_call.1} parent=0
    #allocation2 [shape = 'u8[32768]{0}', space=vmem, size = 0x8000, scoped, tag = 'input window, operand 0, single buffered']
    #allocation3 [shape = 's32[1]{0}', space=sflag, size = 0x4, scoped, tag = 'scoped memory for tpu_custom_call.1']
    #allocation4 [shape = 's32[1]{0}', space=sflag, size = 0x4, scoped, tag = 'scoped memory for tpu_custom_call.1']
    #allocation5 [shape = 'u8[1048576]{0}', space=vmem, size = 0x100000, scoped, tag = 'input window, operand 1, single buffered']
    #allocation6 [shape = 's32[1]{0}', space=sflag, size = 0x4, scoped, tag = 'scoped memory for tpu_custom_call.1']
    #allocation7 [shape = 'u8[4096]{0}', space=vmem, size = 0x1000, scoped, tag = 'input window, operand 2, single buffered']
    #allocation8 [shape = 'u8[2097152]{0}', space=vmem, size = 0x200000, scoped, tag = 'input window, operand 3, single buffered']
    #allocation9 [shape = 's32[1]{0}', space=sflag, size = 0x4, scoped, tag = 'scoped memory for tpu_custom_call.1']
    #allocation10 [shape = 'u8[4096]{0}', space=vmem, size = 0x1000, scoped, tag = 'input window, operand 4, single buffered']
    #allocation11 [shape = 'u8[262144]{0}', space=vmem, size = 0x40000, scoped, tag = 'input window, operand 5, single buffered']
    #allocation12 [shape = 's32[1]{0}', space=sflag, size = 0x4, scoped, tag = 'scoped memory for tpu_custom_call.1']
    #allocation13 [shape = 'u8[512]{0}', space=vmem, size = 0x400, scoped, tag = 'input window, operand 6, single buffered']
    #allocation14 [shape = 'u8[8192]{0}', space=vmem, size = 0x2000, scoped, tag = 'output window, operand 0, single buffered']
    %12 = vsyncpa [#allocation3], 0
    %13 = vsyncpa [#allocation6], 0
    %14 = vsyncpa [#allocation9], 0
    %15 = vsyncpa [#allocation12], 0
    %16 = vsyncpa [#allocation4], 0
    // Predicated region
    $region2: #{tpu_custom_call.1} parent=1 // pred_check
      _
    $region3: #{tpu_custom_call.1} parent=1 // pred_check_branch
      %18 = sbr.rel (0) target = $region5
    $region4: #{tpu_custom_call.1} parent=1 // pred_region
      %s20 = ssub.s32 1024, 1024
      %21 = vsyncadd [#allocation3], %s20
      %s22 = sshll.u32 [#allocation2], 4
      %s23 = int_to_ptr.vmem [resolvable:$true] %s22
      %28 = dma.hbm_to_vmem [thread:$0]  %s0, 1024, %s23, [#allocation3], 512, 512, 32
    $region5: #{tpu_custom_call.1} parent=1 // pred_fallthru
      _
    // Predicated region
    $region6: #{tpu_custom_call.1} parent=1 // pred_check
      _
    $region7: #{tpu_custom_call.1} parent=1 // pred_check_branch
      %30 = sbr.rel (0) target = $region9
    $region8: #{tpu_custom_call.1} parent=1 // pred_region
      %s32 = ssub.s32 32768, 32768
      %33 = vsyncadd [#allocation6], %s32
      %s34 = sshll.u32 [#allocation5], 4
      %s35 = int_to_ptr.vmem [resolvable:$true] %s34
      %40 = dma.hbm_to_vmem [thread:$0]  %s1, 32768, %s35, [#allocation6], 512, 512, 32
    $region9: #{tpu_custom_call.1} parent=1 // pred_fallthru
      _
    // Predicated region
    $region10: #{tpu_custom_call.1} parent=1 // pred_check
      _
    $region11: #{tpu_custom_call.1} parent=1 // pred_check_branch
      %42 = sbr.rel (0) target = $region13
    $region12: #{tpu_custom_call.1} parent=1 // pred_region
      %s44 = ssub.s32 128, 128
      %45 = vsyncadd [#allocation6], %s44
      %s47 = sshll.u32 [#allocation7], 4
      %s48 = int_to_ptr.vmem [resolvable:$true] %s47
      %50 = dma.hbm_to_vmem [thread:$0]  %s2, 128, %s48, [#allocation6]
    $region13: #{tpu_custom_call.1} parent=1 // pred_fallthru
      _
    // Predicated region
    $region14: #{tpu_custom_call.1} parent=1 // pred_check
      _
    $region15: #{tpu_custom_call.1} parent=1 // pred_check_branch
      %52 = sbr.rel (0) target = $region17
    $region16: #{tpu_custom_call.1} parent=1 // pred_region
      %s54 = ssub.s32 65536, 65536
      %55 = vsyncadd [#allocation9], %s54
      %s56 = sshll.u32 [#allocation8], 4
      %s57 = int_to_ptr.vmem [resolvable:$true] %s56
      %62 = dma.hbm_to_vmem [thread:$0]  %s3, 65536, %s57, [#allocation9], 512, 512, 32
    $region17: #{tpu_custom_call.1} parent=1 // pred_fallthru
      _
    // Predicated region
    $region18: #{tpu_custom_call.1} parent=1 // pred_check
      _
    $region19: #{tpu_custom_call.1} parent=1 // pred_check_branch
      %64 = sbr.rel (0) target = $region21
    $region20: #{tpu_custom_call.1} parent=1 // pred_region
      %s66 = ssub.s32 128, 128
      %67 = vsyncadd [#allocation9], %s66
      %s69 = sshll.u32 [#allocation10], 4
      %s70 = int_to_ptr.vmem [resolvable:$true] %s69
      %72 = dma.hbm_to_vmem [thread:$0]  %s4, 128, %s70, [#allocation9]
    $region21: #{tpu_custom_call.1} parent=1 // pred_fallthru
      _
    // Predicated region
    $region22: #{tpu_custom_call.1} parent=1 // pred_check
      _
    $region23: #{tpu_custom_call.1} parent=1 // pred_check_branch
      %74 = sbr.rel (0) target = $region25
    $region24: #{tpu_custom_call.1} parent=1 // pred_region
      %s76 = ssub.s32 8192, 8192
      %77 = vsyncadd [#allocation12], %s76
      %s78 = sshll.u32 [#allocation11], 4
      %s79 = int_to_ptr.vmem [resolvable:$true] %s78
      %84 = dma.hbm_to_vmem [thread:$0]  %s5, 8192, %s79, [#allocation12], 64, 64, 4
    $region25: #{tpu_custom_call.1} parent=1 // pred_fallthru
      _
    // Predicated region
    $region26: #{tpu_custom_call.1} parent=1 // pred_check
      _
    $region27: #{tpu_custom_call.1} parent=1 // pred_check_branch
      %86 = sbr.rel (0) target = $region29
    $region28: #{tpu_custom_call.1} parent=1 // pred_region
      %s88 = ssub.s32 16, 16
      %89 = vsyncadd [#allocation12], %s88
      %s91 = sshll.u32 [#allocation13], 4
      %s92 = int_to_ptr.vmem [resolvable:$true] %s91
      %94 = dma.hbm_to_vmem [thread:$0]  %s6, 16, %s92, [#allocation12]
    $region29: #{tpu_custom_call.1} parent=1 // pred_fallthru
      _
    // Predicated region
    $region30: #{tpu_custom_call.1} parent=1 // pred_check
      _
    $region31: #{tpu_custom_call.1} parent=1 // pred_check_branch
      %96 = sbr.rel (0) target = $region33
    $region32: #{tpu_custom_call.1} parent=1 // pred_region
      %97 = dma.done [#allocation3], 1024
    $region33: #{tpu_custom_call.1} parent=1 // pred_fallthru
      _
    // Predicated region
    $region34: #{tpu_custom_call.1} parent=1 // pred_check
      _
    $region35: #{tpu_custom_call.1} parent=1 // pred_check_branch
      %99 = sbr.rel (0) target = $region37
    $region36: #{tpu_custom_call.1} parent=1 // pred_region
      %100 = dma.done [#allocation6], 32768
    $region37: #{tpu_custom_call.1} parent=1 // pred_fallthru
      _
    // Predicated region
    $region38: #{tpu_custom_call.1} parent=1 // pred_check
      _
    $region39: #{tpu_custom_call.1} parent=1 // pred_check_branch
      %102 = sbr.rel (0) target = $region41
    $region40: #{tpu_custom_call.1} parent=1 // pred_region
      %103 = dma.done [#allocation6], 128
    $region41: #{tpu_custom_call.1} parent=1 // pred_fallthru
      _
    // Predicated region
    $region42: #{tpu_custom_call.1} parent=1 // pred_check
      _
    $region43: #{tpu_custom_call.1} parent=1 // pred_check_branch
      %105 = sbr.rel (0) target = $region45
    $region44: #{tpu_custom_call.1} parent=1 // pred_region
      %106 = dma.done [#allocation9], 65536
    $region45: #{tpu_custom_call.1} parent=1 // pred_fallthru
      _
    // Predicated region
    $region46: #{tpu_custom_call.1} parent=1 // pred_check
      _
    $region47: #{tpu_custom_call.1} parent=1 // pred_check_branch
      %108 = sbr.rel (0) target = $region49
    $region48: #{tpu_custom_call.1} parent=1 // pred_region
      %109 = dma.done [#allocation9], 128
    $region49: #{tpu_custom_call.1} parent=1 // pred_fallthru
      _
    // Predicated region
    $region50: #{tpu_custom_call.1} parent=1 // pred_check
      _
    $region51: #{tpu_custom_call.1} parent=1 // pred_check_branch
      %111 = sbr.rel (0) target = $region53
    $region52: #{tpu_custom_call.1} parent=1 // pred_region
      %112 = dma.done [#allocation12], 8192
    $region53: #{tpu_custom_call.1} parent=1 // pred_fallthru
      _
    // Predicated region
    $region54: #{tpu_custom_call.1} parent=1 // pred_check
      _
    $region55: #{tpu_custom_call.1} parent=1 // pred_check_branch
      %114 = sbr.rel (0) target = $region57
    $region56: #{tpu_custom_call.1} parent=1 // pred_region
      %115 = dma.done [#allocation12], 16
    $region57: #{tpu_custom_call.1} parent=1 // pred_fallthru
      _
    %v117 = vld [vmem:[#allocation2] sm:$0xff]
    %v118 = vld [vmem:[#allocation2 + $0x8] sm:$0xff]
    %v119 = vld [vmem:[#allocation2 + $0x10] sm:$0xff]
    %v120 = vld [vmem:[#allocation2 + $0x18] sm:$0xff]
    %v121 = vld [vmem:[#allocation2 + $0x20] sm:$0xff]
    %v122 = vld [vmem:[#allocation2 + $0x28] sm:$0xff]
    %v123 = vld [vmem:[#allocation2 + $0x30] sm:$0xff]
    %v124 = vld [vmem:[#allocation2 + $0x38] sm:$0xff]
    %v125 = vpack.c.bf16 %v121, %v117
    %v126 = vpack.c.bf16 %v122, %v118
    %v127 = vpack.c.bf16 %v123, %v119
    %v128 = vpack.c.bf16 %v124, %v120
    %v129 = vld [vmem:[#allocation7] sm:$0xff]
    %v130 = vld [vmem:[#allocation10] sm:$0xff]
    %v131 = vld [vmem:[#allocation13] sm:$0x1]
    %v132 = vld [vmem:[#allocation5] sm:$0xff]
    %v133 = vld [vmem:[#allocation5 + $0x8] sm:$0xff]
    %v134 = vld [vmem:[#allocation5 + $0x10] sm:$0xff]
    %v135 = vld [vmem:[#allocation5 + $0x18] sm:$0xff]
    %v136 = vld [vmem:[#allocation5 + $0x20] sm:$0xff]
    %v137 = vld [vmem:[#allocation5 + $0x28] sm:$0xff]
    %v138 = vld [vmem:[#allocation5 + $0x30] sm:$0xff]
    %v139 = vld [vmem:[#allocation5 + $0x38] sm:$0xff]
    %v140 = vld [vmem:[#allocation5 + $0x40] sm:$0xff]
    %v141 = vld [vmem:[#allocation5 + $0x48] sm:$0xff]
    %v142 = vld [vmem:[#allocation5 + $0x50] sm:$0xff]
    %v143 = vld [vmem:[#allocation5 + $0x58] sm:$0xff]
    %v144 = vld [vmem:[#allocation5 + $0x60] sm:$0xff]
    %v145 = vld [vmem:[#allocation5 + $0x68] sm:$0xff]
    %v146 = vld [vmem:[#allocation5 + $0x70] sm:$0xff]
    %v147 = vld [vmem:[#allocation5 + $0x78] sm:$0xff]
    %v148 = vld [vmem:[#allocation5 + $0x80] sm:$0xff]
    %v149 = vld [vmem:[#allocation5 + $0x88] sm:$0xff]
    %v150 = vld [vmem:[#allocation5 + $0x90] sm:$0xff]
    %v151 = vld [vmem:[#allocation5 + $0x98] sm:$0xff]
    %v152 = vld [vmem:[#allocation5 + $0xa0] sm:$0xff]
    %v153 = vld [vmem:[#allocation5 + $0xa8] sm:$0xff]
    %v154 = vld [vmem:[#allocation5 + $0xb0] sm:$0xff]
    %v155 = vld [vmem:[#allocation5 + $0xb8] sm:$0xff]
    %v156 = vld [vmem:[#allocation5 + $0xc0] sm:$0xff]
    %v157 = vld [vmem:[#allocation5 + $0xc8] sm:$0xff]
    %v158 = vld [vmem:[#allocation5 + $0xd0] sm:$0xff]
    %v159 = vld [vmem:[#allocation5 + $0xd8] sm:$0xff]
    %v160 = vld [vmem:[#allocation5 + $0xe0] sm:$0xff]
    %v161 = vld [vmem:[#allocation5 + $0xe8] sm:$0xff]
    %v162 = vld [vmem:[#allocation5 + $0xf0] sm:$0xff]
    %v163 = vld [vmem:[#allocation5 + $0xf8] sm:$0xff]
    %v164 = vld [vmem:[#allocation5 + $0x100] sm:$0xff]
    %v165 = vld [vmem:[#allocation5 + $0x108] sm:$0xff]
    %v166 = vld [vmem:[#allocation5 + $0x110] sm:$0xff]
    %v167 = vld [vmem:[#allocation5 + $0x118] sm:$0xff]
    %v168 = vld [vmem:[#allocation5 + $0x120] sm:$0xff]
    %v169 = vld [vmem:[#allocation5 + $0x128] sm:$0xff]
    %v170 = vld [vmem:[#allocation5 + $0x130] sm:$0xff]
    %v171 = vld [vmem:[#allocation5 + $0x138] sm:$0xff]
    %v172 = vld [vmem:[#allocation5 + $0x140] sm:$0xff]
    %v173 = vld [vmem:[#allocation5 + $0x148] sm:$0xff]
    %v174 = vld [vmem:[#allocation5 + $0x150] sm:$0xff]
    %v175 = vld [vmem:[#allocation5 + $0x158] sm:$0xff]
    %v176 = vld [vmem:[#allocation5 + $0x160] sm:$0xff]
    %v177 = vld [vmem:[#allocation5 + $0x168] sm:$0xff]
    %v178 = vld [vmem:[#allocation5 + $0x170] sm:$0xff]
    %v179 = vld [vmem:[#allocation5 + $0x178] sm:$0xff]
    %v180 = vld [vmem:[#allocation5 + $0x180] sm:$0xff]
    %v181 = vld [vmem:[#allocation5 + $0x188] sm:$0xff]
    %v182 = vld [vmem:[#allocation5 + $0x190] sm:$0xff]
    %v183 = vld [vmem:[#allocation5 + $0x198] sm:$0xff]
    %v184 = vld [vmem:[#allocation5 + $0x1a0] sm:$0xff]
    %v185 = vld [vmem:[#allocation5 + $0x1a8] sm:$0xff]
    %v186 = vld [vmem:[#allocation5 + $0x1b0] sm:$0xff]
    %v187 = vld [vmem:[#allocation5 + $0x1b8] sm:$0xff]
    %v188 = vld [vmem:[#allocation5 + $0x1c0] sm:$0xff]
    %v189 = vld [vmem:[#allocation5 + $0x1c8] sm:$0xff]
    %v190 = vld [vmem:[#allocation5 + $0x1d0] sm:$0xff]
    %v191 = vld [vmem:[#allocation5 + $0x1d8] sm:$0xff]
    %v192 = vld [vmem:[#allocation5 + $0x1e0] sm:$0xff]
    %v193 = vld [vmem:[#allocation5 + $0x1e8] sm:$0xff]
    %v194 = vld [vmem:[#allocation5 + $0x1f0] sm:$0xff]
    %v195 = vld [vmem:[#allocation5 + $0x1f8] sm:$0xff]
    %v196 = vld [vmem:[#allocation5 + $0x200] sm:$0xff]
    %v197 = vld [vmem:[#allocation5 + $0x208] sm:$0xff]
    %v198 = vld [vmem:[#allocation5 + $0x210] sm:$0xff]
    %v199 = vld [vmem:[#allocation5 + $0x218] sm:$0xff]
    %v200 = vld [vmem:[#allocation5 + $0x220] sm:$0xff]
    %v201 = vld [vmem:[#allocation5 + $0x228] sm:$0xff]
    %v202 = vld [vmem:[#allocation5 + $0x230] sm:$0xff]
    %v203 = vld [vmem:[#allocation5 + $0x238] sm:$0xff]
    %v204 = vld [vmem:[#allocation5 + $0x240] sm:$0xff]
    %v205 = vld [vmem:[#allocation5 + $0x248] sm:$0xff]
    %v206 = vld [vmem:[#allocation5 + $0x250] sm:$0xff]
    %v207 = vld [vmem:[#allocation5 + $0x258] sm:$0xff]
    %v208 = vld [vmem:[#allocation5 + $0x260] sm:$0xff]
    %v209 = vld [vmem:[#allocation5 + $0x268] sm:$0xff]
    %v210 = vld [vmem:[#allocation5 + $0x270] sm:$0xff]
    %v211 = vld [vmem:[#allocation5 + $0x278] sm:$0xff]
    %v212 = vld [vmem:[#allocation5 + $0x280] sm:$0xff]
    %v213 = vld [vmem:[#allocation5 + $0x288] sm:$0xff]
    %v214 = vld [vmem:[#allocation5 + $0x290] sm:$0xff]
    %v215 = vld [vmem:[#allocation5 + $0x298] sm:$0xff]
    %v216 = vld [vmem:[#allocation5 + $0x2a0] sm:$0xff]
    %v217 = vld [vmem:[#allocation5 + $0x2a8] sm:$0xff]
    %v218 = vld [vmem:[#allocation5 + $0x2b0] sm:$0xff]
    %v219 = vld [vmem:[#allocation5 + $0x2b8] sm:$0xff]
    %v220 = vld [vmem:[#allocation5 + $0x2c0] sm:$0xff]
    %v221 = vld [vmem:[#allocation5 + $0x2c8] sm:$0xff]
    %v222 = vld [vmem:[#allocation5 + $0x2d0] sm:$0xff]
    %v223 = vld [vmem:[#allocation5 + $0x2d8] sm:$0xff]
    %v224 = vld [vmem:[#allocation5 + $0x2e0] sm:$0xff]
    %v225 = vld [vmem:[#allocation5 + $0x2e8] sm:$0xff]
    %v226 = vld [vmem:[#allocation5 + $0x2f0] sm:$0xff]
    %v227 = vld [vmem:[#allocation5 + $0x2f8] sm:$0xff]
    %v228 = vld [vmem:[#allocation5 + $0x300] sm:$0xff]
    %v229 = vld [vmem:[#allocation5 + $0x308] sm:$0xff]
    %v230 = vld [vmem:[#allocation5 + $0x310] sm:$0xff]
    %v231 = vld [vmem:[#allocation5 + $0x318] sm:$0xff]
    %v232 = vld [vmem:[#allocation5 + $0x320] sm:$0xff]
    %v233 = vld [vmem:[#allocation5 + $0x328] sm:$0xff]
    %v234 = vld [vmem:[#allocation5 + $0x330] sm:$0xff]
    %v235 = vld [vmem:[#allocation5 + $0x338] sm:$0xff]
    %v236 = vld [vmem:[#allocation5 + $0x340] sm:$0xff]
    %v237 = vld [vmem:[#allocation5 + $0x348] sm:$0xff]
    %v238 = vld [vmem:[#allocation5 + $0x350] sm:$0xff]
    %v239 = vld [vmem:[#allocation5 + $0x358] sm:$0xff]
    %v240 = vld [vmem:[#allocation5 + $0x360] sm:$0xff]
    %v241 = vld [vmem:[#allocation5 + $0x368] sm:$0xff]
    %v242 = vld [vmem:[#allocation5 + $0x370] sm:$0xff]
    %v243 = vld [vmem:[#allocation5 + $0x378] sm:$0xff]
    %v244 = vld [vmem:[#allocation5 + $0x380] sm:$0xff]
    %v245 = vld [vmem:[#allocation5 + $0x388] sm:$0xff]
    %v246 = vld [vmem:[#allocation5 + $0x390] sm:$0xff]
    %v247 = vld [vmem:[#allocation5 + $0x398] sm:$0xff]
    %v248 = vld [vmem:[#allocation5 + $0x3a0] sm:$0xff]
    %v249 = vld [vmem:[#allocation5 + $0x3a8] sm:$0xff]
    %v250 = vld [vmem:[#allocation5 + $0x3b0] sm:$0xff]
    %v251 = vld [vmem:[#allocation5 + $0x3b8] sm:$0xff]
    %v252 = vld [vmem:[#allocation5 + $0x3c0] sm:$0xff]
    %v253 = vld [vmem:[#allocation5 + $0x3c8] sm:$0xff]
    %v254 = vld [vmem:[#allocation5 + $0x3d0] sm:$0xff]
    %v255 = vld [vmem:[#allocation5 + $0x3d8] sm:$0xff]
    %v256 = vld [vmem:[#allocation5 + $0x3e0] sm:$0xff]
    %v257 = vld [vmem:[#allocation5 + $0x3e8] sm:$0xff]
    %v258 = vld [vmem:[#allocation5 + $0x3f0] sm:$0xff]
    %v259 = vld [vmem:[#allocation5 + $0x3f8] sm:$0xff]
    %v260 = vld [vmem:[#allocation5 + $0x400] sm:$0xff]
    %v261 = vld [vmem:[#allocation5 + $0x408] sm:$0xff]
    %v262 = vld [vmem:[#allocation5 + $0x410] sm:$0xff]
    %v263 = vld [vmem:[#allocation5 + $0x418] sm:$0xff]
    %v264 = vld [vmem:[#allocation5 + $0x420] sm:$0xff]
    %v265 = vld [vmem:[#allocation5 + $0x428] sm:$0xff]
    %v266 = vld [vmem:[#allocation5 + $0x430] sm:$0xff]
    %v267 = vld [vmem:[#allocation5 + $0x438] sm:$0xff]
    %v268 = vld [vmem:[#allocation5 + $0x440] sm:$0xff]
    %v269 = vld [vmem:[#allocation5 + $0x448] sm:$0xff]
    %v270 = vld [vmem:[#allocation5 + $0x450] sm:$0xff]
    %v271 = vld [vmem:[#allocation5 + $0x458] sm:$0xff]
    %v272 = vld [vmem:[#allocation5 + $0x460] sm:$0xff]
    %v273 = vld [vmem:[#allocation5 + $0x468] sm:$0xff]
    %v274 = vld [vmem:[#allocation5 + $0x470] sm:$0xff]
    %v275 = vld [vmem:[#allocation5 + $0x478] sm:$0xff]
    %v276 = vld [vmem:[#allocation5 + $0x480] sm:$0xff]
    %v277 = vld [vmem:[#allocation5 + $0x488] sm:$0xff]
    %v278 = vld [vmem:[#allocation5 + $0x490] sm:$0xff]
    %v279 = vld [vmem:[#allocation5 + $0x498] sm:$0xff]
    %v280 = vld [vmem:[#allocation5 + $0x4a0] sm:$0xff]
    %v281 = vld [vmem:[#allocation5 + $0x4a8] sm:$0xff]
    %v282 = vld [vmem:[#allocation5 + $0x4b0] sm:$0xff]
    %v283 = vld [vmem:[#allocation5 + $0x4b8] sm:$0xff]
    %v284 = vld [vmem:[#allocation5 + $0x4c0] sm:$0xff]
    %v285 = vld [vmem:[#allocation5 + $0x4c8] sm:$0xff]
    %v286 = vld [vmem:[#allocation5 + $0x4d0] sm:$0xff]
    %v287 = vld [vmem:[#allocation5 + $0x4d8] sm:$0xff]
    %v288 = vld [vmem:[#allocation5 + $0x4e0] sm:$0xff]
    %v289 = vld [vmem:[#allocation5 + $0x4e8] sm:$0xff]
    %v290 = vld [vmem:[#allocation5 + $0x4f0] sm:$0xff]
    %v291 = vld [vmem:[#allocation5 + $0x4f8] sm:$0xff]
    %v292 = vld [vmem:[#allocation5 + $0x500] sm:$0xff]
    %v293 = vld [vmem:[#allocation5 + $0x508] sm:$0xff]
    %v294 = vld [vmem:[#allocation5 + $0x510] sm:$0xff]
    %v295 = vld [vmem:[#allocation5 + $0x518] sm:$0xff]
    %v296 = vld [vmem:[#allocation5 + $0x520] sm:$0xff]
    %v297 = vld [vmem:[#allocation5 + $0x528] sm:$0xff]
    %v298 = vld [vmem:[#allocation5 + $0x530] sm:$0xff]
    %v299 = vld [vmem:[#allocation5 + $0x538] sm:$0xff]
    %v300 = vld [vmem:[#allocation5 + $0x540] sm:$0xff]
    %v301 = vld [vmem:[#allocation5 + $0x548] sm:$0xff]
    %v302 = vld [vmem:[#allocation5 + $0x550] sm:$0xff]
    %v303 = vld [vmem:[#allocation5 + $0x558] sm:$0xff]
    %v304 = vld [vmem:[#allocation5 + $0x560] sm:$0xff]
    %v305 = vld [vmem:[#allocation5 + $0x568] sm:$0xff]
    %v306 = vld [vmem:[#allocation5 + $0x570] sm:$0xff]
    %v307 = vld [vmem:[#allocation5 + $0x578] sm:$0xff]
    %v308 = vld [vmem:[#allocation5 + $0x580] sm:$0xff]
    %v309 = vld [vmem:[#allocation5 + $0x588] sm:$0xff]
    %v310 = vld [vmem:[#allocation5 + $0x590] sm:$0xff]
    %v311 = vld [vmem:[#allocation5 + $0x598] sm:$0xff]
    %v312 = vld [vmem:[#allocation5 + $0x5a0] sm:$0xff]
    %v313 = vld [vmem:[#allocation5 + $0x5a8] sm:$0xff]
    %v314 = vld [vmem:[#allocation5 + $0x5b0] sm:$0xff]
    %v315 = vld [vmem:[#allocation5 + $0x5b8] sm:$0xff]
    %v316 = vld [vmem:[#allocation5 + $0x5c0] sm:$0xff]
    %v317 = vld [vmem:[#allocation5 + $0x5c8] sm:$0xff]
    %v318 = vld [vmem:[#allocation5 + $0x5d0] sm:$0xff]
    %v319 = vld [vmem:[#allocation5 + $0x5d8] sm:$0xff]
    %v320 = vld [vmem:[#allocation5 + $0x5e0] sm:$0xff]
    %v321 = vld [vmem:[#allocation5 + $0x5e8] sm:$0xff]
    %v322 = vld [vmem:[#allocation5 + $0x5f0] sm:$0xff]
    %v323 = vld [vmem:[#allocation5 + $0x5f8] sm:$0xff]
    %v324 = vld [vmem:[#allocation5 + $0x600] sm:$0xff]
    %v325 = vld [vmem:[#allocation5 + $0x608] sm:$0xff]
    %v326 = vld [vmem:[#allocation5 + $0x610] sm:$0xff]
    %v327 = vld [vmem:[#allocation5 + $0x618] sm:$0xff]
    %v328 = vld [vmem:[#allocation5 + $0x620] sm:$0xff]
    %v329 = vld [vmem:[#allocation5 + $0x628] sm:$0xff]
    %v330 = vld [vmem:[#allocation5 + $0x630] sm:$0xff]
    %v331 = vld [vmem:[#allocation5 + $0x638] sm:$0xff]
    %v332 = vld [vmem:[#allocation5 + $0x640] sm:$0xff]
    %v333 = vld [vmem:[#allocation5 + $0x648] sm:$0xff]
    %v334 = vld [vmem:[#allocation5 + $0x650] sm:$0xff]
    %v335 = vld [vmem:[#allocation5 + $0x658] sm:$0xff]
    %v336 = vld [vmem:[#allocation5 + $0x660] sm:$0xff]
    %v337 = vld [vmem:[#allocation5 + $0x668] sm:$0xff]
    %v338 = vld [vmem:[#allocation5 + $0x670] sm:$0xff]
    %v339 = vld [vmem:[#allocation5 + $0x678] sm:$0xff]
    %v340 = vld [vmem:[#allocation5 + $0x680] sm:$0xff]
    %v341 = vld [vmem:[#allocation5 + $0x688] sm:$0xff]
    %v342 = vld [vmem:[#allocation5 + $0x690] sm:$0xff]
    %v343 = vld [vmem:[#allocation5 + $0x698] sm:$0xff]
    %v344 = vld [vmem:[#allocation5 + $0x6a0] sm:$0xff]
    %v345 = vld [vmem:[#allocation5 + $0x6a8] sm:$0xff]
    %v346 = vld [vmem:[#allocation5 + $0x6b0] sm:$0xff]
    %v347 = vld [vmem:[#allocation5 + $0x6b8] sm:$0xff]
    %v348 = vld [vmem:[#allocation5 + $0x6c0] sm:$0xff]
    %v349 = vld [vmem:[#allocation5 + $0x6c8] sm:$0xff]
    %v350 = vld [vmem:[#allocation5 + $0x6d0] sm:$0xff]
    %v351 = vld [vmem:[#allocation5 + $0x6d8] sm:$0xff]
    %v352 = vld [vmem:[#allocation5 + $0x6e0] sm:$0xff]
    %v353 = vld [vmem:[#allocation5 + $0x6e8] sm:$0xff]
    %v354 = vld [vmem:[#allocation5 + $0x6f0] sm:$0xff]
    %v355 = vld [vmem:[#allocation5 + $0x6f8] sm:$0xff]
    %v356 = vld [vmem:[#allocation5 + $0x700] sm:$0xff]
    %v357 = vld [vmem:[#allocation5 + $0x708] sm:$0xff]
    %v358 = vld [vmem:[#allocation5 + $0x710] sm:$0xff]
    %v359 = vld [vmem:[#allocation5 + $0x718] sm:$0xff]
    %v360 = vld [vmem:[#allocation5 + $0x720] sm:$0xff]
    %v361 = vld [vmem:[#allocation5 + $0x728] sm:$0xff]
    %v362 = vld [vmem:[#allocation5 + $0x730] sm:$0xff]
    %v363 = vld [vmem:[#allocation5 + $0x738] sm:$0xff]
    %v364 = vld [vmem:[#allocation5 + $0x740] sm:$0xff]
    %v365 = vld [vmem:[#allocation5 + $0x748] sm:$0xff]
    %v366 = vld [vmem:[#allocation5 + $0x750] sm:$0xff]
    %v367 = vld [vmem:[#allocation5 + $0x758] sm:$0xff]
    %v368 = vld [vmem:[#allocation5 + $0x760] sm:$0xff]
    %v369 = vld [vmem:[#allocation5 + $0x768] sm:$0xff]
    %v370 = vld [vmem:[#allocation5 + $0x770] sm:$0xff]
    %v371 = vld [vmem:[#allocation5 + $0x778] sm:$0xff]
    %v372 = vld [vmem:[#allocation5 + $0x780] sm:$0xff]
    %v373 = vld [vmem:[#allocation5 + $0x788] sm:$0xff]
    %v374 = vld [vmem:[#allocation5 + $0x790] sm:$0xff]
    %v375 = vld [vmem:[#allocation5 + $0x798] sm:$0xff]
    %v376 = vld [vmem:[#allocation5 + $0x7a0] sm:$0xff]
    %v377 = vld [vmem:[#allocation5 + $0x7a8] sm:$0xff]
    %v378 = vld [vmem:[#allocation5 + $0x7b0] sm:$0xff]
    %v379 = vld [vmem:[#allocation5 + $0x7b8] sm:$0xff]
    %v380 = vld [vmem:[#allocation5 + $0x7c0] sm:$0xff]
    %v381 = vld [vmem:[#allocation5 + $0x7c8] sm:$0xff]
    %v382 = vld [vmem:[#allocation5 + $0x7d0] sm:$0xff]
    %v383 = vld [vmem:[#allocation5 + $0x7d8] sm:$0xff]
    %v384 = vld [vmem:[#allocation5 + $0x7e0] sm:$0xff]
    %v385 = vld [vmem:[#allocation5 + $0x7e8] sm:$0xff]
    %v386 = vld [vmem:[#allocation5 + $0x7f0] sm:$0xff]
    %v387 = vld [vmem:[#allocation5 + $0x7f8] sm:$0xff]
    %v389 = vlaneseq
    %v390 = vshrl.u32 %v389, 7
    %v391 = vsub.s32 0, %v390
    %v392 = vrot.slane %v129, %v391
    %v393 = vlaneseq
    %v394 = vshrl.u32 %v393, 7
    %v395 = vsub.s32 1, %v394
    %v396 = vrot.slane %v129, %v395
    %v397 = vlaneseq
    %v398 = vshrl.u32 %v397, 7
    %v399 = vsub.s32 2, %v398
    %v400 = vrot.slane %v129, %v399
    %v401 = vlaneseq
    %v402 = vshrl.u32 %v401, 7
    %v403 = vsub.s32 3, %v402
    %v404 = vrot.slane %v129, %v403
    %v405 = vlaneseq
    %v406 = vshrl.u32 %v405, 7
    %v407 = vsub.s32 4, %v406
    %v408 = vrot.slane %v129, %v407
    %v409 = vlaneseq
    %v410 = vshrl.u32 %v409, 7
    %v411 = vsub.s32 5, %v410
    %v412 = vrot.slane %v129, %v411
    %v413 = vlaneseq
    %v414 = vshrl.u32 %v413, 7
    %v415 = vsub.s32 6, %v414
    %v416 = vrot.slane %v129, %v415
    %v417 = vlaneseq
    %v418 = vshrl.u32 %v417, 7
    %v419 = vsub.s32 7, %v418
    %v420 = vrot.slane %v129, %v419
    %v685 = vunpack.c.l.b16 %v132
    %v686 = vunpack.c.h.b16 %v132
    %v687 = vunpack.c.l.b16 %v133
    %v688 = vunpack.c.h.b16 %v133
    %v689 = vunpack.c.l.b16 %v134
    %v690 = vunpack.c.h.b16 %v134
    %v691 = vunpack.c.l.b16 %v135
    %v692 = vunpack.c.h.b16 %v135
    %v693 = vunpack.c.l.b16 %v136
    %v694 = vunpack.c.h.b16 %v136
    %v695 = vunpack.c.l.b16 %v137
    %v696 = vunpack.c.h.b16 %v137
    %v697 = vunpack.c.l.b16 %v138
    %v698 = vunpack.c.h.b16 %v138
    %v699 = vunpack.c.l.b16 %v139
    %v700 = vunpack.c.h.b16 %v139
    %v701 = vunpack.c.l.b16 %v140
    %v702 = vunpack.c.h.b16 %v140
    %v703 = vunpack.c.l.b16 %v141
    %v704 = vunpack.c.h.b16 %v141
    %v705 = vunpack.c.l.b16 %v142
    %v706 = vunpack.c.h.b16 %v142
    %v707 = vunpack.c.l.b16 %v143
    %v708 = vunpack.c.h.b16 %v143
    %v709 = vunpack.c.l.b16 %v144
    %v710 = vunpack.c.h.b16 %v144
    %v711 = vunpack.c.l.b16 %v145
    %v712 = vunpack.c.h.b16 %v145
    %v713 = vunpack.c.l.b16 %v146
    %v714 = vunpack.c.h.b16 %v146
    %v715 = vunpack.c.l.b16 %v147
    %v716 = vunpack.c.h.b16 %v147
    %v717 = vunpack.c.l.b16 %v148
    %v718 = vunpack.c.h.b16 %v148
    %v719 = vunpack.c.l.b16 %v149
    %v720 = vunpack.c.h.b16 %v149
    %v721 = vunpack.c.l.b16 %v150
    %v722 = vunpack.c.h.b16 %v150
    %v723 = vunpack.c.l.b16 %v151
    %v724 = vunpack.c.h.b16 %v151
    %v725 = vunpack.c.l.b16 %v152
    %v726 = vunpack.c.h.b16 %v152
    %v727 = vunpack.c.l.b16 %v153
    %v728 = vunpack.c.h.b16 %v153
    %v729 = vunpack.c.l.b16 %v154
    %v730 = vunpack.c.h.b16 %v154
    %v731 = vunpack.c.l.b16 %v155
    %v732 = vunpack.c.h.b16 %v155
    %v733 = vunpack.c.l.b16 %v156
    %v734 = vunpack.c.h.b16 %v156
    %v735 = vunpack.c.l.b16 %v157
    %v736 = vunpack.c.h.b16 %v157
    %v737 = vunpack.c.l.b16 %v158
    %v738 = vunpack.c.h.b16 %v158
    %v739 = vunpack.c.l.b16 %v159
    %v740 = vunpack.c.h.b16 %v159
    %v741 = vunpack.c.l.b16 %v160
    %v742 = vunpack.c.h.b16 %v160
    %v743 = vunpack.c.l.b16 %v161
    %v744 = vunpack.c.h.b16 %v161
    %v745 = vunpack.c.l.b16 %v162
    %v746 = vunpack.c.h.b16 %v162
    %v747 = vunpack.c.l.b16 %v163
    %v748 = vunpack.c.h.b16 %v163
    %v749 = vunpack.c.l.b16 %v164
    %v750 = vunpack.c.h.b16 %v164
    %v751 = vunpack.c.l.b16 %v165
    %v752 = vunpack.c.h.b16 %v165
    %v753 = vunpack.c.l.b16 %v166
    %v754 = vunpack.c.h.b16 %v166
    %v755 = vunpack.c.l.b16 %v167
    %v756 = vunpack.c.h.b16 %v167
    %v757 = vunpack.c.l.b16 %v168
    %v758 = vunpack.c.h.b16 %v168
    %v759 = vunpack.c.l.b16 %v169
    %v760 = vunpack.c.h.b16 %v169
    %v761 = vunpack.c.l.b16 %v170
    %v762 = vunpack.c.h.b16 %v170
    %v763 = vunpack.c.l.b16 %v171
    %v764 = vunpack.c.h.b16 %v171
    %v765 = vunpack.c.l.b16 %v172
    %v766 = vunpack.c.h.b16 %v172
    %v767 = vunpack.c.l.b16 %v173
    %v768 = vunpack.c.h.b16 %v173
    %v769 = vunpack.c.l.b16 %v174
    %v770 = vunpack.c.h.b16 %v174
    %v771 = vunpack.c.l.b16 %v175
    %v772 = vunpack.c.h.b16 %v175
    %v773 = vunpack.c.l.b16 %v176
    %v774 = vunpack.c.h.b16 %v176
    %v775 = vunpack.c.l.b16 %v177
    %v776 = vunpack.c.h.b16 %v177
    %v777 = vunpack.c.l.b16 %v178
    %v778 = vunpack.c.h.b16 %v178
    %v779 = vunpack.c.l.b16 %v179
    %v780 = vunpack.c.h.b16 %v179
    %v781 = vunpack.c.l.b16 %v180
    %v782 = vunpack.c.h.b16 %v180
    %v783 = vunpack.c.l.b16 %v181
    %v784 = vunpack.c.h.b16 %v181
    %v785 = vunpack.c.l.b16 %v182
    %v786 = vunpack.c.h.b16 %v182
    %v787 = vunpack.c.l.b16 %v183
    %v788 = vunpack.c.h.b16 %v183
    %v789 = vunpack.c.l.b16 %v184
    %v790 = vunpack.c.h.b16 %v184
    %v791 = vunpack.c.l.b16 %v185
    %v792 = vunpack.c.h.b16 %v185
    %v793 = vunpack.c.l.b16 %v186
    %v794 = vunpack.c.h.b16 %v186
    %v795 = vunpack.c.l.b16 %v187
    %v796 = vunpack.c.h.b16 %v187
    %v797 = vunpack.c.l.b16 %v188
    %v798 = vunpack.c.h.b16 %v188
    %v799 = vunpack.c.l.b16 %v189
    %v800 = vunpack.c.h.b16 %v189
    %v801 = vunpack.c.l.b16 %v190
    %v802 = vunpack.c.h.b16 %v190
    %v803 = vunpack.c.l.b16 %v191
    %v804 = vunpack.c.h.b16 %v191
    %v805 = vunpack.c.l.b16 %v192
    %v806 = vunpack.c.h.b16 %v192
    %v807 = vunpack.c.l.b16 %v193
    %v808 = vunpack.c.h.b16 %v193
    %v809 = vunpack.c.l.b16 %v194
    %v810 = vunpack.c.h.b16 %v194
    %v811 = vunpack.c.l.b16 %v195
    %v812 = vunpack.c.h.b16 %v195
    %v813 = vunpack.c.l.b16 %v196
    %v814 = vunpack.c.h.b16 %v196
    %v815 = vunpack.c.l.b16 %v197
    %v816 = vunpack.c.h.b16 %v197
    %v817 = vunpack.c.l.b16 %v198
    %v818 = vunpack.c.h.b16 %v198
    %v819 = vunpack.c.l.b16 %v199
    %v820 = vunpack.c.h.b16 %v199
    %v821 = vunpack.c.l.b16 %v200
    %v822 = vunpack.c.h.b16 %v200
    %v823 = vunpack.c.l.b16 %v201
    %v824 = vunpack.c.h.b16 %v201
    %v825 = vunpack.c.l.b16 %v202
    %v826 = vunpack.c.h.b16 %v202
    %v827 = vunpack.c.l.b16 %v203
    %v828 = vunpack.c.h.b16 %v203
    %v829 = vunpack.c.l.b16 %v204
    %v830 = vunpack.c.h.b16 %v204
    %v831 = vunpack.c.l.b16 %v205
    %v832 = vunpack.c.h.b16 %v205
    %v833 = vunpack.c.l.b16 %v206
    %v834 = vunpack.c.h.b16 %v206
    %v835 = vunpack.c.l.b16 %v207
    %v836 = vunpack.c.h.b16 %v207
    %v837 = vunpack.c.l.b16 %v208
    %v838 = vunpack.c.h.b16 %v208
    %v839 = vunpack.c.l.b16 %v209
    %v840 = vunpack.c.h.b16 %v209
    %v841 = vunpack.c.l.b16 %v210
    %v842 = vunpack.c.h.b16 %v210
    %v843 = vunpack.c.l.b16 %v211
    %v844 = vunpack.c.h.b16 %v211
    %v845 = vunpack.c.l.b16 %v212
    %v846 = vunpack.c.h.b16 %v212
    %v847 = vunpack.c.l.b16 %v213
    %v848 = vunpack.c.h.b16 %v213
    %v849 = vunpack.c.l.b16 %v214
    %v850 = vunpack.c.h.b16 %v214
    %v851 = vunpack.c.l.b16 %v215
    %v852 = vunpack.c.h.b16 %v215
    %v853 = vunpack.c.l.b16 %v216
    %v854 = vunpack.c.h.b16 %v216
    %v855 = vunpack.c.l.b16 %v217
    %v856 = vunpack.c.h.b16 %v217
    %v857 = vunpack.c.l.b16 %v218
    %v858 = vunpack.c.h.b16 %v218
    %v859 = vunpack.c.l.b16 %v219
    %v860 = vunpack.c.h.b16 %v219
    %v861 = vunpack.c.l.b16 %v220
    %v862 = vunpack.c.h.b16 %v220
    %v863 = vunpack.c.l.b16 %v221
    %v864 = vunpack.c.h.b16 %v221
    %v865 = vunpack.c.l.b16 %v222
    %v866 = vunpack.c.h.b16 %v222
    %v867 = vunpack.c.l.b16 %v223
    %v868 = vunpack.c.h.b16 %v223
    %v869 = vunpack.c.l.b16 %v224
    %v870 = vunpack.c.h.b16 %v224
    %v871 = vunpack.c.l.b16 %v225
    %v872 = vunpack.c.h.b16 %v225
    %v873 = vunpack.c.l.b16 %v226
    %v874 = vunpack.c.h.b16 %v226
    %v875 = vunpack.c.l.b16 %v227
    %v876 = vunpack.c.h.b16 %v227
    %v877 = vunpack.c.l.b16 %v228
    %v878 = vunpack.c.h.b16 %v228
    %v879 = vunpack.c.l.b16 %v229
    %v880 = vunpack.c.h.b16 %v229
    %v881 = vunpack.c.l.b16 %v230
    %v882 = vunpack.c.h.b16 %v230
    %v883 = vunpack.c.l.b16 %v231
    %v884 = vunpack.c.h.b16 %v231
    %v885 = vunpack.c.l.b16 %v232
    %v886 = vunpack.c.h.b16 %v232
    %v887 = vunpack.c.l.b16 %v233
    %v888 = vunpack.c.h.b16 %v233
    %v889 = vunpack.c.l.b16 %v234
    %v890 = vunpack.c.h.b16 %v234
    %v891 = vunpack.c.l.b16 %v235
    %v892 = vunpack.c.h.b16 %v235
    %v893 = vunpack.c.l.b16 %v236
    %v894 = vunpack.c.h.b16 %v236
    %v895 = vunpack.c.l.b16 %v237
    %v896 = vunpack.c.h.b16 %v237
    %v897 = vunpack.c.l.b16 %v238
    %v898 = vunpack.c.h.b16 %v238
    %v899 = vunpack.c.l.b16 %v239
    %v900 = vunpack.c.h.b16 %v239
    %v901 = vunpack.c.l.b16 %v240
    %v902 = vunpack.c.h.b16 %v240
    %v903 = vunpack.c.l.b16 %v241
    %v904 = vunpack.c.h.b16 %v241
    %v905 = vunpack.c.l.b16 %v242
    %v906 = vunpack.c.h.b16 %v242
    %v907 = vunpack.c.l.b16 %v243
    %v908 = vunpack.c.h.b16 %v243
    %v909 = vunpack.c.l.b16 %v244
    %v910 = vunpack.c.h.b16 %v244
    %v911 = vunpack.c.l.b16 %v245
    %v912 = vunpack.c.h.b16 %v245
    %v913 = vunpack.c.l.b16 %v246
    %v914 = vunpack.c.h.b16 %v246
    %v915 = vunpack.c.l.b16 %v247
    %v916 = vunpack.c.h.b16 %v247
    %v917 = vunpack.c.l.b16 %v248
    %v918 = vunpack.c.h.b16 %v248
    %v919 = vunpack.c.l.b16 %v249
    %v920 = vunpack.c.h.b16 %v249
    %v921 = vunpack.c.l.b16 %v250
    %v922 = vunpack.c.h.b16 %v250
    %v923 = vunpack.c.l.b16 %v251
    %v924 = vunpack.c.h.b16 %v251
    %v925 = vunpack.c.l.b16 %v252
    %v926 = vunpack.c.h.b16 %v252
    %v927 = vunpack.c.l.b16 %v253
    %v928 = vunpack.c.h.b16 %v253
    %v929 = vunpack.c.l.b16 %v254
    %v930 = vunpack.c.h.b16 %v254
    %v931 = vunpack.c.l.b16 %v255
    %v932 = vunpack.c.h.b16 %v255
    %v933 = vunpack.c.l.b16 %v256
    %v934 = vunpack.c.h.b16 %v256
    %v935 = vunpack.c.l.b16 %v257
    %v936 = vunpack.c.h.b16 %v257
    %v937 = vunpack.c.l.b16 %v258
    %v938 = vunpack.c.h.b16 %v258
    %v939 = vunpack.c.l.b16 %v259
    %v940 = vunpack.c.h.b16 %v259
    %v941 = vunpack.c.l.b16 %v260
    %v942 = vunpack.c.h.b16 %v260
    %v943 = vunpack.c.l.b16 %v261
    %v944 = vunpack.c.h.b16 %v261
    %v945 = vunpack.c.l.b16 %v262
    %v946 = vunpack.c.h.b16 %v262
    %v947 = vunpack.c.l.b16 %v263
    %v948 = vunpack.c.h.b16 %v263
    %v949 = vunpack.c.l.b16 %v264
    %v950 = vunpack.c.h.b16 %v264
    %v951 = vunpack.c.l.b16 %v265
    %v952 = vunpack.c.h.b16 %v265
    %v953 = vunpack.c.l.b16 %v266
    %v954 = vunpack.c.h.b16 %v266
    %v955 = vunpack.c.l.b16 %v267
    %v956 = vunpack.c.h.b16 %v267
    %v957 = vunpack.c.l.b16 %v268
    %v958 = vunpack.c.h.b16 %v268
    %v959 = vunpack.c.l.b16 %v269
    %v960 = vunpack.c.h.b16 %v269
    %v961 = vunpack.c.l.b16 %v270
    %v962 = vunpack.c.h.b16 %v270
    %v963 = vunpack.c.l.b16 %v271
    %v964 = vunpack.c.h.b16 %v271
    %v965 = vunpack.c.l.b16 %v272
    %v966 = vunpack.c.h.b16 %v272
    %v967 = vunpack.c.l.b16 %v273
    %v968 = vunpack.c.h.b16 %v273
    %v969 = vunpack.c.l.b16 %v274
    %v970 = vunpack.c.h.b16 %v274
    %v971 = vunpack.c.l.b16 %v275
    %v972 = vunpack.c.h.b16 %v275
    %v973 = vunpack.c.l.b16 %v276
    %v974 = vunpack.c.h.b16 %v276
    %v975 = vunpack.c.l.b16 %v277
    %v976 = vunpack.c.h.b16 %v277
    %v977 = vunpack.c.l.b16 %v278
    %v978 = vunpack.c.h.b16 %v278
    %v979 = vunpack.c.l.b16 %v279
    %v980 = vunpack.c.h.b16 %v279
    %v981 = vunpack.c.l.b16 %v280
    %v982 = vunpack.c.h.b16 %v280
    %v983 = vunpack.c.l.b16 %v281
    %v984 = vunpack.c.h.b16 %v281
    %v985 = vunpack.c.l.b16 %v282
    %v986 = vunpack.c.h.b16 %v282
    %v987 = vunpack.c.l.b16 %v283
    %v988 = vunpack.c.h.b16 %v283
    %v989 = vunpack.c.l.b16 %v284
    %v990 = vunpack.c.h.b16 %v284
    %v991 = vunpack.c.l.b16 %v285
    %v992 = vunpack.c.h.b16 %v285
    %v993 = vunpack.c.l.b16 %v286
    %v994 = vunpack.c.h.b16 %v286
    %v995 = vunpack.c.l.b16 %v287
    %v996 = vunpack.c.h.b16 %v287
    %v997 = vunpack.c.l.b16 %v288
    %v998 = vunpack.c.h.b16 %v288
    %v999 = vunpack.c.l.b16 %v289
    %v1000 = vunpack.c.h.b16 %v289
    %v1001 = vunpack.c.l.b16 %v290
    %v1002 = vunpack.c.h.b16 %v290
    %v1003 = vunpack.c.l.b16 %v291
    %v1004 = vunpack.c.h.b16 %v291
    %v1005 = vunpack.c.l.b16 %v292
    %v1006 = vunpack.c.h.b16 %v292
    %v1007 = vunpack.c.l.b16 %v293
    %v1008 = vunpack.c.h.b16 %v293
    %v1009 = vunpack.c.l.b16 %v294
    %v1010 = vunpack.c.h.b16 %v294
    %v1011 = vunpack.c.l.b16 %v295
    %v1012 = vunpack.c.h.b16 %v295
    %v1013 = vunpack.c.l.b16 %v296
    %v1014 = vunpack.c.h.b16 %v296
    %v1015 = vunpack.c.l.b16 %v297
    %v1016 = vunpack.c.h.b16 %v297
    %v1017 = vunpack.c.l.b16 %v298
    %v1018 = vunpack.c.h.b16 %v298
    %v1019 = vunpack.c.l.b16 %v299
    %v1020 = vunpack.c.h.b16 %v299
    %v1021 = vunpack.c.l.b16 %v300
    %v1022 = vunpack.c.h.b16 %v300
    %v1023 = vunpack.c.l.b16 %v301
    %v1024 = vunpack.c.h.b16 %v301
    %v1025 = vunpack.c.l.b16 %v302
    %v1026 = vunpack.c.h.b16 %v302
    %v1027 = vunpack.c.l.b16 %v303
    %v1028 = vunpack.c.h.b16 %v303
    %v1029 = vunpack.c.l.b16 %v304
    %v1030 = vunpack.c.h.b16 %v304
    %v1031 = vunpack.c.l.b16 %v305
    %v1032 = vunpack.c.h.b16 %v305
    %v1033 = vunpack.c.l.b16 %v306
    %v1034 = vunpack.c.h.b16 %v306
    %v1035 = vunpack.c.l.b16 %v307
    %v1036 = vunpack.c.h.b16 %v307
    %v1037 = vunpack.c.l.b16 %v308
    %v1038 = vunpack.c.h.b16 %v308
    %v1039 = vunpack.c.l.b16 %v309
    %v1040 = vunpack.c.h.b16 %v309
    %v1041 = vunpack.c.l.b16 %v310
    %v1042 = vunpack.c.h.b16 %v310
    %v1043 = vunpack.c.l.b16 %v311
    %v1044 = vunpack.c.h.b16 %v311
    %v1045 = vunpack.c.l.b16 %v312
    %v1046 = vunpack.c.h.b16 %v312
    %v1047 = vunpack.c.l.b16 %v313
    %v1048 = vunpack.c.h.b16 %v313
    %v1049 = vunpack.c.l.b16 %v314
    %v1050 = vunpack.c.h.b16 %v314
    %v1051 = vunpack.c.l.b16 %v315
    %v1052 = vunpack.c.h.b16 %v315
    %v1053 = vunpack.c.l.b16 %v316
    %v1054 = vunpack.c.h.b16 %v316
    %v1055 = vunpack.c.l.b16 %v317
    %v1056 = vunpack.c.h.b16 %v317
    %v1057 = vunpack.c.l.b16 %v318
    %v1058 = vunpack.c.h.b16 %v318
    %v1059 = vunpack.c.l.b16 %v319
    %v1060 = vunpack.c.h.b16 %v319
    %v1061 = vunpack.c.l.b16 %v320
    %v1062 = vunpack.c.h.b16 %v320
    %v1063 = vunpack.c.l.b16 %v321
    %v1064 = vunpack.c.h.b16 %v321
    %v1065 = vunpack.c.l.b16 %v322
    %v1066 = vunpack.c.h.b16 %v322
    %v1067 = vunpack.c.l.b16 %v323
    %v1068 = vunpack.c.h.b16 %v323
    %v1069 = vunpack.c.l.b16 %v324
    %v1070 = vunpack.c.h.b16 %v324
    %v1071 = vunpack.c.l.b16 %v325
    %v1072 = vunpack.c.h.b16 %v325
    %v1073 = vunpack.c.l.b16 %v326
    %v1074 = vunpack.c.h.b16 %v326
    %v1075 = vunpack.c.l.b16 %v327
    %v1076 = vunpack.c.h.b16 %v327
    %v1077 = vunpack.c.l.b16 %v328
    %v1078 = vunpack.c.h.b16 %v328
    %v1079 = vunpack.c.l.b16 %v329
    %v1080 = vunpack.c.h.b16 %v329
    %v1081 = vunpack.c.l.b16 %v330
    %v1082 = vunpack.c.h.b16 %v330
    %v1083 = vunpack.c.l.b16 %v331
    %v1084 = vunpack.c.h.b16 %v331
    %v1085 = vunpack.c.l.b16 %v332
    %v1086 = vunpack.c.h.b16 %v332
    %v1087 = vunpack.c.l.b16 %v333
    %v1088 = vunpack.c.h.b16 %v333
    %v1089 = vunpack.c.l.b16 %v334
    %v1090 = vunpack.c.h.b16 %v334
    %v1091 = vunpack.c.l.b16 %v335
    %v1092 = vunpack.c.h.b16 %v335
    %v1093 = vunpack.c.l.b16 %v336
    %v1094 = vunpack.c.h.b16 %v336
    %v1095 = vunpack.c.l.b16 %v337
    %v1096 = vunpack.c.h.b16 %v337
    %v1097 = vunpack.c.l.b16 %v338
    %v1098 = vunpack.c.h.b16 %v338
    %v1099 = vunpack.c.l.b16 %v339
    %v1100 = vunpack.c.h.b16 %v339
    %v1101 = vunpack.c.l.b16 %v340
    %v1102 = vunpack.c.h.b16 %v340
    %v1103 = vunpack.c.l.b16 %v341
    %v1104 = vunpack.c.h.b16 %v341
    %v1105 = vunpack.c.l.b16 %v342
    %v1106 = vunpack.c.h.b16 %v342
    %v1107 = vunpack.c.l.b16 %v343
    %v1108 = vunpack.c.h.b16 %v343
    %v1109 = vunpack.c.l.b16 %v344
    %v1110 = vunpack.c.h.b16 %v344
    %v1111 = vunpack.c.l.b16 %v345
    %v1112 = vunpack.c.h.b16 %v345
    %v1113 = vunpack.c.l.b16 %v346
    %v1114 = vunpack.c.h.b16 %v346
    %v1115 = vunpack.c.l.b16 %v347
    %v1116 = vunpack.c.h.b16 %v347
    %v1117 = vunpack.c.l.b16 %v348
    %v1118 = vunpack.c.h.b16 %v348
    %v1119 = vunpack.c.l.b16 %v349
    %v1120 = vunpack.c.h.b16 %v349
    %v1121 = vunpack.c.l.b16 %v350
    %v1122 = vunpack.c.h.b16 %v350
    %v1123 = vunpack.c.l.b16 %v351
    %v1124 = vunpack.c.h.b16 %v351
    %v1125 = vunpack.c.l.b16 %v352
    %v1126 = vunpack.c.h.b16 %v352
    %v1127 = vunpack.c.l.b16 %v353
    %v1128 = vunpack.c.h.b16 %v353
    %v1129 = vunpack.c.l.b16 %v354
    %v1130 = vunpack.c.h.b16 %v354
    %v1131 = vunpack.c.l.b16 %v355
    %v1132 = vunpack.c.h.b16 %v355
    %v1133 = vunpack.c.l.b16 %v356
    %v1134 = vunpack.c.h.b16 %v356
    %v1135 = vunpack.c.l.b16 %v357
    %v1136 = vunpack.c.h.b16 %v357
    %v1137 = vunpack.c.l.b16 %v358
    %v1138 = vunpack.c.h.b16 %v358
    %v1139 = vunpack.c.l.b16 %v359
    %v1140 = vunpack.c.h.b16 %v359
    %v1141 = vunpack.c.l.b16 %v360
    %v1142 = vunpack.c.h.b16 %v360
    %v1143 = vunpack.c.l.b16 %v361
    %v1144 = vunpack.c.h.b16 %v361
    %v1145 = vunpack.c.l.b16 %v362
    %v1146 = vunpack.c.h.b16 %v362
    %v1147 = vunpack.c.l.b16 %v363
    %v1148 = vunpack.c.h.b16 %v363
    %v1149 = vunpack.c.l.b16 %v364
    %v1150 = vunpack.c.h.b16 %v364
    %v1151 = vunpack.c.l.b16 %v365
    %v1152 = vunpack.c.h.b16 %v365
    %v1153 = vunpack.c.l.b16 %v366
    %v1154 = vunpack.c.h.b16 %v366
    %v1155 = vunpack.c.l.b16 %v367
    %v1156 = vunpack.c.h.b16 %v367
    %v1157 = vunpack.c.l.b16 %v368
    %v1158 = vunpack.c.h.b16 %v368
    %v1159 = vunpack.c.l.b16 %v369
    %v1160 = vunpack.c.h.b16 %v369
    %v1161 = vunpack.c.l.b16 %v370
    %v1162 = vunpack.c.h.b16 %v370
    %v1163 = vunpack.c.l.b16 %v371
    %v1164 = vunpack.c.h.b16 %v371
    %v1165 = vunpack.c.l.b16 %v372
    %v1166 = vunpack.c.h.b16 %v372
    %v1167 = vunpack.c.l.b16 %v373
    %v1168 = vunpack.c.h.b16 %v373
    %v1169 = vunpack.c.l.b16 %v374
    %v1170 = vunpack.c.h.b16 %v374
    %v1171 = vunpack.c.l.b16 %v375
    %v1172 = vunpack.c.h.b16 %v375
    %v1173 = vunpack.c.l.b16 %v376
    %v1174 = vunpack.c.h.b16 %v376
    %v1175 = vunpack.c.l.b16 %v377
    %v1176 = vunpack.c.h.b16 %v377
    %v1177 = vunpack.c.l.b16 %v378
    %v1178 = vunpack.c.h.b16 %v378
    %v1179 = vunpack.c.l.b16 %v379
    %v1180 = vunpack.c.h.b16 %v379
    %v1181 = vunpack.c.l.b16 %v380
    %v1182 = vunpack.c.h.b16 %v380
    %v1183 = vunpack.c.l.b16 %v381
    %v1184 = vunpack.c.h.b16 %v381
    %v1185 = vunpack.c.l.b16 %v382
    %v1186 = vunpack.c.h.b16 %v382
    %v1187 = vunpack.c.l.b16 %v383
    %v1188 = vunpack.c.h.b16 %v383
    %v1189 = vunpack.c.l.b16 %v384
    %v1190 = vunpack.c.h.b16 %v384
    %v1191 = vunpack.c.l.b16 %v385
    %v1192 = vunpack.c.h.b16 %v385
    %v1193 = vunpack.c.l.b16 %v386
    %v1194 = vunpack.c.h.b16 %v386
    %v1195 = vunpack.c.l.b16 %v387
    %v1196 = vunpack.c.h.b16 %v387
    %v1197 = vpack.c.b16 %v693, %v685
    %v1198 = vpack.c.b16 %v694, %v686
    %v1199 = vpack.c.b16 %v695, %v687
    %v1200 = vpack.c.b16 %v696, %v688
    %v1201 = vpack.c.b16 %v697, %v689
    %v1202 = vpack.c.b16 %v698, %v690
    %v1203 = vpack.c.b16 %v699, %v691
    %v1204 = vpack.c.b16 %v700, %v692
    %v1205 = vpack.c.b16 %v709, %v701
    %v1206 = vpack.c.b16 %v710, %v702
    %v1207 = vpack.c.b16 %v711, %v703
    %v1208 = vpack.c.b16 %v712, %v704
    %v1209 = vpack.c.b16 %v713, %v705
    %v1210 = vpack.c.b16 %v714, %v706
    %v1211 = vpack.c.b16 %v715, %v707
    %v1212 = vpack.c.b16 %v716, %v708
    %v1213 = vpack.c.b16 %v725, %v717
    %v1214 = vpack.c.b16 %v726, %v718
    %v1215 = vpack.c.b16 %v727, %v719
    %v1216 = vpack.c.b16 %v728, %v720
    %v1217 = vpack.c.b16 %v729, %v721
    %v1218 = vpack.c.b16 %v730, %v722
    %v1219 = vpack.c.b16 %v731, %v723
    %v1220 = vpack.c.b16 %v732, %v724
    %v1221 = vpack.c.b16 %v741, %v733
    %v1222 = vpack.c.b16 %v742, %v734
    %v1223 = vpack.c.b16 %v743, %v735
    %v1224 = vpack.c.b16 %v744, %v736
    %v1225 = vpack.c.b16 %v745, %v737
    %v1226 = vpack.c.b16 %v746, %v738
    %v1227 = vpack.c.b16 %v747, %v739
    %v1228 = vpack.c.b16 %v748, %v740
    %v1229 = vpack.c.b16 %v757, %v749
    %v1230 = vpack.c.b16 %v758, %v750
    %v1231 = vpack.c.b16 %v759, %v751
    %v1232 = vpack.c.b16 %v760, %v752
    %v1233 = vpack.c.b16 %v761, %v753
    %v1234 = vpack.c.b16 %v762, %v754
    %v1235 = vpack.c.b16 %v763, %v755
    %v1236 = vpack.c.b16 %v764, %v756
    %v1237 = vpack.c.b16 %v773, %v765
    %v1238 = vpack.c.b16 %v774, %v766
    %v1239 = vpack.c.b16 %v775, %v767
    %v1240 = vpack.c.b16 %v776, %v768
    %v1241 = vpack.c.b16 %v777, %v769
    %v1242 = vpack.c.b16 %v778, %v770
    %v1243 = vpack.c.b16 %v779, %v771
    %v1244 = vpack.c.b16 %v780, %v772
    %v1245 = vpack.c.b16 %v789, %v781
    %v1246 = vpack.c.b16 %v790, %v782
    %v1247 = vpack.c.b16 %v791, %v783
    %v1248 = vpack.c.b16 %v792, %v784
    %v1249 = vpack.c.b16 %v793, %v785
    %v1250 = vpack.c.b16 %v794, %v786
    %v1251 = vpack.c.b16 %v795, %v787
    %v1252 = vpack.c.b16 %v796, %v788
    %v1253 = vpack.c.b16 %v805, %v797
    %v1254 = vpack.c.b16 %v806, %v798
    %v1255 = vpack.c.b16 %v807, %v799
    %v1256 = vpack.c.b16 %v808, %v800
    %v1257 = vpack.c.b16 %v809, %v801
    %v1258 = vpack.c.b16 %v810, %v802
    %v1259 = vpack.c.b16 %v811, %v803
    %v1260 = vpack.c.b16 %v812, %v804
    %v1261 = vpack.c.b16 %v821, %v813
    %v1262 = vpack.c.b16 %v822, %v814
    %v1263 = vpack.c.b16 %v823, %v815
    %v1264 = vpack.c.b16 %v824, %v816
    %v1265 = vpack.c.b16 %v825, %v817
    %v1266 = vpack.c.b16 %v826, %v818
    %v1267 = vpack.c.b16 %v827, %v819
    %v1268 = vpack.c.b16 %v828, %v820
    %v1269 = vpack.c.b16 %v837, %v829
    %v1270 = vpack.c.b16 %v838, %v830
    %v1271 = vpack.c.b16 %v839, %v831
    %v1272 = vpack.c.b16 %v840, %v832
    %v1273 = vpack.c.b16 %v841, %v833
    %v1274 = vpack.c.b16 %v842, %v834
    %v1275 = vpack.c.b16 %v843, %v835
    %v1276 = vpack.c.b16 %v844, %v836
    %v1277 = vpack.c.b16 %v853, %v845
    %v1278 = vpack.c.b16 %v854, %v846
    %v1279 = vpack.c.b16 %v855, %v847
    %v1280 = vpack.c.b16 %v856, %v848
    %v1281 = vpack.c.b16 %v857, %v849
    %v1282 = vpack.c.b16 %v858, %v850
    %v1283 = vpack.c.b16 %v859, %v851
    %v1284 = vpack.c.b16 %v860, %v852
    %v1285 = vpack.c.b16 %v869, %v861
    %v1286 = vpack.c.b16 %v870, %v862
    %v1287 = vpack.c.b16 %v871, %v863
    %v1288 = vpack.c.b16 %v872, %v864
    %v1289 = vpack.c.b16 %v873, %v865
    %v1290 = vpack.c.b16 %v874, %v866
    %v1291 = vpack.c.b16 %v875, %v867
    %v1292 = vpack.c.b16 %v876, %v868
    %v1293 = vpack.c.b16 %v885, %v877
    %v1294 = vpack.c.b16 %v886, %v878
    %v1295 = vpack.c.b16 %v887, %v879
    %v1296 = vpack.c.b16 %v888, %v880
    %v1297 = vpack.c.b16 %v889, %v881
    %v1298 = vpack.c.b16 %v890, %v882
    %v1299 = vpack.c.b16 %v891, %v883
    %v1300 = vpack.c.b16 %v892, %v884
    %v1301 = vpack.c.b16 %v901, %v893
    %v1302 = vpack.c.b16 %v902, %v894
    %v1303 = vpack.c.b16 %v903, %v895
    %v1304 = vpack.c.b16 %v904, %v896
    %v1305 = vpack.c.b16 %v905, %v897
    %v1306 = vpack.c.b16 %v906, %v898
    %v1307 = vpack.c.b16 %v907, %v899
    %v1308 = vpack.c.b16 %v908, %v900
    %v1309 = vpack.c.b16 %v917, %v909
    %v1310 = vpack.c.b16 %v918, %v910
    %v1311 = vpack.c.b16 %v919, %v911
    %v1312 = vpack.c.b16 %v920, %v912
    %v1313 = vpack.c.b16 %v921, %v913
    %v1314 = vpack.c.b16 %v922, %v914
    %v1315 = vpack.c.b16 %v923, %v915
    %v1316 = vpack.c.b16 %v924, %v916
    %v1317 = vpack.c.b16 %v933, %v925
    %v1318 = vpack.c.b16 %v934, %v926
    %v1319 = vpack.c.b16 %v935, %v927
    %v1320 = vpack.c.b16 %v936, %v928
    %v1321 = vpack.c.b16 %v937, %v929
    %v1322 = vpack.c.b16 %v938, %v930
    %v1323 = vpack.c.b16 %v939, %v931
    %v1324 = vpack.c.b16 %v940, %v932
    %v1325 = vpack.c.b16 %v949, %v941
    %v1326 = vpack.c.b16 %v950, %v942
    %v1327 = vpack.c.b16 %v951, %v943
    %v1328 = vpack.c.b16 %v952, %v944
    %v1329 = vpack.c.b16 %v953, %v945
    %v1330 = vpack.c.b16 %v954, %v946
    %v1331 = vpack.c.b16 %v955, %v947
    %v1332 = vpack.c.b16 %v956, %v948
    %v1333 = vpack.c.b16 %v965, %v957
    %v1334 = vpack.c.b16 %v966, %v958
    %v1335 = vpack.c.b16 %v967, %v959
    %v1336 = vpack.c.b16 %v968, %v960
    %v1337 = vpack.c.b16 %v969, %v961
    %v1338 = vpack.c.b16 %v970, %v962
    %v1339 = vpack.c.b16 %v971, %v963
    %v1340 = vpack.c.b16 %v972, %v964
    %v1341 = vpack.c.b16 %v981, %v973
    %v1342 = vpack.c.b16 %v982, %v974
    %v1343 = vpack.c.b16 %v983, %v975
    %v1344 = vpack.c.b16 %v984, %v976
    %v1345 = vpack.c.b16 %v985, %v977
    %v1346 = vpack.c.b16 %v986, %v978
    %v1347 = vpack.c.b16 %v987, %v979
    %v1348 = vpack.c.b16 %v988, %v980
    %v1349 = vpack.c.b16 %v997, %v989
    %v1350 = vpack.c.b16 %v998, %v990
    %v1351 = vpack.c.b16 %v999, %v991
    %v1352 = vpack.c.b16 %v1000, %v992
    %v1353 = vpack.c.b16 %v1001, %v993
    %v1354 = vpack.c.b16 %v1002, %v994
    %v1355 = vpack.c.b16 %v1003, %v995
    %v1356 = vpack.c.b16 %v1004, %v996
    %v1357 = vpack.c.b16 %v1013, %v1005
    %v1358 = vpack.c.b16 %v1014, %v1006
    %v1359 = vpack.c.b16 %v1015, %v1007
    %v1360 = vpack.c.b16 %v1016, %v1008
    %v1361 = vpack.c.b16 %v1017, %v1009
    %v1362 = vpack.c.b16 %v1018, %v1010
    %v1363 = vpack.c.b16 %v1019, %v1011
    %v1364 = vpack.c.b16 %v1020, %v1012
    %v1365 = vpack.c.b16 %v1029, %v1021
    %v1366 = vpack.c.b16 %v1030, %v1022
    %v1367 = vpack.c.b16 %v1031, %v1023
    %v1368 = vpack.c.b16 %v1032, %v1024
    %v1369 = vpack.c.b16 %v1033, %v1025
    %v1370 = vpack.c.b16 %v1034, %v1026
    %v1371 = vpack.c.b16 %v1035, %v1027
    %v1372 = vpack.c.b16 %v1036, %v1028
    %v1373 = vpack.c.b16 %v1045, %v1037
    %v1374 = vpack.c.b16 %v1046, %v1038
    %v1375 = vpack.c.b16 %v1047, %v1039
    %v1376 = vpack.c.b16 %v1048, %v1040
    %v1377 = vpack.c.b16 %v1049, %v1041
    %v1378 = vpack.c.b16 %v1050, %v1042
    %v1379 = vpack.c.b16 %v1051, %v1043
    %v1380 = vpack.c.b16 %v1052, %v1044
    %v1381 = vpack.c.b16 %v1061, %v1053
    %v1382 = vpack.c.b16 %v1062, %v1054
    %v1383 = vpack.c.b16 %v1063, %v1055
    %v1384 = vpack.c.b16 %v1064, %v1056
    %v1385 = vpack.c.b16 %v1065, %v1057
    %v1386 = vpack.c.b16 %v1066, %v1058
    %v1387 = vpack.c.b16 %v1067, %v1059
    %v1388 = vpack.c.b16 %v1068, %v1060
    %v1389 = vpack.c.b16 %v1077, %v1069
    %v1390 = vpack.c.b16 %v1078, %v1070
    %v1391 = vpack.c.b16 %v1079, %v1071
    %v1392 = vpack.c.b16 %v1080, %v1072
    %v1393 = vpack.c.b16 %v1081, %v1073
    %v1394 = vpack.c.b16 %v1082, %v1074
    %v1395 = vpack.c.b16 %v1083, %v1075
    %v1396 = vpack.c.b16 %v1084, %v1076
    %v1397 = vpack.c.b16 %v1093, %v1085
    %v1398 = vpack.c.b16 %v1094, %v1086
    %v1399 = vpack.c.b16 %v1095, %v1087
    %v1400 = vpack.c.b16 %v1096, %v1088
    %v1401 = vpack.c.b16 %v1097, %v1089
    %v1402 = vpack.c.b16 %v1098, %v1090
    %v1403 = vpack.c.b16 %v1099, %v1091
    %v1404 = vpack.c.b16 %v1100, %v1092
    %v1405 = vpack.c.b16 %v1109, %v1101
    %v1406 = vpack.c.b16 %v1110, %v1102
    %v1407 = vpack.c.b16 %v1111, %v1103
    %v1408 = vpack.c.b16 %v1112, %v1104
    %v1409 = vpack.c.b16 %v1113, %v1105
    %v1410 = vpack.c.b16 %v1114, %v1106
    %v1411 = vpack.c.b16 %v1115, %v1107
    %v1412 = vpack.c.b16 %v1116, %v1108
    %v1413 = vpack.c.b16 %v1125, %v1117
    %v1414 = vpack.c.b16 %v1126, %v1118
    %v1415 = vpack.c.b16 %v1127, %v1119
    %v1416 = vpack.c.b16 %v1128, %v1120
    %v1417 = vpack.c.b16 %v1129, %v1121
    %v1418 = vpack.c.b16 %v1130, %v1122
    %v1419 = vpack.c.b16 %v1131, %v1123
    %v1420 = vpack.c.b16 %v1132, %v1124
    %v1421 = vpack.c.b16 %v1141, %v1133
    %v1422 = vpack.c.b16 %v1142, %v1134
    %v1423 = vpack.c.b16 %v1143, %v1135
    %v1424 = vpack.c.b16 %v1144, %v1136
    %v1425 = vpack.c.b16 %v1145, %v1137
    %v1426 = vpack.c.b16 %v1146, %v1138
    %v1427 = vpack.c.b16 %v1147, %v1139
    %v1428 = vpack.c.b16 %v1148, %v1140
    %v1429 = vpack.c.b16 %v1157, %v1149
    %v1430 = vpack.c.b16 %v1158, %v1150
    %v1431 = vpack.c.b16 %v1159, %v1151
    %v1432 = vpack.c.b16 %v1160, %v1152
    %v1433 = vpack.c.b16 %v1161, %v1153
    %v1434 = vpack.c.b16 %v1162, %v1154
    %v1435 = vpack.c.b16 %v1163, %v1155
    %v1436 = vpack.c.b16 %v1164, %v1156
    %v1437 = vpack.c.b16 %v1173, %v1165
    %v1438 = vpack.c.b16 %v1174, %v1166
    %v1439 = vpack.c.b16 %v1175, %v1167
    %v1440 = vpack.c.b16 %v1176, %v1168
    %v1441 = vpack.c.b16 %v1177, %v1169
    %v1442 = vpack.c.b16 %v1178, %v1170
    %v1443 = vpack.c.b16 %v1179, %v1171
    %v1444 = vpack.c.b16 %v1180, %v1172
    %v1445 = vpack.c.b16 %v1189, %v1181
    %v1446 = vpack.c.b16 %v1190, %v1182
    %v1447 = vpack.c.b16 %v1191, %v1183
    %v1448 = vpack.c.b16 %v1192, %v1184
    %v1449 = vpack.c.b16 %v1193, %v1185
    %v1450 = vpack.c.b16 %v1194, %v1186
    %v1451 = vpack.c.b16 %v1195, %v1187
    %v1452 = vpack.c.b16 %v1196, %v1188
    %1709 = vmatprep.subr.bf16.mxu0 %v1198
    %1710 = vmatpush1.bf16.msra.mxu0 %v1197
    %1711 = vmatprep.subr.bf16.mxu0 %v1206
    %1712 = vmatpush1.bf16.msra.mxu0 %v1205
    %1713 = vmatprep.subr.bf16.mxu0 %v1214
    %1714 = vmatpush1.bf16.msra.mxu0 %v1213
    %1715 = vmatprep.subr.bf16.mxu0 %v1222
    %1716 = vmatpush1.bf16.msra.mxu0 %v1221
    %1717 = vmatprep.subr.bf16.mxu0 %v1230
    %1718 = vmatpush1.bf16.msra.mxu0 %v1229
    %1719 = vmatprep.subr.bf16.mxu0 %v1238
    %1720 = vmatpush1.bf16.msra.mxu0 %v1237
    %1721 = vmatprep.subr.bf16.mxu0 %v1246
    %1722 = vmatpush1.bf16.msra.mxu0 %v1245
    %1723 = vmatprep.subr.bf16.mxu0 %v1254
    %1724 = vmatpush1.bf16.msra.mxu0 %v1253
    %1725 = vmatprep.subr.bf16.mxu0 %v1262
    %1726 = vmatpush1.bf16.msra.mxu0 %v1261
    %1727 = vmatprep.subr.bf16.mxu0 %v1270
    %1728 = vmatpush1.bf16.msra.mxu0 %v1269
    %1729 = vmatprep.subr.bf16.mxu0 %v1278
    %1730 = vmatpush1.bf16.msra.mxu0 %v1277
    %1731 = vmatprep.subr.bf16.mxu0 %v1286
    %1732 = vmatpush1.bf16.msra.mxu0 %v1285
    %1733 = vmatprep.subr.bf16.mxu0 %v1294
    %1734 = vmatpush1.bf16.msra.mxu0 %v1293
    %1735 = vmatprep.subr.bf16.mxu0 %v1302
    %1736 = vmatpush1.bf16.msra.mxu0 %v1301
    %1737 = vmatprep.subr.bf16.mxu0 %v1310
    %1738 = vmatpush1.bf16.msra.mxu0 %v1309
    %1739 = vmatprep.subr.bf16.mxu0 %v1318
    %1740 = vmatpush1.bf16.msra.mxu0 %v1317
    %1741 = vmatprep.mubr.bf16.mxu0 %v126
    %1742 = vmatmul.mubr.bf16.gmra.mrb[0].mxu0 %v125
    %v1743 = vpop.f32.mrb[0].mxu0
    %v1744 = vadd.f32 %v392, %v1743
    %v1745 = vpop.f32.mrb[0].mxu0
    %v1746 = vadd.f32 %v396, %v1745
    %v1747 = vpop.f32.mrb[0].mxu0
    %v1748 = vadd.f32 %v392, %v1747
    %v1749 = vpop.f32.mrb[0].mxu0
    %v1750 = vadd.f32 %v396, %v1749
    %1751 = vdwg.mxu0
    %1752 = vmatprep.subr.bf16.mxu0 %v1326
    %1753 = vmatpush1.bf16.msra.mxu0 %v1325
    %1754 = vmatprep.subr.bf16.mxu0 %v1334
    %1755 = vmatpush1.bf16.msra.mxu0 %v1333
    %1756 = vmatprep.subr.bf16.mxu0 %v1342
    %1757 = vmatpush1.bf16.msra.mxu0 %v1341
    %1758 = vmatprep.subr.bf16.mxu0 %v1350
    %1759 = vmatpush1.bf16.msra.mxu0 %v1349
    %1760 = vmatprep.subr.bf16.mxu0 %v1358
    %1761 = vmatpush1.bf16.msra.mxu0 %v1357
    %1762 = vmatprep.subr.bf16.mxu0 %v1366
    %1763 = vmatpush1.bf16.msra.mxu0 %v1365
    %1764 = vmatprep.subr.bf16.mxu0 %v1374
    %1765 = vmatpush1.bf16.msra.mxu0 %v1373
    %1766 = vmatprep.subr.bf16.mxu0 %v1382
    %1767 = vmatpush1.bf16.msra.mxu0 %v1381
    %1768 = vmatprep.subr.bf16.mxu0 %v1390
    %1769 = vmatpush1.bf16.msra.mxu0 %v1389
    %1770 = vmatprep.subr.bf16.mxu0 %v1398
    %1771 = vmatpush1.bf16.msra.mxu0 %v1397
    %1772 = vmatprep.subr.bf16.mxu0 %v1406
    %1773 = vmatpush1.bf16.msra.mxu0 %v1405
    %1774 = vmatprep.subr.bf16.mxu0 %v1414
    %1775 = vmatpush1.bf16.msra.mxu0 %v1413
    %1776 = vmatprep.subr.bf16.mxu0 %v1422
    %1777 = vmatpush1.bf16.msra.mxu0 %v1421
    %1778 = vmatprep.subr.bf16.mxu0 %v1430
    %1779 = vmatpush1.bf16.msra.mxu0 %v1429
    %1780 = vmatprep.subr.bf16.mxu0 %v1438
    %1781 = vmatpush1.bf16.msra.mxu0 %v1437
    %1782 = vmatprep.subr.bf16.mxu0 %v1446
    %1783 = vmatpush1.bf16.msra.mxu0 %v1445
    %1784 = vmatprep.mubr.bf16.mxu0 %v128
    %1785 = vmatmul.mubr.bf16.gmra.mrb[0].mxu0 %v127
    %v1786 = vpop.f32.mrb[0].mxu0
    %v1787 = vadd.f32 %v1744, %v1786
    %v1788 = vpop.f32.mrb[0].mxu0
    %v1789 = vadd.f32 %v1746, %v1788
    %v1790 = vpop.f32.mrb[0].mxu0
    %v1791 = vadd.f32 %v1748, %v1790
    %v1792 = vpop.f32.mrb[0].mxu0
    %v1793 = vadd.f32 %v1750, %v1792
    %1794 = vdwg.mxu0
    %1795 = vmatprep.subr.bf16.mxu0 %v1200
    %1796 = vmatpush1.bf16.msra.mxu0 %v1199
    %1797 = vmatprep.subr.bf16.mxu0 %v1208
    %1798 = vmatpush1.bf16.msra.mxu0 %v1207
    %1799 = vmatprep.subr.bf16.mxu0 %v1216
    %1800 = vmatpush1.bf16.msra.mxu0 %v1215
    %1801 = vmatprep.subr.bf16.mxu0 %v1224
    %1802 = vmatpush1.bf16.msra.mxu0 %v1223
    %1803 = vmatprep.subr.bf16.mxu0 %v1232
    %1804 = vmatpush1.bf16.msra.mxu0 %v1231
    %1805 = vmatprep.subr.bf16.mxu0 %v1240
    %1806 = vmatpush1.bf16.msra.mxu0 %v1239
    %1807 = vmatprep.subr.bf16.mxu0 %v1248
    %1808 = vmatpush1.bf16.msra.mxu0 %v1247
    %1809 = vmatprep.subr.bf16.mxu0 %v1256
    %1810 = vmatpush1.bf16.msra.mxu0 %v1255
    %1811 = vmatprep.subr.bf16.mxu0 %v1264
    %1812 = vmatpush1.bf16.msra.mxu0 %v1263
    %1813 = vmatprep.subr.bf16.mxu0 %v1272
    %1814 = vmatpush1.bf16.msra.mxu0 %v1271
    %1815 = vmatprep.subr.bf16.mxu0 %v1280
    %1816 = vmatpush1.bf16.msra.mxu0 %v1279
    %1817 = vmatprep.subr.bf16.mxu0 %v1288
    %1818 = vmatpush1.bf16.msra.mxu0 %v1287
    %1819 = vmatprep.subr.bf16.mxu0 %v1296
    %1820 = vmatpush1.bf16.msra.mxu0 %v1295
    %1821 = vmatprep.subr.bf16.mxu0 %v1304
    %1822 = vmatpush1.bf16.msra.mxu0 %v1303
    %1823 = vmatprep.subr.bf16.mxu0 %v1312
    %1824 = vmatpush1.bf16.msra.mxu0 %v1311
    %1825 = vmatprep.subr.bf16.mxu0 %v1320
    %1826 = vmatpush1.bf16.msra.mxu0 %v1319
    %1827 = vmatprep.mubr.bf16.mxu0 %v126
    %1828 = vmatmul.mubr.bf16.gmra.mrb[0].mxu0 %v125
    %v1829 = vpop.f32.mrb[0].mxu0
    %v1830 = vadd.f32 %v400, %v1829
    %v1831 = vpop.f32.mrb[0].mxu0
    %v1832 = vadd.f32 %v404, %v1831
    %v1833 = vpop.f32.mrb[0].mxu0
    %v1834 = vadd.f32 %v400, %v1833
    %v1835 = vpop.f32.mrb[0].mxu0
    %v1836 = vadd.f32 %v404, %v1835
    %1837 = vdwg.mxu0
    %1838 = vmatprep.subr.bf16.mxu0 %v1328
    %1839 = vmatpush1.bf16.msra.mxu0 %v1327
    %1840 = vmatprep.subr.bf16.mxu0 %v1336
    %1841 = vmatpush1.bf16.msra.mxu0 %v1335
    %1842 = vmatprep.subr.bf16.mxu0 %v1344
    %1843 = vmatpush1.bf16.msra.mxu0 %v1343
    %1844 = vmatprep.subr.bf16.mxu0 %v1352
    %1845 = vmatpush1.bf16.msra.mxu0 %v1351
    %1846 = vmatprep.subr.bf16.mxu0 %v1360
    %1847 = vmatpush1.bf16.msra.mxu0 %v1359
    %1848 = vmatprep.subr.bf16.mxu0 %v1368
    %1849 = vmatpush1.bf16.msra.mxu0 %v1367
    %1850 = vmatprep.subr.bf16.mxu0 %v1376
    %1851 = vmatpush1.bf16.msra.mxu0 %v1375
    %1852 = vmatprep.subr.bf16.mxu0 %v1384
    %1853 = vmatpush1.bf16.msra.mxu0 %v1383
    %1854 = vmatprep.subr.bf16.mxu0 %v1392
    %1855 = vmatpush1.bf16.msra.mxu0 %v1391
    %1856 = vmatprep.subr.bf16.mxu0 %v1400
    %1857 = vmatpush1.bf16.msra.mxu0 %v1399
    %1858 = vmatprep.subr.bf16.mxu0 %v1408
    %1859 = vmatpush1.bf16.msra.mxu0 %v1407
    %1860 = vmatprep.subr.bf16.mxu0 %v1416
    %1861 = vmatpush1.bf16.msra.mxu0 %v1415
    %1862 = vmatprep.subr.bf16.mxu0 %v1424
    %1863 = vmatpush1.bf16.msra.mxu0 %v1423
    %1864 = vmatprep.subr.bf16.mxu0 %v1432
    %1865 = vmatpush1.bf16.msra.mxu0 %v1431
    %1866 = vmatprep.subr.bf16.mxu0 %v1440
    %1867 = vmatpush1.bf16.msra.mxu0 %v1439
    %1868 = vmatprep.subr.bf16.mxu0 %v1448
    %1869 = vmatpush1.bf16.msra.mxu0 %v1447
    %1870 = vmatprep.mubr.bf16.mxu0 %v128
    %1871 = vmatmul.mubr.bf16.gmra.mrb[0].mxu0 %v127
    %v1872 = vpop.f32.mrb[0].mxu0
    %v1873 = vadd.f32 %v1830, %v1872
    %v1874 = vpop.f32.mrb[0].mxu0
    %v1875 = vadd.f32 %v1832, %v1874
    %v1876 = vpop.f32.mrb[0].mxu0
    %v1877 = vadd.f32 %v1834, %v1876
    %v1878 = vpop.f32.mrb[0].mxu0
    %v1879 = vadd.f32 %v1836, %v1878
    %1880 = vdwg.mxu0
    %1881 = vmatprep.subr.bf16.mxu0 %v1202
    %1882 = vmatpush1.bf16.msra.mxu0 %v1201
    %1883 = vmatprep.subr.bf16.mxu0 %v1210
    %1884 = vmatpush1.bf16.msra.mxu0 %v1209
    %1885 = vmatprep.subr.bf16.mxu0 %v1218
    %1886 = vmatpush1.bf16.msra.mxu0 %v1217
    %1887 = vmatprep.subr.bf16.mxu0 %v1226
    %1888 = vmatpush1.bf16.msra.mxu0 %v1225
    %1889 = vmatprep.subr.bf16.mxu0 %v1234
    %1890 = vmatpush1.bf16.msra.mxu0 %v1233
    %1891 = vmatprep.subr.bf16.mxu0 %v1242
    %1892 = vmatpush1.bf16.msra.mxu0 %v1241
    %1893 = vmatprep.subr.bf16.mxu0 %v1250
    %1894 = vmatpush1.bf16.msra.mxu0 %v1249
    %1895 = vmatprep.subr.bf16.mxu0 %v1258
    %1896 = vmatpush1.bf16.msra.mxu0 %v1257
    %1897 = vmatprep.subr.bf16.mxu0 %v1266
    %1898 = vmatpush1.bf16.msra.mxu0 %v1265
    %1899 = vmatprep.subr.bf16.mxu0 %v1274
    %1900 = vmatpush1.bf16.msra.mxu0 %v1273
    %1901 = vmatprep.subr.bf16.mxu0 %v1282
    %1902 = vmatpush1.bf16.msra.mxu0 %v1281
    %1903 = vmatprep.subr.bf16.mxu0 %v1290
    %1904 = vmatpush1.bf16.msra.mxu0 %v1289
    %1905 = vmatprep.subr.bf16.mxu0 %v1298
    %1906 = vmatpush1.bf16.msra.mxu0 %v1297
    %1907 = vmatprep.subr.bf16.mxu0 %v1306
    %1908 = vmatpush1.bf16.msra.mxu0 %v1305
    %1909 = vmatprep.subr.bf16.mxu0 %v1314
    %1910 = vmatpush1.bf16.msra.mxu0 %v1313
    %1911 = vmatprep.subr.bf16.mxu0 %v1322
    %1912 = vmatpush1.bf16.msra.mxu0 %v1321
    %1913 = vmatprep.mubr.bf16.mxu0 %v126
    %1914 = vmatmul.mubr.bf16.gmra.mrb[0].mxu0 %v125
    %v1915 = vpop.f32.mrb[0].mxu0
    %v1916 = vadd.f32 %v408, %v1915
    %v1917 = vpop.f32.mrb[0].mxu0
    %v1918 = vadd.f32 %v412, %v1917
    %v1919 = vpop.f32.mrb[0].mxu0
    %v1920 = vadd.f32 %v408, %v1919
    %v1921 = vpop.f32.mrb[0].mxu0
    %v1922 = vadd.f32 %v412, %v1921
    %1923 = vdwg.mxu0
    %1924 = vmatprep.subr.bf16.mxu0 %v1330
    %1925 = vmatpush1.bf16.msra.mxu0 %v1329
    %1926 = vmatprep.subr.bf16.mxu0 %v1338
    %1927 = vmatpush1.bf16.msra.mxu0 %v1337
    %1928 = vmatprep.subr.bf16.mxu0 %v1346
    %1929 = vmatpush1.bf16.msra.mxu0 %v1345
    %1930 = vmatprep.subr.bf16.mxu0 %v1354
    %1931 = vmatpush1.bf16.msra.mxu0 %v1353
    %1932 = vmatprep.subr.bf16.mxu0 %v1362
    %1933 = vmatpush1.bf16.msra.mxu0 %v1361
    %1934 = vmatprep.subr.bf16.mxu0 %v1370
    %1935 = vmatpush1.bf16.msra.mxu0 %v1369
    %1936 = vmatprep.subr.bf16.mxu0 %v1378
    %1937 = vmatpush1.bf16.msra.mxu0 %v1377
    %1938 = vmatprep.subr.bf16.mxu0 %v1386
    %1939 = vmatpush1.bf16.msra.mxu0 %v1385
    %1940 = vmatprep.subr.bf16.mxu0 %v1394
    %1941 = vmatpush1.bf16.msra.mxu0 %v1393
    %1942 = vmatprep.subr.bf16.mxu0 %v1402
    %1943 = vmatpush1.bf16.msra.mxu0 %v1401
    %1944 = vmatprep.subr.bf16.mxu0 %v1410
    %1945 = vmatpush1.bf16.msra.mxu0 %v1409
    %1946 = vmatprep.subr.bf16.mxu0 %v1418
    %1947 = vmatpush1.bf16.msra.mxu0 %v1417
    %1948 = vmatprep.subr.bf16.mxu0 %v1426
    %1949 = vmatpush1.bf16.msra.mxu0 %v1425
    %1950 = vmatprep.subr.bf16.mxu0 %v1434
    %1951 = vmatpush1.bf16.msra.mxu0 %v1433
    %1952 = vmatprep.subr.bf16.mxu0 %v1442
    %1953 = vmatpush1.bf16.msra.mxu0 %v1441
    %1954 = vmatprep.subr.bf16.mxu0 %v1450
    %1955 = vmatpush1.bf16.msra.mxu0 %v1449
    %1956 = vmatprep.mubr.bf16.mxu0 %v128
    %1957 = vmatmul.mubr.bf16.gmra.mrb[0].mxu0 %v127
    %v1958 = vpop.f32.mrb[0].mxu0
    %v1959 = vadd.f32 %v1916, %v1958
    %v1960 = vpop.f32.mrb[0].mxu0
    %v1961 = vadd.f32 %v1918, %v1960
    %v1962 = vpop.f32.mrb[0].mxu0
    %v1963 = vadd.f32 %v1920, %v1962
    %v1964 = vpop.f32.mrb[0].mxu0
    %v1965 = vadd.f32 %v1922, %v1964
    %1966 = vdwg.mxu0
    %1967 = vmatprep.subr.bf16.mxu0 %v1204
    %1968 = vmatpush1.bf16.msra.mxu0 %v1203
    %1969 = vmatprep.subr.bf16.mxu0 %v1212
    %1970 = vmatpush1.bf16.msra.mxu0 %v1211
    %1971 = vmatprep.subr.bf16.mxu0 %v1220
    %1972 = vmatpush1.bf16.msra.mxu0 %v1219
    %1973 = vmatprep.subr.bf16.mxu0 %v1228
    %1974 = vmatpush1.bf16.msra.mxu0 %v1227
    %1975 = vmatprep.subr.bf16.mxu0 %v1236
    %1976 = vmatpush1.bf16.msra.mxu0 %v1235
    %1977 = vmatprep.subr.bf16.mxu0 %v1244
    %1978 = vmatpush1.bf16.msra.mxu0 %v1243
    %1979 = vmatprep.subr.bf16.mxu0 %v1252
    %1980 = vmatpush1.bf16.msra.mxu0 %v1251
    %1981 = vmatprep.subr.bf16.mxu0 %v1260
    %1982 = vmatpush1.bf16.msra.mxu0 %v1259
    %1983 = vmatprep.subr.bf16.mxu0 %v1268
    %1984 = vmatpush1.bf16.msra.mxu0 %v1267
    %1985 = vmatprep.subr.bf16.mxu0 %v1276
    %1986 = vmatpush1.bf16.msra.mxu0 %v1275
    %1987 = vmatprep.subr.bf16.mxu0 %v1284
    %1988 = vmatpush1.bf16.msra.mxu0 %v1283
    %1989 = vmatprep.subr.bf16.mxu0 %v1292
    %1990 = vmatpush1.bf16.msra.mxu0 %v1291
    %1991 = vmatprep.subr.bf16.mxu0 %v1300
    %1992 = vmatpush1.bf16.msra.mxu0 %v1299
    %1993 = vmatprep.subr.bf16.mxu0 %v1308
    %1994 = vmatpush1.bf16.msra.mxu0 %v1307
    %1995 = vmatprep.subr.bf16.mxu0 %v1316
    %1996 = vmatpush1.bf16.msra.mxu0 %v1315
    %1997 = vmatprep.subr.bf16.mxu0 %v1324
    %1998 = vmatpush1.bf16.msra.mxu0 %v1323
    %1999 = vmatprep.mubr.bf16.mxu0 %v126
    %2000 = vmatmul.mubr.bf16.gmra.mrb[0].mxu0 %v125
    %v2001 = vpop.f32.mrb[0].mxu0
    %v2002 = vadd.f32 %v416, %v2001
    %v2003 = vpop.f32.mrb[0].mxu0
    %v2004 = vadd.f32 %v420, %v2003
    %v2005 = vpop.f32.mrb[0].mxu0
    %v2006 = vadd.f32 %v416, %v2005
    %v2007 = vpop.f32.mrb[0].mxu0
    %v2008 = vadd.f32 %v420, %v2007
    %2009 = vdwg.mxu0
    %2010 = vmatprep.subr.bf16.mxu0 %v1332
    %2011 = vmatpush1.bf16.msra.mxu0 %v1331
    %2012 = vmatprep.subr.bf16.mxu0 %v1340
    %2013 = vmatpush1.bf16.msra.mxu0 %v1339
    %2014 = vmatprep.subr.bf16.mxu0 %v1348
    %2015 = vmatpush1.bf16.msra.mxu0 %v1347
    %2016 = vmatprep.subr.bf16.mxu0 %v1356
    %2017 = vmatpush1.bf16.msra.mxu0 %v1355
    %2018 = vmatprep.subr.bf16.mxu0 %v1364
    %2019 = vmatpush1.bf16.msra.mxu0 %v1363
    %2020 = vmatprep.subr.bf16.mxu0 %v1372
    %2021 = vmatpush1.bf16.msra.mxu0 %v1371
    %2022 = vmatprep.subr.bf16.mxu0 %v1380
    %2023 = vmatpush1.bf16.msra.mxu0 %v1379
    %2024 = vmatprep.subr.bf16.mxu0 %v1388
    %2025 = vmatpush1.bf16.msra.mxu0 %v1387
    %2026 = vmatprep.subr.bf16.mxu0 %v1396
    %2027 = vmatpush1.bf16.msra.mxu0 %v1395
    %2028 = vmatprep.subr.bf16.mxu0 %v1404
    %2029 = vmatpush1.bf16.msra.mxu0 %v1403
    %2030 = vmatprep.subr.bf16.mxu0 %v1412
    %2031 = vmatpush1.bf16.msra.mxu0 %v1411
    %2032 = vmatprep.subr.bf16.mxu0 %v1420
    %2033 = vmatpush1.bf16.msra.mxu0 %v1419
    %2034 = vmatprep.subr.bf16.mxu0 %v1428
    %2035 = vmatpush1.bf16.msra.mxu0 %v1427
    %2036 = vmatprep.subr.bf16.mxu0 %v1436
    %2037 = vmatpush1.bf16.msra.mxu0 %v1435
    %2038 = vmatprep.subr.bf16.mxu0 %v1444
    %2039 = vmatpush1.bf16.msra.mxu0 %v1443
    %2040 = vmatprep.subr.bf16.mxu0 %v1452
    %2041 = vmatpush1.bf16.msra.mxu0 %v1451
    %2042 = vmatprep.mubr.bf16.mxu0 %v128
    %2043 = vmatmul.mubr.bf16.gmra.mrb[0].mxu0 %v127
    %v2044 = vpop.f32.mrb[0].mxu0
    %v2045 = vadd.f32 %v2002, %v2044
    %v2046 = vpop.f32.mrb[0].mxu0
    %v2047 = vadd.f32 %v2004, %v2046
    %v2048 = vpop.f32.mrb[0].mxu0
    %v2049 = vadd.f32 %v2006, %v2048
    %v2050 = vpop.f32.mrb[0].mxu0
    %v2051 = vadd.f32 %v2008, %v2050
    %2052 = vdwg.mxu0
    %v2053 = vmax.f32 %v1787, 0.0
    %v2054 = vmax.f32 %v1789, 0.0
    %v2055 = vmax.f32 %v1873, 0.0
    %v2056 = vmax.f32 %v1875, 0.0
    %v2057 = vmax.f32 %v1959, 0.0
    %v2058 = vmax.f32 %v1961, 0.0
    %v2059 = vmax.f32 %v2045, 0.0
    %v2060 = vmax.f32 %v2047, 0.0
    %v2061 = vmax.f32 %v1791, 0.0
    %v2062 = vmax.f32 %v1793, 0.0
    %v2063 = vmax.f32 %v1877, 0.0
    %v2064 = vmax.f32 %v1879, 0.0
    %v2065 = vmax.f32 %v1963, 0.0
    %v2066 = vmax.f32 %v1965, 0.0
    %v2067 = vmax.f32 %v2049, 0.0
    %v2068 = vmax.f32 %v2051, 0.0
    %v2069 = vpack.c.bf16 %v2061, %v2053
    %v2070 = vpack.c.bf16 %v2062, %v2054
    %v2071 = vpack.c.bf16 %v2063, %v2055
    %v2072 = vpack.c.bf16 %v2064, %v2056
    %v2073 = vpack.c.bf16 %v2065, %v2057
    %v2074 = vpack.c.bf16 %v2066, %v2058
    %v2075 = vpack.c.bf16 %v2067, %v2059
    %v2076 = vpack.c.bf16 %v2068, %v2060
    %v2077 = vld [vmem:[#allocation8] sm:$0xff]
    %v2078 = vld [vmem:[#allocation8 + $0x8] sm:$0xff]
    %v2079 = vld [vmem:[#allocation8 + $0x10] sm:$0xff]
    %v2080 = vld [vmem:[#allocation8 + $0x18] sm:$0xff]
    %v2081 = vld [vmem:[#allocation8 + $0x20] sm:$0xff]
    %v2082 = vld [vmem:[#allocation8 + $0x28] sm:$0xff]
    %v2083 = vld [vmem:[#allocation8 + $0x30] sm:$0xff]
    %v2084 = vld [vmem:[#allocation8 + $0x38] sm:$0xff]
    %v2085 = vld [vmem:[#allocation8 + $0x40] sm:$0xff]
    %v2086 = vld [vmem:[#allocation8 + $0x48] sm:$0xff]
    %v2087 = vld [vmem:[#allocation8 + $0x50] sm:$0xff]
    %v2088 = vld [vmem:[#allocation8 + $0x58] sm:$0xff]
    %v2089 = vld [vmem:[#allocation8 + $0x60] sm:$0xff]
    %v2090 = vld [vmem:[#allocation8 + $0x68] sm:$0xff]
    %v2091 = vld [vmem:[#allocation8 + $0x70] sm:$0xff]
    %v2092 = vld [vmem:[#allocation8 + $0x78] sm:$0xff]
    %v2093 = vld [vmem:[#allocation8 + $0x80] sm:$0xff]
    %v2094 = vld [vmem:[#allocation8 + $0x88] sm:$0xff]
    %v2095 = vld [vmem:[#allocation8 + $0x90] sm:$0xff]
    %v2096 = vld [vmem:[#allocation8 + $0x98] sm:$0xff]
    %v2097 = vld [vmem:[#allocation8 + $0xa0] sm:$0xff]
    %v2098 = vld [vmem:[#allocation8 + $0xa8] sm:$0xff]
    %v2099 = vld [vmem:[#allocation8 + $0xb0] sm:$0xff]
    %v2100 = vld [vmem:[#allocation8 + $0xb8] sm:$0xff]
    %v2101 = vld [vmem:[#allocation8 + $0xc0] sm:$0xff]
    %v2102 = vld [vmem:[#allocation8 + $0xc8] sm:$0xff]
    %v2103 = vld [vmem:[#allocation8 + $0xd0] sm:$0xff]
    %v2104 = vld [vmem:[#allocation8 + $0xd8] sm:$0xff]
    %v2105 = vld [vmem:[#allocation8 + $0xe0] sm:$0xff]
    %v2106 = vld [vmem:[#allocation8 + $0xe8] sm:$0xff]
    %v2107 = vld [vmem:[#allocation8 + $0xf0] sm:$0xff]
    %v2108 = vld [vmem:[#allocation8 + $0xf8] sm:$0xff]
    %v2109 = vld [vmem:[#allocation8 + $0x100] sm:$0xff]
    %v2110 = vld [vmem:[#allocation8 + $0x108] sm:$0xff]
    %v2111 = vld [vmem:[#allocation8 + $0x110] sm:$0xff]
    %v2112 = vld [vmem:[#allocation8 + $0x118] sm:$0xff]
    %v2113 = vld [vmem:[#allocation8 + $0x120] sm:$0xff]
    %v2114 = vld [vmem:[#allocation8 + $0x128] sm:$0xff]
    %v2115 = vld [vmem:[#allocation8 + $0x130] sm:$0xff]
    %v2116 = vld [vmem:[#allocation8 + $0x138] sm:$0xff]
    %v2117 = vld [vmem:[#allocation8 + $0x140] sm:$0xff]
    %v2118 = vld [vmem:[#allocation8 + $0x148] sm:$0xff]
    %v2119 = vld [vmem:[#allocation8 + $0x150] sm:$0xff]
    %v2120 = vld [vmem:[#allocation8 + $0x158] sm:$0xff]
    %v2121 = vld [vmem:[#allocation8 + $0x160] sm:$0xff]
    %v2122 = vld [vmem:[#allocation8 + $0x168] sm:$0xff]
    %v2123 = vld [vmem:[#allocation8 + $0x170] sm:$0xff]
    %v2124 = vld [vmem:[#allocation8 + $0x178] sm:$0xff]
    %v2125 = vld [vmem:[#allocation8 + $0x180] sm:$0xff]
    %v2126 = vld [vmem:[#allocation8 + $0x188] sm:$0xff]
    %v2127 = vld [vmem:[#allocation8 + $0x190] sm:$0xff]
    %v2128 = vld [vmem:[#allocation8 + $0x198] sm:$0xff]
    %v2129 = vld [vmem:[#allocation8 + $0x1a0] sm:$0xff]
    %v2130 = vld [vmem:[#allocation8 + $0x1a8] sm:$0xff]
    %v2131 = vld [vmem:[#allocation8 + $0x1b0] sm:$0xff]
    %v2132 = vld [vmem:[#allocation8 + $0x1b8] sm:$0xff]
    %v2133 = vld [vmem:[#allocation8 + $0x1c0] sm:$0xff]
    %v2134 = vld [vmem:[#allocation8 + $0x1c8] sm:$0xff]
    %v2135 = vld [vmem:[#allocation8 + $0x1d0] sm:$0xff]
    %v2136 = vld [vmem:[#allocation8 + $0x1d8] sm:$0xff]
    %v2137 = vld [vmem:[#allocation8 + $0x1e0] sm:$0xff]
    %v2138 = vld [vmem:[#allocation8 + $0x1e8] sm:$0xff]
    %v2139 = vld [vmem:[#allocation8 + $0x1f0] sm:$0xff]
    %v2140 = vld [vmem:[#allocation8 + $0x1f8] sm:$0xff]
    %v2141 = vld [vmem:[#allocation8 + $0x200] sm:$0xff]
    %v2142 = vld [vmem:[#allocation8 + $0x208] sm:$0xff]
    %v2143 = vld [vmem:[#allocation8 + $0x210] sm:$0xff]
    %v2144 = vld [vmem:[#allocation8 + $0x218] sm:$0xff]
    %v2145 = vld [vmem:[#allocation8 + $0x220] sm:$0xff]
    %v2146 = vld [vmem:[#allocation8 + $0x228] sm:$0xff]
    %v2147 = vld [vmem:[#allocation8 + $0x230] sm:$0xff]
    %v2148 = vld [vmem:[#allocation8 + $0x238] sm:$0xff]
    %v2149 = vld [vmem:[#allocation8 + $0x240] sm:$0xff]
    %v2150 = vld [vmem:[#allocation8 + $0x248] sm:$0xff]
    %v2151 = vld [vmem:[#allocation8 + $0x250] sm:$0xff]
    %v2152 = vld [vmem:[#allocation8 + $0x258] sm:$0xff]
    %v2153 = vld [vmem:[#allocation8 + $0x260] sm:$0xff]
    %v2154 = vld [vmem:[#allocation8 + $0x268] sm:$0xff]
    %v2155 = vld [vmem:[#allocation8 + $0x270] sm:$0xff]
    %v2156 = vld [vmem:[#allocation8 + $0x278] sm:$0xff]
    %v2157 = vld [vmem:[#allocation8 + $0x280] sm:$0xff]
    %v2158 = vld [vmem:[#allocation8 + $0x288] sm:$0xff]
    %v2159 = vld [vmem:[#allocation8 + $0x290] sm:$0xff]
    %v2160 = vld [vmem:[#allocation8 + $0x298] sm:$0xff]
    %v2161 = vld [vmem:[#allocation8 + $0x2a0] sm:$0xff]
    %v2162 = vld [vmem:[#allocation8 + $0x2a8] sm:$0xff]
    %v2163 = vld [vmem:[#allocation8 + $0x2b0] sm:$0xff]
    %v2164 = vld [vmem:[#allocation8 + $0x2b8] sm:$0xff]
    %v2165 = vld [vmem:[#allocation8 + $0x2c0] sm:$0xff]
    %v2166 = vld [vmem:[#allocation8 + $0x2c8] sm:$0xff]
    %v2167 = vld [vmem:[#allocation8 + $0x2d0] sm:$0xff]
    %v2168 = vld [vmem:[#allocation8 + $0x2d8] sm:$0xff]
    %v2169 = vld [vmem:[#allocation8 + $0x2e0] sm:$0xff]
    %v2170 = vld [vmem:[#allocation8 + $0x2e8] sm:$0xff]
    %v2171 = vld [vmem:[#allocation8 + $0x2f0] sm:$0xff]
    %v2172 = vld [vmem:[#allocation8 + $0x2f8] sm:$0xff]
    %v2173 = vld [vmem:[#allocation8 + $0x300] sm:$0xff]
    %v2174 = vld [vmem:[#allocation8 + $0x308] sm:$0xff]
    %v2175 = vld [vmem:[#allocation8 + $0x310] sm:$0xff]
    %v2176 = vld [vmem:[#allocation8 + $0x318] sm:$0xff]
    %v2177 = vld [vmem:[#allocation8 + $0x320] sm:$0xff]
    %v2178 = vld [vmem:[#allocation8 + $0x328] sm:$0xff]
    %v2179 = vld [vmem:[#allocation8 + $0x330] sm:$0xff]
    %v2180 = vld [vmem:[#allocation8 + $0x338] sm:$0xff]
    %v2181 = vld [vmem:[#allocation8 + $0x340] sm:$0xff]
    %v2182 = vld [vmem:[#allocation8 + $0x348] sm:$0xff]
    %v2183 = vld [vmem:[#allocation8 + $0x350] sm:$0xff]
    %v2184 = vld [vmem:[#allocation8 + $0x358] sm:$0xff]
    %v2185 = vld [vmem:[#allocation8 + $0x360] sm:$0xff]
    %v2186 = vld [vmem:[#allocation8 + $0x368] sm:$0xff]
    %v2187 = vld [vmem:[#allocation8 + $0x370] sm:$0xff]
    %v2188 = vld [vmem:[#allocation8 + $0x378] sm:$0xff]
    %v2189 = vld [vmem:[#allocation8 + $0x380] sm:$0xff]
    %v2190 = vld [vmem:[#allocation8 + $0x388] sm:$0xff]
    %v2191 = vld [vmem:[#allocation8 + $0x390] sm:$0xff]
    %v2192 = vld [vmem:[#allocation8 + $0x398] sm:$0xff]
    %v2193 = vld [vmem:[#allocation8 + $0x3a0] sm:$0xff]
    %v2194 = vld [vmem:[#allocation8 + $0x3a8] sm:$0xff]
    %v2195 = vld [vmem:[#allocation8 + $0x3b0] sm:$0xff]
    %v2196 = vld [vmem:[#allocation8 + $0x3b8] sm:$0xff]
    %v2197 = vld [vmem:[#allocation8 + $0x3c0] sm:$0xff]
    %v2198 = vld [vmem:[#allocation8 + $0x3c8] sm:$0xff]
    %v2199 = vld [vmem:[#allocation8 + $0x3d0] sm:$0xff]
    %v2200 = vld [vmem:[#allocation8 + $0x3d8] sm:$0xff]
    %v2201 = vld [vmem:[#allocation8 + $0x3e0] sm:$0xff]
    %v2202 = vld [vmem:[#allocation8 + $0x3e8] sm:$0xff]
    %v2203 = vld [vmem:[#allocation8 + $0x3f0] sm:$0xff]
    %v2204 = vld [vmem:[#allocation8 + $0x3f8] sm:$0xff]
    %v2205 = vld [vmem:[#allocation8 + $0x400] sm:$0xff]
    %v2206 = vld [vmem:[#allocation8 + $0x408] sm:$0xff]
    %v2207 = vld [vmem:[#allocation8 + $0x410] sm:$0xff]
    %v2208 = vld [vmem:[#allocation8 + $0x418] sm:$0xff]
    %v2209 = vld [vmem:[#allocation8 + $0x420] sm:$0xff]
    %v2210 = vld [vmem:[#allocation8 + $0x428] sm:$0xff]
    %v2211 = vld [vmem:[#allocation8 + $0x430] sm:$0xff]
    %v2212 = vld [vmem:[#allocation8 + $0x438] sm:$0xff]
    %v2213 = vld [vmem:[#allocation8 + $0x440] sm:$0xff]
    %v2214 = vld [vmem:[#allocation8 + $0x448] sm:$0xff]
    %v2215 = vld [vmem:[#allocation8 + $0x450] sm:$0xff]
    %v2216 = vld [vmem:[#allocation8 + $0x458] sm:$0xff]
    %v2217 = vld [vmem:[#allocation8 + $0x460] sm:$0xff]
    %v2218 = vld [vmem:[#allocation8 + $0x468] sm:$0xff]
    %v2219 = vld [vmem:[#allocation8 + $0x470] sm:$0xff]
    %v2220 = vld [vmem:[#allocation8 + $0x478] sm:$0xff]
    %v2221 = vld [vmem:[#allocation8 + $0x480] sm:$0xff]
    %v2222 = vld [vmem:[#allocation8 + $0x488] sm:$0xff]
    %v2223 = vld [vmem:[#allocation8 + $0x490] sm:$0xff]
    %v2224 = vld [vmem:[#allocation8 + $0x498] sm:$0xff]
    %v2225 = vld [vmem:[#allocation8 + $0x4a0] sm:$0xff]
    %v2226 = vld [vmem:[#allocation8 + $0x4a8] sm:$0xff]
    %v2227 = vld [vmem:[#allocation8 + $0x4b0] sm:$0xff]
    %v2228 = vld [vmem:[#allocation8 + $0x4b8] sm:$0xff]
    %v2229 = vld [vmem:[#allocation8 + $0x4c0] sm:$0xff]
    %v2230 = vld [vmem:[#allocation8 + $0x4c8] sm:$0xff]
    %v2231 = vld [vmem:[#allocation8 + $0x4d0] sm:$0xff]
    %v2232 = vld [vmem:[#allocation8 + $0x4d8] sm:$0xff]
    %v2233 = vld [vmem:[#allocation8 + $0x4e0] sm:$0xff]
    %v2234 = vld [vmem:[#allocation8 + $0x4e8] sm:$0xff]
    %v2235 = vld [vmem:[#allocation8 + $0x4f0] sm:$0xff]
    %v2236 = vld [vmem:[#allocation8 + $0x4f8] sm:$0xff]
    %v2237 = vld [vmem:[#allocation8 + $0x500] sm:$0xff]
    %v2238 = vld [vmem:[#allocation8 + $0x508] sm:$0xff]
    %v2239 = vld [vmem:[#allocation8 + $0x510] sm:$0xff]
    %v2240 = vld [vmem:[#allocation8 + $0x518] sm:$0xff]
    %v2241 = vld [vmem:[#allocation8 + $0x520] sm:$0xff]
    %v2242 = vld [vmem:[#allocation8 + $0x528] sm:$0xff]
    %v2243 = vld [vmem:[#allocation8 + $0x530] sm:$0xff]
    %v2244 = vld [vmem:[#allocation8 + $0x538] sm:$0xff]
    %v2245 = vld [vmem:[#allocation8 + $0x540] sm:$0xff]
    %v2246 = vld [vmem:[#allocation8 + $0x548] sm:$0xff]
    %v2247 = vld [vmem:[#allocation8 + $0x550] sm:$0xff]
    %v2248 = vld [vmem:[#allocation8 + $0x558] sm:$0xff]
    %v2249 = vld [vmem:[#allocation8 + $0x560] sm:$0xff]
    %v2250 = vld [vmem:[#allocation8 + $0x568] sm:$0xff]
    %v2251 = vld [vmem:[#allocation8 + $0x570] sm:$0xff]
    %v2252 = vld [vmem:[#allocation8 + $0x578] sm:$0xff]
    %v2253 = vld [vmem:[#allocation8 + $0x580] sm:$0xff]
    %v2254 = vld [vmem:[#allocation8 + $0x588] sm:$0xff]
    %v2255 = vld [vmem:[#allocation8 + $0x590] sm:$0xff]
    %v2256 = vld [vmem:[#allocation8 + $0x598] sm:$0xff]
    %v2257 = vld [vmem:[#allocation8 + $0x5a0] sm:$0xff]
    %v2258 = vld [vmem:[#allocation8 + $0x5a8] sm:$0xff]
    %v2259 = vld [vmem:[#allocation8 + $0x5b0] sm:$0xff]
    %v2260 = vld [vmem:[#allocation8 + $0x5b8] sm:$0xff]
    %v2261 = vld [vmem:[#allocation8 + $0x5c0] sm:$0xff]
    %v2262 = vld [vmem:[#allocation8 + $0x5c8] sm:$0xff]
    %v2263 = vld [vmem:[#allocation8 + $0x5d0] sm:$0xff]
    %v2264 = vld [vmem:[#allocation8 + $0x5d8] sm:$0xff]
    %v2265 = vld [vmem:[#allocation8 + $0x5e0] sm:$0xff]
    %v2266 = vld [vmem:[#allocation8 + $0x5e8] sm:$0xff]
    %v2267 = vld [vmem:[#allocation8 + $0x5f0] sm:$0xff]
    %v2268 = vld [vmem:[#allocation8 + $0x5f8] sm:$0xff]
    %v2269 = vld [vmem:[#allocation8 + $0x600] sm:$0xff]
    %v2270 = vld [vmem:[#allocation8 + $0x608] sm:$0xff]
    %v2271 = vld [vmem:[#allocation8 + $0x610] sm:$0xff]
    %v2272 = vld [vmem:[#allocation8 + $0x618] sm:$0xff]
    %v2273 = vld [vmem:[#allocation8 + $0x620] sm:$0xff]
    %v2274 = vld [vmem:[#allocation8 + $0x628] sm:$0xff]
    %v2275 = vld [vmem:[#allocation8 + $0x630] sm:$0xff]
    %v2276 = vld [vmem:[#allocation8 + $0x638] sm:$0xff]
    %v2277 = vld [vmem:[#allocation8 + $0x640] sm:$0xff]
    %v2278 = vld [vmem:[#allocation8 + $0x648] sm:$0xff]
    %v2279 = vld [vmem:[#allocation8 + $0x650] sm:$0xff]
    %v2280 = vld [vmem:[#allocation8 + $0x658] sm:$0xff]
    %v2281 = vld [vmem:[#allocation8 + $0x660] sm:$0xff]
    %v2282 = vld [vmem:[#allocation8 + $0x668] sm:$0xff]
    %v2283 = vld [vmem:[#allocation8 + $0x670] sm:$0xff]
    %v2284 = vld [vmem:[#allocation8 + $0x678] sm:$0xff]
    %v2285 = vld [vmem:[#allocation8 + $0x680] sm:$0xff]
    %v2286 = vld [vmem:[#allocation8 + $0x688] sm:$0xff]
    %v2287 = vld [vmem:[#allocation8 + $0x690] sm:$0xff]
    %v2288 = vld [vmem:[#allocation8 + $0x698] sm:$0xff]
    %v2289 = vld [vmem:[#allocation8 + $0x6a0] sm:$0xff]
    %v2290 = vld [vmem:[#allocation8 + $0x6a8] sm:$0xff]
    %v2291 = vld [vmem:[#allocation8 + $0x6b0] sm:$0xff]
    %v2292 = vld [vmem:[#allocation8 + $0x6b8] sm:$0xff]
    %v2293 = vld [vmem:[#allocation8 + $0x6c0] sm:$0xff]
    %v2294 = vld [vmem:[#allocation8 + $0x6c8] sm:$0xff]
    %v2295 = vld [vmem:[#allocation8 + $0x6d0] sm:$0xff]
    %v2296 = vld [vmem:[#allocation8 + $0x6d8] sm:$0xff]
    %v2297 = vld [vmem:[#allocation8 + $0x6e0] sm:$0xff]
    %v2298 = vld [vmem:[#allocation8 + $0x6e8] sm:$0xff]
    %v2299 = vld [vmem:[#allocation8 + $0x6f0] sm:$0xff]
    %v2300 = vld [vmem:[#allocation8 + $0x6f8] sm:$0xff]
    %v2301 = vld [vmem:[#allocation8 + $0x700] sm:$0xff]
    %v2302 = vld [vmem:[#allocation8 + $0x708] sm:$0xff]
    %v2303 = vld [vmem:[#allocation8 + $0x710] sm:$0xff]
    %v2304 = vld [vmem:[#allocation8 + $0x718] sm:$0xff]
    %v2305 = vld [vmem:[#allocation8 + $0x720] sm:$0xff]
    %v2306 = vld [vmem:[#allocation8 + $0x728] sm:$0xff]
    %v2307 = vld [vmem:[#allocation8 + $0x730] sm:$0xff]
    %v2308 = vld [vmem:[#allocation8 + $0x738] sm:$0xff]
    %v2309 = vld [vmem:[#allocation8 + $0x740] sm:$0xff]
    %v2310 = vld [vmem:[#allocation8 + $0x748] sm:$0xff]
    %v2311 = vld [vmem:[#allocation8 + $0x750] sm:$0xff]
    %v2312 = vld [vmem:[#allocation8 + $0x758] sm:$0xff]
    %v2313 = vld [vmem:[#allocation8 + $0x760] sm:$0xff]
    %v2314 = vld [vmem:[#allocation8 + $0x768] sm:$0xff]
    %v2315 = vld [vmem:[#allocation8 + $0x770] sm:$0xff]
    %v2316 = vld [vmem:[#allocation8 + $0x778] sm:$0xff]
    %v2317 = vld [vmem:[#allocation8 + $0x780] sm:$0xff]
    %v2318 = vld [vmem:[#allocation8 + $0x788] sm:$0xff]
    %v2319 = vld [vmem:[#allocation8 + $0x790] sm:$0xff]
    %v2320 = vld [vmem:[#allocation8 + $0x798] sm:$0xff]
    %v2321 = vld [vmem:[#allocation8 + $0x7a0] sm:$0xff]
    %v2322 = vld [vmem:[#allocation8 + $0x7a8] sm:$0xff]
    %v2323 = vld [vmem:[#allocation8 + $0x7b0] sm:$0xff]
    %v2324 = vld [vmem:[#allocation8 + $0x7b8] sm:$0xff]
    %v2325 = vld [vmem:[#allocation8 + $0x7c0] sm:$0xff]
    %v2326 = vld [vmem:[#allocation8 + $0x7c8] sm:$0xff]
    %v2327 = vld [vmem:[#allocation8 + $0x7d0] sm:$0xff]
    %v2328 = vld [vmem:[#allocation8 + $0x7d8] sm:$0xff]
    %v2329 = vld [vmem:[#allocation8 + $0x7e0] sm:$0xff]
    %v2330 = vld [vmem:[#allocation8 + $0x7e8] sm:$0xff]
    %v2331 = vld [vmem:[#allocation8 + $0x7f0] sm:$0xff]
    %v2332 = vld [vmem:[#allocation8 + $0x7f8] sm:$0xff]
    %v2333 = vld [vmem:[#allocation8 + $0x800] sm:$0xff]
    %v2334 = vld [vmem:[#allocation8 + $0x808] sm:$0xff]
    %v2335 = vld [vmem:[#allocation8 + $0x810] sm:$0xff]
    %v2336 = vld [vmem:[#allocation8 + $0x818] sm:$0xff]
    %v2337 = vld [vmem:[#allocation8 + $0x820] sm:$0xff]
    %v2338 = vld [vmem:[#allocation8 + $0x828] sm:$0xff]
    %v2339 = vld [vmem:[#allocation8 + $0x830] sm:$0xff]
    %v2340 = vld [vmem:[#allocation8 + $0x838] sm:$0xff]
    %v2341 = vld [vmem:[#allocation8 + $0x840] sm:$0xff]
    %v2342 = vld [vmem:[#allocation8 + $0x848] sm:$0xff]
    %v2343 = vld [vmem:[#allocation8 + $0x850] sm:$0xff]
    %v2344 = vld [vmem:[#allocation8 + $0x858] sm:$0xff]
    %v2345 = vld [vmem:[#allocation8 + $0x860] sm:$0xff]
    %v2346 = vld [vmem:[#allocation8 + $0x868] sm:$0xff]
    %v2347 = vld [vmem:[#allocation8 + $0x870] sm:$0xff]
    %v2348 = vld [vmem:[#allocation8 + $0x878] sm:$0xff]
    %v2349 = vld [vmem:[#allocation8 + $0x880] sm:$0xff]
    %v2350 = vld [vmem:[#allocation8 + $0x888] sm:$0xff]
    %v2351 = vld [vmem:[#allocation8 + $0x890] sm:$0xff]
    %v2352 = vld [vmem:[#allocation8 + $0x898] sm:$0xff]
    %v2353 = vld [vmem:[#allocation8 + $0x8a0] sm:$0xff]
    %v2354 = vld [vmem:[#allocation8 + $0x8a8] sm:$0xff]
    %v2355 = vld [vmem:[#allocation8 + $0x8b0] sm:$0xff]
    %v2356 = vld [vmem:[#allocation8 + $0x8b8] sm:$0xff]
    %v2357 = vld [vmem:[#allocation8 + $0x8c0] sm:$0xff]
    %v2358 = vld [vmem:[#allocation8 + $0x8c8] sm:$0xff]
    %v2359 = vld [vmem:[#allocation8 + $0x8d0] sm:$0xff]
    %v2360 = vld [vmem:[#allocation8 + $0x8d8] sm:$0xff]
    %v2361 = vld [vmem:[#allocation8 + $0x8e0] sm:$0xff]
    %v2362 = vld [vmem:[#allocation8 + $0x8e8] sm:$0xff]
    %v2363 = vld [vmem:[#allocation8 + $0x8f0] sm:$0xff]
    %v2364 = vld [vmem:[#allocation8 + $0x8f8] sm:$0xff]
    %v2365 = vld [vmem:[#allocation8 + $0x900] sm:$0xff]
    %v2366 = vld [vmem:[#allocation8 + $0x908] sm:$0xff]
    %v2367 = vld [vmem:[#allocation8 + $0x910] sm:$0xff]
    %v2368 = vld [vmem:[#allocation8 + $0x918] sm:$0xff]
    %v2369 = vld [vmem:[#allocation8 + $0x920] sm:$0xff]
    %v2370 = vld [vmem:[#allocation8 + $0x928] sm:$0xff]
    %v2371 = vld [vmem:[#allocation8 + $0x930] sm:$0xff]
    %v2372 = vld [vmem:[#allocation8 + $0x938] sm:$0xff]
    %v2373 = vld [vmem:[#allocation8 + $0x940] sm:$0xff]
    %v2374 = vld [vmem:[#allocation8 + $0x948] sm:$0xff]
    %v2375 = vld [vmem:[#allocation8 + $0x950] sm:$0xff]
    %v2376 = vld [vmem:[#allocation8 + $0x958] sm:$0xff]
    %v2377 = vld [vmem:[#allocation8 + $0x960] sm:$0xff]
    %v2378 = vld [vmem:[#allocation8 + $0x968] sm:$0xff]
    %v2379 = vld [vmem:[#allocation8 + $0x970] sm:$0xff]
    %v2380 = vld [vmem:[#allocation8 + $0x978] sm:$0xff]
    %v2381 = vld [vmem:[#allocation8 + $0x980] sm:$0xff]
    %v2382 = vld [vmem:[#allocation8 + $0x988] sm:$0xff]
    %v2383 = vld [vmem:[#allocation8 + $0x990] sm:$0xff]
    %v2384 = vld [vmem:[#allocation8 + $0x998] sm:$0xff]
    %v2385 = vld [vmem:[#allocation8 + $0x9a0] sm:$0xff]
    %v2386 = vld [vmem:[#allocation8 + $0x9a8] sm:$0xff]
    %v2387 = vld [vmem:[#allocation8 + $0x9b0] sm:$0xff]
    %v2388 = vld [vmem:[#allocation8 + $0x9b8] sm:$0xff]
    %v2389 = vld [vmem:[#allocation8 + $0x9c0] sm:$0xff]
    %v2390 = vld [vmem:[#allocation8 + $0x9c8] sm:$0xff]
    %v2391 = vld [vmem:[#allocation8 + $0x9d0] sm:$0xff]
    %v2392 = vld [vmem:[#allocation8 + $0x9d8] sm:$0xff]
    %v2393 = vld [vmem:[#allocation8 + $0x9e0] sm:$0xff]
    %v2394 = vld [vmem:[#allocation8 + $0x9e8] sm:$0xff]
    %v2395 = vld [vmem:[#allocation8 + $0x9f0] sm:$0xff]
    %v2396 = vld [vmem:[#allocation8 + $0x9f8] sm:$0xff]
    %v2397 = vld [vmem:[#allocation8 + $0xa00] sm:$0xff]
    %v2398 = vld [vmem:[#allocation8 + $0xa08] sm:$0xff]
    %v2399 = vld [vmem:[#allocation8 + $0xa10] sm:$0xff]
    %v2400 = vld [vmem:[#allocation8 + $0xa18] sm:$0xff]
    %v2401 = vld [vmem:[#allocation8 + $0xa20] sm:$0xff]
    %v2402 = vld [vmem:[#allocation8 + $0xa28] sm:$0xff]
    %v2403 = vld [vmem:[#allocation8 + $0xa30] sm:$0xff]
    %v2404 = vld [vmem:[#allocation8 + $0xa38] sm:$0xff]
    %v2405 = vld [vmem:[#allocation8 + $0xa40] sm:$0xff]
    %v2406 = vld [vmem:[#allocation8 + $0xa48] sm:$0xff]
    %v2407 = vld [vmem:[#allocation8 + $0xa50] sm:$0xff]
    %v2408 = vld [vmem:[#allocation8 + $0xa58] sm:$0xff]
    %v2409 = vld [vmem:[#allocation8 + $0xa60] sm:$0xff]
    %v2410 = vld [vmem:[#allocation8 + $0xa68] sm:$0xff]
    %v2411 = vld [vmem:[#allocation8 + $0xa70] sm:$0xff]
    %v2412 = vld [vmem:[#allocation8 + $0xa78] sm:$0xff]
    %v2413 = vld [vmem:[#allocation8 + $0xa80] sm:$0xff]
    %v2414 = vld [vmem:[#allocation8 + $0xa88] sm:$0xff]
    %v2415 = vld [vmem:[#allocation8 + $0xa90] sm:$0xff]
    %v2416 = vld [vmem:[#allocation8 + $0xa98] sm:$0xff]
    %v2417 = vld [vmem:[#allocation8 + $0xaa0] sm:$0xff]
    %v2418 = vld [vmem:[#allocation8 + $0xaa8] sm:$0xff]
    %v2419 = vld [vmem:[#allocation8 + $0xab0] sm:$0xff]
    %v2420 = vld [vmem:[#allocation8 + $0xab8] sm:$0xff]
    %v2421 = vld [vmem:[#allocation8 + $0xac0] sm:$0xff]
    %v2422 = vld [vmem:[#allocation8 + $0xac8] sm:$0xff]
    %v2423 = vld [vmem:[#allocation8 + $0xad0] sm:$0xff]
    %v2424 = vld [vmem:[#allocation8 + $0xad8] sm:$0xff]
    %v2425 = vld [vmem:[#allocation8 + $0xae0] sm:$0xff]
    %v2426 = vld [vmem:[#allocation8 + $0xae8] sm:$0xff]
    %v2427 = vld [vmem:[#allocation8 + $0xaf0] sm:$0xff]
    %v2428 = vld [vmem:[#allocation8 + $0xaf8] sm:$0xff]
    %v2429 = vld [vmem:[#allocation8 + $0xb00] sm:$0xff]
    %v2430 = vld [vmem:[#allocation8 + $0xb08] sm:$0xff]
    %v2431 = vld [vmem:[#allocation8 + $0xb10] sm:$0xff]
    %v2432 = vld [vmem:[#allocation8 + $0xb18] sm:$0xff]
    %v2433 = vld [vmem:[#allocation8 + $0xb20] sm:$0xff]
    %v2434 = vld [vmem:[#allocation8 + $0xb28] sm:$0xff]
    %v2435 = vld [vmem:[#allocation8 + $0xb30] sm:$0xff]
    %v2436 = vld [vmem:[#allocation8 + $0xb38] sm:$0xff]
    %v2437 = vld [vmem:[#allocation8 + $0xb40] sm:$0xff]
    %v2438 = vld [vmem:[#allocation8 + $0xb48] sm:$0xff]
    %v2439 = vld [vmem:[#allocation8 + $0xb50] sm:$0xff]
    %v2440 = vld [vmem:[#allocation8 + $0xb58] sm:$0xff]
    %v2441 = vld [vmem:[#allocation8 + $0xb60] sm:$0xff]
    %v2442 = vld [vmem:[#allocation8 + $0xb68] sm:$0xff]
    %v2443 = vld [vmem:[#allocation8 + $0xb70] sm:$0xff]
    %v2444 = vld [vmem:[#allocation8 + $0xb78] sm:$0xff]
    %v2445 = vld [vmem:[#allocation8 + $0xb80] sm:$0xff]
    %v2446 = vld [vmem:[#allocation8 + $0xb88] sm:$0xff]
    %v2447 = vld [vmem:[#allocation8 + $0xb90] sm:$0xff]
    %v2448 = vld [vmem:[#allocation8 + $0xb98] sm:$0xff]
    %v2449 = vld [vmem:[#allocation8 + $0xba0] sm:$0xff]
    %v2450 = vld [vmem:[#allocation8 + $0xba8] sm:$0xff]
    %v2451 = vld [vmem:[#allocation8 + $0xbb0] sm:$0xff]
    %v2452 = vld [vmem:[#allocation8 + $0xbb8] sm:$0xff]
    %v2453 = vld [vmem:[#allocation8 + $0xbc0] sm:$0xff]
    %v2454 = vld [vmem:[#allocation8 + $0xbc8] sm:$0xff]
    %v2455 = vld [vmem:[#allocation8 + $0xbd0] sm:$0xff]
    %v2456 = vld [vmem:[#allocation8 + $0xbd8] sm:$0xff]
    %v2457 = vld [vmem:[#allocation8 + $0xbe0] sm:$0xff]
    %v2458 = vld [vmem:[#allocation8 + $0xbe8] sm:$0xff]
    %v2459 = vld [vmem:[#allocation8 + $0xbf0] sm:$0xff]
    %v2460 = vld [vmem:[#allocation8 + $0xbf8] sm:$0xff]
    %v2461 = vld [vmem:[#allocation8 + $0xc00] sm:$0xff]
    %v2462 = vld [vmem:[#allocation8 + $0xc08] sm:$0xff]
    %v2463 = vld [vmem:[#allocation8 + $0xc10] sm:$0xff]
    %v2464 = vld [vmem:[#allocation8 + $0xc18] sm:$0xff]
    %v2465 = vld [vmem:[#allocation8 + $0xc20] sm:$0xff]
    %v2466 = vld [vmem:[#allocation8 + $0xc28] sm:$0xff]
    %v2467 = vld [vmem:[#allocation8 + $0xc30] sm:$0xff]
    %v2468 = vld [vmem:[#allocation8 + $0xc38] sm:$0xff]
    %v2469 = vld [vmem:[#allocation8 + $0xc40] sm:$0xff]
    %v2470 = vld [vmem:[#allocation8 + $0xc48] sm:$0xff]
    %v2471 = vld [vmem:[#allocation8 + $0xc50] sm:$0xff]
    %v2472 = vld [vmem:[#allocation8 + $0xc58] sm:$0xff]
    %v2473 = vld [vmem:[#allocation8 + $0xc60] sm:$0xff]
    %v2474 = vld [vmem:[#allocation8 + $0xc68] sm:$0xff]
    %v2475 = vld [vmem:[#allocation8 + $0xc70] sm:$0xff]
    %v2476 = vld [vmem:[#allocation8 + $0xc78] sm:$0xff]
    %v2477 = vld [vmem:[#allocation8 + $0xc80] sm:$0xff]
    %v2478 = vld [vmem:[#allocation8 + $0xc88] sm:$0xff]
    %v2479 = vld [vmem:[#allocation8 + $0xc90] sm:$0xff]
    %v2480 = vld [vmem:[#allocation8 + $0xc98] sm:$0xff]
    %v2481 = vld [vmem:[#allocation8 + $0xca0] sm:$0xff]
    %v2482 = vld [vmem:[#allocation8 + $0xca8] sm:$0xff]
    %v2483 = vld [vmem:[#allocation8 + $0xcb0] sm:$0xff]
    %v2484 = vld [vmem:[#allocation8 + $0xcb8] sm:$0xff]
    %v2485 = vld [vmem:[#allocation8 + $0xcc0] sm:$0xff]
    %v2486 = vld [vmem:[#allocation8 + $0xcc8] sm:$0xff]
    %v2487 = vld [vmem:[#allocation8 + $0xcd0] sm:$0xff]
    %v2488 = vld [vmem:[#allocation8 + $0xcd8] sm:$0xff]
    %v2489 = vld [vmem:[#allocation8 + $0xce0] sm:$0xff]
    %v2490 = vld [vmem:[#allocation8 + $0xce8] sm:$0xff]
    %v2491 = vld [vmem:[#allocation8 + $0xcf0] sm:$0xff]
    %v2492 = vld [vmem:[#allocation8 + $0xcf8] sm:$0xff]
    %v2493 = vld [vmem:[#allocation8 + $0xd00] sm:$0xff]
    %v2494 = vld [vmem:[#allocation8 + $0xd08] sm:$0xff]
    %v2495 = vld [vmem:[#allocation8 + $0xd10] sm:$0xff]
    %v2496 = vld [vmem:[#allocation8 + $0xd18] sm:$0xff]
    %v2497 = vld [vmem:[#allocation8 + $0xd20] sm:$0xff]
    %v2498 = vld [vmem:[#allocation8 + $0xd28] sm:$0xff]
    %v2499 = vld [vmem:[#allocation8 + $0xd30] sm:$0xff]
    %v2500 = vld [vmem:[#allocation8 + $0xd38] sm:$0xff]
    %v2501 = vld [vmem:[#allocation8 + $0xd40] sm:$0xff]
    %v2502 = vld [vmem:[#allocation8 + $0xd48] sm:$0xff]
    %v2503 = vld [vmem:[#allocation8 + $0xd50] sm:$0xff]
    %v2504 = vld [vmem:[#allocation8 + $0xd58] sm:$0xff]
    %v2505 = vld [vmem:[#allocation8 + $0xd60] sm:$0xff]
    %v2506 = vld [vmem:[#allocation8 + $0xd68] sm:$0xff]
    %v2507 = vld [vmem:[#allocation8 + $0xd70] sm:$0xff]
    %v2508 = vld [vmem:[#allocation8 + $0xd78] sm:$0xff]
    %v2509 = vld [vmem:[#allocation8 + $0xd80] sm:$0xff]
    %v2510 = vld [vmem:[#allocation8 + $0xd88] sm:$0xff]
    %v2511 = vld [vmem:[#allocation8 + $0xd90] sm:$0xff]
    %v2512 = vld [vmem:[#allocation8 + $0xd98] sm:$0xff]
    %v2513 = vld [vmem:[#allocation8 + $0xda0] sm:$0xff]
    %v2514 = vld [vmem:[#allocation8 + $0xda8] sm:$0xff]
    %v2515 = vld [vmem:[#allocation8 + $0xdb0] sm:$0xff]
    %v2516 = vld [vmem:[#allocation8 + $0xdb8] sm:$0xff]
    %v2517 = vld [vmem:[#allocation8 + $0xdc0] sm:$0xff]
    %v2518 = vld [vmem:[#allocation8 + $0xdc8] sm:$0xff]
    %v2519 = vld [vmem:[#allocation8 + $0xdd0] sm:$0xff]
    %v2520 = vld [vmem:[#allocation8 + $0xdd8] sm:$0xff]
    %v2521 = vld [vmem:[#allocation8 + $0xde0] sm:$0xff]
    %v2522 = vld [vmem:[#allocation8 + $0xde8] sm:$0xff]
    %v2523 = vld [vmem:[#allocation8 + $0xdf0] sm:$0xff]
    %v2524 = vld [vmem:[#allocation8 + $0xdf8] sm:$0xff]
    %v2525 = vld [vmem:[#allocation8 + $0xe00] sm:$0xff]
    %v2526 = vld [vmem:[#allocation8 + $0xe08] sm:$0xff]
    %v2527 = vld [vmem:[#allocation8 + $0xe10] sm:$0xff]
    %v2528 = vld [vmem:[#allocation8 + $0xe18] sm:$0xff]
    %v2529 = vld [vmem:[#allocation8 + $0xe20] sm:$0xff]
    %v2530 = vld [vmem:[#allocation8 + $0xe28] sm:$0xff]
    %v2531 = vld [vmem:[#allocation8 + $0xe30] sm:$0xff]
    %v2532 = vld [vmem:[#allocation8 + $0xe38] sm:$0xff]
    %v2533 = vld [vmem:[#allocation8 + $0xe40] sm:$0xff]
    %v2534 = vld [vmem:[#allocation8 + $0xe48] sm:$0xff]
    %v2535 = vld [vmem:[#allocation8 + $0xe50] sm:$0xff]
    %v2536 = vld [vmem:[#allocation8 + $0xe58] sm:$0xff]
    %v2537 = vld [vmem:[#allocation8 + $0xe60] sm:$0xff]
    %v2538 = vld [vmem:[#allocation8 + $0xe68] sm:$0xff]
    %v2539 = vld [vmem:[#allocation8 + $0xe70] sm:$0xff]
    %v2540 = vld [vmem:[#allocation8 + $0xe78] sm:$0xff]
    %v2541 = vld [vmem:[#allocation8 + $0xe80] sm:$0xff]
    %v2542 = vld [vmem:[#allocation8 + $0xe88] sm:$0xff]
    %v2543 = vld [vmem:[#allocation8 + $0xe90] sm:$0xff]
    %v2544 = vld [vmem:[#allocation8 + $0xe98] sm:$0xff]
    %v2545 = vld [vmem:[#allocation8 + $0xea0] sm:$0xff]
    %v2546 = vld [vmem:[#allocation8 + $0xea8] sm:$0xff]
    %v2547 = vld [vmem:[#allocation8 + $0xeb0] sm:$0xff]
    %v2548 = vld [vmem:[#allocation8 + $0xeb8] sm:$0xff]
    %v2549 = vld [vmem:[#allocation8 + $0xec0] sm:$0xff]
    %v2550 = vld [vmem:[#allocation8 + $0xec8] sm:$0xff]
    %v2551 = vld [vmem:[#allocation8 + $0xed0] sm:$0xff]
    %v2552 = vld [vmem:[#allocation8 + $0xed8] sm:$0xff]
    %v2553 = vld [vmem:[#allocation8 + $0xee0] sm:$0xff]
    %v2554 = vld [vmem:[#allocation8 + $0xee8] sm:$0xff]
    %v2555 = vld [vmem:[#allocation8 + $0xef0] sm:$0xff]
    %v2556 = vld [vmem:[#allocation8 + $0xef8] sm:$0xff]
    %v2557 = vld [vmem:[#allocation8 + $0xf00] sm:$0xff]
    %v2558 = vld [vmem:[#allocation8 + $0xf08] sm:$0xff]
    %v2559 = vld [vmem:[#allocation8 + $0xf10] sm:$0xff]
    %v2560 = vld [vmem:[#allocation8 + $0xf18] sm:$0xff]
    %v2561 = vld [vmem:[#allocation8 + $0xf20] sm:$0xff]
    %v2562 = vld [vmem:[#allocation8 + $0xf28] sm:$0xff]
    %v2563 = vld [vmem:[#allocation8 + $0xf30] sm:$0xff]
    %v2564 = vld [vmem:[#allocation8 + $0xf38] sm:$0xff]
    %v2565 = vld [vmem:[#allocation8 + $0xf40] sm:$0xff]
    %v2566 = vld [vmem:[#allocation8 + $0xf48] sm:$0xff]
    %v2567 = vld [vmem:[#allocation8 + $0xf50] sm:$0xff]
    %v2568 = vld [vmem:[#allocation8 + $0xf58] sm:$0xff]
    %v2569 = vld [vmem:[#allocation8 + $0xf60] sm:$0xff]
    %v2570 = vld [vmem:[#allocation8 + $0xf68] sm:$0xff]
    %v2571 = vld [vmem:[#allocation8 + $0xf70] sm:$0xff]
    %v2572 = vld [vmem:[#allocation8 + $0xf78] sm:$0xff]
    %v2573 = vld [vmem:[#allocation8 + $0xf80] sm:$0xff]
    %v2574 = vld [vmem:[#allocation8 + $0xf88] sm:$0xff]
    %v2575 = vld [vmem:[#allocation8 + $0xf90] sm:$0xff]
    %v2576 = vld [vmem:[#allocation8 + $0xf98] sm:$0xff]
    %v2577 = vld [vmem:[#allocation8 + $0xfa0] sm:$0xff]
    %v2578 = vld [vmem:[#allocation8 + $0xfa8] sm:$0xff]
    %v2579 = vld [vmem:[#allocation8 + $0xfb0] sm:$0xff]
    %v2580 = vld [vmem:[#allocation8 + $0xfb8] sm:$0xff]
    %v2581 = vld [vmem:[#allocation8 + $0xfc0] sm:$0xff]
    %v2582 = vld [vmem:[#allocation8 + $0xfc8] sm:$0xff]
    %v2583 = vld [vmem:[#allocation8 + $0xfd0] sm:$0xff]
    %v2584 = vld [vmem:[#allocation8 + $0xfd8] sm:$0xff]
    %v2585 = vld [vmem:[#allocation8 + $0xfe0] sm:$0xff]
    %v2586 = vld [vmem:[#allocation8 + $0xfe8] sm:$0xff]
    %v2587 = vld [vmem:[#allocation8 + $0xff0] sm:$0xff]
    %v2588 = vld [vmem:[#allocation8 + $0xff8] sm:$0xff]
    %v2590 = vlaneseq
    %v2591 = vshrl.u32 %v2590, 7
    %v2592 = vsub.s32 0, %v2591
    %v2593 = vrot.slane %v130, %v2592
    %v2594 = vlaneseq
    %v2595 = vshrl.u32 %v2594, 7
    %v2596 = vsub.s32 1, %v2595
    %v2597 = vrot.slane %v130, %v2596
    %v2598 = vlaneseq
    %v2599 = vshrl.u32 %v2598, 7
    %v2600 = vsub.s32 2, %v2599
    %v2601 = vrot.slane %v130, %v2600
    %v2602 = vlaneseq
    %v2603 = vshrl.u32 %v2602, 7
    %v2604 = vsub.s32 3, %v2603
    %v2605 = vrot.slane %v130, %v2604
    %v2606 = vlaneseq
    %v2607 = vshrl.u32 %v2606, 7
    %v2608 = vsub.s32 4, %v2607
    %v2609 = vrot.slane %v130, %v2608
    %v2610 = vlaneseq
    %v2611 = vshrl.u32 %v2610, 7
    %v2612 = vsub.s32 5, %v2611
    %v2613 = vrot.slane %v130, %v2612
    %v2614 = vlaneseq
    %v2615 = vshrl.u32 %v2614, 7
    %v2616 = vsub.s32 6, %v2615
    %v2617 = vrot.slane %v130, %v2616
    %v2618 = vlaneseq
    %v2619 = vshrl.u32 %v2618, 7
    %v2620 = vsub.s32 7, %v2619
    %v2621 = vrot.slane %v130, %v2620
    %v3142 = vunpack.c.l.b16 %v2077
    %v3143 = vunpack.c.h.b16 %v2077
    %v3144 = vunpack.c.l.b16 %v2078
    %v3145 = vunpack.c.h.b16 %v2078
    %v3146 = vunpack.c.l.b16 %v2079
    %v3147 = vunpack.c.h.b16 %v2079
    %v3148 = vunpack.c.l.b16 %v2080
    %v3149 = vunpack.c.h.b16 %v2080
    %v3150 = vunpack.c.l.b16 %v2081
    %v3151 = vunpack.c.h.b16 %v2081
    %v3152 = vunpack.c.l.b16 %v2082
    %v3153 = vunpack.c.h.b16 %v2082
    %v3154 = vunpack.c.l.b16 %v2083
    %v3155 = vunpack.c.h.b16 %v2083
    %v3156 = vunpack.c.l.b16 %v2084
    %v3157 = vunpack.c.h.b16 %v2084
    %v3158 = vunpack.c.l.b16 %v2085
    %v3159 = vunpack.c.h.b16 %v2085
    %v3160 = vunpack.c.l.b16 %v2086
    %v3161 = vunpack.c.h.b16 %v2086
    %v3162 = vunpack.c.l.b16 %v2087
    %v3163 = vunpack.c.h.b16 %v2087
    %v3164 = vunpack.c.l.b16 %v2088
    %v3165 = vunpack.c.h.b16 %v2088
    %v3166 = vunpack.c.l.b16 %v2089
    %v3167 = vunpack.c.h.b16 %v2089
    %v3168 = vunpack.c.l.b16 %v2090
    %v3169 = vunpack.c.h.b16 %v2090
    %v3170 = vunpack.c.l.b16 %v2091
    %v3171 = vunpack.c.h.b16 %v2091
    %v3172 = vunpack.c.l.b16 %v2092
    %v3173 = vunpack.c.h.b16 %v2092
    %v3174 = vunpack.c.l.b16 %v2093
    %v3175 = vunpack.c.h.b16 %v2093
    %v3176 = vunpack.c.l.b16 %v2094
    %v3177 = vunpack.c.h.b16 %v2094
    %v3178 = vunpack.c.l.b16 %v2095
    %v3179 = vunpack.c.h.b16 %v2095
    %v3180 = vunpack.c.l.b16 %v2096
    %v3181 = vunpack.c.h.b16 %v2096
    %v3182 = vunpack.c.l.b16 %v2097
    %v3183 = vunpack.c.h.b16 %v2097
    %v3184 = vunpack.c.l.b16 %v2098
    %v3185 = vunpack.c.h.b16 %v2098
    %v3186 = vunpack.c.l.b16 %v2099
    %v3187 = vunpack.c.h.b16 %v2099
    %v3188 = vunpack.c.l.b16 %v2100
    %v3189 = vunpack.c.h.b16 %v2100
    %v3190 = vunpack.c.l.b16 %v2101
    %v3191 = vunpack.c.h.b16 %v2101
    %v3192 = vunpack.c.l.b16 %v2102
    %v3193 = vunpack.c.h.b16 %v2102
    %v3194 = vunpack.c.l.b16 %v2103
    %v3195 = vunpack.c.h.b16 %v2103
    %v3196 = vunpack.c.l.b16 %v2104
    %v3197 = vunpack.c.h.b16 %v2104
    %v3198 = vunpack.c.l.b16 %v2105
    %v3199 = vunpack.c.h.b16 %v2105
    %v3200 = vunpack.c.l.b16 %v2106
    %v3201 = vunpack.c.h.b16 %v2106
    %v3202 = vunpack.c.l.b16 %v2107
    %v3203 = vunpack.c.h.b16 %v2107
    %v3204 = vunpack.c.l.b16 %v2108
    %v3205 = vunpack.c.h.b16 %v2108
    %v3206 = vunpack.c.l.b16 %v2109
    %v3207 = vunpack.c.h.b16 %v2109
    %v3208 = vunpack.c.l.b16 %v2110
    %v3209 = vunpack.c.h.b16 %v2110
    %v3210 = vunpack.c.l.b16 %v2111
    %v3211 = vunpack.c.h.b16 %v2111
    %v3212 = vunpack.c.l.b16 %v2112
    %v3213 = vunpack.c.h.b16 %v2112
    %v3214 = vunpack.c.l.b16 %v2113
    %v3215 = vunpack.c.h.b16 %v2113
    %v3216 = vunpack.c.l.b16 %v2114
    %v3217 = vunpack.c.h.b16 %v2114
    %v3218 = vunpack.c.l.b16 %v2115
    %v3219 = vunpack.c.h.b16 %v2115
    %v3220 = vunpack.c.l.b16 %v2116
    %v3221 = vunpack.c.h.b16 %v2116
    %v3222 = vunpack.c.l.b16 %v2117
    %v3223 = vunpack.c.h.b16 %v2117
    %v3224 = vunpack.c.l.b16 %v2118
    %v3225 = vunpack.c.h.b16 %v2118
    %v3226 = vunpack.c.l.b16 %v2119
    %v3227 = vunpack.c.h.b16 %v2119
    %v3228 = vunpack.c.l.b16 %v2120
    %v3229 = vunpack.c.h.b16 %v2120
    %v3230 = vunpack.c.l.b16 %v2121
    %v3231 = vunpack.c.h.b16 %v2121
    %v3232 = vunpack.c.l.b16 %v2122
    %v3233 = vunpack.c.h.b16 %v2122
    %v3234 = vunpack.c.l.b16 %v2123
    %v3235 = vunpack.c.h.b16 %v2123
    %v3236 = vunpack.c.l.b16 %v2124
    %v3237 = vunpack.c.h.b16 %v2124
    %v3238 = vunpack.c.l.b16 %v2125
    %v3239 = vunpack.c.h.b16 %v2125
    %v3240 = vunpack.c.l.b16 %v2126
    %v3241 = vunpack.c.h.b16 %v2126
    %v3242 = vunpack.c.l.b16 %v2127
    %v3243 = vunpack.c.h.b16 %v2127
    %v3244 = vunpack.c.l.b16 %v2128
    %v3245 = vunpack.c.h.b16 %v2128
    %v3246 = vunpack.c.l.b16 %v2129
    %v3247 = vunpack.c.h.b16 %v2129
    %v3248 = vunpack.c.l.b16 %v2130
    %v3249 = vunpack.c.h.b16 %v2130
    %v3250 = vunpack.c.l.b16 %v2131
    %v3251 = vunpack.c.h.b16 %v2131
    %v3252 = vunpack.c.l.b16 %v2132
    %v3253 = vunpack.c.h.b16 %v2132
    %v3254 = vunpack.c.l.b16 %v2133
    %v3255 = vunpack.c.h.b16 %v2133
    %v3256 = vunpack.c.l.b16 %v2134
    %v3257 = vunpack.c.h.b16 %v2134
    %v3258 = vunpack.c.l.b16 %v2135
    %v3259 = vunpack.c.h.b16 %v2135
    %v3260 = vunpack.c.l.b16 %v2136
    %v3261 = vunpack.c.h.b16 %v2136
    %v3262 = vunpack.c.l.b16 %v2137
    %v3263 = vunpack.c.h.b16 %v2137
    %v3264 = vunpack.c.l.b16 %v2138
    %v3265 = vunpack.c.h.b16 %v2138
    %v3266 = vunpack.c.l.b16 %v2139
    %v3267 = vunpack.c.h.b16 %v2139
    %v3268 = vunpack.c.l.b16 %v2140
    %v3269 = vunpack.c.h.b16 %v2140
    %v3270 = vunpack.c.l.b16 %v2141
    %v3271 = vunpack.c.h.b16 %v2141
    %v3272 = vunpack.c.l.b16 %v2142
    %v3273 = vunpack.c.h.b16 %v2142
    %v3274 = vunpack.c.l.b16 %v2143
    %v3275 = vunpack.c.h.b16 %v2143
    %v3276 = vunpack.c.l.b16 %v2144
    %v3277 = vunpack.c.h.b16 %v2144
    %v3278 = vunpack.c.l.b16 %v2145
    %v3279 = vunpack.c.h.b16 %v2145
    %v3280 = vunpack.c.l.b16 %v2146
    %v3281 = vunpack.c.h.b16 %v2146
    %v3282 = vunpack.c.l.b16 %v2147
    %v3283 = vunpack.c.h.b16 %v2147
    %v3284 = vunpack.c.l.b16 %v2148
    %v3285 = vunpack.c.h.b16 %v2148
    %v3286 = vunpack.c.l.b16 %v2149
    %v3287 = vunpack.c.h.b16 %v2149
    %v3288 = vunpack.c.l.b16 %v2150
    %v3289 = vunpack.c.h.b16 %v2150
    %v3290 = vunpack.c.l.b16 %v2151
    %v3291 = vunpack.c.h.b16 %v2151
    %v3292 = vunpack.c.l.b16 %v2152
    %v3293 = vunpack.c.h.b16 %v2152
    %v3294 = vunpack.c.l.b16 %v2153
    %v3295 = vunpack.c.h.b16 %v2153
    %v3296 = vunpack.c.l.b16 %v2154
    %v3297 = vunpack.c.h.b16 %v2154
    %v3298 = vunpack.c.l.b16 %v2155
    %v3299 = vunpack.c.h.b16 %v2155
    %v3300 = vunpack.c.l.b16 %v2156
    %v3301 = vunpack.c.h.b16 %v2156
    %v3302 = vunpack.c.l.b16 %v2157
    %v3303 = vunpack.c.h.b16 %v2157
    %v3304 = vunpack.c.l.b16 %v2158
    %v3305 = vunpack.c.h.b16 %v2158
    %v3306 = vunpack.c.l.b16 %v2159
    %v3307 = vunpack.c.h.b16 %v2159
    %v3308 = vunpack.c.l.b16 %v2160
    %v3309 = vunpack.c.h.b16 %v2160
    %v3310 = vunpack.c.l.b16 %v2161
    %v3311 = vunpack.c.h.b16 %v2161
    %v3312 = vunpack.c.l.b16 %v2162
    %v3313 = vunpack.c.h.b16 %v2162
    %v3314 = vunpack.c.l.b16 %v2163
    %v3315 = vunpack.c.h.b16 %v2163
    %v3316 = vunpack.c.l.b16 %v2164
    %v3317 = vunpack.c.h.b16 %v2164
    %v3318 = vunpack.c.l.b16 %v2165
    %v3319 = vunpack.c.h.b16 %v2165
    %v3320 = vunpack.c.l.b16 %v2166
    %v3321 = vunpack.c.h.b16 %v2166
    %v3322 = vunpack.c.l.b16 %v2167
    %v3323 = vunpack.c.h.b16 %v2167
    %v3324 = vunpack.c.l.b16 %v2168
    %v3325 = vunpack.c.h.b16 %v2168
    %v3326 = vunpack.c.l.b16 %v2169
    %v3327 = vunpack.c.h.b16 %v2169
    %v3328 = vunpack.c.l.b16 %v2170
    %v3329 = vunpack.c.h.b16 %v2170
    %v3330 = vunpack.c.l.b16 %v2171
    %v3331 = vunpack.c.h.b16 %v2171
    %v3332 = vunpack.c.l.b16 %v2172
    %v3333 = vunpack.c.h.b16 %v2172
    %v3334 = vunpack.c.l.b16 %v2173
    %v3335 = vunpack.c.h.b16 %v2173
    %v3336 = vunpack.c.l.b16 %v2174
    %v3337 = vunpack.c.h.b16 %v2174
    %v3338 = vunpack.c.l.b16 %v2175
    %v3339 = vunpack.c.h.b16 %v2175
    %v3340 = vunpack.c.l.b16 %v2176
    %v3341 = vunpack.c.h.b16 %v2176
    %v3342 = vunpack.c.l.b16 %v2177
    %v3343 = vunpack.c.h.b16 %v2177
    %v3344 = vunpack.c.l.b16 %v2178
    %v3345 = vunpack.c.h.b16 %v2178
    %v3346 = vunpack.c.l.b16 %v2179
    %v3347 = vunpack.c.h.b16 %v2179
    %v3348 = vunpack.c.l.b16 %v2180
    %v3349 = vunpack.c.h.b16 %v2180
    %v3350 = vunpack.c.l.b16 %v2181
    %v3351 = vunpack.c.h.b16 %v2181
    %v3352 = vunpack.c.l.b16 %v2182
    %v3353 = vunpack.c.h.b16 %v2182
    %v3354 = vunpack.c.l.b16 %v2183
    %v3355 = vunpack.c.h.b16 %v2183
    %v3356 = vunpack.c.l.b16 %v2184
    %v3357 = vunpack.c.h.b16 %v2184
    %v3358 = vunpack.c.l.b16 %v2185
    %v3359 = vunpack.c.h.b16 %v2185
    %v3360 = vunpack.c.l.b16 %v2186
    %v3361 = vunpack.c.h.b16 %v2186
    %v3362 = vunpack.c.l.b16 %v2187
    %v3363 = vunpack.c.h.b16 %v2187
    %v3364 = vunpack.c.l.b16 %v2188
    %v3365 = vunpack.c.h.b16 %v2188
    %v3366 = vunpack.c.l.b16 %v2189
    %v3367 = vunpack.c.h.b16 %v2189
    %v3368 = vunpack.c.l.b16 %v2190
    %v3369 = vunpack.c.h.b16 %v2190
    %v3370 = vunpack.c.l.b16 %v2191
    %v3371 = vunpack.c.h.b16 %v2191
    %v3372 = vunpack.c.l.b16 %v2192
    %v3373 = vunpack.c.h.b16 %v2192
    %v3374 = vunpack.c.l.b16 %v2193
    %v3375 = vunpack.c.h.b16 %v2193
    %v3376 = vunpack.c.l.b16 %v2194
    %v3377 = vunpack.c.h.b16 %v2194
    %v3378 = vunpack.c.l.b16 %v2195
    %v3379 = vunpack.c.h.b16 %v2195
    %v3380 = vunpack.c.l.b16 %v2196
    %v3381 = vunpack.c.h.b16 %v2196
    %v3382 = vunpack.c.l.b16 %v2197
    %v3383 = vunpack.c.h.b16 %v2197
    %v3384 = vunpack.c.l.b16 %v2198
    %v3385 = vunpack.c.h.b16 %v2198
    %v3386 = vunpack.c.l.b16 %v2199
    %v3387 = vunpack.c.h.b16 %v2199
    %v3388 = vunpack.c.l.b16 %v2200
    %v3389 = vunpack.c.h.b16 %v2200
    %v3390 = vunpack.c.l.b16 %v2201
    %v3391 = vunpack.c.h.b16 %v2201
    %v3392 = vunpack.c.l.b16 %v2202
    %v3393 = vunpack.c.h.b16 %v2202
    %v3394 = vunpack.c.l.b16 %v2203
    %v3395 = vunpack.c.h.b16 %v2203
    %v3396 = vunpack.c.l.b16 %v2204
    %v3397 = vunpack.c.h.b16 %v2204
    %v3398 = vunpack.c.l.b16 %v2205
    %v3399 = vunpack.c.h.b16 %v2205
    %v3400 = vunpack.c.l.b16 %v2206
    %v3401 = vunpack.c.h.b16 %v2206
    %v3402 = vunpack.c.l.b16 %v2207
    %v3403 = vunpack.c.h.b16 %v2207
    %v3404 = vunpack.c.l.b16 %v2208
    %v3405 = vunpack.c.h.b16 %v2208
    %v3406 = vunpack.c.l.b16 %v2209
    %v3407 = vunpack.c.h.b16 %v2209
    %v3408 = vunpack.c.l.b16 %v2210
    %v3409 = vunpack.c.h.b16 %v2210
    %v3410 = vunpack.c.l.b16 %v2211
    %v3411 = vunpack.c.h.b16 %v2211
    %v3412 = vunpack.c.l.b16 %v2212
    %v3413 = vunpack.c.h.b16 %v2212
    %v3414 = vunpack.c.l.b16 %v2213
    %v3415 = vunpack.c.h.b16 %v2213
    %v3416 = vunpack.c.l.b16 %v2214
    %v3417 = vunpack.c.h.b16 %v2214
    %v3418 = vunpack.c.l.b16 %v2215
    %v3419 = vunpack.c.h.b16 %v2215
    %v3420 = vunpack.c.l.b16 %v2216
    %v3421 = vunpack.c.h.b16 %v2216
    %v3422 = vunpack.c.l.b16 %v2217
    %v3423 = vunpack.c.h.b16 %v2217
    %v3424 = vunpack.c.l.b16 %v2218
    %v3425 = vunpack.c.h.b16 %v2218
    %v3426 = vunpack.c.l.b16 %v2219
    %v3427 = vunpack.c.h.b16 %v2219
    %v3428 = vunpack.c.l.b16 %v2220
    %v3429 = vunpack.c.h.b16 %v2220
    %v3430 = vunpack.c.l.b16 %v2221
    %v3431 = vunpack.c.h.b16 %v2221
    %v3432 = vunpack.c.l.b16 %v2222
    %v3433 = vunpack.c.h.b16 %v2222
    %v3434 = vunpack.c.l.b16 %v2223
    %v3435 = vunpack.c.h.b16 %v2223
    %v3436 = vunpack.c.l.b16 %v2224
    %v3437 = vunpack.c.h.b16 %v2224
    %v3438 = vunpack.c.l.b16 %v2225
    %v3439 = vunpack.c.h.b16 %v2225
    %v3440 = vunpack.c.l.b16 %v2226
    %v3441 = vunpack.c.h.b16 %v2226
    %v3442 = vunpack.c.l.b16 %v2227
    %v3443 = vunpack.c.h.b16 %v2227
    %v3444 = vunpack.c.l.b16 %v2228
    %v3445 = vunpack.c.h.b16 %v2228
    %v3446 = vunpack.c.l.b16 %v2229
    %v3447 = vunpack.c.h.b16 %v2229
    %v3448 = vunpack.c.l.b16 %v2230
    %v3449 = vunpack.c.h.b16 %v2230
    %v3450 = vunpack.c.l.b16 %v2231
    %v3451 = vunpack.c.h.b16 %v2231
    %v3452 = vunpack.c.l.b16 %v2232
    %v3453 = vunpack.c.h.b16 %v2232
    %v3454 = vunpack.c.l.b16 %v2233
    %v3455 = vunpack.c.h.b16 %v2233
    %v3456 = vunpack.c.l.b16 %v2234
    %v3457 = vunpack.c.h.b16 %v2234
    %v3458 = vunpack.c.l.b16 %v2235
    %v3459 = vunpack.c.h.b16 %v2235
    %v3460 = vunpack.c.l.b16 %v2236
    %v3461 = vunpack.c.h.b16 %v2236
    %v3462 = vunpack.c.l.b16 %v2237
    %v3463 = vunpack.c.h.b16 %v2237
    %v3464 = vunpack.c.l.b16 %v2238
    %v3465 = vunpack.c.h.b16 %v2238
    %v3466 = vunpack.c.l.b16 %v2239
    %v3467 = vunpack.c.h.b16 %v2239
    %v3468 = vunpack.c.l.b16 %v2240
    %v3469 = vunpack.c.h.b16 %v2240
    %v3470 = vunpack.c.l.b16 %v2241
    %v3471 = vunpack.c.h.b16 %v2241
    %v3472 = vunpack.c.l.b16 %v2242
    %v3473 = vunpack.c.h.b16 %v2242
    %v3474 = vunpack.c.l.b16 %v2243
    %v3475 = vunpack.c.h.b16 %v2243
    %v3476 = vunpack.c.l.b16 %v2244
    %v3477 = vunpack.c.h.b16 %v2244
    %v3478 = vunpack.c.l.b16 %v2245
    %v3479 = vunpack.c.h.b16 %v2245
    %v3480 = vunpack.c.l.b16 %v2246
    %v3481 = vunpack.c.h.b16 %v2246
    %v3482 = vunpack.c.l.b16 %v2247
    %v3483 = vunpack.c.h.b16 %v2247
    %v3484 = vunpack.c.l.b16 %v2248
    %v3485 = vunpack.c.h.b16 %v2248
    %v3486 = vunpack.c.l.b16 %v2249
    %v3487 = vunpack.c.h.b16 %v2249
    %v3488 = vunpack.c.l.b16 %v2250
    %v3489 = vunpack.c.h.b16 %v2250
    %v3490 = vunpack.c.l.b16 %v2251
    %v3491 = vunpack.c.h.b16 %v2251
    %v3492 = vunpack.c.l.b16 %v2252
    %v3493 = vunpack.c.h.b16 %v2252
    %v3494 = vunpack.c.l.b16 %v2253
    %v3495 = vunpack.c.h.b16 %v2253
    %v3496 = vunpack.c.l.b16 %v2254
    %v3497 = vunpack.c.h.b16 %v2254
    %v3498 = vunpack.c.l.b16 %v2255
    %v3499 = vunpack.c.h.b16 %v2255
    %v3500 = vunpack.c.l.b16 %v2256
    %v3501 = vunpack.c.h.b16 %v2256
    %v3502 = vunpack.c.l.b16 %v2257
    %v3503 = vunpack.c.h.b16 %v2257
    %v3504 = vunpack.c.l.b16 %v2258
    %v3505 = vunpack.c.h.b16 %v2258
    %v3506 = vunpack.c.l.b16 %v2259
    %v3507 = vunpack.c.h.b16 %v2259
    %v3508 = vunpack.c.l.b16 %v2260
    %v3509 = vunpack.c.h.b16 %v2260
    %v3510 = vunpack.c.l.b16 %v2261
    %v3511 = vunpack.c.h.b16 %v2261
    %v3512 = vunpack.c.l.b16 %v2262
    %v3513 = vunpack.c.h.b16 %v2262
    %v3514 = vunpack.c.l.b16 %v2263
    %v3515 = vunpack.c.h.b16 %v2263
    %v3516 = vunpack.c.l.b16 %v2264
    %v3517 = vunpack.c.h.b16 %v2264
    %v3518 = vunpack.c.l.b16 %v2265
    %v3519 = vunpack.c.h.b16 %v2265
    %v3520 = vunpack.c.l.b16 %v2266
    %v3521 = vunpack.c.h.b16 %v2266
    %v3522 = vunpack.c.l.b16 %v2267
    %v3523 = vunpack.c.h.b16 %v2267
    %v3524 = vunpack.c.l.b16 %v2268
    %v3525 = vunpack.c.h.b16 %v2268
    %v3526 = vunpack.c.l.b16 %v2269
    %v3527 = vunpack.c.h.b16 %v2269
    %v3528 = vunpack.c.l.b16 %v2270
    %v3529 = vunpack.c.h.b16 %v2270
    %v3530 = vunpack.c.l.b16 %v2271
    %v3531 = vunpack.c.h.b16 %v2271
    %v3532 = vunpack.c.l.b16 %v2272
    %v3533 = vunpack.c.h.b16 %v2272
    %v3534 = vunpack.c.l.b16 %v2273
    %v3535 = vunpack.c.h.b16 %v2273
    %v3536 = vunpack.c.l.b16 %v2274
    %v3537 = vunpack.c.h.b16 %v2274
    %v3538 = vunpack.c.l.b16 %v2275
    %v3539 = vunpack.c.h.b16 %v2275
    %v3540 = vunpack.c.l.b16 %v2276
    %v3541 = vunpack.c.h.b16 %v2276
    %v3542 = vunpack.c.l.b16 %v2277
    %v3543 = vunpack.c.h.b16 %v2277
    %v3544 = vunpack.c.l.b16 %v2278
    %v3545 = vunpack.c.h.b16 %v2278
    %v3546 = vunpack.c.l.b16 %v2279
    %v3547 = vunpack.c.h.b16 %v2279
    %v3548 = vunpack.c.l.b16 %v2280
    %v3549 = vunpack.c.h.b16 %v2280
    %v3550 = vunpack.c.l.b16 %v2281
    %v3551 = vunpack.c.h.b16 %v2281
    %v3552 = vunpack.c.l.b16 %v2282
    %v3553 = vunpack.c.h.b16 %v2282
    %v3554 = vunpack.c.l.b16 %v2283
    %v3555 = vunpack.c.h.b16 %v2283
    %v3556 = vunpack.c.l.b16 %v2284
    %v3557 = vunpack.c.h.b16 %v2284
    %v3558 = vunpack.c.l.b16 %v2285
    %v3559 = vunpack.c.h.b16 %v2285
    %v3560 = vunpack.c.l.b16 %v2286
    %v3561 = vunpack.c.h.b16 %v2286
    %v3562 = vunpack.c.l.b16 %v2287
    %v3563 = vunpack.c.h.b16 %v2287
    %v3564 = vunpack.c.l.b16 %v2288
    %v3565 = vunpack.c.h.b16 %v2288
    %v3566 = vunpack.c.l.b16 %v2289
    %v3567 = vunpack.c.h.b16 %v2289
    %v3568 = vunpack.c.l.b16 %v2290
    %v3569 = vunpack.c.h.b16 %v2290
    %v3570 = vunpack.c.l.b16 %v2291
    %v3571 = vunpack.c.h.b16 %v2291
    %v3572 = vunpack.c.l.b16 %v2292
    %v3573 = vunpack.c.h.b16 %v2292
    %v3574 = vunpack.c.l.b16 %v2293
    %v3575 = vunpack.c.h.b16 %v2293
    %v3576 = vunpack.c.l.b16 %v2294
    %v3577 = vunpack.c.h.b16 %v2294
    %v3578 = vunpack.c.l.b16 %v2295
    %v3579 = vunpack.c.h.b16 %v2295
    %v3580 = vunpack.c.l.b16 %v2296
    %v3581 = vunpack.c.h.b16 %v2296
    %v3582 = vunpack.c.l.b16 %v2297
    %v3583 = vunpack.c.h.b16 %v2297
    %v3584 = vunpack.c.l.b16 %v2298
    %v3585 = vunpack.c.h.b16 %v2298
    %v3586 = vunpack.c.l.b16 %v2299
    %v3587 = vunpack.c.h.b16 %v2299
    %v3588 = vunpack.c.l.b16 %v2300
    %v3589 = vunpack.c.h.b16 %v2300
    %v3590 = vunpack.c.l.b16 %v2301
    %v3591 = vunpack.c.h.b16 %v2301
    %v3592 = vunpack.c.l.b16 %v2302
    %v3593 = vunpack.c.h.b16 %v2302
    %v3594 = vunpack.c.l.b16 %v2303
    %v3595 = vunpack.c.h.b16 %v2303
    %v3596 = vunpack.c.l.b16 %v2304
    %v3597 = vunpack.c.h.b16 %v2304
    %v3598 = vunpack.c.l.b16 %v2305
    %v3599 = vunpack.c.h.b16 %v2305
    %v3600 = vunpack.c.l.b16 %v2306
    %v3601 = vunpack.c.h.b16 %v2306
    %v3602 = vunpack.c.l.b16 %v2307
    %v3603 = vunpack.c.h.b16 %v2307
    %v3604 = vunpack.c.l.b16 %v2308
    %v3605 = vunpack.c.h.b16 %v2308
    %v3606 = vunpack.c.l.b16 %v2309
    %v3607 = vunpack.c.h.b16 %v2309
    %v3608 = vunpack.c.l.b16 %v2310
    %v3609 = vunpack.c.h.b16 %v2310
    %v3610 = vunpack.c.l.b16 %v2311
    %v3611 = vunpack.c.h.b16 %v2311
    %v3612 = vunpack.c.l.b16 %v2312
    %v3613 = vunpack.c.h.b16 %v2312
    %v3614 = vunpack.c.l.b16 %v2313
    %v3615 = vunpack.c.h.b16 %v2313
    %v3616 = vunpack.c.l.b16 %v2314
    %v3617 = vunpack.c.h.b16 %v2314
    %v3618 = vunpack.c.l.b16 %v2315
    %v3619 = vunpack.c.h.b16 %v2315
    %v3620 = vunpack.c.l.b16 %v2316
    %v3621 = vunpack.c.h.b16 %v2316
    %v3622 = vunpack.c.l.b16 %v2317
    %v3623 = vunpack.c.h.b16 %v2317
    %v3624 = vunpack.c.l.b16 %v2318
    %v3625 = vunpack.c.h.b16 %v2318
    %v3626 = vunpack.c.l.b16 %v2319
    %v3627 = vunpack.c.h.b16 %v2319
    %v3628 = vunpack.c.l.b16 %v2320
    %v3629 = vunpack.c.h.b16 %v2320
    %v3630 = vunpack.c.l.b16 %v2321
    %v3631 = vunpack.c.h.b16 %v2321
    %v3632 = vunpack.c.l.b16 %v2322
    %v3633 = vunpack.c.h.b16 %v2322
    %v3634 = vunpack.c.l.b16 %v2323
    %v3635 = vunpack.c.h.b16 %v2323
    %v3636 = vunpack.c.l.b16 %v2324
    %v3637 = vunpack.c.h.b16 %v2324
    %v3638 = vunpack.c.l.b16 %v2325
    %v3639 = vunpack.c.h.b16 %v2325
    %v3640 = vunpack.c.l.b16 %v2326
    %v3641 = vunpack.c.h.b16 %v2326
    %v3642 = vunpack.c.l.b16 %v2327
    %v3643 = vunpack.c.h.b16 %v2327
    %v3644 = vunpack.c.l.b16 %v2328
    %v3645 = vunpack.c.h.b16 %v2328
    %v3646 = vunpack.c.l.b16 %v2329
    %v3647 = vunpack.c.h.b16 %v2329
    %v3648 = vunpack.c.l.b16 %v2330
    %v3649 = vunpack.c.h.b16 %v2330
    %v3650 = vunpack.c.l.b16 %v2331
    %v3651 = vunpack.c.h.b16 %v2331
    %v3652 = vunpack.c.l.b16 %v2332
    %v3653 = vunpack.c.h.b16 %v2332
    %v3654 = vunpack.c.l.b16 %v2333
    %v3655 = vunpack.c.h.b16 %v2333
    %v3656 = vunpack.c.l.b16 %v2334
    %v3657 = vunpack.c.h.b16 %v2334
    %v3658 = vunpack.c.l.b16 %v2335
    %v3659 = vunpack.c.h.b16 %v2335
    %v3660 = vunpack.c.l.b16 %v2336
    %v3661 = vunpack.c.h.b16 %v2336
    %v3662 = vunpack.c.l.b16 %v2337
    %v3663 = vunpack.c.h.b16 %v2337
    %v3664 = vunpack.c.l.b16 %v2338
    %v3665 = vunpack.c.h.b16 %v2338
    %v3666 = vunpack.c.l.b16 %v2339
    %v3667 = vunpack.c.h.b16 %v2339
    %v3668 = vunpack.c.l.b16 %v2340
    %v3669 = vunpack.c.h.b16 %v2340
    %v3670 = vunpack.c.l.b16 %v2341
    %v3671 = vunpack.c.h.b16 %v2341
    %v3672 = vunpack.c.l.b16 %v2342
    %v3673 = vunpack.c.h.b16 %v2342
    %v3674 = vunpack.c.l.b16 %v2343
    %v3675 = vunpack.c.h.b16 %v2343
    %v3676 = vunpack.c.l.b16 %v2344
    %v3677 = vunpack.c.h.b16 %v2344
    %v3678 = vunpack.c.l.b16 %v2345
    %v3679 = vunpack.c.h.b16 %v2345
    %v3680 = vunpack.c.l.b16 %v2346
    %v3681 = vunpack.c.h.b16 %v2346
    %v3682 = vunpack.c.l.b16 %v2347
    %v3683 = vunpack.c.h.b16 %v2347
    %v3684 = vunpack.c.l.b16 %v2348
    %v3685 = vunpack.c.h.b16 %v2348
    %v3686 = vunpack.c.l.b16 %v2349
    %v3687 = vunpack.c.h.b16 %v2349
    %v3688 = vunpack.c.l.b16 %v2350
    %v3689 = vunpack.c.h.b16 %v2350
    %v3690 = vunpack.c.l.b16 %v2351
    %v3691 = vunpack.c.h.b16 %v2351
    %v3692 = vunpack.c.l.b16 %v2352
    %v3693 = vunpack.c.h.b16 %v2352
    %v3694 = vunpack.c.l.b16 %v2353
    %v3695 = vunpack.c.h.b16 %v2353
    %v3696 = vunpack.c.l.b16 %v2354
    %v3697 = vunpack.c.h.b16 %v2354
    %v3698 = vunpack.c.l.b16 %v2355
    %v3699 = vunpack.c.h.b16 %v2355
    %v3700 = vunpack.c.l.b16 %v2356
    %v3701 = vunpack.c.h.b16 %v2356
    %v3702 = vunpack.c.l.b16 %v2357
    %v3703 = vunpack.c.h.b16 %v2357
    %v3704 = vunpack.c.l.b16 %v2358
    %v3705 = vunpack.c.h.b16 %v2358
    %v3706 = vunpack.c.l.b16 %v2359
    %v3707 = vunpack.c.h.b16 %v2359
    %v3708 = vunpack.c.l.b16 %v2360
    %v3709 = vunpack.c.h.b16 %v2360
    %v3710 = vunpack.c.l.b16 %v2361
    %v3711 = vunpack.c.h.b16 %v2361
    %v3712 = vunpack.c.l.b16 %v2362
    %v3713 = vunpack.c.h.b16 %v2362
    %v3714 = vunpack.c.l.b16 %v2363
    %v3715 = vunpack.c.h.b16 %v2363
    %v3716 = vunpack.c.l.b16 %v2364
    %v3717 = vunpack.c.h.b16 %v2364
    %v3718 = vunpack.c.l.b16 %v2365
    %v3719 = vunpack.c.h.b16 %v2365
    %v3720 = vunpack.c.l.b16 %v2366
    %v3721 = vunpack.c.h.b16 %v2366
    %v3722 = vunpack.c.l.b16 %v2367
    %v3723 = vunpack.c.h.b16 %v2367
    %v3724 = vunpack.c.l.b16 %v2368
    %v3725 = vunpack.c.h.b16 %v2368
    %v3726 = vunpack.c.l.b16 %v2369
    %v3727 = vunpack.c.h.b16 %v2369
    %v3728 = vunpack.c.l.b16 %v2370
    %v3729 = vunpack.c.h.b16 %v2370
    %v3730 = vunpack.c.l.b16 %v2371
    %v3731 = vunpack.c.h.b16 %v2371
    %v3732 = vunpack.c.l.b16 %v2372
    %v3733 = vunpack.c.h.b16 %v2372
    %v3734 = vunpack.c.l.b16 %v2373
    %v3735 = vunpack.c.h.b16 %v2373
    %v3736 = vunpack.c.l.b16 %v2374
    %v3737 = vunpack.c.h.b16 %v2374
    %v3738 = vunpack.c.l.b16 %v2375
    %v3739 = vunpack.c.h.b16 %v2375
    %v3740 = vunpack.c.l.b16 %v2376
    %v3741 = vunpack.c.h.b16 %v2376
    %v3742 = vunpack.c.l.b16 %v2377
    %v3743 = vunpack.c.h.b16 %v2377
    %v3744 = vunpack.c.l.b16 %v2378
    %v3745 = vunpack.c.h.b16 %v2378
    %v3746 = vunpack.c.l.b16 %v2379
    %v3747 = vunpack.c.h.b16 %v2379
    %v3748 = vunpack.c.l.b16 %v2380
    %v3749 = vunpack.c.h.b16 %v2380
    %v3750 = vunpack.c.l.b16 %v2381
    %v3751 = vunpack.c.h.b16 %v2381
    %v3752 = vunpack.c.l.b16 %v2382
    %v3753 = vunpack.c.h.b16 %v2382
    %v3754 = vunpack.c.l.b16 %v2383
    %v3755 = vunpack.c.h.b16 %v2383
    %v3756 = vunpack.c.l.b16 %v2384
    %v3757 = vunpack.c.h.b16 %v2384
    %v3758 = vunpack.c.l.b16 %v2385
    %v3759 = vunpack.c.h.b16 %v2385
    %v3760 = vunpack.c.l.b16 %v2386
    %v3761 = vunpack.c.h.b16 %v2386
    %v3762 = vunpack.c.l.b16 %v2387
    %v3763 = vunpack.c.h.b16 %v2387
    %v3764 = vunpack.c.l.b16 %v2388
    %v3765 = vunpack.c.h.b16 %v2388
    %v3766 = vunpack.c.l.b16 %v2389
    %v3767 = vunpack.c.h.b16 %v2389
    %v3768 = vunpack.c.l.b16 %v2390
    %v3769 = vunpack.c.h.b16 %v2390
    %v3770 = vunpack.c.l.b16 %v2391
    %v3771 = vunpack.c.h.b16 %v2391
    %v3772 = vunpack.c.l.b16 %v2392
    %v3773 = vunpack.c.h.b16 %v2392
    %v3774 = vunpack.c.l.b16 %v2393
    %v3775 = vunpack.c.h.b16 %v2393
    %v3776 = vunpack.c.l.b16 %v2394
    %v3777 = vunpack.c.h.b16 %v2394
    %v3778 = vunpack.c.l.b16 %v2395
    %v3779 = vunpack.c.h.b16 %v2395
    %v3780 = vunpack.c.l.b16 %v2396
    %v3781 = vunpack.c.h.b16 %v2396
    %v3782 = vunpack.c.l.b16 %v2397
    %v3783 = vunpack.c.h.b16 %v2397
    %v3784 = vunpack.c.l.b16 %v2398
    %v3785 = vunpack.c.h.b16 %v2398
    %v3786 = vunpack.c.l.b16 %v2399
    %v3787 = vunpack.c.h.b16 %v2399
    %v3788 = vunpack.c.l.b16 %v2400
    %v3789 = vunpack.c.h.b16 %v2400
    %v3790 = vunpack.c.l.b16 %v2401
    %v3791 = vunpack.c.h.b16 %v2401
    %v3792 = vunpack.c.l.b16 %v2402
    %v3793 = vunpack.c.h.b16 %v2402
    %v3794 = vunpack.c.l.b16 %v2403
    %v3795 = vunpack.c.h.b16 %v2403
    %v3796 = vunpack.c.l.b16 %v2404
    %v3797 = vunpack.c.h.b16 %v2404
    %v3798 = vunpack.c.l.b16 %v2405
    %v3799 = vunpack.c.h.b16 %v2405
    %v3800 = vunpack.c.l.b16 %v2406
    %v3801 = vunpack.c.h.b16 %v2406
    %v3802 = vunpack.c.l.b16 %v2407
    %v3803 = vunpack.c.h.b16 %v2407
    %v3804 = vunpack.c.l.b16 %v2408
    %v3805 = vunpack.c.h.b16 %v2408
    %v3806 = vunpack.c.l.b16 %v2409
    %v3807 = vunpack.c.h.b16 %v2409
    %v3808 = vunpack.c.l.b16 %v2410
    %v3809 = vunpack.c.h.b16 %v2410
    %v3810 = vunpack.c.l.b16 %v2411
    %v3811 = vunpack.c.h.b16 %v2411
    %v3812 = vunpack.c.l.b16 %v2412
    %v3813 = vunpack.c.h.b16 %v2412
    %v3814 = vunpack.c.l.b16 %v2413
    %v3815 = vunpack.c.h.b16 %v2413
    %v3816 = vunpack.c.l.b16 %v2414
    %v3817 = vunpack.c.h.b16 %v2414
    %v3818 = vunpack.c.l.b16 %v2415
    %v3819 = vunpack.c.h.b16 %v2415
    %v3820 = vunpack.c.l.b16 %v2416
    %v3821 = vunpack.c.h.b16 %v2416
    %v3822 = vunpack.c.l.b16 %v2417
    %v3823 = vunpack.c.h.b16 %v2417
    %v3824 = vunpack.c.l.b16 %v2418
    %v3825 = vunpack.c.h.b16 %v2418
    %v3826 = vunpack.c.l.b16 %v2419
    %v3827 = vunpack.c.h.b16 %v2419
    %v3828 = vunpack.c.l.b16 %v2420
    %v3829 = vunpack.c.h.b16 %v2420
    %v3830 = vunpack.c.l.b16 %v2421
    %v3831 = vunpack.c.h.b16 %v2421
    %v3832 = vunpack.c.l.b16 %v2422
    %v3833 = vunpack.c.h.b16 %v2422
    %v3834 = vunpack.c.l.b16 %v2423
    %v3835 = vunpack.c.h.b16 %v2423
    %v3836 = vunpack.c.l.b16 %v2424
    %v3837 = vunpack.c.h.b16 %v2424
    %v3838 = vunpack.c.l.b16 %v2425
    %v3839 = vunpack.c.h.b16 %v2425
    %v3840 = vunpack.c.l.b16 %v2426
    %v3841 = vunpack.c.h.b16 %v2426
    %v3842 = vunpack.c.l.b16 %v2427
    %v3843 = vunpack.c.h.b16 %v2427
    %v3844 = vunpack.c.l.b16 %v2428
    %v3845 = vunpack.c.h.b16 %v2428
    %v3846 = vunpack.c.l.b16 %v2429
    %v3847 = vunpack.c.h.b16 %v2429
    %v3848 = vunpack.c.l.b16 %v2430
    %v3849 = vunpack.c.h.b16 %v2430
    %v3850 = vunpack.c.l.b16 %v2431
    %v3851 = vunpack.c.h.b16 %v2431
    %v3852 = vunpack.c.l.b16 %v2432
    %v3853 = vunpack.c.h.b16 %v2432
    %v3854 = vunpack.c.l.b16 %v2433
    %v3855 = vunpack.c.h.b16 %v2433
    %v3856 = vunpack.c.l.b16 %v2434
    %v3857 = vunpack.c.h.b16 %v2434
    %v3858 = vunpack.c.l.b16 %v2435
    %v3859 = vunpack.c.h.b16 %v2435
    %v3860 = vunpack.c.l.b16 %v2436
    %v3861 = vunpack.c.h.b16 %v2436
    %v3862 = vunpack.c.l.b16 %v2437
    %v3863 = vunpack.c.h.b16 %v2437
    %v3864 = vunpack.c.l.b16 %v2438
    %v3865 = vunpack.c.h.b16 %v2438
    %v3866 = vunpack.c.l.b16 %v2439
    %v3867 = vunpack.c.h.b16 %v2439
    %v3868 = vunpack.c.l.b16 %v2440
    %v3869 = vunpack.c.h.b16 %v2440
    %v3870 = vunpack.c.l.b16 %v2441
    %v3871 = vunpack.c.h.b16 %v2441
    %v3872 = vunpack.c.l.b16 %v2442
    %v3873 = vunpack.c.h.b16 %v2442
    %v3874 = vunpack.c.l.b16 %v2443
    %v3875 = vunpack.c.h.b16 %v2443
    %v3876 = vunpack.c.l.b16 %v2444
    %v3877 = vunpack.c.h.b16 %v2444
    %v3878 = vunpack.c.l.b16 %v2445
    %v3879 = vunpack.c.h.b16 %v2445
    %v3880 = vunpack.c.l.b16 %v2446
    %v3881 = vunpack.c.h.b16 %v2446
    %v3882 = vunpack.c.l.b16 %v2447
    %v3883 = vunpack.c.h.b16 %v2447
    %v3884 = vunpack.c.l.b16 %v2448
    %v3885 = vunpack.c.h.b16 %v2448
    %v3886 = vunpack.c.l.b16 %v2449
    %v3887 = vunpack.c.h.b16 %v2449
    %v3888 = vunpack.c.l.b16 %v2450
    %v3889 = vunpack.c.h.b16 %v2450
    %v3890 = vunpack.c.l.b16 %v2451
    %v3891 = vunpack.c.h.b16 %v2451
    %v3892 = vunpack.c.l.b16 %v2452
    %v3893 = vunpack.c.h.b16 %v2452
    %v3894 = vunpack.c.l.b16 %v2453
    %v3895 = vunpack.c.h.b16 %v2453
    %v3896 = vunpack.c.l.b16 %v2454
    %v3897 = vunpack.c.h.b16 %v2454
    %v3898 = vunpack.c.l.b16 %v2455
    %v3899 = vunpack.c.h.b16 %v2455
    %v3900 = vunpack.c.l.b16 %v2456
    %v3901 = vunpack.c.h.b16 %v2456
    %v3902 = vunpack.c.l.b16 %v2457
    %v3903 = vunpack.c.h.b16 %v2457
    %v3904 = vunpack.c.l.b16 %v2458
    %v3905 = vunpack.c.h.b16 %v2458
    %v3906 = vunpack.c.l.b16 %v2459
    %v3907 = vunpack.c.h.b16 %v2459
    %v3908 = vunpack.c.l.b16 %v2460
    %v3909 = vunpack.c.h.b16 %v2460
    %v3910 = vunpack.c.l.b16 %v2461
    %v3911 = vunpack.c.h.b16 %v2461
    %v3912 = vunpack.c.l.b16 %v2462
    %v3913 = vunpack.c.h.b16 %v2462
    %v3914 = vunpack.c.l.b16 %v2463
    %v3915 = vunpack.c.h.b16 %v2463
    %v3916 = vunpack.c.l.b16 %v2464
    %v3917 = vunpack.c.h.b16 %v2464
    %v3918 = vunpack.c.l.b16 %v2465
    %v3919 = vunpack.c.h.b16 %v2465
    %v3920 = vunpack.c.l.b16 %v2466
    %v3921 = vunpack.c.h.b16 %v2466
    %v3922 = vunpack.c.l.b16 %v2467
    %v3923 = vunpack.c.h.b16 %v2467
    %v3924 = vunpack.c.l.b16 %v2468
    %v3925 = vunpack.c.h.b16 %v2468
    %v3926 = vunpack.c.l.b16 %v2469
    %v3927 = vunpack.c.h.b16 %v2469
    %v3928 = vunpack.c.l.b16 %v2470
    %v3929 = vunpack.c.h.b16 %v2470
    %v3930 = vunpack.c.l.b16 %v2471
    %v3931 = vunpack.c.h.b16 %v2471
    %v3932 = vunpack.c.l.b16 %v2472
    %v3933 = vunpack.c.h.b16 %v2472
    %v3934 = vunpack.c.l.b16 %v2473
    %v3935 = vunpack.c.h.b16 %v2473
    %v3936 = vunpack.c.l.b16 %v2474
    %v3937 = vunpack.c.h.b16 %v2474
    %v3938 = vunpack.c.l.b16 %v2475
    %v3939 = vunpack.c.h.b16 %v2475
    %v3940 = vunpack.c.l.b16 %v2476
    %v3941 = vunpack.c.h.b16 %v2476
    %v3942 = vunpack.c.l.b16 %v2477
    %v3943 = vunpack.c.h.b16 %v2477
    %v3944 = vunpack.c.l.b16 %v2478
    %v3945 = vunpack.c.h.b16 %v2478
    %v3946 = vunpack.c.l.b16 %v2479
    %v3947 = vunpack.c.h.b16 %v2479
    %v3948 = vunpack.c.l.b16 %v2480
    %v3949 = vunpack.c.h.b16 %v2480
    %v3950 = vunpack.c.l.b16 %v2481
    %v3951 = vunpack.c.h.b16 %v2481
    %v3952 = vunpack.c.l.b16 %v2482
    %v3953 = vunpack.c.h.b16 %v2482
    %v3954 = vunpack.c.l.b16 %v2483
    %v3955 = vunpack.c.h.b16 %v2483
    %v3956 = vunpack.c.l.b16 %v2484
    %v3957 = vunpack.c.h.b16 %v2484
    %v3958 = vunpack.c.l.b16 %v2485
    %v3959 = vunpack.c.h.b16 %v2485
    %v3960 = vunpack.c.l.b16 %v2486
    %v3961 = vunpack.c.h.b16 %v2486
    %v3962 = vunpack.c.l.b16 %v2487
    %v3963 = vunpack.c.h.b16 %v2487
    %v3964 = vunpack.c.l.b16 %v2488
    %v3965 = vunpack.c.h.b16 %v2488
    %v3966 = vunpack.c.l.b16 %v2489
    %v3967 = vunpack.c.h.b16 %v2489
    %v3968 = vunpack.c.l.b16 %v2490
    %v3969 = vunpack.c.h.b16 %v2490
    %v3970 = vunpack.c.l.b16 %v2491
    %v3971 = vunpack.c.h.b16 %v2491
    %v3972 = vunpack.c.l.b16 %v2492
    %v3973 = vunpack.c.h.b16 %v2492
    %v3974 = vunpack.c.l.b16 %v2493
    %v3975 = vunpack.c.h.b16 %v2493
    %v3976 = vunpack.c.l.b16 %v2494
    %v3977 = vunpack.c.h.b16 %v2494
    %v3978 = vunpack.c.l.b16 %v2495
    %v3979 = vunpack.c.h.b16 %v2495
    %v3980 = vunpack.c.l.b16 %v2496
    %v3981 = vunpack.c.h.b16 %v2496
    %v3982 = vunpack.c.l.b16 %v2497
    %v3983 = vunpack.c.h.b16 %v2497
    %v3984 = vunpack.c.l.b16 %v2498
    %v3985 = vunpack.c.h.b16 %v2498
    %v3986 = vunpack.c.l.b16 %v2499
    %v3987 = vunpack.c.h.b16 %v2499
    %v3988 = vunpack.c.l.b16 %v2500
    %v3989 = vunpack.c.h.b16 %v2500
    %v3990 = vunpack.c.l.b16 %v2501
    %v3991 = vunpack.c.h.b16 %v2501
    %v3992 = vunpack.c.l.b16 %v2502
    %v3993 = vunpack.c.h.b16 %v2502
    %v3994 = vunpack.c.l.b16 %v2503
    %v3995 = vunpack.c.h.b16 %v2503
    %v3996 = vunpack.c.l.b16 %v2504
    %v3997 = vunpack.c.h.b16 %v2504
    %v3998 = vunpack.c.l.b16 %v2505
    %v3999 = vunpack.c.h.b16 %v2505
    %v4000 = vunpack.c.l.b16 %v2506
    %v4001 = vunpack.c.h.b16 %v2506
    %v4002 = vunpack.c.l.b16 %v2507
    %v4003 = vunpack.c.h.b16 %v2507
    %v4004 = vunpack.c.l.b16 %v2508
    %v4005 = vunpack.c.h.b16 %v2508
    %v4006 = vunpack.c.l.b16 %v2509
    %v4007 = vunpack.c.h.b16 %v2509
    %v4008 = vunpack.c.l.b16 %v2510
    %v4009 = vunpack.c.h.b16 %v2510
    %v4010 = vunpack.c.l.b16 %v2511
    %v4011 = vunpack.c.h.b16 %v2511
    %v4012 = vunpack.c.l.b16 %v2512
    %v4013 = vunpack.c.h.b16 %v2512
    %v4014 = vunpack.c.l.b16 %v2513
    %v4015 = vunpack.c.h.b16 %v2513
    %v4016 = vunpack.c.l.b16 %v2514
    %v4017 = vunpack.c.h.b16 %v2514
    %v4018 = vunpack.c.l.b16 %v2515
    %v4019 = vunpack.c.h.b16 %v2515
    %v4020 = vunpack.c.l.b16 %v2516
    %v4021 = vunpack.c.h.b16 %v2516
    %v4022 = vunpack.c.l.b16 %v2517
    %v4023 = vunpack.c.h.b16 %v2517
    %v4024 = vunpack.c.l.b16 %v2518
    %v4025 = vunpack.c.h.b16 %v2518
    %v4026 = vunpack.c.l.b16 %v2519
    %v4027 = vunpack.c.h.b16 %v2519
    %v4028 = vunpack.c.l.b16 %v2520
    %v4029 = vunpack.c.h.b16 %v2520
    %v4030 = vunpack.c.l.b16 %v2521
    %v4031 = vunpack.c.h.b16 %v2521
    %v4032 = vunpack.c.l.b16 %v2522
    %v4033 = vunpack.c.h.b16 %v2522
    %v4034 = vunpack.c.l.b16 %v2523
    %v4035 = vunpack.c.h.b16 %v2523
    %v4036 = vunpack.c.l.b16 %v2524
    %v4037 = vunpack.c.h.b16 %v2524
    %v4038 = vunpack.c.l.b16 %v2525
    %v4039 = vunpack.c.h.b16 %v2525
    %v4040 = vunpack.c.l.b16 %v2526
    %v4041 = vunpack.c.h.b16 %v2526
    %v4042 = vunpack.c.l.b16 %v2527
    %v4043 = vunpack.c.h.b16 %v2527
    %v4044 = vunpack.c.l.b16 %v2528
    %v4045 = vunpack.c.h.b16 %v2528
    %v4046 = vunpack.c.l.b16 %v2529
    %v4047 = vunpack.c.h.b16 %v2529
    %v4048 = vunpack.c.l.b16 %v2530
    %v4049 = vunpack.c.h.b16 %v2530
    %v4050 = vunpack.c.l.b16 %v2531
    %v4051 = vunpack.c.h.b16 %v2531
    %v4052 = vunpack.c.l.b16 %v2532
    %v4053 = vunpack.c.h.b16 %v2532
    %v4054 = vunpack.c.l.b16 %v2533
    %v4055 = vunpack.c.h.b16 %v2533
    %v4056 = vunpack.c.l.b16 %v2534
    %v4057 = vunpack.c.h.b16 %v2534
    %v4058 = vunpack.c.l.b16 %v2535
    %v4059 = vunpack.c.h.b16 %v2535
    %v4060 = vunpack.c.l.b16 %v2536
    %v4061 = vunpack.c.h.b16 %v2536
    %v4062 = vunpack.c.l.b16 %v2537
    %v4063 = vunpack.c.h.b16 %v2537
    %v4064 = vunpack.c.l.b16 %v2538
    %v4065 = vunpack.c.h.b16 %v2538
    %v4066 = vunpack.c.l.b16 %v2539
    %v4067 = vunpack.c.h.b16 %v2539
    %v4068 = vunpack.c.l.b16 %v2540
    %v4069 = vunpack.c.h.b16 %v2540
    %v4070 = vunpack.c.l.b16 %v2541
    %v4071 = vunpack.c.h.b16 %v2541
    %v4072 = vunpack.c.l.b16 %v2542
    %v4073 = vunpack.c.h.b16 %v2542
    %v4074 = vunpack.c.l.b16 %v2543
    %v4075 = vunpack.c.h.b16 %v2543
    %v4076 = vunpack.c.l.b16 %v2544
    %v4077 = vunpack.c.h.b16 %v2544
    %v4078 = vunpack.c.l.b16 %v2545
    %v4079 = vunpack.c.h.b16 %v2545
    %v4080 = vunpack.c.l.b16 %v2546
    %v4081 = vunpack.c.h.b16 %v2546
    %v4082 = vunpack.c.l.b16 %v2547
    %v4083 = vunpack.c.h.b16 %v2547
    %v4084 = vunpack.c.l.b16 %v2548
    %v4085 = vunpack.c.h.b16 %v2548
    %v4086 = vunpack.c.l.b16 %v2549
    %v4087 = vunpack.c.h.b16 %v2549
    %v4088 = vunpack.c.l.b16 %v2550
    %v4089 = vunpack.c.h.b16 %v2550
    %v4090 = vunpack.c.l.b16 %v2551
    %v4091 = vunpack.c.h.b16 %v2551
    %v4092 = vunpack.c.l.b16 %v2552
    %v4093 = vunpack.c.h.b16 %v2552
    %v4094 = vunpack.c.l.b16 %v2553
    %v4095 = vunpack.c.h.b16 %v2553
    %v4096 = vunpack.c.l.b16 %v2554
    %v4097 = vunpack.c.h.b16 %v2554
    %v4098 = vunpack.c.l.b16 %v2555
    %v4099 = vunpack.c.h.b16 %v2555
    %v4100 = vunpack.c.l.b16 %v2556
    %v4101 = vunpack.c.h.b16 %v2556
    %v4102 = vunpack.c.l.b16 %v2557
    %v4103 = vunpack.c.h.b16 %v2557
    %v4104 = vunpack.c.l.b16 %v2558
    %v4105 = vunpack.c.h.b16 %v2558
    %v4106 = vunpack.c.l.b16 %v2559
    %v4107 = vunpack.c.h.b16 %v2559
    %v4108 = vunpack.c.l.b16 %v2560
    %v4109 = vunpack.c.h.b16 %v2560
    %v4110 = vunpack.c.l.b16 %v2561
    %v4111 = vunpack.c.h.b16 %v2561
    %v4112 = vunpack.c.l.b16 %v2562
    %v4113 = vunpack.c.h.b16 %v2562
    %v4114 = vunpack.c.l.b16 %v2563
    %v4115 = vunpack.c.h.b16 %v2563
    %v4116 = vunpack.c.l.b16 %v2564
    %v4117 = vunpack.c.h.b16 %v2564
    %v4118 = vunpack.c.l.b16 %v2565
    %v4119 = vunpack.c.h.b16 %v2565
    %v4120 = vunpack.c.l.b16 %v2566
    %v4121 = vunpack.c.h.b16 %v2566
    %v4122 = vunpack.c.l.b16 %v2567
    %v4123 = vunpack.c.h.b16 %v2567
    %v4124 = vunpack.c.l.b16 %v2568
    %v4125 = vunpack.c.h.b16 %v2568
    %v4126 = vunpack.c.l.b16 %v2569
    %v4127 = vunpack.c.h.b16 %v2569
    %v4128 = vunpack.c.l.b16 %v2570
    %v4129 = vunpack.c.h.b16 %v2570
    %v4130 = vunpack.c.l.b16 %v2571
    %v4131 = vunpack.c.h.b16 %v2571
    %v4132 = vunpack.c.l.b16 %v2572
    %v4133 = vunpack.c.h.b16 %v2572
    %v4134 = vunpack.c.l.b16 %v2573
    %v4135 = vunpack.c.h.b16 %v2573
    %v4136 = vunpack.c.l.b16 %v2574
    %v4137 = vunpack.c.h.b16 %v2574
    %v4138 = vunpack.c.l.b16 %v2575
    %v4139 = vunpack.c.h.b16 %v2575
    %v4140 = vunpack.c.l.b16 %v2576
    %v4141 = vunpack.c.h.b16 %v2576
    %v4142 = vunpack.c.l.b16 %v2577
    %v4143 = vunpack.c.h.b16 %v2577
    %v4144 = vunpack.c.l.b16 %v2578
    %v4145 = vunpack.c.h.b16 %v2578
    %v4146 = vunpack.c.l.b16 %v2579
    %v4147 = vunpack.c.h.b16 %v2579
    %v4148 = vunpack.c.l.b16 %v2580
    %v4149 = vunpack.c.h.b16 %v2580
    %v4150 = vunpack.c.l.b16 %v2581
    %v4151 = vunpack.c.h.b16 %v2581
    %v4152 = vunpack.c.l.b16 %v2582
    %v4153 = vunpack.c.h.b16 %v2582
    %v4154 = vunpack.c.l.b16 %v2583
    %v4155 = vunpack.c.h.b16 %v2583
    %v4156 = vunpack.c.l.b16 %v2584
    %v4157 = vunpack.c.h.b16 %v2584
    %v4158 = vunpack.c.l.b16 %v2585
    %v4159 = vunpack.c.h.b16 %v2585
    %v4160 = vunpack.c.l.b16 %v2586
    %v4161 = vunpack.c.h.b16 %v2586
    %v4162 = vunpack.c.l.b16 %v2587
    %v4163 = vunpack.c.h.b16 %v2587
    %v4164 = vunpack.c.l.b16 %v2588
    %v4165 = vunpack.c.h.b16 %v2588
    %v4166 = vpack.c.b16 %v3150, %v3142
    %v4167 = vpack.c.b16 %v3151, %v3143
    %v4168 = vpack.c.b16 %v3152, %v3144
    %v4169 = vpack.c.b16 %v3153, %v3145
    %v4170 = vpack.c.b16 %v3154, %v3146
    %v4171 = vpack.c.b16 %v3155, %v3147
    %v4172 = vpack.c.b16 %v3156, %v3148
    %v4173 = vpack.c.b16 %v3157, %v3149
    %v4174 = vpack.c.b16 %v3166, %v3158
    %v4175 = vpack.c.b16 %v3167, %v3159
    %v4176 = vpack.c.b16 %v3168, %v3160
    %v4177 = vpack.c.b16 %v3169, %v3161
    %v4178 = vpack.c.b16 %v3170, %v3162
    %v4179 = vpack.c.b16 %v3171, %v3163
    %v4180 = vpack.c.b16 %v3172, %v3164
    %v4181 = vpack.c.b16 %v3173, %v3165
    %v4182 = vpack.c.b16 %v3182, %v3174
    %v4183 = vpack.c.b16 %v3183, %v3175
    %v4184 = vpack.c.b16 %v3184, %v3176
    %v4185 = vpack.c.b16 %v3185, %v3177
    %v4186 = vpack.c.b16 %v3186, %v3178
    %v4187 = vpack.c.b16 %v3187, %v3179
    %v4188 = vpack.c.b16 %v3188, %v3180
    %v4189 = vpack.c.b16 %v3189, %v3181
    %v4190 = vpack.c.b16 %v3198, %v3190
    %v4191 = vpack.c.b16 %v3199, %v3191
    %v4192 = vpack.c.b16 %v3200, %v3192
    %v4193 = vpack.c.b16 %v3201, %v3193
    %v4194 = vpack.c.b16 %v3202, %v3194
    %v4195 = vpack.c.b16 %v3203, %v3195
    %v4196 = vpack.c.b16 %v3204, %v3196
    %v4197 = vpack.c.b16 %v3205, %v3197
    %v4198 = vpack.c.b16 %v3214, %v3206
    %v4199 = vpack.c.b16 %v3215, %v3207
    %v4200 = vpack.c.b16 %v3216, %v3208
    %v4201 = vpack.c.b16 %v3217, %v3209
    %v4202 = vpack.c.b16 %v3218, %v3210
    %v4203 = vpack.c.b16 %v3219, %v3211
    %v4204 = vpack.c.b16 %v3220, %v3212
    %v4205 = vpack.c.b16 %v3221, %v3213
    %v4206 = vpack.c.b16 %v3230, %v3222
    %v4207 = vpack.c.b16 %v3231, %v3223
    %v4208 = vpack.c.b16 %v3232, %v3224
    %v4209 = vpack.c.b16 %v3233, %v3225
    %v4210 = vpack.c.b16 %v3234, %v3226
    %v4211 = vpack.c.b16 %v3235, %v3227
    %v4212 = vpack.c.b16 %v3236, %v3228
    %v4213 = vpack.c.b16 %v3237, %v3229
    %v4214 = vpack.c.b16 %v3246, %v3238
    %v4215 = vpack.c.b16 %v3247, %v3239
    %v4216 = vpack.c.b16 %v3248, %v3240
    %v4217 = vpack.c.b16 %v3249, %v3241
    %v4218 = vpack.c.b16 %v3250, %v3242
    %v4219 = vpack.c.b16 %v3251, %v3243
    %v4220 = vpack.c.b16 %v3252, %v3244
    %v4221 = vpack.c.b16 %v3253, %v3245
    %v4222 = vpack.c.b16 %v3262, %v3254
    %v4223 = vpack.c.b16 %v3263, %v3255
    %v4224 = vpack.c.b16 %v3264, %v3256
    %v4225 = vpack.c.b16 %v3265, %v3257
    %v4226 = vpack.c.b16 %v3266, %v3258
    %v4227 = vpack.c.b16 %v3267, %v3259
    %v4228 = vpack.c.b16 %v3268, %v3260
    %v4229 = vpack.c.b16 %v3269, %v3261
    %v4230 = vpack.c.b16 %v3278, %v3270
    %v4231 = vpack.c.b16 %v3279, %v3271
    %v4232 = vpack.c.b16 %v3280, %v3272
    %v4233 = vpack.c.b16 %v3281, %v3273
    %v4234 = vpack.c.b16 %v3282, %v3274
    %v4235 = vpack.c.b16 %v3283, %v3275
    %v4236 = vpack.c.b16 %v3284, %v3276
    %v4237 = vpack.c.b16 %v3285, %v3277
    %v4238 = vpack.c.b16 %v3294, %v3286
    %v4239 = vpack.c.b16 %v3295, %v3287
    %v4240 = vpack.c.b16 %v3296, %v3288
    %v4241 = vpack.c.b16 %v3297, %v3289
    %v4242 = vpack.c.b16 %v3298, %v3290
    %v4243 = vpack.c.b16 %v3299, %v3291
    %v4244 = vpack.c.b16 %v3300, %v3292
    %v4245 = vpack.c.b16 %v3301, %v3293
    %v4246 = vpack.c.b16 %v3310, %v3302
    %v4247 = vpack.c.b16 %v3311, %v3303
    %v4248 = vpack.c.b16 %v3312, %v3304
    %v4249 = vpack.c.b16 %v3313, %v3305
    %v4250 = vpack.c.b16 %v3314, %v3306
    %v4251 = vpack.c.b16 %v3315, %v3307
    %v4252 = vpack.c.b16 %v3316, %v3308
    %v4253 = vpack.c.b16 %v3317, %v3309
    %v4254 = vpack.c.b16 %v3326, %v3318
    %v4255 = vpack.c.b16 %v3327, %v3319
    %v4256 = vpack.c.b16 %v3328, %v3320
    %v4257 = vpack.c.b16 %v3329, %v3321
    %v4258 = vpack.c.b16 %v3330, %v3322
    %v4259 = vpack.c.b16 %v3331, %v3323
    %v4260 = vpack.c.b16 %v3332, %v3324
    %v4261 = vpack.c.b16 %v3333, %v3325
    %v4262 = vpack.c.b16 %v3342, %v3334
    %v4263 = vpack.c.b16 %v3343, %v3335
    %v4264 = vpack.c.b16 %v3344, %v3336
    %v4265 = vpack.c.b16 %v3345, %v3337
    %v4266 = vpack.c.b16 %v3346, %v3338
    %v4267 = vpack.c.b16 %v3347, %v3339
    %v4268 = vpack.c.b16 %v3348, %v3340
    %v4269 = vpack.c.b16 %v3349, %v3341
    %v4270 = vpack.c.b16 %v3358, %v3350
    %v4271 = vpack.c.b16 %v3359, %v3351
    %v4272 = vpack.c.b16 %v3360, %v3352
    %v4273 = vpack.c.b16 %v3361, %v3353
    %v4274 = vpack.c.b16 %v3362, %v3354
    %v4275 = vpack.c.b16 %v3363, %v3355
    %v4276 = vpack.c.b16 %v3364, %v3356
    %v4277 = vpack.c.b16 %v3365, %v3357
    %v4278 = vpack.c.b16 %v3374, %v3366
    %v4279 = vpack.c.b16 %v3375, %v3367
    %v4280 = vpack.c.b16 %v3376, %v3368
    %v4281 = vpack.c.b16 %v3377, %v3369
    %v4282 = vpack.c.b16 %v3378, %v3370
    %v4283 = vpack.c.b16 %v3379, %v3371
    %v4284 = vpack.c.b16 %v3380, %v3372
    %v4285 = vpack.c.b16 %v3381, %v3373
    %v4286 = vpack.c.b16 %v3390, %v3382
    %v4287 = vpack.c.b16 %v3391, %v3383
    %v4288 = vpack.c.b16 %v3392, %v3384
    %v4289 = vpack.c.b16 %v3393, %v3385
    %v4290 = vpack.c.b16 %v3394, %v3386
    %v4291 = vpack.c.b16 %v3395, %v3387
    %v4292 = vpack.c.b16 %v3396, %v3388
    %v4293 = vpack.c.b16 %v3397, %v3389
    %v4294 = vpack.c.b16 %v3406, %v3398
    %v4295 = vpack.c.b16 %v3407, %v3399
    %v4296 = vpack.c.b16 %v3408, %v3400
    %v4297 = vpack.c.b16 %v3409, %v3401
    %v4298 = vpack.c.b16 %v3410, %v3402
    %v4299 = vpack.c.b16 %v3411, %v3403
    %v4300 = vpack.c.b16 %v3412, %v3404
    %v4301 = vpack.c.b16 %v3413, %v3405
    %v4302 = vpack.c.b16 %v3422, %v3414
    %v4303 = vpack.c.b16 %v3423, %v3415
    %v4304 = vpack.c.b16 %v3424, %v3416
    %v4305 = vpack.c.b16 %v3425, %v3417
    %v4306 = vpack.c.b16 %v3426, %v3418
    %v4307 = vpack.c.b16 %v3427, %v3419
    %v4308 = vpack.c.b16 %v3428, %v3420
    %v4309 = vpack.c.b16 %v3429, %v3421
    %v4310 = vpack.c.b16 %v3438, %v3430
    %v4311 = vpack.c.b16 %v3439, %v3431
    %v4312 = vpack.c.b16 %v3440, %v3432
    %v4313 = vpack.c.b16 %v3441, %v3433
    %v4314 = vpack.c.b16 %v3442, %v3434
    %v4315 = vpack.c.b16 %v3443, %v3435
    %v4316 = vpack.c.b16 %v3444, %v3436
    %v4317 = vpack.c.b16 %v3445, %v3437
    %v4318 = vpack.c.b16 %v3454, %v3446
    %v4319 = vpack.c.b16 %v3455, %v3447
    %v4320 = vpack.c.b16 %v3456, %v3448
    %v4321 = vpack.c.b16 %v3457, %v3449
    %v4322 = vpack.c.b16 %v3458, %v3450
    %v4323 = vpack.c.b16 %v3459, %v3451
    %v4324 = vpack.c.b16 %v3460, %v3452
    %v4325 = vpack.c.b16 %v3461, %v3453
    %v4326 = vpack.c.b16 %v3470, %v3462
    %v4327 = vpack.c.b16 %v3471, %v3463
    %v4328 = vpack.c.b16 %v3472, %v3464
    %v4329 = vpack.c.b16 %v3473, %v3465
    %v4330 = vpack.c.b16 %v3474, %v3466
    %v4331 = vpack.c.b16 %v3475, %v3467
    %v4332 = vpack.c.b16 %v3476, %v3468
    %v4333 = vpack.c.b16 %v3477, %v3469
    %v4334 = vpack.c.b16 %v3486, %v3478
    %v4335 = vpack.c.b16 %v3487, %v3479
    %v4336 = vpack.c.b16 %v3488, %v3480
    %v4337 = vpack.c.b16 %v3489, %v3481
    %v4338 = vpack.c.b16 %v3490, %v3482
    %v4339 = vpack.c.b16 %v3491, %v3483
    %v4340 = vpack.c.b16 %v3492, %v3484
    %v4341 = vpack.c.b16 %v3493, %v3485
    %v4342 = vpack.c.b16 %v3502, %v3494
    %v4343 = vpack.c.b16 %v3503, %v3495
    %v4344 = vpack.c.b16 %v3504, %v3496
    %v4345 = vpack.c.b16 %v3505, %v3497
    %v4346 = vpack.c.b16 %v3506, %v3498
    %v4347 = vpack.c.b16 %v3507, %v3499
    %v4348 = vpack.c.b16 %v3508, %v3500
    %v4349 = vpack.c.b16 %v3509, %v3501
    %v4350 = vpack.c.b16 %v3518, %v3510
    %v4351 = vpack.c.b16 %v3519, %v3511
    %v4352 = vpack.c.b16 %v3520, %v3512
    %v4353 = vpack.c.b16 %v3521, %v3513
    %v4354 = vpack.c.b16 %v3522, %v3514
    %v4355 = vpack.c.b16 %v3523, %v3515
    %v4356 = vpack.c.b16 %v3524, %v3516
    %v4357 = vpack.c.b16 %v3525, %v3517
    %v4358 = vpack.c.b16 %v3534, %v3526
    %v4359 = vpack.c.b16 %v3535, %v3527
    %v4360 = vpack.c.b16 %v3536, %v3528
    %v4361 = vpack.c.b16 %v3537, %v3529
    %v4362 = vpack.c.b16 %v3538, %v3530
    %v4363 = vpack.c.b16 %v3539, %v3531
    %v4364 = vpack.c.b16 %v3540, %v3532
    %v4365 = vpack.c.b16 %v3541, %v3533
    %v4366 = vpack.c.b16 %v3550, %v3542
    %v4367 = vpack.c.b16 %v3551, %v3543
    %v4368 = vpack.c.b16 %v3552, %v3544
    %v4369 = vpack.c.b16 %v3553, %v3545
    %v4370 = vpack.c.b16 %v3554, %v3546
    %v4371 = vpack.c.b16 %v3555, %v3547
    %v4372 = vpack.c.b16 %v3556, %v3548
    %v4373 = vpack.c.b16 %v3557, %v3549
    %v4374 = vpack.c.b16 %v3566, %v3558
    %v4375 = vpack.c.b16 %v3567, %v3559
    %v4376 = vpack.c.b16 %v3568, %v3560
    %v4377 = vpack.c.b16 %v3569, %v3561
    %v4378 = vpack.c.b16 %v3570, %v3562
    %v4379 = vpack.c.b16 %v3571, %v3563
    %v4380 = vpack.c.b16 %v3572, %v3564
    %v4381 = vpack.c.b16 %v3573, %v3565
    %v4382 = vpack.c.b16 %v3582, %v3574
    %v4383 = vpack.c.b16 %v3583, %v3575
    %v4384 = vpack.c.b16 %v3584, %v3576
    %v4385 = vpack.c.b16 %v3585, %v3577
    %v4386 = vpack.c.b16 %v3586, %v3578
    %v4387 = vpack.c.b16 %v3587, %v3579
    %v4388 = vpack.c.b16 %v3588, %v3580
    %v4389 = vpack.c.b16 %v3589, %v3581
    %v4390 = vpack.c.b16 %v3598, %v3590
    %v4391 = vpack.c.b16 %v3599, %v3591
    %v4392 = vpack.c.b16 %v3600, %v3592
    %v4393 = vpack.c.b16 %v3601, %v3593
    %v4394 = vpack.c.b16 %v3602, %v3594
    %v4395 = vpack.c.b16 %v3603, %v3595
    %v4396 = vpack.c.b16 %v3604, %v3596
    %v4397 = vpack.c.b16 %v3605, %v3597
    %v4398 = vpack.c.b16 %v3614, %v3606
    %v4399 = vpack.c.b16 %v3615, %v3607
    %v4400 = vpack.c.b16 %v3616, %v3608
    %v4401 = vpack.c.b16 %v3617, %v3609
    %v4402 = vpack.c.b16 %v3618, %v3610
    %v4403 = vpack.c.b16 %v3619, %v3611
    %v4404 = vpack.c.b16 %v3620, %v3612
    %v4405 = vpack.c.b16 %v3621, %v3613
    %v4406 = vpack.c.b16 %v3630, %v3622
    %v4407 = vpack.c.b16 %v3631, %v3623
    %v4408 = vpack.c.b16 %v3632, %v3624
    %v4409 = vpack.c.b16 %v3633, %v3625
    %v4410 = vpack.c.b16 %v3634, %v3626
    %v4411 = vpack.c.b16 %v3635, %v3627
    %v4412 = vpack.c.b16 %v3636, %v3628
    %v4413 = vpack.c.b16 %v3637, %v3629
    %v4414 = vpack.c.b16 %v3646, %v3638
    %v4415 = vpack.c.b16 %v3647, %v3639
    %v4416 = vpack.c.b16 %v3648, %v3640
    %v4417 = vpack.c.b16 %v3649, %v3641
    %v4418 = vpack.c.b16 %v3650, %v3642
    %v4419 = vpack.c.b16 %v3651, %v3643
    %v4420 = vpack.c.b16 %v3652, %v3644
    %v4421 = vpack.c.b16 %v3653, %v3645
    %v4422 = vpack.c.b16 %v3662, %v3654
    %v4423 = vpack.c.b16 %v3663, %v3655
    %v4424 = vpack.c.b16 %v3664, %v3656
    %v4425 = vpack.c.b16 %v3665, %v3657
    %v4426 = vpack.c.b16 %v3666, %v3658
    %v4427 = vpack.c.b16 %v3667, %v3659
    %v4428 = vpack.c.b16 %v3668, %v3660
    %v4429 = vpack.c.b16 %v3669, %v3661
    %v4430 = vpack.c.b16 %v3678, %v3670
    %v4431 = vpack.c.b16 %v3679, %v3671
    %v4432 = vpack.c.b16 %v3680, %v3672
    %v4433 = vpack.c.b16 %v3681, %v3673
    %v4434 = vpack.c.b16 %v3682, %v3674
    %v4435 = vpack.c.b16 %v3683, %v3675
    %v4436 = vpack.c.b16 %v3684, %v3676
    %v4437 = vpack.c.b16 %v3685, %v3677
    %v4438 = vpack.c.b16 %v3694, %v3686
    %v4439 = vpack.c.b16 %v3695, %v3687
    %v4440 = vpack.c.b16 %v3696, %v3688
    %v4441 = vpack.c.b16 %v3697, %v3689
    %v4442 = vpack.c.b16 %v3698, %v3690
    %v4443 = vpack.c.b16 %v3699, %v3691
    %v4444 = vpack.c.b16 %v3700, %v3692
    %v4445 = vpack.c.b16 %v3701, %v3693
    %v4446 = vpack.c.b16 %v3710, %v3702
    %v4447 = vpack.c.b16 %v3711, %v3703
    %v4448 = vpack.c.b16 %v3712, %v3704
    %v4449 = vpack.c.b16 %v3713, %v3705
    %v4450 = vpack.c.b16 %v3714, %v3706
    %v4451 = vpack.c.b16 %v3715, %v3707
    %v4452 = vpack.c.b16 %v3716, %v3708
    %v4453 = vpack.c.b16 %v3717, %v3709
    %v4454 = vpack.c.b16 %v3726, %v3718
    %v4455 = vpack.c.b16 %v3727, %v3719
    %v4456 = vpack.c.b16 %v3728, %v3720
    %v4457 = vpack.c.b16 %v3729, %v3721
    %v4458 = vpack.c.b16 %v3730, %v3722
    %v4459 = vpack.c.b16 %v3731, %v3723
    %v4460 = vpack.c.b16 %v3732, %v3724
    %v4461 = vpack.c.b16 %v3733, %v3725
    %v4462 = vpack.c.b16 %v3742, %v3734
    %v4463 = vpack.c.b16 %v3743, %v3735
    %v4464 = vpack.c.b16 %v3744, %v3736
    %v4465 = vpack.c.b16 %v3745, %v3737
    %v4466 = vpack.c.b16 %v3746, %v3738
    %v4467 = vpack.c.b16 %v3747, %v3739
    %v4468 = vpack.c.b16 %v3748, %v3740
    %v4469 = vpack.c.b16 %v3749, %v3741
    %v4470 = vpack.c.b16 %v3758, %v3750
    %v4471 = vpack.c.b16 %v3759, %v3751
    %v4472 = vpack.c.b16 %v3760, %v3752
    %v4473 = vpack.c.b16 %v3761, %v3753
    %v4474 = vpack.c.b16 %v3762, %v3754
    %v4475 = vpack.c.b16 %v3763, %v3755
    %v4476 = vpack.c.b16 %v3764, %v3756
    %v4477 = vpack.c.b16 %v3765, %v3757
    %v4478 = vpack.c.b16 %v3774, %v3766
    %v4479 = vpack.c.b16 %v3775, %v3767
    %v4480 = vpack.c.b16 %v3776, %v3768
    %v4481 = vpack.c.b16 %v3777, %v3769
    %v4482 = vpack.c.b16 %v3778, %v3770
    %v4483 = vpack.c.b16 %v3779, %v3771
    %v4484 = vpack.c.b16 %v3780, %v3772
    %v4485 = vpack.c.b16 %v3781, %v3773
    %v4486 = vpack.c.b16 %v3790, %v3782
    %v4487 = vpack.c.b16 %v3791, %v3783
    %v4488 = vpack.c.b16 %v3792, %v3784
    %v4489 = vpack.c.b16 %v3793, %v3785
    %v4490 = vpack.c.b16 %v3794, %v3786
    %v4491 = vpack.c.b16 %v3795, %v3787
    %v4492 = vpack.c.b16 %v3796, %v3788
    %v4493 = vpack.c.b16 %v3797, %v3789
    %v4494 = vpack.c.b16 %v3806, %v3798
    %v4495 = vpack.c.b16 %v3807, %v3799
    %v4496 = vpack.c.b16 %v3808, %v3800
    %v4497 = vpack.c.b16 %v3809, %v3801
    %v4498 = vpack.c.b16 %v3810, %v3802
    %v4499 = vpack.c.b16 %v3811, %v3803
    %v4500 = vpack.c.b16 %v3812, %v3804
    %v4501 = vpack.c.b16 %v3813, %v3805
    %v4502 = vpack.c.b16 %v3822, %v3814
    %v4503 = vpack.c.b16 %v3823, %v3815
    %v4504 = vpack.c.b16 %v3824, %v3816
    %v4505 = vpack.c.b16 %v3825, %v3817
    %v4506 = vpack.c.b16 %v3826, %v3818
    %v4507 = vpack.c.b16 %v3827, %v3819
    %v4508 = vpack.c.b16 %v3828, %v3820
    %v4509 = vpack.c.b16 %v3829, %v3821
    %v4510 = vpack.c.b16 %v3838, %v3830
    %v4511 = vpack.c.b16 %v3839, %v3831
    %v4512 = vpack.c.b16 %v3840, %v3832
    %v4513 = vpack.c.b16 %v3841, %v3833
    %v4514 = vpack.c.b16 %v3842, %v3834
    %v4515 = vpack.c.b16 %v3843, %v3835
    %v4516 = vpack.c.b16 %v3844, %v3836
    %v4517 = vpack.c.b16 %v3845, %v3837
    %v4518 = vpack.c.b16 %v3854, %v3846
    %v4519 = vpack.c.b16 %v3855, %v3847
    %v4520 = vpack.c.b16 %v3856, %v3848
    %v4521 = vpack.c.b16 %v3857, %v3849
    %v4522 = vpack.c.b16 %v3858, %v3850
    %v4523 = vpack.c.b16 %v3859, %v3851
    %v4524 = vpack.c.b16 %v3860, %v3852
    %v4525 = vpack.c.b16 %v3861, %v3853
    %v4526 = vpack.c.b16 %v3870, %v3862
    %v4527 = vpack.c.b16 %v3871, %v3863
    %v4528 = vpack.c.b16 %v3872, %v3864
    %v4529 = vpack.c.b16 %v3873, %v3865
    %v4530 = vpack.c.b16 %v3874, %v3866
    %v4531 = vpack.c.b16 %v3875, %v3867
    %v4532 = vpack.c.b16 %v3876, %v3868
    %v4533 = vpack.c.b16 %v3877, %v3869
    %v4534 = vpack.c.b16 %v3886, %v3878
    %v4535 = vpack.c.b16 %v3887, %v3879
    %v4536 = vpack.c.b16 %v3888, %v3880
    %v4537 = vpack.c.b16 %v3889, %v3881
    %v4538 = vpack.c.b16 %v3890, %v3882
    %v4539 = vpack.c.b16 %v3891, %v3883
    %v4540 = vpack.c.b16 %v3892, %v3884
    %v4541 = vpack.c.b16 %v3893, %v3885
    %v4542 = vpack.c.b16 %v3902, %v3894
    %v4543 = vpack.c.b16 %v3903, %v3895
    %v4544 = vpack.c.b16 %v3904, %v3896
    %v4545 = vpack.c.b16 %v3905, %v3897
    %v4546 = vpack.c.b16 %v3906, %v3898
    %v4547 = vpack.c.b16 %v3907, %v3899
    %v4548 = vpack.c.b16 %v3908, %v3900
    %v4549 = vpack.c.b16 %v3909, %v3901
    %v4550 = vpack.c.b16 %v3918, %v3910
    %v4551 = vpack.c.b16 %v3919, %v3911
    %v4552 = vpack.c.b16 %v3920, %v3912
    %v4553 = vpack.c.b16 %v3921, %v3913
    %v4554 = vpack.c.b16 %v3922, %v3914
    %v4555 = vpack.c.b16 %v3923, %v3915
    %v4556 = vpack.c.b16 %v3924, %v3916
    %v4557 = vpack.c.b16 %v3925, %v3917
    %v4558 = vpack.c.b16 %v3934, %v3926
    %v4559 = vpack.c.b16 %v3935, %v3927
    %v4560 = vpack.c.b16 %v3936, %v3928
    %v4561 = vpack.c.b16 %v3937, %v3929
    %v4562 = vpack.c.b16 %v3938, %v3930
    %v4563 = vpack.c.b16 %v3939, %v3931
    %v4564 = vpack.c.b16 %v3940, %v3932
    %v4565 = vpack.c.b16 %v3941, %v3933
    %v4566 = vpack.c.b16 %v3950, %v3942
    %v4567 = vpack.c.b16 %v3951, %v3943
    %v4568 = vpack.c.b16 %v3952, %v3944
    %v4569 = vpack.c.b16 %v3953, %v3945
    %v4570 = vpack.c.b16 %v3954, %v3946
    %v4571 = vpack.c.b16 %v3955, %v3947
    %v4572 = vpack.c.b16 %v3956, %v3948
    %v4573 = vpack.c.b16 %v3957, %v3949
    %v4574 = vpack.c.b16 %v3966, %v3958
    %v4575 = vpack.c.b16 %v3967, %v3959
    %v4576 = vpack.c.b16 %v3968, %v3960
    %v4577 = vpack.c.b16 %v3969, %v3961
    %v4578 = vpack.c.b16 %v3970, %v3962
    %v4579 = vpack.c.b16 %v3971, %v3963
    %v4580 = vpack.c.b16 %v3972, %v3964
    %v4581 = vpack.c.b16 %v3973, %v3965
    %v4582 = vpack.c.b16 %v3982, %v3974
    %v4583 = vpack.c.b16 %v3983, %v3975
    %v4584 = vpack.c.b16 %v3984, %v3976
    %v4585 = vpack.c.b16 %v3985, %v3977
    %v4586 = vpack.c.b16 %v3986, %v3978
    %v4587 = vpack.c.b16 %v3987, %v3979
    %v4588 = vpack.c.b16 %v3988, %v3980
    %v4589 = vpack.c.b16 %v3989, %v3981
    %v4590 = vpack.c.b16 %v3998, %v3990
    %v4591 = vpack.c.b16 %v3999, %v3991
    %v4592 = vpack.c.b16 %v4000, %v3992
    %v4593 = vpack.c.b16 %v4001, %v3993
    %v4594 = vpack.c.b16 %v4002, %v3994
    %v4595 = vpack.c.b16 %v4003, %v3995
    %v4596 = vpack.c.b16 %v4004, %v3996
    %v4597 = vpack.c.b16 %v4005, %v3997
    %v4598 = vpack.c.b16 %v4014, %v4006
    %v4599 = vpack.c.b16 %v4015, %v4007
    %v4600 = vpack.c.b16 %v4016, %v4008
    %v4601 = vpack.c.b16 %v4017, %v4009
    %v4602 = vpack.c.b16 %v4018, %v4010
    %v4603 = vpack.c.b16 %v4019, %v4011
    %v4604 = vpack.c.b16 %v4020, %v4012
    %v4605 = vpack.c.b16 %v4021, %v4013
    %v4606 = vpack.c.b16 %v4030, %v4022
    %v4607 = vpack.c.b16 %v4031, %v4023
    %v4608 = vpack.c.b16 %v4032, %v4024
    %v4609 = vpack.c.b16 %v4033, %v4025
    %v4610 = vpack.c.b16 %v4034, %v4026
    %v4611 = vpack.c.b16 %v4035, %v4027
    %v4612 = vpack.c.b16 %v4036, %v4028
    %v4613 = vpack.c.b16 %v4037, %v4029
    %v4614 = vpack.c.b16 %v4046, %v4038
    %v4615 = vpack.c.b16 %v4047, %v4039
    %v4616 = vpack.c.b16 %v4048, %v4040
    %v4617 = vpack.c.b16 %v4049, %v4041
    %v4618 = vpack.c.b16 %v4050, %v4042
    %v4619 = vpack.c.b16 %v4051, %v4043
    %v4620 = vpack.c.b16 %v4052, %v4044
    %v4621 = vpack.c.b16 %v4053, %v4045
    %v4622 = vpack.c.b16 %v4062, %v4054
    %v4623 = vpack.c.b16 %v4063, %v4055
    %v4624 = vpack.c.b16 %v4064, %v4056
    %v4625 = vpack.c.b16 %v4065, %v4057
    %v4626 = vpack.c.b16 %v4066, %v4058
    %v4627 = vpack.c.b16 %v4067, %v4059
    %v4628 = vpack.c.b16 %v4068, %v4060
    %v4629 = vpack.c.b16 %v4069, %v4061
    %v4630 = vpack.c.b16 %v4078, %v4070
    %v4631 = vpack.c.b16 %v4079, %v4071
    %v4632 = vpack.c.b16 %v4080, %v4072
    %v4633 = vpack.c.b16 %v4081, %v4073
    %v4634 = vpack.c.b16 %v4082, %v4074
    %v4635 = vpack.c.b16 %v4083, %v4075
    %v4636 = vpack.c.b16 %v4084, %v4076
    %v4637 = vpack.c.b16 %v4085, %v4077
    %v4638 = vpack.c.b16 %v4094, %v4086
    %v4639 = vpack.c.b16 %v4095, %v4087
    %v4640 = vpack.c.b16 %v4096, %v4088
    %v4641 = vpack.c.b16 %v4097, %v4089
    %v4642 = vpack.c.b16 %v4098, %v4090
    %v4643 = vpack.c.b16 %v4099, %v4091
    %v4644 = vpack.c.b16 %v4100, %v4092
    %v4645 = vpack.c.b16 %v4101, %v4093
    %v4646 = vpack.c.b16 %v4110, %v4102
    %v4647 = vpack.c.b16 %v4111, %v4103
    %v4648 = vpack.c.b16 %v4112, %v4104
    %v4649 = vpack.c.b16 %v4113, %v4105
    %v4650 = vpack.c.b16 %v4114, %v4106
    %v4651 = vpack.c.b16 %v4115, %v4107
    %v4652 = vpack.c.b16 %v4116, %v4108
    %v4653 = vpack.c.b16 %v4117, %v4109
    %v4654 = vpack.c.b16 %v4126, %v4118
    %v4655 = vpack.c.b16 %v4127, %v4119
    %v4656 = vpack.c.b16 %v4128, %v4120
    %v4657 = vpack.c.b16 %v4129, %v4121
    %v4658 = vpack.c.b16 %v4130, %v4122
    %v4659 = vpack.c.b16 %v4131, %v4123
    %v4660 = vpack.c.b16 %v4132, %v4124
    %v4661 = vpack.c.b16 %v4133, %v4125
    %v4662 = vpack.c.b16 %v4142, %v4134
    %v4663 = vpack.c.b16 %v4143, %v4135
    %v4664 = vpack.c.b16 %v4144, %v4136
    %v4665 = vpack.c.b16 %v4145, %v4137
    %v4666 = vpack.c.b16 %v4146, %v4138
    %v4667 = vpack.c.b16 %v4147, %v4139
    %v4668 = vpack.c.b16 %v4148, %v4140
    %v4669 = vpack.c.b16 %v4149, %v4141
    %v4670 = vpack.c.b16 %v4158, %v4150
    %v4671 = vpack.c.b16 %v4159, %v4151
    %v4672 = vpack.c.b16 %v4160, %v4152
    %v4673 = vpack.c.b16 %v4161, %v4153
    %v4674 = vpack.c.b16 %v4162, %v4154
    %v4675 = vpack.c.b16 %v4163, %v4155
    %v4676 = vpack.c.b16 %v4164, %v4156
    %v4677 = vpack.c.b16 %v4165, %v4157
    %5190 = vmatprep.subr.bf16.mxu0 %v4167
    %5191 = vmatpush1.bf16.msra.mxu0 %v4166
    %5192 = vmatprep.subr.bf16.mxu0 %v4175
    %5193 = vmatpush1.bf16.msra.mxu0 %v4174
    %5194 = vmatprep.subr.bf16.mxu0 %v4183
    %5195 = vmatpush1.bf16.msra.mxu0 %v4182
    %5196 = vmatprep.subr.bf16.mxu0 %v4191
    %5197 = vmatpush1.bf16.msra.mxu0 %v4190
    %5198 = vmatprep.subr.bf16.mxu0 %v4199
    %5199 = vmatpush1.bf16.msra.mxu0 %v4198
    %5200 = vmatprep.subr.bf16.mxu0 %v4207
    %5201 = vmatpush1.bf16.msra.mxu0 %v4206
    %5202 = vmatprep.subr.bf16.mxu0 %v4215
    %5203 = vmatpush1.bf16.msra.mxu0 %v4214
    %5204 = vmatprep.subr.bf16.mxu0 %v4223
    %5205 = vmatpush1.bf16.msra.mxu0 %v4222
    %5206 = vmatprep.subr.bf16.mxu0 %v4231
    %5207 = vmatpush1.bf16.msra.mxu0 %v4230
    %5208 = vmatprep.subr.bf16.mxu0 %v4239
    %5209 = vmatpush1.bf16.msra.mxu0 %v4238
    %5210 = vmatprep.subr.bf16.mxu0 %v4247
    %5211 = vmatpush1.bf16.msra.mxu0 %v4246
    %5212 = vmatprep.subr.bf16.mxu0 %v4255
    %5213 = vmatpush1.bf16.msra.mxu0 %v4254
    %5214 = vmatprep.subr.bf16.mxu0 %v4263
    %5215 = vmatpush1.bf16.msra.mxu0 %v4262
    %5216 = vmatprep.subr.bf16.mxu0 %v4271
    %5217 = vmatpush1.bf16.msra.mxu0 %v4270
    %5218 = vmatprep.subr.bf16.mxu0 %v4279
    %5219 = vmatpush1.bf16.msra.mxu0 %v4278
    %5220 = vmatprep.subr.bf16.mxu0 %v4287
    %5221 = vmatpush1.bf16.msra.mxu0 %v4286
    %5222 = vmatprep.mubr.bf16.mxu0 %v2070
    %5223 = vmatmul.mubr.bf16.gmra.mrb[0].mxu0 %v2069
    %v5224 = vpop.f32.mrb[0].mxu0
    %v5225 = vadd.f32 %v2593, %v5224
    %v5226 = vpop.f32.mrb[0].mxu0
    %v5227 = vadd.f32 %v2597, %v5226
    %v5228 = vpop.f32.mrb[0].mxu0
    %v5229 = vadd.f32 %v2593, %v5228
    %v5230 = vpop.f32.mrb[0].mxu0
    %v5231 = vadd.f32 %v2597, %v5230
    %5232 = vdwg.mxu0
    %5233 = vmatprep.subr.bf16.mxu0 %v4295
    %5234 = vmatpush1.bf16.msra.mxu0 %v4294
    %5235 = vmatprep.subr.bf16.mxu0 %v4303
    %5236 = vmatpush1.bf16.msra.mxu0 %v4302
    %5237 = vmatprep.subr.bf16.mxu0 %v4311
    %5238 = vmatpush1.bf16.msra.mxu0 %v4310
    %5239 = vmatprep.subr.bf16.mxu0 %v4319
    %5240 = vmatpush1.bf16.msra.mxu0 %v4318
    %5241 = vmatprep.subr.bf16.mxu0 %v4327
    %5242 = vmatpush1.bf16.msra.mxu0 %v4326
    %5243 = vmatprep.subr.bf16.mxu0 %v4335
    %5244 = vmatpush1.bf16.msra.mxu0 %v4334
    %5245 = vmatprep.subr.bf16.mxu0 %v4343
    %5246 = vmatpush1.bf16.msra.mxu0 %v4342
    %5247 = vmatprep.subr.bf16.mxu0 %v4351
    %5248 = vmatpush1.bf16.msra.mxu0 %v4350
    %5249 = vmatprep.subr.bf16.mxu0 %v4359
    %5250 = vmatpush1.bf16.msra.mxu0 %v4358
    %5251 = vmatprep.subr.bf16.mxu0 %v4367
    %5252 = vmatpush1.bf16.msra.mxu0 %v4366
    %5253 = vmatprep.subr.bf16.mxu0 %v4375
    %5254 = vmatpush1.bf16.msra.mxu0 %v4374
    %5255 = vmatprep.subr.bf16.mxu0 %v4383
    %5256 = vmatpush1.bf16.msra.mxu0 %v4382
    %5257 = vmatprep.subr.bf16.mxu0 %v4391
    %5258 = vmatpush1.bf16.msra.mxu0 %v4390
    %5259 = vmatprep.subr.bf16.mxu0 %v4399
    %5260 = vmatpush1.bf16.msra.mxu0 %v4398
    %5261 = vmatprep.subr.bf16.mxu0 %v4407
    %5262 = vmatpush1.bf16.msra.mxu0 %v4406
    %5263 = vmatprep.subr.bf16.mxu0 %v4415
    %5264 = vmatpush1.bf16.msra.mxu0 %v4414
    %5265 = vmatprep.mubr.bf16.mxu0 %v2072
    %5266 = vmatmul.mubr.bf16.gmra.mrb[0].mxu0 %v2071
    %v5267 = vpop.f32.mrb[0].mxu0
    %v5268 = vadd.f32 %v5225, %v5267
    %v5269 = vpop.f32.mrb[0].mxu0
    %v5270 = vadd.f32 %v5227, %v5269
    %v5271 = vpop.f32.mrb[0].mxu0
    %v5272 = vadd.f32 %v5229, %v5271
    %v5273 = vpop.f32.mrb[0].mxu0
    %v5274 = vadd.f32 %v5231, %v5273
    %5275 = vdwg.mxu0
    %5276 = vmatprep.subr.bf16.mxu0 %v4423
    %5277 = vmatpush1.bf16.msra.mxu0 %v4422
    %5278 = vmatprep.subr.bf16.mxu0 %v4431
    %5279 = vmatpush1.bf16.msra.mxu0 %v4430
    %5280 = vmatprep.subr.bf16.mxu0 %v4439
    %5281 = vmatpush1.bf16.msra.mxu0 %v4438
    %5282 = vmatprep.subr.bf16.mxu0 %v4447
    %5283 = vmatpush1.bf16.msra.mxu0 %v4446
    %5284 = vmatprep.subr.bf16.mxu0 %v4455
    %5285 = vmatpush1.bf16.msra.mxu0 %v4454
    %5286 = vmatprep.subr.bf16.mxu0 %v4463
    %5287 = vmatpush1.bf16.msra.mxu0 %v4462
    %5288 = vmatprep.subr.bf16.mxu0 %v4471
    %5289 = vmatpush1.bf16.msra.mxu0 %v4470
    %5290 = vmatprep.subr.bf16.mxu0 %v4479
    %5291 = vmatpush1.bf16.msra.mxu0 %v4478
    %5292 = vmatprep.subr.bf16.mxu0 %v4487
    %5293 = vmatpush1.bf16.msra.mxu0 %v4486
    %5294 = vmatprep.subr.bf16.mxu0 %v4495
    %5295 = vmatpush1.bf16.msra.mxu0 %v4494
    %5296 = vmatprep.subr.bf16.mxu0 %v4503
    %5297 = vmatpush1.bf16.msra.mxu0 %v4502
    %5298 = vmatprep.subr.bf16.mxu0 %v4511
    %5299 = vmatpush1.bf16.msra.mxu0 %v4510
    %5300 = vmatprep.subr.bf16.mxu0 %v4519
    %5301 = vmatpush1.bf16.msra.mxu0 %v4518
    %5302 = vmatprep.subr.bf16.mxu0 %v4527
    %5303 = vmatpush1.bf16.msra.mxu0 %v4526
    %5304 = vmatprep.subr.bf16.mxu0 %v4535
    %5305 = vmatpush1.bf16.msra.mxu0 %v4534
    %5306 = vmatprep.subr.bf16.mxu0 %v4543
    %5307 = vmatpush1.bf16.msra.mxu0 %v4542
    %5308 = vmatprep.mubr.bf16.mxu0 %v2074
    %5309 = vmatmul.mubr.bf16.gmra.mrb[0].mxu0 %v2073
    %v5310 = vpop.f32.mrb[0].mxu0
    %v5311 = vadd.f32 %v5268, %v5310
    %v5312 = vpop.f32.mrb[0].mxu0
    %v5313 = vadd.f32 %v5270, %v5312
    %v5314 = vpop.f32.mrb[0].mxu0
    %v5315 = vadd.f32 %v5272, %v5314
    %v5316 = vpop.f32.mrb[0].mxu0
    %v5317 = vadd.f32 %v5274, %v5316
    %5318 = vdwg.mxu0
    %5319 = vmatprep.subr.bf16.mxu0 %v4551
    %5320 = vmatpush1.bf16.msra.mxu0 %v4550
    %5321 = vmatprep.subr.bf16.mxu0 %v4559
    %5322 = vmatpush1.bf16.msra.mxu0 %v4558
    %5323 = vmatprep.subr.bf16.mxu0 %v4567
    %5324 = vmatpush1.bf16.msra.mxu0 %v4566
    %5325 = vmatprep.subr.bf16.mxu0 %v4575
    %5326 = vmatpush1.bf16.msra.mxu0 %v4574
    %5327 = vmatprep.subr.bf16.mxu0 %v4583
    %5328 = vmatpush1.bf16.msra.mxu0 %v4582
    %5329 = vmatprep.subr.bf16.mxu0 %v4591
    %5330 = vmatpush1.bf16.msra.mxu0 %v4590
    %5331 = vmatprep.subr.bf16.mxu0 %v4599
    %5332 = vmatpush1.bf16.msra.mxu0 %v4598
    %5333 = vmatprep.subr.bf16.mxu0 %v4607
    %5334 = vmatpush1.bf16.msra.mxu0 %v4606
    %5335 = vmatprep.subr.bf16.mxu0 %v4615
    %5336 = vmatpush1.bf16.msra.mxu0 %v4614
    %5337 = vmatprep.subr.bf16.mxu0 %v4623
    %5338 = vmatpush1.bf16.msra.mxu0 %v4622
    %5339 = vmatprep.subr.bf16.mxu0 %v4631
    %5340 = vmatpush1.bf16.msra.mxu0 %v4630
    %5341 = vmatprep.subr.bf16.mxu0 %v4639
    %5342 = vmatpush1.bf16.msra.mxu0 %v4638
    %5343 = vmatprep.subr.bf16.mxu0 %v4647
    %5344 = vmatpush1.bf16.msra.mxu0 %v4646
    %5345 = vmatprep.subr.bf16.mxu0 %v4655
    %5346 = vmatpush1.bf16.msra.mxu0 %v4654
    %5347 = vmatprep.subr.bf16.mxu0 %v4663
    %5348 = vmatpush1.bf16.msra.mxu0 %v4662
    %5349 = vmatprep.subr.bf16.mxu0 %v4671
    %5350 = vmatpush1.bf16.msra.mxu0 %v4670
    %5351 = vmatprep.mubr.bf16.mxu0 %v2076
    %5352 = vmatmul.mubr.bf16.gmra.mrb[0].mxu0 %v2075
    %v5353 = vpop.f32.mrb[0].mxu0
    %v5354 = vadd.f32 %v5311, %v5353
    %v5355 = vpop.f32.mrb[0].mxu0
    %v5356 = vadd.f32 %v5313, %v5355
    %v5357 = vpop.f32.mrb[0].mxu0
    %v5358 = vadd.f32 %v5315, %v5357
    %v5359 = vpop.f32.mrb[0].mxu0
    %v5360 = vadd.f32 %v5317, %v5359
    %5361 = vdwg.mxu0
    %5362 = vmatprep.subr.bf16.mxu0 %v4169
    %5363 = vmatpush1.bf16.msra.mxu0 %v4168
    %5364 = vmatprep.subr.bf16.mxu0 %v4177
    %5365 = vmatpush1.bf16.msra.mxu0 %v4176
    %5366 = vmatprep.subr.bf16.mxu0 %v4185
    %5367 = vmatpush1.bf16.msra.mxu0 %v4184
    %5368 = vmatprep.subr.bf16.mxu0 %v4193
    %5369 = vmatpush1.bf16.msra.mxu0 %v4192
    %5370 = vmatprep.subr.bf16.mxu0 %v4201
    %5371 = vmatpush1.bf16.msra.mxu0 %v4200
    %5372 = vmatprep.subr.bf16.mxu0 %v4209
    %5373 = vmatpush1.bf16.msra.mxu0 %v4208
    %5374 = vmatprep.subr.bf16.mxu0 %v4217
    %5375 = vmatpush1.bf16.msra.mxu0 %v4216
    %5376 = vmatprep.subr.bf16.mxu0 %v4225
    %5377 = vmatpush1.bf16.msra.mxu0 %v4224
    %5378 = vmatprep.subr.bf16.mxu0 %v4233
    %5379 = vmatpush1.bf16.msra.mxu0 %v4232
    %5380 = vmatprep.subr.bf16.mxu0 %v4241
    %5381 = vmatpush1.bf16.msra.mxu0 %v4240
    %5382 = vmatprep.subr.bf16.mxu0 %v4249
    %5383 = vmatpush1.bf16.msra.mxu0 %v4248
    %5384 = vmatprep.subr.bf16.mxu0 %v4257
    %5385 = vmatpush1.bf16.msra.mxu0 %v4256
    %5386 = vmatprep.subr.bf16.mxu0 %v4265
    %5387 = vmatpush1.bf16.msra.mxu0 %v4264
    %5388 = vmatprep.subr.bf16.mxu0 %v4273
    %5389 = vmatpush1.bf16.msra.mxu0 %v4272
    %5390 = vmatprep.subr.bf16.mxu0 %v4281
    %5391 = vmatpush1.bf16.msra.mxu0 %v4280
    %5392 = vmatprep.subr.bf16.mxu0 %v4289
    %5393 = vmatpush1.bf16.msra.mxu0 %v4288
    %5394 = vmatprep.mubr.bf16.mxu0 %v2070
    %5395 = vmatmul.mubr.bf16.gmra.mrb[0].mxu0 %v2069
    %v5396 = vpop.f32.mrb[0].mxu0
    %v5397 = vadd.f32 %v2601, %v5396
    %v5398 = vpop.f32.mrb[0].mxu0
    %v5399 = vadd.f32 %v2605, %v5398
    %v5400 = vpop.f32.mrb[0].mxu0
    %v5401 = vadd.f32 %v2601, %v5400
    %v5402 = vpop.f32.mrb[0].mxu0
    %v5403 = vadd.f32 %v2605, %v5402
    %5404 = vdwg.mxu0
    %5405 = vmatprep.subr.bf16.mxu0 %v4297
    %5406 = vmatpush1.bf16.msra.mxu0 %v4296
    %5407 = vmatprep.subr.bf16.mxu0 %v4305
    %5408 = vmatpush1.bf16.msra.mxu0 %v4304
    %5409 = vmatprep.subr.bf16.mxu0 %v4313
    %5410 = vmatpush1.bf16.msra.mxu0 %v4312
    %5411 = vmatprep.subr.bf16.mxu0 %v4321
    %5412 = vmatpush1.bf16.msra.mxu0 %v4320
    %5413 = vmatprep.subr.bf16.mxu0 %v4329
    %5414 = vmatpush1.bf16.msra.mxu0 %v4328
    %5415 = vmatprep.subr.bf16.mxu0 %v4337
    %5416 = vmatpush1.bf16.msra.mxu0 %v4336
    %5417 = vmatprep.subr.bf16.mxu0 %v4345
    %5418 = vmatpush1.bf16.msra.mxu0 %v4344
    %5419 = vmatprep.subr.bf16.mxu0 %v4353
    %5420 = vmatpush1.bf16.msra.mxu0 %v4352
    %5421 = vmatprep.subr.bf16.mxu0 %v4361
    %5422 = vmatpush1.bf16.msra.mxu0 %v4360
    %5423 = vmatprep.subr.bf16.mxu0 %v4369
    %5424 = vmatpush1.bf16.msra.mxu0 %v4368
    %5425 = vmatprep.subr.bf16.mxu0 %v4377
    %5426 = vmatpush1.bf16.msra.mxu0 %v4376
    %5427 = vmatprep.subr.bf16.mxu0 %v4385
    %5428 = vmatpush1.bf16.msra.mxu0 %v4384
    %5429 = vmatprep.subr.bf16.mxu0 %v4393
    %5430 = vmatpush1.bf16.msra.mxu0 %v4392
    %5431 = vmatprep.subr.bf16.mxu0 %v4401
    %5432 = vmatpush1.bf16.msra.mxu0 %v4400
    %5433 = vmatprep.subr.bf16.mxu0 %v4409
    %5434 = vmatpush1.bf16.msra.mxu0 %v4408
    %5435 = vmatprep.subr.bf16.mxu0 %v4417
    %5436 = vmatpush1.bf16.msra.mxu0 %v4416
    %5437 = vmatprep.mubr.bf16.mxu0 %v2072
    %5438 = vmatmul.mubr.bf16.gmra.mrb[0].mxu0 %v2071
    %v5439 = vpop.f32.mrb[0].mxu0
    %v5440 = vadd.f32 %v5397, %v5439
    %v5441 = vpop.f32.mrb[0].mxu0
    %v5442 = vadd.f32 %v5399, %v5441
    %v5443 = vpop.f32.mrb[0].mxu0
    %v5444 = vadd.f32 %v5401, %v5443
    %v5445 = vpop.f32.mrb[0].mxu0
    %v5446 = vadd.f32 %v5403, %v5445
    %5447 = vdwg.mxu0
    %5448 = vmatprep.subr.bf16.mxu0 %v4425
    %5449 = vmatpush1.bf16.msra.mxu0 %v4424
    %5450 = vmatprep.subr.bf16.mxu0 %v4433
    %5451 = vmatpush1.bf16.msra.mxu0 %v4432
    %5452 = vmatprep.subr.bf16.mxu0 %v4441
    %5453 = vmatpush1.bf16.msra.mxu0 %v4440
    %5454 = vmatprep.subr.bf16.mxu0 %v4449
    %5455 = vmatpush1.bf16.msra.mxu0 %v4448
    %5456 = vmatprep.subr.bf16.mxu0 %v4457
    %5457 = vmatpush1.bf16.msra.mxu0 %v4456
    %5458 = vmatprep.subr.bf16.mxu0 %v4465
    %5459 = vmatpush1.bf16.msra.mxu0 %v4464
    %5460 = vmatprep.subr.bf16.mxu0 %v4473
    %5461 = vmatpush1.bf16.msra.mxu0 %v4472
    %5462 = vmatprep.subr.bf16.mxu0 %v4481
    %5463 = vmatpush1.bf16.msra.mxu0 %v4480
    %5464 = vmatprep.subr.bf16.mxu0 %v4489
    %5465 = vmatpush1.bf16.msra.mxu0 %v4488
    %5466 = vmatprep.subr.bf16.mxu0 %v4497
    %5467 = vmatpush1.bf16.msra.mxu0 %v4496
    %5468 = vmatprep.subr.bf16.mxu0 %v4505
    %5469 = vmatpush1.bf16.msra.mxu0 %v4504
    %5470 = vmatprep.subr.bf16.mxu0 %v4513
    %5471 = vmatpush1.bf16.msra.mxu0 %v4512
    %5472 = vmatprep.subr.bf16.mxu0 %v4521
    %5473 = vmatpush1.bf16.msra.mxu0 %v4520
    %5474 = vmatprep.subr.bf16.mxu0 %v4529
    %5475 = vmatpush1.bf16.msra.mxu0 %v4528
    %5476 = vmatprep.subr.bf16.mxu0 %v4537
    %5477 = vmatpush1.bf16.msra.mxu0 %v4536
    %5478 = vmatprep.subr.bf16.mxu0 %v4545
    %5479 = vmatpush1.bf16.msra.mxu0 %v4544
    %5480 = vmatprep.mubr.bf16.mxu0 %v2074
    %5481 = vmatmul.mubr.bf16.gmra.mrb[0].mxu0 %v2073
    %v5482 = vpop.f32.mrb[0].mxu0
    %v5483 = vadd.f32 %v5440, %v5482
    %v5484 = vpop.f32.mrb[0].mxu0
    %v5485 = vadd.f32 %v5442, %v5484
    %v5486 = vpop.f32.mrb[0].mxu0
    %v5487 = vadd.f32 %v5444, %v5486
    %v5488 = vpop.f32.mrb[0].mxu0
    %v5489 = vadd.f32 %v5446, %v5488
    %5490 = vdwg.mxu0
    %5491 = vmatprep.subr.bf16.mxu0 %v4553
    %5492 = vmatpush1.bf16.msra.mxu0 %v4552
    %5493 = vmatprep.subr.bf16.mxu0 %v4561
    %5494 = vmatpush1.bf16.msra.mxu0 %v4560
    %5495 = vmatprep.subr.bf16.mxu0 %v4569
    %5496 = vmatpush1.bf16.msra.mxu0 %v4568
    %5497 = vmatprep.subr.bf16.mxu0 %v4577
    %5498 = vmatpush1.bf16.msra.mxu0 %v4576
    %5499 = vmatprep.subr.bf16.mxu0 %v4585
    %5500 = vmatpush1.bf16.msra.mxu0 %v4584
    %5501 = vmatprep.subr.bf16.mxu0 %v4593
    %5502 = vmatpush1.bf16.msra.mxu0 %v4592
    %5503 = vmatprep.subr.bf16.mxu0 %v4601
    %5504 = vmatpush1.bf16.msra.mxu0 %v4600
    %5505 = vmatprep.subr.bf16.mxu0 %v4609
    %5506 = vmatpush1.bf16.msra.mxu0 %v4608
    %5507 = vmatprep.subr.bf16.mxu0 %v4617
    %5508 = vmatpush1.bf16.msra.mxu0 %v4616
    %5509 = vmatprep.subr.bf16.mxu0 %v4625
    %5510 = vmatpush1.bf16.msra.mxu0 %v4624
    %5511 = vmatprep.subr.bf16.mxu0 %v4633
    %5512 = vmatpush1.bf16.msra.mxu0 %v4632
    %5513 = vmatprep.subr.bf16.mxu0 %v4641
    %5514 = vmatpush1.bf16.msra.mxu0 %v4640
    %5515 = vmatprep.subr.bf16.mxu0 %v4649
    %5516 = vmatpush1.bf16.msra.mxu0 %v4648
    %5517 = vmatprep.subr.bf16.mxu0 %v4657
    %5518 = vmatpush1.bf16.msra.mxu0 %v4656
    %5519 = vmatprep.subr.bf16.mxu0 %v4665
    %5520 = vmatpush1.bf16.msra.mxu0 %v4664
    %5521 = vmatprep.subr.bf16.mxu0 %v4673
    %5522 = vmatpush1.bf16.msra.mxu0 %v4672
    %5523 = vmatprep.mubr.bf16.mxu0 %v2076
    %5524 = vmatmul.mubr.bf16.gmra.mrb[0].mxu0 %v2075
    %v5525 = vpop.f32.mrb[0].mxu0
    %v5526 = vadd.f32 %v5483, %v5525
    %v5527 = vpop.f32.mrb[0].mxu0
    %v5528 = vadd.f32 %v5485, %v5527
    %v5529 = vpop.f32.mrb[0].mxu0
    %v5530 = vadd.f32 %v5487, %v5529
    %v5531 = vpop.f32.mrb[0].mxu0
    %v5532 = vadd.f32 %v5489, %v5531
    %5533 = vdwg.mxu0
    %5534 = vmatprep.subr.bf16.mxu0 %v4171
    %5535 = vmatpush1.bf16.msra.mxu0 %v4170
    %5536 = vmatprep.subr.bf16.mxu0 %v4179
    %5537 = vmatpush1.bf16.msra.mxu0 %v4178
    %5538 = vmatprep.subr.bf16.mxu0 %v4187
    %5539 = vmatpush1.bf16.msra.mxu0 %v4186
    %5540 = vmatprep.subr.bf16.mxu0 %v4195
    %5541 = vmatpush1.bf16.msra.mxu0 %v4194
    %5542 = vmatprep.subr.bf16.mxu0 %v4203
    %5543 = vmatpush1.bf16.msra.mxu0 %v4202
    %5544 = vmatprep.subr.bf16.mxu0 %v4211
    %5545 = vmatpush1.bf16.msra.mxu0 %v4210
    %5546 = vmatprep.subr.bf16.mxu0 %v4219
    %5547 = vmatpush1.bf16.msra.mxu0 %v4218
    %5548 = vmatprep.subr.bf16.mxu0 %v4227
    %5549 = vmatpush1.bf16.msra.mxu0 %v4226
    %5550 = vmatprep.subr.bf16.mxu0 %v4235
    %5551 = vmatpush1.bf16.msra.mxu0 %v4234
    %5552 = vmatprep.subr.bf16.mxu0 %v4243
    %5553 = vmatpush1.bf16.msra.mxu0 %v4242
    %5554 = vmatprep.subr.bf16.mxu0 %v4251
    %5555 = vmatpush1.bf16.msra.mxu0 %v4250
    %5556 = vmatprep.subr.bf16.mxu0 %v4259
    %5557 = vmatpush1.bf16.msra.mxu0 %v4258
    %5558 = vmatprep.subr.bf16.mxu0 %v4267
    %5559 = vmatpush1.bf16.msra.mxu0 %v4266
    %5560 = vmatprep.subr.bf16.mxu0 %v4275
    %5561 = vmatpush1.bf16.msra.mxu0 %v4274
    %5562 = vmatprep.subr.bf16.mxu0 %v4283
    %5563 = vmatpush1.bf16.msra.mxu0 %v4282
    %5564 = vmatprep.subr.bf16.mxu0 %v4291
    %5565 = vmatpush1.bf16.msra.mxu0 %v4290
    %5566 = vmatprep.mubr.bf16.mxu0 %v2070
    %5567 = vmatmul.mubr.bf16.gmra.mrb[0].mxu0 %v2069
    %v5568 = vpop.f32.mrb[0].mxu0
    %v5569 = vadd.f32 %v2609, %v5568
    %v5570 = vpop.f32.mrb[0].mxu0
    %v5571 = vadd.f32 %v2613, %v5570
    %v5572 = vpop.f32.mrb[0].mxu0
    %v5573 = vadd.f32 %v2609, %v5572
    %v5574 = vpop.f32.mrb[0].mxu0
    %v5575 = vadd.f32 %v2613, %v5574
    %5576 = vdwg.mxu0
    %5577 = vmatprep.subr.bf16.mxu0 %v4299
    %5578 = vmatpush1.bf16.msra.mxu0 %v4298
    %5579 = vmatprep.subr.bf16.mxu0 %v4307
    %5580 = vmatpush1.bf16.msra.mxu0 %v4306
    %5581 = vmatprep.subr.bf16.mxu0 %v4315
    %5582 = vmatpush1.bf16.msra.mxu0 %v4314
    %5583 = vmatprep.subr.bf16.mxu0 %v4323
    %5584 = vmatpush1.bf16.msra.mxu0 %v4322
    %5585 = vmatprep.subr.bf16.mxu0 %v4331
    %5586 = vmatpush1.bf16.msra.mxu0 %v4330
    %5587 = vmatprep.subr.bf16.mxu0 %v4339
    %5588 = vmatpush1.bf16.msra.mxu0 %v4338
    %5589 = vmatprep.subr.bf16.mxu0 %v4347
    %5590 = vmatpush1.bf16.msra.mxu0 %v4346
    %5591 = vmatprep.subr.bf16.mxu0 %v4355
    %5592 = vmatpush1.bf16.msra.mxu0 %v4354
    %5593 = vmatprep.subr.bf16.mxu0 %v4363
    %5594 = vmatpush1.bf16.msra.mxu0 %v4362
    %5595 = vmatprep.subr.bf16.mxu0 %v4371
    %5596 = vmatpush1.bf16.msra.mxu0 %v4370
    %5597 = vmatprep.subr.bf16.mxu0 %v4379
    %5598 = vmatpush1.bf16.msra.mxu0 %v4378
    %5599 = vmatprep.subr.bf16.mxu0 %v4387
    %5600 = vmatpush1.bf16.msra.mxu0 %v4386
    %5601 = vmatprep.subr.bf16.mxu0 %v4395
    %5602 = vmatpush1.bf16.msra.mxu0 %v4394
    %5603 = vmatprep.subr.bf16.mxu0 %v4403
    %5604 = vmatpush1.bf16.msra.mxu0 %v4402
    %5605 = vmatprep.subr.bf16.mxu0 %v4411
    %5606 = vmatpush1.bf16.msra.mxu0 %v4410
    %5607 = vmatprep.subr.bf16.mxu0 %v4419
    %5608 = vmatpush1.bf16.msra.mxu0 %v4418
    %5609 = vmatprep.mubr.bf16.mxu0 %v2072
    %5610 = vmatmul.mubr.bf16.gmra.mrb[0].mxu0 %v2071
    %v5611 = vpop.f32.mrb[0].mxu0
    %v5612 = vadd.f32 %v5569, %v5611
    %v5613 = vpop.f32.mrb[0].mxu0
    %v5614 = vadd.f32 %v5571, %v5613
    %v5615 = vpop.f32.mrb[0].mxu0
    %v5616 = vadd.f32 %v5573, %v5615
    %v5617 = vpop.f32.mrb[0].mxu0
    %v5618 = vadd.f32 %v5575, %v5617
    %5619 = vdwg.mxu0
    %5620 = vmatprep.subr.bf16.mxu0 %v4427
    %5621 = vmatpush1.bf16.msra.mxu0 %v4426
    %5622 = vmatprep.subr.bf16.mxu0 %v4435
    %5623 = vmatpush1.bf16.msra.mxu0 %v4434
    %5624 = vmatprep.subr.bf16.mxu0 %v4443
    %5625 = vmatpush1.bf16.msra.mxu0 %v4442
    %5626 = vmatprep.subr.bf16.mxu0 %v4451
    %5627 = vmatpush1.bf16.msra.mxu0 %v4450
    %5628 = vmatprep.subr.bf16.mxu0 %v4459
    %5629 = vmatpush1.bf16.msra.mxu0 %v4458
    %5630 = vmatprep.subr.bf16.mxu0 %v4467
    %5631 = vmatpush1.bf16.msra.mxu0 %v4466
    %5632 = vmatprep.subr.bf16.mxu0 %v4475
    %5633 = vmatpush1.bf16.msra.mxu0 %v4474
    %5634 = vmatprep.subr.bf16.mxu0 %v4483
    %5635 = vmatpush1.bf16.msra.mxu0 %v4482
    %5636 = vmatprep.subr.bf16.mxu0 %v4491
    %5637 = vmatpush1.bf16.msra.mxu0 %v4490
    %5638 = vmatprep.subr.bf16.mxu0 %v4499
    %5639 = vmatpush1.bf16.msra.mxu0 %v4498
    %5640 = vmatprep.subr.bf16.mxu0 %v4507
    %5641 = vmatpush1.bf16.msra.mxu0 %v4506
    %5642 = vmatprep.subr.bf16.mxu0 %v4515
    %5643 = vmatpush1.bf16.msra.mxu0 %v4514
    %5644 = vmatprep.subr.bf16.mxu0 %v4523
    %5645 = vmatpush1.bf16.msra.mxu0 %v4522
    %5646 = vmatprep.subr.bf16.mxu0 %v4531
    %5647 = vmatpush1.bf16.msra.mxu0 %v4530
    %5648 = vmatprep.subr.bf16.mxu0 %v4539
    %5649 = vmatpush1.bf16.msra.mxu0 %v4538
    %5650 = vmatprep.subr.bf16.mxu0 %v4547
    %5651 = vmatpush1.bf16.msra.mxu0 %v4546
    %5652 = vmatprep.mubr.bf16.mxu0 %v2074
    %5653 = vmatmul.mubr.bf16.gmra.mrb[0].mxu0 %v2073
    %v5654 = vpop.f32.mrb[0].mxu0
    %v5655 = vadd.f32 %v5612, %v5654
    %v5656 = vpop.f32.mrb[0].mxu0
    %v5657 = vadd.f32 %v5614, %v5656
    %v5658 = vpop.f32.mrb[0].mxu0
    %v5659 = vadd.f32 %v5616, %v5658
    %v5660 = vpop.f32.mrb[0].mxu0
    %v5661 = vadd.f32 %v5618, %v5660
    %5662 = vdwg.mxu0
    %5663 = vmatprep.subr.bf16.mxu0 %v4555
    %5664 = vmatpush1.bf16.msra.mxu0 %v4554
    %5665 = vmatprep.subr.bf16.mxu0 %v4563
    %5666 = vmatpush1.bf16.msra.mxu0 %v4562
    %5667 = vmatprep.subr.bf16.mxu0 %v4571
    %5668 = vmatpush1.bf16.msra.mxu0 %v4570
    %5669 = vmatprep.subr.bf16.mxu0 %v4579
    %5670 = vmatpush1.bf16.msra.mxu0 %v4578
    %5671 = vmatprep.subr.bf16.mxu0 %v4587
    %5672 = vmatpush1.bf16.msra.mxu0 %v4586
    %5673 = vmatprep.subr.bf16.mxu0 %v4595
    %5674 = vmatpush1.bf16.msra.mxu0 %v4594
    %5675 = vmatprep.subr.bf16.mxu0 %v4603
    %5676 = vmatpush1.bf16.msra.mxu0 %v4602
    %5677 = vmatprep.subr.bf16.mxu0 %v4611
    %5678 = vmatpush1.bf16.msra.mxu0 %v4610
    %5679 = vmatprep.subr.bf16.mxu0 %v4619
    %5680 = vmatpush1.bf16.msra.mxu0 %v4618
    %5681 = vmatprep.subr.bf16.mxu0 %v4627
    %5682 = vmatpush1.bf16.msra.mxu0 %v4626
    %5683 = vmatprep.subr.bf16.mxu0 %v4635
    %5684 = vmatpush1.bf16.msra.mxu0 %v4634
    %5685 = vmatprep.subr.bf16.mxu0 %v4643
    %5686 = vmatpush1.bf16.msra.mxu0 %v4642
    %5687 = vmatprep.subr.bf16.mxu0 %v4651
    %5688 = vmatpush1.bf16.msra.mxu0 %v4650
    %5689 = vmatprep.subr.bf16.mxu0 %v4659
    %5690 = vmatpush1.bf16.msra.mxu0 %v4658
    %5691 = vmatprep.subr.bf16.mxu0 %v4667
    %5692 = vmatpush1.bf16.msra.mxu0 %v4666
    %5693 = vmatprep.subr.bf16.mxu0 %v4675
    %5694 = vmatpush1.bf16.msra.mxu0 %v4674
    %5695 = vmatprep.mubr.bf16.mxu0 %v2076
    %5696 = vmatmul.mubr.bf16.gmra.mrb[0].mxu0 %v2075
    %v5697 = vpop.f32.mrb[0].mxu0
    %v5698 = vadd.f32 %v5655, %v5697
    %v5699 = vpop.f32.mrb[0].mxu0
    %v5700 = vadd.f32 %v5657, %v5699
    %v5701 = vpop.f32.mrb[0].mxu0
    %v5702 = vadd.f32 %v5659, %v5701
    %v5703 = vpop.f32.mrb[0].mxu0
    %v5704 = vadd.f32 %v5661, %v5703
    %5705 = vdwg.mxu0
    %5706 = vmatprep.subr.bf16.mxu0 %v4173
    %5707 = vmatpush1.bf16.msra.mxu0 %v4172
    %5708 = vmatprep.subr.bf16.mxu0 %v4181
    %5709 = vmatpush1.bf16.msra.mxu0 %v4180
    %5710 = vmatprep.subr.bf16.mxu0 %v4189
    %5711 = vmatpush1.bf16.msra.mxu0 %v4188
    %5712 = vmatprep.subr.bf16.mxu0 %v4197
    %5713 = vmatpush1.bf16.msra.mxu0 %v4196
    %5714 = vmatprep.subr.bf16.mxu0 %v4205
    %5715 = vmatpush1.bf16.msra.mxu0 %v4204
    %5716 = vmatprep.subr.bf16.mxu0 %v4213
    %5717 = vmatpush1.bf16.msra.mxu0 %v4212
    %5718 = vmatprep.subr.bf16.mxu0 %v4221
    %5719 = vmatpush1.bf16.msra.mxu0 %v4220
    %5720 = vmatprep.subr.bf16.mxu0 %v4229
    %5721 = vmatpush1.bf16.msra.mxu0 %v4228
    %5722 = vmatprep.subr.bf16.mxu0 %v4237
    %5723 = vmatpush1.bf16.msra.mxu0 %v4236
    %5724 = vmatprep.subr.bf16.mxu0 %v4245
    %5725 = vmatpush1.bf16.msra.mxu0 %v4244
    %5726 = vmatprep.subr.bf16.mxu0 %v4253
    %5727 = vmatpush1.bf16.msra.mxu0 %v4252
    %5728 = vmatprep.subr.bf16.mxu0 %v4261
    %5729 = vmatpush1.bf16.msra.mxu0 %v4260
    %5730 = vmatprep.subr.bf16.mxu0 %v4269
    %5731 = vmatpush1.bf16.msra.mxu0 %v4268
    %5732 = vmatprep.subr.bf16.mxu0 %v4277
    %5733 = vmatpush1.bf16.msra.mxu0 %v4276
    %5734 = vmatprep.subr.bf16.mxu0 %v4285
    %5735 = vmatpush1.bf16.msra.mxu0 %v4284
    %5736 = vmatprep.subr.bf16.mxu0 %v4293
    %5737 = vmatpush1.bf16.msra.mxu0 %v4292
    %5738 = vmatprep.mubr.bf16.mxu0 %v2070
    %5739 = vmatmul.mubr.bf16.gmra.mrb[0].mxu0 %v2069
    %v5740 = vpop.f32.mrb[0].mxu0
    %v5741 = vadd.f32 %v2617, %v5740
    %v5742 = vpop.f32.mrb[0].mxu0
    %v5743 = vadd.f32 %v2621, %v5742
    %v5744 = vpop.f32.mrb[0].mxu0
    %v5745 = vadd.f32 %v2617, %v5744
    %v5746 = vpop.f32.mrb[0].mxu0
    %v5747 = vadd.f32 %v2621, %v5746
    %5748 = vdwg.mxu0
    %5749 = vmatprep.subr.bf16.mxu0 %v4301
    %5750 = vmatpush1.bf16.msra.mxu0 %v4300
    %5751 = vmatprep.subr.bf16.mxu0 %v4309
    %5752 = vmatpush1.bf16.msra.mxu0 %v4308
    %5753 = vmatprep.subr.bf16.mxu0 %v4317
    %5754 = vmatpush1.bf16.msra.mxu0 %v4316
    %5755 = vmatprep.subr.bf16.mxu0 %v4325
    %5756 = vmatpush1.bf16.msra.mxu0 %v4324
    %5757 = vmatprep.subr.bf16.mxu0 %v4333
    %5758 = vmatpush1.bf16.msra.mxu0 %v4332
    %5759 = vmatprep.subr.bf16.mxu0 %v4341
    %5760 = vmatpush1.bf16.msra.mxu0 %v4340
    %5761 = vmatprep.subr.bf16.mxu0 %v4349
    %5762 = vmatpush1.bf16.msra.mxu0 %v4348
    %5763 = vmatprep.subr.bf16.mxu0 %v4357
    %5764 = vmatpush1.bf16.msra.mxu0 %v4356
    %5765 = vmatprep.subr.bf16.mxu0 %v4365
    %5766 = vmatpush1.bf16.msra.mxu0 %v4364
    %5767 = vmatprep.subr.bf16.mxu0 %v4373
    %5768 = vmatpush1.bf16.msra.mxu0 %v4372
    %5769 = vmatprep.subr.bf16.mxu0 %v4381
    %5770 = vmatpush1.bf16.msra.mxu0 %v4380
    %5771 = vmatprep.subr.bf16.mxu0 %v4389
    %5772 = vmatpush1.bf16.msra.mxu0 %v4388
    %5773 = vmatprep.subr.bf16.mxu0 %v4397
    %5774 = vmatpush1.bf16.msra.mxu0 %v4396
    %5775 = vmatprep.subr.bf16.mxu0 %v4405
    %5776 = vmatpush1.bf16.msra.mxu0 %v4404
    %5777 = vmatprep.subr.bf16.mxu0 %v4413
    %5778 = vmatpush1.bf16.msra.mxu0 %v4412
    %5779 = vmatprep.subr.bf16.mxu0 %v4421
    %5780 = vmatpush1.bf16.msra.mxu0 %v4420
    %5781 = vmatprep.mubr.bf16.mxu0 %v2072
    %5782 = vmatmul.mubr.bf16.gmra.mrb[0].mxu0 %v2071
    %v5783 = vpop.f32.mrb[0].mxu0
    %v5784 = vadd.f32 %v5741, %v5783
    %v5785 = vpop.f32.mrb[0].mxu0
    %v5786 = vadd.f32 %v5743, %v5785
    %v5787 = vpop.f32.mrb[0].mxu0
    %v5788 = vadd.f32 %v5745, %v5787
    %v5789 = vpop.f32.mrb[0].mxu0
    %v5790 = vadd.f32 %v5747, %v5789
    %5791 = vdwg.mxu0
    %5792 = vmatprep.subr.bf16.mxu0 %v4429
    %5793 = vmatpush1.bf16.msra.mxu0 %v4428
    %5794 = vmatprep.subr.bf16.mxu0 %v4437
    %5795 = vmatpush1.bf16.msra.mxu0 %v4436
    %5796 = vmatprep.subr.bf16.mxu0 %v4445
    %5797 = vmatpush1.bf16.msra.mxu0 %v4444
    %5798 = vmatprep.subr.bf16.mxu0 %v4453
    %5799 = vmatpush1.bf16.msra.mxu0 %v4452
    %5800 = vmatprep.subr.bf16.mxu0 %v4461
    %5801 = vmatpush1.bf16.msra.mxu0 %v4460
    %5802 = vmatprep.subr.bf16.mxu0 %v4469
    %5803 = vmatpush1.bf16.msra.mxu0 %v4468
    %5804 = vmatprep.subr.bf16.mxu0 %v4477
    %5805 = vmatpush1.bf16.msra.mxu0 %v4476
    %5806 = vmatprep.subr.bf16.mxu0 %v4485
    %5807 = vmatpush1.bf16.msra.mxu0 %v4484
    %5808 = vmatprep.subr.bf16.mxu0 %v4493
    %5809 = vmatpush1.bf16.msra.mxu0 %v4492
    %5810 = vmatprep.subr.bf16.mxu0 %v4501
    %5811 = vmatpush1.bf16.msra.mxu0 %v4500
    %5812 = vmatprep.subr.bf16.mxu0 %v4509
    %5813 = vmatpush1.bf16.msra.mxu0 %v4508
    %5814 = vmatprep.subr.bf16.mxu0 %v4517
    %5815 = vmatpush1.bf16.msra.mxu0 %v4516
    %5816 = vmatprep.subr.bf16.mxu0 %v4525
    %5817 = vmatpush1.bf16.msra.mxu0 %v4524
    %5818 = vmatprep.subr.bf16.mxu0 %v4533
    %5819 = vmatpush1.bf16.msra.mxu0 %v4532
    %5820 = vmatprep.subr.bf16.mxu0 %v4541
    %5821 = vmatpush1.bf16.msra.mxu0 %v4540
    %5822 = vmatprep.subr.bf16.mxu0 %v4549
    %5823 = vmatpush1.bf16.msra.mxu0 %v4548
    %5824 = vmatprep.mubr.bf16.mxu0 %v2074
    %5825 = vmatmul.mubr.bf16.gmra.mrb[0].mxu0 %v2073
    %v5826 = vpop.f32.mrb[0].mxu0
    %v5827 = vadd.f32 %v5784, %v5826
    %v5828 = vpop.f32.mrb[0].mxu0
    %v5829 = vadd.f32 %v5786, %v5828
    %v5830 = vpop.f32.mrb[0].mxu0
    %v5831 = vadd.f32 %v5788, %v5830
    %v5832 = vpop.f32.mrb[0].mxu0
    %v5833 = vadd.f32 %v5790, %v5832
    %5834 = vdwg.mxu0
    %5835 = vmatprep.subr.bf16.mxu0 %v4557
    %5836 = vmatpush1.bf16.msra.mxu0 %v4556
    %5837 = vmatprep.subr.bf16.mxu0 %v4565
    %5838 = vmatpush1.bf16.msra.mxu0 %v4564
    %5839 = vmatprep.subr.bf16.mxu0 %v4573
    %5840 = vmatpush1.bf16.msra.mxu0 %v4572
    %5841 = vmatprep.subr.bf16.mxu0 %v4581
    %5842 = vmatpush1.bf16.msra.mxu0 %v4580
    %5843 = vmatprep.subr.bf16.mxu0 %v4589
    %5844 = vmatpush1.bf16.msra.mxu0 %v4588
    %5845 = vmatprep.subr.bf16.mxu0 %v4597
    %5846 = vmatpush1.bf16.msra.mxu0 %v4596
    %5847 = vmatprep.subr.bf16.mxu0 %v4605
    %5848 = vmatpush1.bf16.msra.mxu0 %v4604
    %5849 = vmatprep.subr.bf16.mxu0 %v4613
    %5850 = vmatpush1.bf16.msra.mxu0 %v4612
    %5851 = vmatprep.subr.bf16.mxu0 %v4621
    %5852 = vmatpush1.bf16.msra.mxu0 %v4620
    %5853 = vmatprep.subr.bf16.mxu0 %v4629
    %5854 = vmatpush1.bf16.msra.mxu0 %v4628
    %5855 = vmatprep.subr.bf16.mxu0 %v4637
    %5856 = vmatpush1.bf16.msra.mxu0 %v4636
    %5857 = vmatprep.subr.bf16.mxu0 %v4645
    %5858 = vmatpush1.bf16.msra.mxu0 %v4644
    %5859 = vmatprep.subr.bf16.mxu0 %v4653
    %5860 = vmatpush1.bf16.msra.mxu0 %v4652
    %5861 = vmatprep.subr.bf16.mxu0 %v4661
    %5862 = vmatpush1.bf16.msra.mxu0 %v4660
    %5863 = vmatprep.subr.bf16.mxu0 %v4669
    %5864 = vmatpush1.bf16.msra.mxu0 %v4668
    %5865 = vmatprep.subr.bf16.mxu0 %v4677
    %5866 = vmatpush1.bf16.msra.mxu0 %v4676
    %5867 = vmatprep.mubr.bf16.mxu0 %v2076
    %5868 = vmatmul.mubr.bf16.gmra.mrb[0].mxu0 %v2075
    %v5869 = vpop.f32.mrb[0].mxu0
    %v5870 = vadd.f32 %v5827, %v5869
    %v5871 = vpop.f32.mrb[0].mxu0
    %v5872 = vadd.f32 %v5829, %v5871
    %v5873 = vpop.f32.mrb[0].mxu0
    %v5874 = vadd.f32 %v5831, %v5873
    %v5875 = vpop.f32.mrb[0].mxu0
    %v5876 = vadd.f32 %v5833, %v5875
    %5877 = vdwg.mxu0
    %v5878 = vmax.f32 %v5354, 0.0
    %v5879 = vmax.f32 %v5356, 0.0
    %v5880 = vmax.f32 %v5526, 0.0
    %v5881 = vmax.f32 %v5528, 0.0
    %v5882 = vmax.f32 %v5698, 0.0
    %v5883 = vmax.f32 %v5700, 0.0
    %v5884 = vmax.f32 %v5870, 0.0
    %v5885 = vmax.f32 %v5872, 0.0
    %v5886 = vmax.f32 %v5358, 0.0
    %v5887 = vmax.f32 %v5360, 0.0
    %v5888 = vmax.f32 %v5530, 0.0
    %v5889 = vmax.f32 %v5532, 0.0
    %v5890 = vmax.f32 %v5702, 0.0
    %v5891 = vmax.f32 %v5704, 0.0
    %v5892 = vmax.f32 %v5874, 0.0
    %v5893 = vmax.f32 %v5876, 0.0
    %v5894 = vpack.c.bf16 %v5886, %v5878
    %v5895 = vpack.c.bf16 %v5887, %v5879
    %v5896 = vpack.c.bf16 %v5888, %v5880
    %v5897 = vpack.c.bf16 %v5889, %v5881
    %v5898 = vpack.c.bf16 %v5890, %v5882
    %v5899 = vpack.c.bf16 %v5891, %v5883
    %v5900 = vpack.c.bf16 %v5892, %v5884
    %v5901 = vpack.c.bf16 %v5893, %v5885
    %v5902 = vld [vmem:[#allocation11] sm:$0xf]
    %v5903 = vld [vmem:[#allocation11 + $0x4] sm:$0xf]
    %v5904 = vld [vmem:[#allocation11 + $0x8] sm:$0xf]
    %v5905 = vld [vmem:[#allocation11 + $0xc] sm:$0xf]
    %v5906 = vld [vmem:[#allocation11 + $0x10] sm:$0xf]
    %v5907 = vld [vmem:[#allocation11 + $0x14] sm:$0xf]
    %v5908 = vld [vmem:[#allocation11 + $0x18] sm:$0xf]
    %v5909 = vld [vmem:[#allocation11 + $0x1c] sm:$0xf]
    %v5910 = vld [vmem:[#allocation11 + $0x20] sm:$0xf]
    %v5911 = vld [vmem:[#allocation11 + $0x24] sm:$0xf]
    %v5912 = vld [vmem:[#allocation11 + $0x28] sm:$0xf]
    %v5913 = vld [vmem:[#allocation11 + $0x2c] sm:$0xf]
    %v5914 = vld [vmem:[#allocation11 + $0x30] sm:$0xf]
    %v5915 = vld [vmem:[#allocation11 + $0x34] sm:$0xf]
    %v5916 = vld [vmem:[#allocation11 + $0x38] sm:$0xf]
    %v5917 = vld [vmem:[#allocation11 + $0x3c] sm:$0xf]
    %v5918 = vld [vmem:[#allocation11 + $0x40] sm:$0xf]
    %v5919 = vld [vmem:[#allocation11 + $0x44] sm:$0xf]
    %v5920 = vld [vmem:[#allocation11 + $0x48] sm:$0xf]
    %v5921 = vld [vmem:[#allocation11 + $0x4c] sm:$0xf]
    %v5922 = vld [vmem:[#allocation11 + $0x50] sm:$0xf]
    %v5923 = vld [vmem:[#allocation11 + $0x54] sm:$0xf]
    %v5924 = vld [vmem:[#allocation11 + $0x58] sm:$0xf]
    %v5925 = vld [vmem:[#allocation11 + $0x5c] sm:$0xf]
    %v5926 = vld [vmem:[#allocation11 + $0x60] sm:$0xf]
    %v5927 = vld [vmem:[#allocation11 + $0x64] sm:$0xf]
    %v5928 = vld [vmem:[#allocation11 + $0x68] sm:$0xf]
    %v5929 = vld [vmem:[#allocation11 + $0x6c] sm:$0xf]
    %v5930 = vld [vmem:[#allocation11 + $0x70] sm:$0xf]
    %v5931 = vld [vmem:[#allocation11 + $0x74] sm:$0xf]
    %v5932 = vld [vmem:[#allocation11 + $0x78] sm:$0xf]
    %v5933 = vld [vmem:[#allocation11 + $0x7c] sm:$0xf]
    %v5934 = vld [vmem:[#allocation11 + $0x80] sm:$0xf]
    %v5935 = vld [vmem:[#allocation11 + $0x84] sm:$0xf]
    %v5936 = vld [vmem:[#allocation11 + $0x88] sm:$0xf]
    %v5937 = vld [vmem:[#allocation11 + $0x8c] sm:$0xf]
    %v5938 = vld [vmem:[#allocation11 + $0x90] sm:$0xf]
    %v5939 = vld [vmem:[#allocation11 + $0x94] sm:$0xf]
    %v5940 = vld [vmem:[#allocation11 + $0x98] sm:$0xf]
    %v5941 = vld [vmem:[#allocation11 + $0x9c] sm:$0xf]
    %v5942 = vld [vmem:[#allocation11 + $0xa0] sm:$0xf]
    %v5943 = vld [vmem:[#allocation11 + $0xa4] sm:$0xf]
    %v5944 = vld [vmem:[#allocation11 + $0xa8] sm:$0xf]
    %v5945 = vld [vmem:[#allocation11 + $0xac] sm:$0xf]
    %v5946 = vld [vmem:[#allocation11 + $0xb0] sm:$0xf]
    %v5947 = vld [vmem:[#allocation11 + $0xb4] sm:$0xf]
    %v5948 = vld [vmem:[#allocation11 + $0xb8] sm:$0xf]
    %v5949 = vld [vmem:[#allocation11 + $0xbc] sm:$0xf]
    %v5950 = vld [vmem:[#allocation11 + $0xc0] sm:$0xf]
    %v5951 = vld [vmem:[#allocation11 + $0xc4] sm:$0xf]
    %v5952 = vld [vmem:[#allocation11 + $0xc8] sm:$0xf]
    %v5953 = vld [vmem:[#allocation11 + $0xcc] sm:$0xf]
    %v5954 = vld [vmem:[#allocation11 + $0xd0] sm:$0xf]
    %v5955 = vld [vmem:[#allocation11 + $0xd4] sm:$0xf]
    %v5956 = vld [vmem:[#allocation11 + $0xd8] sm:$0xf]
    %v5957 = vld [vmem:[#allocation11 + $0xdc] sm:$0xf]
    %v5958 = vld [vmem:[#allocation11 + $0xe0] sm:$0xf]
    %v5959 = vld [vmem:[#allocation11 + $0xe4] sm:$0xf]
    %v5960 = vld [vmem:[#allocation11 + $0xe8] sm:$0xf]
    %v5961 = vld [vmem:[#allocation11 + $0xec] sm:$0xf]
    %v5962 = vld [vmem:[#allocation11 + $0xf0] sm:$0xf]
    %v5963 = vld [vmem:[#allocation11 + $0xf4] sm:$0xf]
    %v5964 = vld [vmem:[#allocation11 + $0xf8] sm:$0xf]
    %v5965 = vld [vmem:[#allocation11 + $0xfc] sm:$0xf]
    %v5966 = vld [vmem:[#allocation11 + $0x100] sm:$0xf]
    %v5967 = vld [vmem:[#allocation11 + $0x104] sm:$0xf]
    %v5968 = vld [vmem:[#allocation11 + $0x108] sm:$0xf]
    %v5969 = vld [vmem:[#allocation11 + $0x10c] sm:$0xf]
    %v5970 = vld [vmem:[#allocation11 + $0x110] sm:$0xf]
    %v5971 = vld [vmem:[#allocation11 + $0x114] sm:$0xf]
    %v5972 = vld [vmem:[#allocation11 + $0x118] sm:$0xf]
    %v5973 = vld [vmem:[#allocation11 + $0x11c] sm:$0xf]
    %v5974 = vld [vmem:[#allocation11 + $0x120] sm:$0xf]
    %v5975 = vld [vmem:[#allocation11 + $0x124] sm:$0xf]
    %v5976 = vld [vmem:[#allocation11 + $0x128] sm:$0xf]
    %v5977 = vld [vmem:[#allocation11 + $0x12c] sm:$0xf]
    %v5978 = vld [vmem:[#allocation11 + $0x130] sm:$0xf]
    %v5979 = vld [vmem:[#allocation11 + $0x134] sm:$0xf]
    %v5980 = vld [vmem:[#allocation11 + $0x138] sm:$0xf]
    %v5981 = vld [vmem:[#allocation11 + $0x13c] sm:$0xf]
    %v5982 = vld [vmem:[#allocation11 + $0x140] sm:$0xf]
    %v5983 = vld [vmem:[#allocation11 + $0x144] sm:$0xf]
    %v5984 = vld [vmem:[#allocation11 + $0x148] sm:$0xf]
    %v5985 = vld [vmem:[#allocation11 + $0x14c] sm:$0xf]
    %v5986 = vld [vmem:[#allocation11 + $0x150] sm:$0xf]
    %v5987 = vld [vmem:[#allocation11 + $0x154] sm:$0xf]
    %v5988 = vld [vmem:[#allocation11 + $0x158] sm:$0xf]
    %v5989 = vld [vmem:[#allocation11 + $0x15c] sm:$0xf]
    %v5990 = vld [vmem:[#allocation11 + $0x160] sm:$0xf]
    %v5991 = vld [vmem:[#allocation11 + $0x164] sm:$0xf]
    %v5992 = vld [vmem:[#allocation11 + $0x168] sm:$0xf]
    %v5993 = vld [vmem:[#allocation11 + $0x16c] sm:$0xf]
    %v5994 = vld [vmem:[#allocation11 + $0x170] sm:$0xf]
    %v5995 = vld [vmem:[#allocation11 + $0x174] sm:$0xf]
    %v5996 = vld [vmem:[#allocation11 + $0x178] sm:$0xf]
    %v5997 = vld [vmem:[#allocation11 + $0x17c] sm:$0xf]
    %v5998 = vld [vmem:[#allocation11 + $0x180] sm:$0xf]
    %v5999 = vld [vmem:[#allocation11 + $0x184] sm:$0xf]
    %v6000 = vld [vmem:[#allocation11 + $0x188] sm:$0xf]
    %v6001 = vld [vmem:[#allocation11 + $0x18c] sm:$0xf]
    %v6002 = vld [vmem:[#allocation11 + $0x190] sm:$0xf]
    %v6003 = vld [vmem:[#allocation11 + $0x194] sm:$0xf]
    %v6004 = vld [vmem:[#allocation11 + $0x198] sm:$0xf]
    %v6005 = vld [vmem:[#allocation11 + $0x19c] sm:$0xf]
    %v6006 = vld [vmem:[#allocation11 + $0x1a0] sm:$0xf]
    %v6007 = vld [vmem:[#allocation11 + $0x1a4] sm:$0xf]
    %v6008 = vld [vmem:[#allocation11 + $0x1a8] sm:$0xf]
    %v6009 = vld [vmem:[#allocation11 + $0x1ac] sm:$0xf]
    %v6010 = vld [vmem:[#allocation11 + $0x1b0] sm:$0xf]
    %v6011 = vld [vmem:[#allocation11 + $0x1b4] sm:$0xf]
    %v6012 = vld [vmem:[#allocation11 + $0x1b8] sm:$0xf]
    %v6013 = vld [vmem:[#allocation11 + $0x1bc] sm:$0xf]
    %v6014 = vld [vmem:[#allocation11 + $0x1c0] sm:$0xf]
    %v6015 = vld [vmem:[#allocation11 + $0x1c4] sm:$0xf]
    %v6016 = vld [vmem:[#allocation11 + $0x1c8] sm:$0xf]
    %v6017 = vld [vmem:[#allocation11 + $0x1cc] sm:$0xf]
    %v6018 = vld [vmem:[#allocation11 + $0x1d0] sm:$0xf]
    %v6019 = vld [vmem:[#allocation11 + $0x1d4] sm:$0xf]
    %v6020 = vld [vmem:[#allocation11 + $0x1d8] sm:$0xf]
    %v6021 = vld [vmem:[#allocation11 + $0x1dc] sm:$0xf]
    %v6022 = vld [vmem:[#allocation11 + $0x1e0] sm:$0xf]
    %v6023 = vld [vmem:[#allocation11 + $0x1e4] sm:$0xf]
    %v6024 = vld [vmem:[#allocation11 + $0x1e8] sm:$0xf]
    %v6025 = vld [vmem:[#allocation11 + $0x1ec] sm:$0xf]
    %v6026 = vld [vmem:[#allocation11 + $0x1f0] sm:$0xf]
    %v6027 = vld [vmem:[#allocation11 + $0x1f4] sm:$0xf]
    %v6028 = vld [vmem:[#allocation11 + $0x1f8] sm:$0xf]
    %v6029 = vld [vmem:[#allocation11 + $0x1fc] sm:$0xf]
    %v6031 = vlaneseq
    %v6032 = vshrl.u32 %v6031, 7
    %v6033 = vsub.s32 0, %v6032
    %v6034 = vrot.slane %v131, %v6033
    %v6164 = vunpack.c.l.b16 %v5902
    %v6165 = vunpack.c.l.b16 %v5903
    %v6166 = vunpack.c.l.b16 %v5904
    %v6167 = vunpack.c.l.b16 %v5905
    %v6168 = vunpack.c.l.b16 %v5906
    %v6169 = vunpack.c.l.b16 %v5907
    %v6170 = vunpack.c.l.b16 %v5908
    %v6171 = vunpack.c.l.b16 %v5909
    %v6172 = vunpack.c.l.b16 %v5910
    %v6173 = vunpack.c.l.b16 %v5911
    %v6174 = vunpack.c.l.b16 %v5912
    %v6175 = vunpack.c.l.b16 %v5913
    %v6176 = vunpack.c.l.b16 %v5914
    %v6177 = vunpack.c.l.b16 %v5915
    %v6178 = vunpack.c.l.b16 %v5916
    %v6179 = vunpack.c.l.b16 %v5917
    %v6180 = vunpack.c.l.b16 %v5918
    %v6181 = vunpack.c.l.b16 %v5919
    %v6182 = vunpack.c.l.b16 %v5920
    %v6183 = vunpack.c.l.b16 %v5921
    %v6184 = vunpack.c.l.b16 %v5922
    %v6185 = vunpack.c.l.b16 %v5923
    %v6186 = vunpack.c.l.b16 %v5924
    %v6187 = vunpack.c.l.b16 %v5925
    %v6188 = vunpack.c.l.b16 %v5926
    %v6189 = vunpack.c.l.b16 %v5927
    %v6190 = vunpack.c.l.b16 %v5928
    %v6191 = vunpack.c.l.b16 %v5929
    %v6192 = vunpack.c.l.b16 %v5930
    %v6193 = vunpack.c.l.b16 %v5931
    %v6194 = vunpack.c.l.b16 %v5932
    %v6195 = vunpack.c.l.b16 %v5933
    %v6196 = vunpack.c.l.b16 %v5934
    %v6197 = vunpack.c.l.b16 %v5935
    %v6198 = vunpack.c.l.b16 %v5936
    %v6199 = vunpack.c.l.b16 %v5937
    %v6200 = vunpack.c.l.b16 %v5938
    %v6201 = vunpack.c.l.b16 %v5939
    %v6202 = vunpack.c.l.b16 %v5940
    %v6203 = vunpack.c.l.b16 %v5941
    %v6204 = vunpack.c.l.b16 %v5942
    %v6205 = vunpack.c.l.b16 %v5943
    %v6206 = vunpack.c.l.b16 %v5944
    %v6207 = vunpack.c.l.b16 %v5945
    %v6208 = vunpack.c.l.b16 %v5946
    %v6209 = vunpack.c.l.b16 %v5947
    %v6210 = vunpack.c.l.b16 %v5948
    %v6211 = vunpack.c.l.b16 %v5949
    %v6212 = vunpack.c.l.b16 %v5950
    %v6213 = vunpack.c.l.b16 %v5951
    %v6214 = vunpack.c.l.b16 %v5952
    %v6215 = vunpack.c.l.b16 %v5953
    %v6216 = vunpack.c.l.b16 %v5954
    %v6217 = vunpack.c.l.b16 %v5955
    %v6218 = vunpack.c.l.b16 %v5956
    %v6219 = vunpack.c.l.b16 %v5957
    %v6220 = vunpack.c.l.b16 %v5958
    %v6221 = vunpack.c.l.b16 %v5959
    %v6222 = vunpack.c.l.b16 %v5960
    %v6223 = vunpack.c.l.b16 %v5961
    %v6224 = vunpack.c.l.b16 %v5962
    %v6225 = vunpack.c.l.b16 %v5963
    %v6226 = vunpack.c.l.b16 %v5964
    %v6227 = vunpack.c.l.b16 %v5965
    %v6228 = vunpack.c.l.b16 %v5966
    %v6229 = vunpack.c.l.b16 %v5967
    %v6230 = vunpack.c.l.b16 %v5968
    %v6231 = vunpack.c.l.b16 %v5969
    %v6232 = vunpack.c.l.b16 %v5970
    %v6233 = vunpack.c.l.b16 %v5971
    %v6234 = vunpack.c.l.b16 %v5972
    %v6235 = vunpack.c.l.b16 %v5973
    %v6236 = vunpack.c.l.b16 %v5974
    %v6237 = vunpack.c.l.b16 %v5975
    %v6238 = vunpack.c.l.b16 %v5976
    %v6239 = vunpack.c.l.b16 %v5977
    %v6240 = vunpack.c.l.b16 %v5978
    %v6241 = vunpack.c.l.b16 %v5979
    %v6242 = vunpack.c.l.b16 %v5980
    %v6243 = vunpack.c.l.b16 %v5981
    %v6244 = vunpack.c.l.b16 %v5982
    %v6245 = vunpack.c.l.b16 %v5983
    %v6246 = vunpack.c.l.b16 %v5984
    %v6247 = vunpack.c.l.b16 %v5985
    %v6248 = vunpack.c.l.b16 %v5986
    %v6249 = vunpack.c.l.b16 %v5987
    %v6250 = vunpack.c.l.b16 %v5988
    %v6251 = vunpack.c.l.b16 %v5989
    %v6252 = vunpack.c.l.b16 %v5990
    %v6253 = vunpack.c.l.b16 %v5991
    %v6254 = vunpack.c.l.b16 %v5992
    %v6255 = vunpack.c.l.b16 %v5993
    %v6256 = vunpack.c.l.b16 %v5994
    %v6257 = vunpack.c.l.b16 %v5995
    %v6258 = vunpack.c.l.b16 %v5996
    %v6259 = vunpack.c.l.b16 %v5997
    %v6260 = vunpack.c.l.b16 %v5998
    %v6261 = vunpack.c.l.b16 %v5999
    %v6262 = vunpack.c.l.b16 %v6000
    %v6263 = vunpack.c.l.b16 %v6001
    %v6264 = vunpack.c.l.b16 %v6002
    %v6265 = vunpack.c.l.b16 %v6003
    %v6266 = vunpack.c.l.b16 %v6004
    %v6267 = vunpack.c.l.b16 %v6005
    %v6268 = vunpack.c.l.b16 %v6006
    %v6269 = vunpack.c.l.b16 %v6007
    %v6270 = vunpack.c.l.b16 %v6008
    %v6271 = vunpack.c.l.b16 %v6009
    %v6272 = vunpack.c.l.b16 %v6010
    %v6273 = vunpack.c.l.b16 %v6011
    %v6274 = vunpack.c.l.b16 %v6012
    %v6275 = vunpack.c.l.b16 %v6013
    %v6276 = vunpack.c.l.b16 %v6014
    %v6277 = vunpack.c.l.b16 %v6015
    %v6278 = vunpack.c.l.b16 %v6016
    %v6279 = vunpack.c.l.b16 %v6017
    %v6280 = vunpack.c.l.b16 %v6018
    %v6281 = vunpack.c.l.b16 %v6019
    %v6282 = vunpack.c.l.b16 %v6020
    %v6283 = vunpack.c.l.b16 %v6021
    %v6284 = vunpack.c.l.b16 %v6022
    %v6285 = vunpack.c.l.b16 %v6023
    %v6286 = vunpack.c.l.b16 %v6024
    %v6287 = vunpack.c.l.b16 %v6025
    %v6288 = vunpack.c.l.b16 %v6026
    %v6289 = vunpack.c.l.b16 %v6027
    %v6290 = vunpack.c.l.b16 %v6028
    %v6291 = vunpack.c.l.b16 %v6029
    %v6292 = vpack.c.b16 %v6165, %v6164
    %v6293 = vpack.c.b16 %v6167, %v6166
    %v6294 = vpack.c.b16 %v6169, %v6168
    %v6295 = vpack.c.b16 %v6171, %v6170
    %v6296 = vpack.c.b16 %v6173, %v6172
    %v6297 = vpack.c.b16 %v6175, %v6174
    %v6298 = vpack.c.b16 %v6177, %v6176
    %v6299 = vpack.c.b16 %v6179, %v6178
    %v6300 = vpack.c.b16 %v6181, %v6180
    %v6301 = vpack.c.b16 %v6183, %v6182
    %v6302 = vpack.c.b16 %v6185, %v6184
    %v6303 = vpack.c.b16 %v6187, %v6186
    %v6304 = vpack.c.b16 %v6189, %v6188
    %v6305 = vpack.c.b16 %v6191, %v6190
    %v6306 = vpack.c.b16 %v6193, %v6192
    %v6307 = vpack.c.b16 %v6195, %v6194
    %v6308 = vpack.c.b16 %v6197, %v6196
    %v6309 = vpack.c.b16 %v6199, %v6198
    %v6310 = vpack.c.b16 %v6201, %v6200
    %v6311 = vpack.c.b16 %v6203, %v6202
    %v6312 = vpack.c.b16 %v6205, %v6204
    %v6313 = vpack.c.b16 %v6207, %v6206
    %v6314 = vpack.c.b16 %v6209, %v6208
    %v6315 = vpack.c.b16 %v6211, %v6210
    %v6316 = vpack.c.b16 %v6213, %v6212
    %v6317 = vpack.c.b16 %v6215, %v6214
    %v6318 = vpack.c.b16 %v6217, %v6216
    %v6319 = vpack.c.b16 %v6219, %v6218
    %v6320 = vpack.c.b16 %v6221, %v6220
    %v6321 = vpack.c.b16 %v6223, %v6222
    %v6322 = vpack.c.b16 %v6225, %v6224
    %v6323 = vpack.c.b16 %v6227, %v6226
    %v6324 = vpack.c.b16 %v6229, %v6228
    %v6325 = vpack.c.b16 %v6231, %v6230
    %v6326 = vpack.c.b16 %v6233, %v6232
    %v6327 = vpack.c.b16 %v6235, %v6234
    %v6328 = vpack.c.b16 %v6237, %v6236
    %v6329 = vpack.c.b16 %v6239, %v6238
    %v6330 = vpack.c.b16 %v6241, %v6240
    %v6331 = vpack.c.b16 %v6243, %v6242
    %v6332 = vpack.c.b16 %v6245, %v6244
    %v6333 = vpack.c.b16 %v6247, %v6246
    %v6334 = vpack.c.b16 %v6249, %v6248
    %v6335 = vpack.c.b16 %v6251, %v6250
    %v6336 = vpack.c.b16 %v6253, %v6252
    %v6337 = vpack.c.b16 %v6255, %v6254
    %v6338 = vpack.c.b16 %v6257, %v6256
    %v6339 = vpack.c.b16 %v6259, %v6258
    %v6340 = vpack.c.b16 %v6261, %v6260
    %v6341 = vpack.c.b16 %v6263, %v6262
    %v6342 = vpack.c.b16 %v6265, %v6264
    %v6343 = vpack.c.b16 %v6267, %v6266
    %v6344 = vpack.c.b16 %v6269, %v6268
    %v6345 = vpack.c.b16 %v6271, %v6270
    %v6346 = vpack.c.b16 %v6273, %v6272
    %v6347 = vpack.c.b16 %v6275, %v6274
    %v6348 = vpack.c.b16 %v6277, %v6276
    %v6349 = vpack.c.b16 %v6279, %v6278
    %v6350 = vpack.c.b16 %v6281, %v6280
    %v6351 = vpack.c.b16 %v6283, %v6282
    %v6352 = vpack.c.b16 %v6285, %v6284
    %v6353 = vpack.c.b16 %v6287, %v6286
    %v6354 = vpack.c.b16 %v6289, %v6288
    %v6355 = vpack.c.b16 %v6291, %v6290
    %6420 = vmatprep.subr.bf16.mxu0 0
    %6421 = vmatpush1.bf16.msra.mxu0 %v6292
    %6422 = vmatprep.subr.bf16.mxu0 0
    %6423 = vmatpush1.bf16.msra.mxu0 %v6293
    %6424 = vmatprep.subr.bf16.mxu0 0
    %6425 = vmatpush1.bf16.msra.mxu0 %v6294
    %6426 = vmatprep.subr.bf16.mxu0 0
    %6427 = vmatpush1.bf16.msra.mxu0 %v6295
    %6428 = vmatprep.subr.bf16.mxu0 0
    %6429 = vmatpush1.bf16.msra.mxu0 %v6296
    %6430 = vmatprep.subr.bf16.mxu0 0
    %6431 = vmatpush1.bf16.msra.mxu0 %v6297
    %6432 = vmatprep.subr.bf16.mxu0 0
    %6433 = vmatpush1.bf16.msra.mxu0 %v6298
    %6434 = vmatprep.subr.bf16.mxu0 0
    %6435 = vmatpush1.bf16.msra.mxu0 %v6299
    %6436 = vmatprep.subr.bf16.mxu0 0
    %6437 = vmatpush1.bf16.msra.mxu0 %v6300
    %6438 = vmatprep.subr.bf16.mxu0 0
    %6439 = vmatpush1.bf16.msra.mxu0 %v6301
    %6440 = vmatprep.subr.bf16.mxu0 0
    %6441 = vmatpush1.bf16.msra.mxu0 %v6302
    %6442 = vmatprep.subr.bf16.mxu0 0
    %6443 = vmatpush1.bf16.msra.mxu0 %v6303
    %6444 = vmatprep.subr.bf16.mxu0 0
    %6445 = vmatpush1.bf16.msra.mxu0 %v6304
    %6446 = vmatprep.subr.bf16.mxu0 0
    %6447 = vmatpush1.bf16.msra.mxu0 %v6305
    %6448 = vmatprep.subr.bf16.mxu0 0
    %6449 = vmatpush1.bf16.msra.mxu0 %v6306
    %6450 = vmatprep.subr.bf16.mxu0 0
    %6451 = vmatpush1.bf16.msra.mxu0 %v6307
    %6452 = vmatprep.mubr.bf16.mxu0 %v5895
    %6453 = vmatmul.mubr.bf16.gmra.mrb[0].mxu0 %v5894
    %v6454 = vpop.f32.mrb[0].mxu0
    %v6455 = vadd.f32 %v6034, %v6454
    %v6456 = vpop.f32.mrb[0].mxu0
    %v6457 = vpop.f32.mrb[0].mxu0
    %v6458 = vadd.f32 %v6034, %v6457
    %v6459 = vpop.f32.mrb[0].mxu0
    %6460 = vdwg.mxu0
    %6461 = vmatprep.subr.bf16.mxu0 0
    %6462 = vmatpush1.bf16.msra.mxu0 %v6308
    %6463 = vmatprep.subr.bf16.mxu0 0
    %6464 = vmatpush1.bf16.msra.mxu0 %v6309
    %6465 = vmatprep.subr.bf16.mxu0 0
    %6466 = vmatpush1.bf16.msra.mxu0 %v6310
    %6467 = vmatprep.subr.bf16.mxu0 0
    %6468 = vmatpush1.bf16.msra.mxu0 %v6311
    %6469 = vmatprep.subr.bf16.mxu0 0
    %6470 = vmatpush1.bf16.msra.mxu0 %v6312
    %6471 = vmatprep.subr.bf16.mxu0 0
    %6472 = vmatpush1.bf16.msra.mxu0 %v6313
    %6473 = vmatprep.subr.bf16.mxu0 0
    %6474 = vmatpush1.bf16.msra.mxu0 %v6314
    %6475 = vmatprep.subr.bf16.mxu0 0
    %6476 = vmatpush1.bf16.msra.mxu0 %v6315
    %6477 = vmatprep.subr.bf16.mxu0 0
    %6478 = vmatpush1.bf16.msra.mxu0 %v6316
    %6479 = vmatprep.subr.bf16.mxu0 0
    %6480 = vmatpush1.bf16.msra.mxu0 %v6317
    %6481 = vmatprep.subr.bf16.mxu0 0
    %6482 = vmatpush1.bf16.msra.mxu0 %v6318
    %6483 = vmatprep.subr.bf16.mxu0 0
    %6484 = vmatpush1.bf16.msra.mxu0 %v6319
    %6485 = vmatprep.subr.bf16.mxu0 0
    %6486 = vmatpush1.bf16.msra.mxu0 %v6320
    %6487 = vmatprep.subr.bf16.mxu0 0
    %6488 = vmatpush1.bf16.msra.mxu0 %v6321
    %6489 = vmatprep.subr.bf16.mxu0 0
    %6490 = vmatpush1.bf16.msra.mxu0 %v6322
    %6491 = vmatprep.subr.bf16.mxu0 0
    %6492 = vmatpush1.bf16.msra.mxu0 %v6323
    %6493 = vmatprep.mubr.bf16.mxu0 %v5897
    %6494 = vmatmul.mubr.bf16.gmra.mrb[0].mxu0 %v5896
    %v6495 = vpop.f32.mrb[0].mxu0
    %v6496 = vadd.f32 %v6455, %v6495
    %v6497 = vpop.f32.mrb[0].mxu0
    %v6498 = vpop.f32.mrb[0].mxu0
    %v6499 = vadd.f32 %v6458, %v6498
    %v6500 = vpop.f32.mrb[0].mxu0
    %6501 = vdwg.mxu0
    %6502 = vmatprep.subr.bf16.mxu0 0
    %6503 = vmatpush1.bf16.msra.mxu0 %v6324
    %6504 = vmatprep.subr.bf16.mxu0 0
    %6505 = vmatpush1.bf16.msra.mxu0 %v6325
    %6506 = vmatprep.subr.bf16.mxu0 0
    %6507 = vmatpush1.bf16.msra.mxu0 %v6326
    %6508 = vmatprep.subr.bf16.mxu0 0
    %6509 = vmatpush1.bf16.msra.mxu0 %v6327
    %6510 = vmatprep.subr.bf16.mxu0 0
    %6511 = vmatpush1.bf16.msra.mxu0 %v6328
    %6512 = vmatprep.subr.bf16.mxu0 0
    %6513 = vmatpush1.bf16.msra.mxu0 %v6329
    %6514 = vmatprep.subr.bf16.mxu0 0
    %6515 = vmatpush1.bf16.msra.mxu0 %v6330
    %6516 = vmatprep.subr.bf16.mxu0 0
    %6517 = vmatpush1.bf16.msra.mxu0 %v6331
    %6518 = vmatprep.subr.bf16.mxu0 0
    %6519 = vmatpush1.bf16.msra.mxu0 %v6332
    %6520 = vmatprep.subr.bf16.mxu0 0
    %6521 = vmatpush1.bf16.msra.mxu0 %v6333
    %6522 = vmatprep.subr.bf16.mxu0 0
    %6523 = vmatpush1.bf16.msra.mxu0 %v6334
    %6524 = vmatprep.subr.bf16.mxu0 0
    %6525 = vmatpush1.bf16.msra.mxu0 %v6335
    %6526 = vmatprep.subr.bf16.mxu0 0
    %6527 = vmatpush1.bf16.msra.mxu0 %v6336
    %6528 = vmatprep.subr.bf16.mxu0 0
    %6529 = vmatpush1.bf16.msra.mxu0 %v6337
    %6530 = vmatprep.subr.bf16.mxu0 0
    %6531 = vmatpush1.bf16.msra.mxu0 %v6338
    %6532 = vmatprep.subr.bf16.mxu0 0
    %6533 = vmatpush1.bf16.msra.mxu0 %v6339
    %6534 = vmatprep.mubr.bf16.mxu0 %v5899
    %6535 = vmatmul.mubr.bf16.gmra.mrb[0].mxu0 %v5898
    %v6536 = vpop.f32.mrb[0].mxu0
    %v6537 = vadd.f32 %v6496, %v6536
    %v6538 = vpop.f32.mrb[0].mxu0
    %v6539 = vpop.f32.mrb[0].mxu0
    %v6540 = vadd.f32 %v6499, %v6539
    %v6541 = vpop.f32.mrb[0].mxu0
    %6542 = vdwg.mxu0
    %6543 = vmatprep.subr.bf16.mxu0 0
    %6544 = vmatpush1.bf16.msra.mxu0 %v6340
    %6545 = vmatprep.subr.bf16.mxu0 0
    %6546 = vmatpush1.bf16.msra.mxu0 %v6341
    %6547 = vmatprep.subr.bf16.mxu0 0
    %6548 = vmatpush1.bf16.msra.mxu0 %v6342
    %6549 = vmatprep.subr.bf16.mxu0 0
    %6550 = vmatpush1.bf16.msra.mxu0 %v6343
    %6551 = vmatprep.subr.bf16.mxu0 0
    %6552 = vmatpush1.bf16.msra.mxu0 %v6344
    %6553 = vmatprep.subr.bf16.mxu0 0
    %6554 = vmatpush1.bf16.msra.mxu0 %v6345
    %6555 = vmatprep.subr.bf16.mxu0 0
    %6556 = vmatpush1.bf16.msra.mxu0 %v6346
    %6557 = vmatprep.subr.bf16.mxu0 0
    %6558 = vmatpush1.bf16.msra.mxu0 %v6347
    %6559 = vmatprep.subr.bf16.mxu0 0
    %6560 = vmatpush1.bf16.msra.mxu0 %v6348
    %6561 = vmatprep.subr.bf16.mxu0 0
    %6562 = vmatpush1.bf16.msra.mxu0 %v6349
    %6563 = vmatprep.subr.bf16.mxu0 0
    %6564 = vmatpush1.bf16.msra.mxu0 %v6350
    %6565 = vmatprep.subr.bf16.mxu0 0
    %6566 = vmatpush1.bf16.msra.mxu0 %v6351
    %6567 = vmatprep.subr.bf16.mxu0 0
    %6568 = vmatpush1.bf16.msra.mxu0 %v6352
    %6569 = vmatprep.subr.bf16.mxu0 0
    %6570 = vmatpush1.bf16.msra.mxu0 %v6353
    %6571 = vmatprep.subr.bf16.mxu0 0
    %6572 = vmatpush1.bf16.msra.mxu0 %v6354
    %6573 = vmatprep.subr.bf16.mxu0 0
    %6574 = vmatpush1.bf16.msra.mxu0 %v6355
    %6575 = vmatprep.mubr.bf16.mxu0 %v5901
    %6576 = vmatmul.mubr.bf16.gmra.mrb[0].mxu0 %v5900
    %v6577 = vpop.f32.mrb[0].mxu0
    %v6578 = vadd.f32 %v6537, %v6577
    %v6579 = vpop.f32.mrb[0].mxu0
    %v6580 = vpop.f32.mrb[0].mxu0
    %v6581 = vadd.f32 %v6540, %v6580
    %v6582 = vpop.f32.mrb[0].mxu0
    %6583 = vdwg.mxu0
    %v6584 = vlaneseq
    %v6585 = vand.u32 %v6584, 127
    %v6586 = vmax.f32 %v6578, 0.0
    %v6587 = vmax.f32 %v6581, 0.0
    %v6588 = vand.u32 2147483647, %v6578
    %v6589 = vand.u32 2147483647, %v6581
    %v6590 = vsub.f32 0.0, %v6588
    %v6591 = vsub.f32 0.0, %v6589
    %v6592 = vmul.f32 %v6590, 1.442695
    %v6593 = vpow.pop %v6592
    %v6594 = vmul.f32 %v6591, 1.442695
    %v6595 = vpow.pop %v6594
    %v6596 = vadd.f32 %v6593, 1.0
    %v6597 = vlog2.pop %v6596
    %v6598 = vmul.f32 %v6597, 0.6931472
    %v6599 = vmul.f32 -0.5, %v6593
    %v6600 = vadd.f32 %v6599, 1.0
    %v6601 = vmul.f32 %v6600, %v6593
    %v6602 = vand.u32 2147483647, %v6593
    %vm6603 = vcmp.lt.f32.partialorder %v6602, 0.0004427343
    %v6604 = vsel %vm6603, %v6601, %v6598
    %v6605 = vadd.f32 %v6595, 1.0
    %v6606 = vlog2.pop %v6605
    %v6607 = vmul.f32 %v6606, 0.6931472
    %v6608 = vmul.f32 -0.5, %v6595
    %v6609 = vadd.f32 %v6608, 1.0
    %v6610 = vmul.f32 %v6609, %v6595
    %v6611 = vand.u32 2147483647, %v6595
    %vm6612 = vcmp.lt.f32.partialorder %v6611, 0.0004427343
    %v6613 = vsel %vm6612, %v6610, %v6607
    %v6614 = vadd.f32 %v6586, %v6604
    %v6615 = vadd.f32 %v6587, %v6613
    %vm6616 = vcmp.lt.s32.totalorder %v6585, 64
    %v6617 = vadd.f32 %v6614, 1e-07
    %v6618 = vadd.f32 %v6615, 1e-07
    %v6619 = vsel %vm6616, %v6578, %v6617
    %v6620 = vsel %vm6616, %v6581, %v6618
    %6621 = vst [vmem:[#allocation14] sm:$0xff] %v6619
    %6622 = vst [vmem:[#allocation14 + $0x8] sm:$0xff] %v6620
    // Predicated region
    $region58: #{tpu_custom_call.1} parent=1 // pred_check
      _
    $region59: #{tpu_custom_call.1} parent=1 // pred_check_branch
      %6624 = sbr.rel (0) target = $region61
    $region60: #{tpu_custom_call.1} parent=1 // pred_region
      %s6626 = ssub.s32 256, 256
      %6627 = vsyncadd [#allocation4], %s6626
      %s6628 = sshll.u32 [#allocation14], 4
      %s6629 = int_to_ptr.vmem [resolvable:$true] %s6628
      %6634 = dma.vmem_to_hbm [thread:$0]  %s6629, 256, %s7, [#allocation4], 128, 128, 8
    $region61: #{tpu_custom_call.1} parent=1 // pred_fallthru
      _
    // Predicated region
    $region62: #{tpu_custom_call.1} parent=1 // pred_check
      _
    $region63: #{tpu_custom_call.1} parent=1 // pred_check_branch
      %6636 = sbr.rel (0) target = $region65
    $region64: #{tpu_custom_call.1} parent=1 // pred_region
      %6637 = dma.done [#allocation4], 256
    $region65: #{tpu_custom_call.1} parent=1 // pred_fallthru
      _
    %6638 = vsyncpa [#allocation3], 1
    %6639 = vsyncpa [#allocation6], 1
    %6640 = vsyncpa [#allocation9], 1
    %6641 = vsyncpa [#allocation12], 1
    %6642 = vsyncpa [#allocation4], 1

</llo_original>
